<compile_context>
chip_gen: v6e
topology: v6e:2x2x1
jax: 0.10.0
libtpu: 0.0.40
codegen_flags: <defaults>
</compile_context>

<pallas_src>
import jax
import jax.numpy as jnp
from jax.experimental import pallas as pl
from jax.experimental.pallas import tpu as pltpu

EPS = 1e-5


def _round_up(x, m):
    return (x + m - 1) // m * m


def cnn_forward(x_nchw, params):
    """NCHW in / NCHW out, matching the PyTorch module's forward."""
    N, Cin, H, W = x_nchw.shape
    assert Cin == 3, "conv1 expects 3 input channels"
    # Fused pooling logic below is specialized to the demo geometry.
    assert H == 48 and W == 16, "kernel specialized to 48x16 inputs"

    C1, C2 = 64, 128
    H2, W2 = H // 6, W // 2          # after maxpool1: 8 x 8
    H3, W3 = H2 - 2, W2 - 2          # after conv3:    6 x 6
    H4, W4 = H3 // 6, W3 // 2        # after maxpool2: 1 x 3

    # Padded slab allocations (conv inputs): width rounded to a multiple of 8,
    # plus one extra zero row so every 3x3-tap row-slice of the flattened slab
    # stays in bounds (over-reads only land in masked garbage columns).
    Hs2, Ws2 = (H2 + 2) + 1, _round_up(W2 + 2, 8)   # conv2 input (pad=1): 11x16
    Hs3, Ws3 = H2 + 1,       _round_up(W2, 8)       # conv3 input (pad=0):  9x 8
    Hs4, Ws4 = (H3 + 2) + 1, _round_up(W3 + 2, 8)   # conv4 input (pad=1):  9x 8
    Hs5, Ws5 = (H4 + 2) + 1, _round_up(W4 + 2, 8)   # conv5 input (pad=1):  4x 8

    # ---- wrapper glue: NCHW -> NHWC, im2col for conv1 (K = 9*3 = 27) --------
    x = jnp.transpose(x_nchw, (0, 2, 3, 1)).astype(jnp.float32)      # (N,H,W,3)
    xp = jnp.pad(x, ((0, 0), (1, 1), (1, 1), (0, 0)))
    taps1 = [xp[:, kh:kh + H, kw:kw + W, :] for kh in range(3) for kw in range(3)]
    x1 = jnp.concatenate(taps1, axis=-1).reshape(N, H * W, 9 * Cin)  # (N,768,27)

    def kernel(x1_ref, w1_ref, w2_ref, w3_ref, w4_ref, w5_ref,
               g1_ref, b1_ref, g2_ref, b2_ref, g3_ref, b3_ref,
               o_ref,
               a1_ref, slab2_ref, slab3_ref, slab4_ref, slab5_ref, pool_ref):
        f32 = jnp.float32
        HW = H * W

        def bn_coeffs(s, ss, count, g_ref, b_ref):
            mean = s / count
            var = ss / count - mean * mean            # biased (training-mode BN)
            scale = g_ref[...] * jax.lax.rsqrt(var + EPS)
            shift = b_ref[...] - mean * scale
            return scale, shift

        def masked_stats(y, ws, wo):
            # Per-channel sum / sum-sq over valid columns (c < wo) of a wide
            # conv output whose rows are laid out as h*ws + c.
            col = jax.lax.broadcasted_iota(jnp.int32, (y.shape[0], 1), 0) % ws
            ym = jnp.where(col < wo, y, 0.0)
            return (jnp.sum(ym, axis=0, keepdims=True),
                    jnp.sum(ym * ym, axis=0, keepdims=True))

        def wide_conv(pf2d, w_ref, ho, ws):
            # pf2d: (Hs*Ws, Cin) flattened zero-padded slab of ONE sample.
            # Single MXU matmul: 9 taps concatenated along K (K = 9*Cin).
            taps = []
            for kh in range(3):
                for kw in range(3):
                    s0 = kh * ws + kw
                    taps.append(pf2d[s0:s0 + ho * ws, :])
            lhs = jnp.concatenate(taps, axis=-1)                   # (ho*ws, 9*Cin)
            return jnp.dot(lhs, w_ref[...], preferred_element_type=f32)

        def conv_bn_relu(slab_ref, w_ref, g_ref, b_ref, hs, ws, ho, wo, cin):
            wides = []
            s = jnp.zeros((1, C2), f32)
            ss = jnp.zeros((1, C2), f32)
            for n in range(N):
                pf2d = slab_ref[n].reshape(hs * ws, cin)
                y = wide_conv(pf2d, w_ref, ho, ws)                 # (ho*ws, 128)
                si, ssi = masked_stats(y, ws, wo)
                s, ss = s + si, ss + ssi
                wides.append(y)
            scale, shift = bn_coeffs(s, ss, float(N * ho * wo), g_ref, b_ref)
            return [jnp.maximum(w * scale + shift, 0.0) for w in wides]

        # Zero the slabs once: zero borders implement the conv padding.
        slab2_ref[...] = jnp.zeros_like(slab2_ref)
        slab3_ref[...] = jnp.zeros_like(slab3_ref)
        slab4_ref[...] = jnp.zeros_like(slab4_ref)
        slab5_ref[...] = jnp.zeros_like(slab5_ref)

        # ---- conv1 (im2col'd at boundary) + bn + relu ------------------------
        ys = []
        s = jnp.zeros((1, C1), f32)
        ss = jnp.zeros((1, C1), f32)
        for n in range(N):
            y = jnp.dot(x1_ref[n], w1_ref[...], preferred_element_type=f32)
            s = s + jnp.sum(y, axis=0, keepdims=True)
            ss = ss + jnp.sum(y * y, axis=0, keepdims=True)
            ys.append(y)                                           # (H*W, 64)
        scale, shift = bn_coeffs(s, ss, float(N * HW), g1_ref, b1_ref)
        for n in range(N):
            a1_ref[n * HW:(n + 1) * HW, :] = jnp.maximum(ys[n] * scale + shift, 0.0)

        # ---- maxpool [6,2]: width pairs via stride-2 sublane reads, height
        #      groups via a tile-preserving fold + unrolled maximum. ----------
        even = a1_ref[pl.ds(0, N * HW // 2, 2), :]
        odd = a1_ref[pl.ds(1, N * HW // 2, 2), :]
        wpair = jnp.maximum(even, odd)                             # (N*H*W2, 64)
        wpair = wpair.reshape(N * H2, 6, W2, C1)
        pooled = wpair[:, 0, :, :]
        for dh in range(1, 6):
            pooled = jnp.maximum(pooled, wpair[:, dh, :, :])       # (N*H2, W2, 64)
        slab2_ref[:, 1:1 + H2, 1:1 + W2, :] = pooled.reshape(N, H2, W2, C1)

        # ---- conv2 + bn2 + relu ----------------------------------------------
        z2 = conv_bn_relu(slab2_ref, w2_ref, g2_ref, b2_ref, Hs2, Ws2, H2, W2, C1)
        for n in range(N):
            slab3_ref[n, 0:H2, 0:W2, :] = z2[n].reshape(H2, Ws2, C2)[:, 0:W2, :]

        # ---- conv3 (no padding) + bn2 + relu ---------------------------------
        z3 = conv_bn_relu(slab3_ref, w3_ref, g2_ref, b2_ref, Hs3, Ws3, H3, W3, C2)
        for n in range(N):
            slab4_ref[n, 1:1 + H3, 1:1 + W3, :] = z3[n].reshape(H3, Ws3, C2)[:, 0:W3, :]

        # ---- conv4 + bn2 + relu + maxpool [6,2] ------------------------------
        z4 = conv_bn_relu(slab4_ref, w4_ref, g2_ref, b2_ref, Hs4, Ws4, H3, W3, C2)
        for n in range(N):
            r3 = z4[n].reshape(H3, Ws4, C2)                        # (6, 8, 128)
            hmax = r3[0]
            for dh in range(1, H3):                                # pool kh = 6 = H3
                hmax = jnp.maximum(hmax, r3[dh])                   # (8, 128)
            pool_ref[...] = hmax
            colmax = jnp.maximum(pool_ref[pl.ds(0, W4, 2), :],
                                 pool_ref[pl.ds(1, W4, 2), :])     # (3, 128)
            slab5_ref[n, 1:1 + H4, 1:1 + W4, :] = colmax.reshape(H4, W4, C2)

        # ---- conv5 + bn3 + relu -> output (NHWC, lane-dense 128 channels) ---
        z5 = conv_bn_relu(slab5_ref, w5_ref, g3_ref, b3_ref, Hs5, Ws5, H4, W4, C2)
        for n in range(N):
            o_ref[n] = z5[n][0:W4, :].reshape(1, W4, C2)

    def full_spec(shape):
        nd = len(shape)
        return pl.BlockSpec(shape, lambda *_: (0,) * nd)

    out_nhwc = pl.pallas_call(
        kernel,
        out_shape=jax.ShapeDtypeStruct((N, 1, W4, C2), jnp.float32),
        grid_spec=pltpu.PrefetchScalarGridSpec(
            num_scalar_prefetch=0,
            grid=(1,),
            in_specs=[
                full_spec((N, H * W, 9 * Cin)),
                full_spec((9 * Cin, C1)),
                full_spec((9 * C1, C2)),
                full_spec((9 * C2, C2)),
                full_spec((9 * C2, C2)),
                full_spec((9 * C2, C2)),
                full_spec((1, C1)), full_spec((1, C1)),
                full_spec((1, C2)), full_spec((1, C2)),
                full_spec((1, C2)), full_spec((1, C2)),
            ],
            out_specs=full_spec((N, 1, W4, C2)),
            scratch_shapes=[
                pltpu.VMEM((N * H * W, C1), jnp.float32),     # conv1 act (pool staging)
                pltpu.VMEM((N, Hs2, Ws2, C1), jnp.float32),   # conv2 padded input slab
                pltpu.VMEM((N, Hs3, Ws3, C2), jnp.float32),   # conv3 input slab
                pltpu.VMEM((N, Hs4, Ws4, C2), jnp.float32),   # conv4 padded input slab
                pltpu.VMEM((N, Hs5, Ws5, C2), jnp.float32),   # conv5 padded input slab
                pltpu.VMEM((Ws4, C2), jnp.float32),           # maxpool2 staging
            ],
        ),
        compiler_params=pltpu.CompilerParams(dimension_semantics=("arbitrary",)),
    )(x1, params["w1"], params["w2"], params["w3"], params["w4"], params["w5"],
      params["g1"], params["be1"], params["g2"], params["be2"],
      params["g3"], params["be3"])

    return jnp.transpose(out_nhwc, (0, 3, 1, 2))                  # NCHW (N,128,1,3)


# -----------------------------------------------------------------------------
# Deterministic synthetic parameters (shapes per __init__; values synthetic).
# -----------------------------------------------------------------------------
def init_params(key):
    ks = jax.random.split(key, 5)

    def conv_w(k, cin, cout):
        fan_in = cin * 9
        w = jax.random.normal(k, (3, 3, cin, cout), jnp.float32) / (fan_in ** 0.5)
        return w.reshape(9 * cin, cout)     # K index = (kh*3 + kw)*cin + ci

    p = {
        "w1": conv_w(ks[0], 3, 64),
        "w2": conv_w(ks[1], 64, 128),
        "w3": conv_w(ks[2], 128, 128),
        "w4": conv_w(ks[3], 128, 128),
        "w5": conv_w(ks[4], 128, 128),
        # BatchNorm affine (PyTorch default: weight=1, bias=0)
        "g1": jnp.ones((1, 64), jnp.float32),  "be1": jnp.zeros((1, 64), jnp.float32),
        "g2": jnp.ones((1, 128), jnp.float32), "be2": jnp.zeros((1, 128), jnp.float32),
        "g3": jnp.ones((1, 128), jnp.float32), "be3": jnp.zeros((1, 128), jnp.float32),
    }
    # Conv biases omitted: every conv feeds a batch-statistics BatchNorm whose
    # mean subtraction cancels a per-channel bias exactly (dead work).
    # conv6/conv7/bn4/bn5 are declared in __init__ but never used in forward.
    return p


if __name__ == "__main__":
    key = jax.random.PRNGKey(0)
    kx, kp = jax.random.split(key)
    # NCHW input: 3 channels, H=48, W=16 so both MaxPool2d([6,2]) stages
    # produce non-empty outputs (final spatial 1x3).
    x = jax.random.normal(kx, (2, 3, 48, 16), jnp.float32)
    params = init_params(kp)

    fwd = jax.jit(cnn_forward)
    y = fwd(x, params)
    jax.block_until_ready(y)
    assert y.shape == (2, 128, 1, 3), y.shape
    assert y.dtype == jnp.float32
    assert bool(jnp.all(jnp.isfinite(y)))
    print("KERNEL_OK")
</pallas_src>

<mosaic_0001>
module attributes {stable_mosaic.version = 11 : i64} {
  func.func @kernel(%arg0: i32, %arg1: memref<2x768x27xf32, #tpu.memory_space<vmem>>, %arg2: memref<27x64xf32, #tpu.memory_space<vmem>>, %arg3: memref<576x128xf32, #tpu.memory_space<vmem>>, %arg4: memref<1152x128xf32, #tpu.memory_space<vmem>>, %arg5: memref<1152x128xf32, #tpu.memory_space<vmem>>, %arg6: memref<1152x128xf32, #tpu.memory_space<vmem>>, %arg7: memref<1x64xf32, #tpu.memory_space<vmem>>, %arg8: memref<1x64xf32, #tpu.memory_space<vmem>>, %arg9: memref<1x128xf32, #tpu.memory_space<vmem>>, %arg10: memref<1x128xf32, #tpu.memory_space<vmem>>, %arg11: memref<1x128xf32, #tpu.memory_space<vmem>>, %arg12: memref<1x128xf32, #tpu.memory_space<vmem>>, %arg13: memref<2x1x3x128xf32, #tpu.memory_space<vmem>>, %arg14: memref<1536x64xf32, #tpu.memory_space<vmem>>, %arg15: memref<2x11x16x64xf32, #tpu.memory_space<vmem>>, %arg16: memref<2x9x8x128xf32, #tpu.memory_space<vmem>>, %arg17: memref<2x9x8x128xf32, #tpu.memory_space<vmem>>, %arg18: memref<2x4x8x128xf32, #tpu.memory_space<vmem>>, %arg19: memref<8x128xf32, #tpu.memory_space<vmem>>) attributes {dimension_semantics = [#tpu.dimension_semantics<arbitrary>], iteration_bounds = array<i64: 1>, scalar_prefetch = 0 : i64, scratch_operands = 6 : i64, tpu.core_type = #tpu.core_type<tc>, window_params = [{pipeline_mode = #tpu.pipeline_mode<synchronous>, transform_indices = @transform_0, window_bounds = array<i64: 2, 768, 27>}, {pipeline_mode = #tpu.pipeline_mode<synchronous>, transform_indices = @transform_1, window_bounds = array<i64: 27, 64>}, {pipeline_mode = #tpu.pipeline_mode<synchronous>, transform_indices = @transform_2, window_bounds = array<i64: 576, 128>}, {pipeline_mode = #tpu.pipeline_mode<synchronous>, transform_indices = @transform_3, window_bounds = array<i64: 1152, 128>}, {pipeline_mode = #tpu.pipeline_mode<synchronous>, transform_indices = @transform_4, window_bounds = array<i64: 1152, 128>}, {pipeline_mode = #tpu.pipeline_mode<synchronous>, transform_indices = @transform_5, window_bounds = array<i64: 1152, 128>}, {pipeline_mode = #tpu.pipeline_mode<synchronous>, transform_indices = @transform_6, window_bounds = array<i64: 1, 64>}, {pipeline_mode = #tpu.pipeline_mode<synchronous>, transform_indices = @transform_7, window_bounds = array<i64: 1, 64>}, {pipeline_mode = #tpu.pipeline_mode<synchronous>, transform_indices = @transform_8, window_bounds = array<i64: 1, 128>}, {pipeline_mode = #tpu.pipeline_mode<synchronous>, transform_indices = @transform_9, window_bounds = array<i64: 1, 128>}, {pipeline_mode = #tpu.pipeline_mode<synchronous>, transform_indices = @transform_10, window_bounds = array<i64: 1, 128>}, {pipeline_mode = #tpu.pipeline_mode<synchronous>, transform_indices = @transform_11, window_bounds = array<i64: 1, 128>}, {pipeline_mode = #tpu.pipeline_mode<synchronous>, transform_indices = @transform_12, window_bounds = array<i64: 2, 1, 3, 128>}]} {
    %cst = arith.constant 0.000000e+00 : f32
    %0 = vector.broadcast %cst : f32 to vector<2x11x16x64xf32>
    %c0 = arith.constant 0 : index
    %c0_0 = arith.constant 0 : index
    %c0_1 = arith.constant 0 : index
    %c0_2 = arith.constant 0 : index
    %1 = vector.load %arg15[%c0, %c0_0, %c0_1, %c0_2] : memref<2x11x16x64xf32, #tpu.memory_space<vmem>>, vector<2x11x16x64xf32>
    tpu.vector_store %arg15[%c0, %c0_0, %c0_1, %c0_2], %0 {strides = array<i32>} : memref<2x11x16x64xf32, #tpu.memory_space<vmem>>, vector<2x11x16x64xf32>,
    %cst_3 = arith.constant 0.000000e+00 : f32
    %2 = vector.broadcast %cst_3 : f32 to vector<2x9x8x128xf32>
    %c0_4 = arith.constant 0 : index
    %c0_5 = arith.constant 0 : index
    %c0_6 = arith.constant 0 : index
    %c0_7 = arith.constant 0 : index
    %3 = vector.load %arg16[%c0_4, %c0_5, %c0_6, %c0_7] : memref<2x9x8x128xf32, #tpu.memory_space<vmem>>, vector<2x9x8x128xf32>
    tpu.vector_store %arg16[%c0_4, %c0_5, %c0_6, %c0_7], %2 {strides = array<i32>} : memref<2x9x8x128xf32, #tpu.memory_space<vmem>>, vector<2x9x8x128xf32>,
    %cst_8 = arith.constant 0.000000e+00 : f32
    %4 = vector.broadcast %cst_8 : f32 to vector<2x9x8x128xf32>
    %c0_9 = arith.constant 0 : index
    %c0_10 = arith.constant 0 : index
    %c0_11 = arith.constant 0 : index
    %c0_12 = arith.constant 0 : index
    %5 = vector.load %arg17[%c0_9, %c0_10, %c0_11, %c0_12] : memref<2x9x8x128xf32, #tpu.memory_space<vmem>>, vector<2x9x8x128xf32>
    tpu.vector_store %arg17[%c0_9, %c0_10, %c0_11, %c0_12], %4 {strides = array<i32>} : memref<2x9x8x128xf32, #tpu.memory_space<vmem>>, vector<2x9x8x128xf32>,
    %cst_13 = arith.constant 0.000000e+00 : f32
    %6 = vector.broadcast %cst_13 : f32 to vector<2x4x8x128xf32>
    %c0_14 = arith.constant 0 : index
    %c0_15 = arith.constant 0 : index
    %c0_16 = arith.constant 0 : index
    %c0_17 = arith.constant 0 : index
    %7 = vector.load %arg18[%c0_14, %c0_15, %c0_16, %c0_17] : memref<2x4x8x128xf32, #tpu.memory_space<vmem>>, vector<2x4x8x128xf32>
    tpu.vector_store %arg18[%c0_14, %c0_15, %c0_16, %c0_17], %6 {strides = array<i32>} : memref<2x4x8x128xf32, #tpu.memory_space<vmem>>, vector<2x4x8x128xf32>,
    %cst_18 = arith.constant 0.000000e+00 : f32
    %8 = vector.broadcast %cst_18 : f32 to vector<1x64xf32>
    %cst_19 = arith.constant 0.000000e+00 : f32
    %9 = vector.broadcast %cst_19 : f32 to vector<1x64xf32>
    %c0_20 = arith.constant 0 : index
    %c0_21 = arith.constant 0 : index
    %c0_22 = arith.constant 0 : index
    %10 = vector.load %arg1[%c0_20, %c0_21, %c0_22] : memref<2x768x27xf32, #tpu.memory_space<vmem>>, vector<1x768x27xf32>
    %11 = vector.shape_cast %10 : vector<1x768x27xf32> to vector<768x27xf32>
    %c0_23 = arith.constant 0 : index
    %c0_24 = arith.constant 0 : index
    %12 = vector.load %arg2[%c0_23, %c0_24] : memref<27x64xf32, #tpu.memory_space<vmem>>, vector<27x64xf32>
    %cst_25 = arith.constant dense<0.000000e+00> : vector<768x64xf32>
    %13 = tpu.matmul %11, %12, %cst_25 {dimension_numbers = #tpu.dot_dimension_numbers<[1], [0], [0], [1], [0, 0, 1, 1], [], []>} : vector<768x27xf32>, vector<27x64xf32>, vector<768x64xf32> -> vector<768x64xf32>
    %cst_26 = arith.constant dense<0.000000e+00> : vector<64xf32>
    %14 = vector.multi_reduction <add>, %13, %cst_26 [0] : vector<768x64xf32> to vector<64xf32>
    %15 = vector.shape_cast %14 : vector<64xf32> to vector<1x64xf32>
    %16 = arith.addf %8, %15 : vector<1x64xf32>
    %17 = arith.mulf %13, %13 : vector<768x64xf32>
    %cst_27 = arith.constant dense<0.000000e+00> : vector<64xf32>
    %18 = vector.multi_reduction <add>, %17, %cst_27 [0] : vector<768x64xf32> to vector<64xf32>
    %19 = vector.shape_cast %18 : vector<64xf32> to vector<1x64xf32>
    %20 = arith.addf %9, %19 : vector<1x64xf32>
    %c1 = arith.constant 1 : index
    %c0_28 = arith.constant 0 : index
    %c0_29 = arith.constant 0 : index
    %21 = vector.load %arg1[%c1, %c0_28, %c0_29] : memref<2x768x27xf32, #tpu.memory_space<vmem>>, vector<1x768x27xf32>
    %22 = vector.shape_cast %21 : vector<1x768x27xf32> to vector<768x27xf32>
    %c0_30 = arith.constant 0 : index
    %c0_31 = arith.constant 0 : index
    %23 = vector.load %arg2[%c0_30, %c0_31] : memref<27x64xf32, #tpu.memory_space<vmem>>, vector<27x64xf32>
    %cst_32 = arith.constant dense<0.000000e+00> : vector<768x64xf32>
    %24 = tpu.matmul %22, %23, %cst_32 {dimension_numbers = #tpu.dot_dimension_numbers<[1], [0], [0], [1], [0, 0, 1, 1], [], []>} : vector<768x27xf32>, vector<27x64xf32>, vector<768x64xf32> -> vector<768x64xf32>
    %cst_33 = arith.constant dense<0.000000e+00> : vector<64xf32>
    %25 = vector.multi_reduction <add>, %24, %cst_33 [0] : vector<768x64xf32> to vector<64xf32>
    %26 = vector.shape_cast %25 : vector<64xf32> to vector<1x64xf32>
    %27 = arith.addf %16, %26 : vector<1x64xf32>
    %28 = arith.mulf %24, %24 : vector<768x64xf32>
    %cst_34 = arith.constant dense<0.000000e+00> : vector<64xf32>
    %29 = vector.multi_reduction <add>, %28, %cst_34 [0] : vector<768x64xf32> to vector<64xf32>
    %30 = vector.shape_cast %29 : vector<64xf32> to vector<1x64xf32>
    %31 = arith.addf %20, %30 : vector<1x64xf32>
    %cst_35 = arith.constant 1.536000e+03 : f32
    %32 = vector.broadcast %cst_35 : f32 to vector<1x64xf32>
    %33 = arith.divf %27, %32 : vector<1x64xf32>
    %cst_36 = arith.constant 1.536000e+03 : f32
    %34 = vector.broadcast %cst_36 : f32 to vector<1x64xf32>
    %35 = arith.divf %31, %34 : vector<1x64xf32>
    %36 = arith.mulf %33, %33 : vector<1x64xf32>
    %37 = arith.subf %35, %36 : vector<1x64xf32>
    %c0_37 = arith.constant 0 : index
    %c0_38 = arith.constant 0 : index
    %38 = vector.load %arg7[%c0_37, %c0_38] : memref<1x64xf32, #tpu.memory_space<vmem>>, vector<1x64xf32>
    %cst_39 = arith.constant 9.99999974E-6 : f32
    %39 = vector.broadcast %cst_39 : f32 to vector<1x64xf32>
    %40 = arith.addf %37, %39 : vector<1x64xf32>
    %41 = math.rsqrt %40 : vector<1x64xf32>
    %42 = arith.mulf %38, %41 : vector<1x64xf32>
    %c0_40 = arith.constant 0 : index
    %c0_41 = arith.constant 0 : index
    %43 = vector.load %arg8[%c0_40, %c0_41] : memref<1x64xf32, #tpu.memory_space<vmem>>, vector<1x64xf32>
    %44 = arith.mulf %33, %42 : vector<1x64xf32>
    %45 = arith.subf %43, %44 : vector<1x64xf32>
    %46 = vector.broadcast %42 : vector<1x64xf32> to vector<768x64xf32>
    %47 = arith.mulf %13, %46 : vector<768x64xf32>
    %48 = vector.broadcast %45 : vector<1x64xf32> to vector<768x64xf32>
    %49 = arith.addf %47, %48 : vector<768x64xf32>
    %cst_42 = arith.constant 0.000000e+00 : f32
    %50 = vector.broadcast %cst_42 : f32 to vector<768x64xf32>
    %51 = arith.maximumf %49, %50 : vector<768x64xf32>
    %c0_43 = arith.constant 0 : index
    %c0_44 = arith.constant 0 : index
    %52 = vector.load %arg14[%c0_43, %c0_44] : memref<1536x64xf32, #tpu.memory_space<vmem>>, vector<768x64xf32>
    tpu.vector_store %arg14[%c0_43, %c0_44], %51 {strides = array<i32>} : memref<1536x64xf32, #tpu.memory_space<vmem>>, vector<768x64xf32>,
    %53 = vector.broadcast %42 : vector<1x64xf32> to vector<768x64xf32>
    %54 = arith.mulf %24, %53 : vector<768x64xf32>
    %55 = vector.broadcast %45 : vector<1x64xf32> to vector<768x64xf32>
    %56 = arith.addf %54, %55 : vector<768x64xf32>
    %cst_45 = arith.constant 0.000000e+00 : f32
    %57 = vector.broadcast %cst_45 : f32 to vector<768x64xf32>
    %58 = arith.maximumf %56, %57 : vector<768x64xf32>
    %c768 = arith.constant 768 : index
    %c0_46 = arith.constant 0 : index
    %59 = vector.load %arg14[%c768, %c0_46] : memref<1536x64xf32, #tpu.memory_space<vmem>>, vector<768x64xf32>
    tpu.vector_store %arg14[%c768, %c0_46], %58 {strides = array<i32>} : memref<1536x64xf32, #tpu.memory_space<vmem>>, vector<768x64xf32>,
    %c0_47 = arith.constant 0 : index
    %c0_48 = arith.constant 0 : index
    %60 = tpu.strided_load %arg14[%c0_47, %c0_48] {strides = array<i32: 2, 1>} : memref<1536x64xf32, #tpu.memory_space<vmem>>, vector<768x64xf32>
    %c1_49 = arith.constant 1 : index
    %c0_50 = arith.constant 0 : index
    %61 = tpu.strided_load %arg14[%c1_49, %c0_50] {strides = array<i32: 2, 1>} : memref<1536x64xf32, #tpu.memory_space<vmem>>, vector<768x64xf32>
    %62 = arith.maximumf %60, %61 : vector<768x64xf32>
    %63 = vector.shape_cast %62 : vector<768x64xf32> to vector<16x6x8x64xf32>
    %64 = vector.extract_strided_slice %63 {offsets = [0, 0, 0, 0], sizes = [16, 1, 8, 64], strides = [1, 1, 1, 1]} : vector<16x6x8x64xf32> to vector<16x1x8x64xf32>
    %65 = vector.shape_cast %64 : vector<16x1x8x64xf32> to vector<16x8x64xf32>
    %66 = vector.extract_strided_slice %63 {offsets = [0, 1, 0, 0], sizes = [16, 1, 8, 64], strides = [1, 1, 1, 1]} : vector<16x6x8x64xf32> to vector<16x1x8x64xf32>
    %67 = vector.shape_cast %66 : vector<16x1x8x64xf32> to vector<16x8x64xf32>
    %68 = arith.maximumf %65, %67 : vector<16x8x64xf32>
    %69 = vector.extract_strided_slice %63 {offsets = [0, 2, 0, 0], sizes = [16, 1, 8, 64], strides = [1, 1, 1, 1]} : vector<16x6x8x64xf32> to vector<16x1x8x64xf32>
    %70 = vector.shape_cast %69 : vector<16x1x8x64xf32> to vector<16x8x64xf32>
    %71 = arith.maximumf %68, %70 : vector<16x8x64xf32>
    %72 = vector.extract_strided_slice %63 {offsets = [0, 3, 0, 0], sizes = [16, 1, 8, 64], strides = [1, 1, 1, 1]} : vector<16x6x8x64xf32> to vector<16x1x8x64xf32>
    %73 = vector.shape_cast %72 : vector<16x1x8x64xf32> to vector<16x8x64xf32>
    %74 = arith.maximumf %71, %73 : vector<16x8x64xf32>
    %75 = vector.extract_strided_slice %63 {offsets = [0, 4, 0, 0], sizes = [16, 1, 8, 64], strides = [1, 1, 1, 1]} : vector<16x6x8x64xf32> to vector<16x1x8x64xf32>
    %76 = vector.shape_cast %75 : vector<16x1x8x64xf32> to vector<16x8x64xf32>
    %77 = arith.maximumf %74, %76 : vector<16x8x64xf32>
    %78 = vector.extract_strided_slice %63 {offsets = [0, 5, 0, 0], sizes = [16, 1, 8, 64], strides = [1, 1, 1, 1]} : vector<16x6x8x64xf32> to vector<16x1x8x64xf32>
    %79 = vector.shape_cast %78 : vector<16x1x8x64xf32> to vector<16x8x64xf32>
    %80 = arith.maximumf %77, %79 : vector<16x8x64xf32>
    %81 = vector.shape_cast %80 : vector<16x8x64xf32> to vector<2x8x8x64xf32>
    %c0_51 = arith.constant 0 : index
    %c1_52 = arith.constant 1 : index
    %c1_53 = arith.constant 1 : index
    %c0_54 = arith.constant 0 : index
    %82 = vector.load %arg15[%c0_51, %c1_52, %c1_53, %c0_54] : memref<2x11x16x64xf32, #tpu.memory_space<vmem>>, vector<2x8x8x64xf32>
    tpu.vector_store %arg15[%c0_51, %c1_52, %c1_53, %c0_54], %81 {strides = array<i32>} : memref<2x11x16x64xf32, #tpu.memory_space<vmem>>, vector<2x8x8x64xf32>,
    %cst_55 = arith.constant 0.000000e+00 : f32
    %83 = vector.broadcast %cst_55 : f32 to vector<1x128xf32>
    %cst_56 = arith.constant 0.000000e+00 : f32
    %84 = vector.broadcast %cst_56 : f32 to vector<1x128xf32>
    %c0_57 = arith.constant 0 : index
    %c0_58 = arith.constant 0 : index
    %c0_59 = arith.constant 0 : index
    %c0_60 = arith.constant 0 : index
    %85 = vector.load %arg15[%c0_57, %c0_58, %c0_59, %c0_60] : memref<2x11x16x64xf32, #tpu.memory_space<vmem>>, vector<1x11x16x64xf32>
    %86 = vector.shape_cast %85 : vector<1x11x16x64xf32> to vector<11x16x64xf32>
    %87 = vector.shape_cast %86 : vector<11x16x64xf32> to vector<176x64xf32>
    %88 = vector.extract_strided_slice %87 {offsets = [0, 0], sizes = [128, 64], strides = [1, 1]} : vector<176x64xf32> to vector<128x64xf32>
    %89 = vector.extract_strided_slice %87 {offsets = [1, 0], sizes = [128, 64], strides = [1, 1]} : vector<176x64xf32> to vector<128x64xf32>
    %90 = vector.extract_strided_slice %87 {offsets = [2, 0], sizes = [128, 64], strides = [1, 1]} : vector<176x64xf32> to vector<128x64xf32>
    %91 = vector.extract_strided_slice %87 {offsets = [16, 0], sizes = [128, 64], strides = [1, 1]} : vector<176x64xf32> to vector<128x64xf32>
    %92 = vector.extract_strided_slice %87 {offsets = [17, 0], sizes = [128, 64], strides = [1, 1]} : vector<176x64xf32> to vector<128x64xf32>
    %93 = vector.extract_strided_slice %87 {offsets = [18, 0], sizes = [128, 64], strides = [1, 1]} : vector<176x64xf32> to vector<128x64xf32>
    %94 = vector.extract_strided_slice %87 {offsets = [32, 0], sizes = [128, 64], strides = [1, 1]} : vector<176x64xf32> to vector<128x64xf32>
    %95 = vector.extract_strided_slice %87 {offsets = [33, 0], sizes = [128, 64], strides = [1, 1]} : vector<176x64xf32> to vector<128x64xf32>
    %96 = vector.extract_strided_slice %87 {offsets = [34, 0], sizes = [128, 64], strides = [1, 1]} : vector<176x64xf32> to vector<128x64xf32>
    %97 = tpu.concatenate %88, %89, %90, %91, %92, %93, %94, %95, %96 in 1 : vector<128x64xf32>, vector<128x64xf32>, vector<128x64xf32>, vector<128x64xf32>, vector<128x64xf32>, vector<128x64xf32>, vector<128x64xf32>, vector<128x64xf32>, vector<128x64xf32> -> vector<128x576xf32>
    %c0_61 = arith.constant 0 : index
    %c0_62 = arith.constant 0 : index
    %98 = vector.load %arg3[%c0_61, %c0_62] : memref<576x128xf32, #tpu.memory_space<vmem>>, vector<576x128xf32>
    %cst_63 = arith.constant dense<0.000000e+00> : vector<128x128xf32>
    %99 = tpu.matmul %97, %98, %cst_63 {dimension_numbers = #tpu.dot_dimension_numbers<[1], [0], [0], [1], [0, 0, 1, 1], [], []>} : vector<128x576xf32>, vector<576x128xf32>, vector<128x128xf32> -> vector<128x128xf32>
    %100 = tpu.iota {dimensions = array<i32: 0>} : vector<128x1xi32>
    %c16_i32 = arith.constant 16 : i32
    %c0_i32 = arith.constant 0 : i32
    %101 = arith.cmpi eq, %c16_i32, %c0_i32 : i32
    %c1_i32 = arith.constant 1 : i32
    %102 = arith.select %101, %c1_i32, %c16_i32 : i32
    %103 = vector.broadcast %102 : i32 to vector<128x1xi32>
    %104 = arith.remsi %100, %103 : vector<128x1xi32>
    %c0_i32_64 = arith.constant 0 : i32
    %105 = vector.broadcast %c0_i32_64 : i32 to vector<128x1xi32>
    %106 = arith.cmpi ne, %104, %105 : vector<128x1xi32>
    %c0_i32_65 = arith.constant 0 : i32
    %107 = vector.broadcast %c0_i32_65 : i32 to vector<128x1xi32>
    %108 = arith.cmpi slt, %104, %107 : vector<128x1xi32>
    %c0_i32_66 = arith.constant 0 : i32
    %109 = arith.cmpi slt, %102, %c0_i32_66 : i32
    %110 = vector.broadcast %109 : i1 to vector<128x1xi1>
    %111 = vector.broadcast %110 : vector<128x1xi1> to vector<128x1xi1>
    %112 = arith.xori %108, %111 : vector<128x1xi1>
    %113 = arith.andi %112, %106 : vector<128x1xi1>
    %114 = vector.broadcast %102 : i32 to vector<128x1xi32>
    %115 = arith.addi %104, %114 : vector<128x1xi32>
    %116 = arith.select %113, %115, %104 : vector<128x1xi1>, vector<128x1xi32>
    %c8_i32 = arith.constant 8 : i32
    %117 = vector.broadcast %c8_i32 : i32 to vector<128x1xi32>
    %118 = arith.cmpi slt, %116, %117 : vector<128x1xi32>
    %cst_67 = arith.constant 0.000000e+00 : f32
    %119 = vector.shape_cast %118 : vector<128x1xi1> to vector<128x1xi1>
    %120 = vector.broadcast %119 : vector<128x1xi1> to vector<128x128xi1>
    %121 = vector.broadcast %cst_67 : f32 to vector<128x128xf32>
    %122 = arith.select %120, %99, %121 : vector<128x128xi1>, vector<128x128xf32>
    %cst_68 = arith.constant dense<0.000000e+00> : vector<128xf32>
    %123 = vector.multi_reduction <add>, %122, %cst_68 [0] : vector<128x128xf32> to vector<128xf32>
    %124 = vector.shape_cast %123 : vector<128xf32> to vector<1x128xf32>
    %125 = arith.mulf %122, %122 : vector<128x128xf32>
    %cst_69 = arith.constant dense<0.000000e+00> : vector<128xf32>
    %126 = vector.multi_reduction <add>, %125, %cst_69 [0] : vector<128x128xf32> to vector<128xf32>
    %127 = vector.shape_cast %126 : vector<128xf32> to vector<1x128xf32>
    %128 = arith.addf %83, %124 : vector<1x128xf32>
    %129 = arith.addf %84, %127 : vector<1x128xf32>
    %c1_70 = arith.constant 1 : index
    %c0_71 = arith.constant 0 : index
    %c0_72 = arith.constant 0 : index
    %c0_73 = arith.constant 0 : index
    %130 = vector.load %arg15[%c1_70, %c0_71, %c0_72, %c0_73] : memref<2x11x16x64xf32, #tpu.memory_space<vmem>>, vector<1x11x16x64xf32>
    %131 = vector.shape_cast %130 : vector<1x11x16x64xf32> to vector<11x16x64xf32>
    %132 = vector.shape_cast %131 : vector<11x16x64xf32> to vector<176x64xf32>
    %133 = vector.extract_strided_slice %132 {offsets = [0, 0], sizes = [128, 64], strides = [1, 1]} : vector<176x64xf32> to vector<128x64xf32>
    %134 = vector.extract_strided_slice %132 {offsets = [1, 0], sizes = [128, 64], strides = [1, 1]} : vector<176x64xf32> to vector<128x64xf32>
    %135 = vector.extract_strided_slice %132 {offsets = [2, 0], sizes = [128, 64], strides = [1, 1]} : vector<176x64xf32> to vector<128x64xf32>
    %136 = vector.extract_strided_slice %132 {offsets = [16, 0], sizes = [128, 64], strides = [1, 1]} : vector<176x64xf32> to vector<128x64xf32>
    %137 = vector.extract_strided_slice %132 {offsets = [17, 0], sizes = [128, 64], strides = [1, 1]} : vector<176x64xf32> to vector<128x64xf32>
    %138 = vector.extract_strided_slice %132 {offsets = [18, 0], sizes = [128, 64], strides = [1, 1]} : vector<176x64xf32> to vector<128x64xf32>
    %139 = vector.extract_strided_slice %132 {offsets = [32, 0], sizes = [128, 64], strides = [1, 1]} : vector<176x64xf32> to vector<128x64xf32>
    %140 = vector.extract_strided_slice %132 {offsets = [33, 0], sizes = [128, 64], strides = [1, 1]} : vector<176x64xf32> to vector<128x64xf32>
    %141 = vector.extract_strided_slice %132 {offsets = [34, 0], sizes = [128, 64], strides = [1, 1]} : vector<176x64xf32> to vector<128x64xf32>
    %142 = tpu.concatenate %133, %134, %135, %136, %137, %138, %139, %140, %141 in 1 : vector<128x64xf32>, vector<128x64xf32>, vector<128x64xf32>, vector<128x64xf32>, vector<128x64xf32>, vector<128x64xf32>, vector<128x64xf32>, vector<128x64xf32>, vector<128x64xf32> -> vector<128x576xf32>
    %c0_74 = arith.constant 0 : index
    %c0_75 = arith.constant 0 : index
    %143 = vector.load %arg3[%c0_74, %c0_75] : memref<576x128xf32, #tpu.memory_space<vmem>>, vector<576x128xf32>
    %cst_76 = arith.constant dense<0.000000e+00> : vector<128x128xf32>
    %144 = tpu.matmul %142, %143, %cst_76 {dimension_numbers = #tpu.dot_dimension_numbers<[1], [0], [0], [1], [0, 0, 1, 1], [], []>} : vector<128x576xf32>, vector<576x128xf32>, vector<128x128xf32> -> vector<128x128xf32>
    %145 = tpu.iota {dimensions = array<i32: 0>} : vector<128x1xi32>
    %c16_i32_77 = arith.constant 16 : i32
    %c0_i32_78 = arith.constant 0 : i32
    %146 = arith.cmpi eq, %c16_i32_77, %c0_i32_78 : i32
    %c1_i32_79 = arith.constant 1 : i32
    %147 = arith.select %146, %c1_i32_79, %c16_i32_77 : i32
    %148 = vector.broadcast %147 : i32 to vector<128x1xi32>
    %149 = arith.remsi %145, %148 : vector<128x1xi32>
    %c0_i32_80 = arith.constant 0 : i32
    %150 = vector.broadcast %c0_i32_80 : i32 to vector<128x1xi32>
    %151 = arith.cmpi ne, %149, %150 : vector<128x1xi32>
    %c0_i32_81 = arith.constant 0 : i32
    %152 = vector.broadcast %c0_i32_81 : i32 to vector<128x1xi32>
    %153 = arith.cmpi slt, %149, %152 : vector<128x1xi32>
    %c0_i32_82 = arith.constant 0 : i32
    %154 = arith.cmpi slt, %147, %c0_i32_82 : i32
    %155 = vector.broadcast %154 : i1 to vector<128x1xi1>
    %156 = vector.broadcast %155 : vector<128x1xi1> to vector<128x1xi1>
    %157 = arith.xori %153, %156 : vector<128x1xi1>
    %158 = arith.andi %157, %151 : vector<128x1xi1>
    %159 = vector.broadcast %147 : i32 to vector<128x1xi32>
    %160 = arith.addi %149, %159 : vector<128x1xi32>
    %161 = arith.select %158, %160, %149 : vector<128x1xi1>, vector<128x1xi32>
    %c8_i32_83 = arith.constant 8 : i32
    %162 = vector.broadcast %c8_i32_83 : i32 to vector<128x1xi32>
    %163 = arith.cmpi slt, %161, %162 : vector<128x1xi32>
    %cst_84 = arith.constant 0.000000e+00 : f32
    %164 = vector.shape_cast %163 : vector<128x1xi1> to vector<128x1xi1>
    %165 = vector.broadcast %164 : vector<128x1xi1> to vector<128x128xi1>
    %166 = vector.broadcast %cst_84 : f32 to vector<128x128xf32>
    %167 = arith.select %165, %144, %166 : vector<128x128xi1>, vector<128x128xf32>
    %cst_85 = arith.constant dense<0.000000e+00> : vector<128xf32>
    %168 = vector.multi_reduction <add>, %167, %cst_85 [0] : vector<128x128xf32> to vector<128xf32>
    %169 = vector.shape_cast %168 : vector<128xf32> to vector<1x128xf32>
    %170 = arith.mulf %167, %167 : vector<128x128xf32>
    %cst_86 = arith.constant dense<0.000000e+00> : vector<128xf32>
    %171 = vector.multi_reduction <add>, %170, %cst_86 [0] : vector<128x128xf32> to vector<128xf32>
    %172 = vector.shape_cast %171 : vector<128xf32> to vector<1x128xf32>
    %173 = arith.addf %128, %169 : vector<1x128xf32>
    %174 = arith.addf %129, %172 : vector<1x128xf32>
    %cst_87 = arith.constant 1.280000e+02 : f32
    %175 = vector.broadcast %cst_87 : f32 to vector<1x128xf32>
    %176 = arith.divf %173, %175 : vector<1x128xf32>
    %cst_88 = arith.constant 1.280000e+02 : f32
    %177 = vector.broadcast %cst_88 : f32 to vector<1x128xf32>
    %178 = arith.divf %174, %177 : vector<1x128xf32>
    %179 = arith.mulf %176, %176 : vector<1x128xf32>
    %180 = arith.subf %178, %179 : vector<1x128xf32>
    %c0_89 = arith.constant 0 : index
    %c0_90 = arith.constant 0 : index
    %181 = vector.load %arg9[%c0_89, %c0_90] : memref<1x128xf32, #tpu.memory_space<vmem>>, vector<1x128xf32>
    %cst_91 = arith.constant 9.99999974E-6 : f32
    %182 = vector.broadcast %cst_91 : f32 to vector<1x128xf32>
    %183 = arith.addf %180, %182 : vector<1x128xf32>
    %184 = math.rsqrt %183 : vector<1x128xf32>
    %185 = arith.mulf %181, %184 : vector<1x128xf32>
    %c0_92 = arith.constant 0 : index
    %c0_93 = arith.constant 0 : index
    %186 = vector.load %arg10[%c0_92, %c0_93] : memref<1x128xf32, #tpu.memory_space<vmem>>, vector<1x128xf32>
    %187 = arith.mulf %176, %185 : vector<1x128xf32>
    %188 = arith.subf %186, %187 : vector<1x128xf32>
    %189 = vector.broadcast %185 : vector<1x128xf32> to vector<128x128xf32>
    %190 = arith.mulf %99, %189 : vector<128x128xf32>
    %191 = vector.broadcast %188 : vector<1x128xf32> to vector<128x128xf32>
    %192 = arith.addf %190, %191 : vector<128x128xf32>
    %cst_94 = arith.constant 0.000000e+00 : f32
    %193 = vector.broadcast %cst_94 : f32 to vector<128x128xf32>
    %194 = arith.maximumf %192, %193 : vector<128x128xf32>
    %195 = vector.broadcast %185 : vector<1x128xf32> to vector<128x128xf32>
    %196 = arith.mulf %144, %195 : vector<128x128xf32>
    %197 = vector.broadcast %188 : vector<1x128xf32> to vector<128x128xf32>
    %198 = arith.addf %196, %197 : vector<128x128xf32>
    %cst_95 = arith.constant 0.000000e+00 : f32
    %199 = vector.broadcast %cst_95 : f32 to vector<128x128xf32>
    %200 = arith.maximumf %198, %199 : vector<128x128xf32>
    %201 = vector.shape_cast %194 : vector<128x128xf32> to vector<8x16x128xf32>
    %202 = vector.extract_strided_slice %201 {offsets = [0, 0, 0], sizes = [8, 8, 128], strides = [1, 1, 1]} : vector<8x16x128xf32> to vector<8x8x128xf32>
    %c0_96 = arith.constant 0 : index
    %c0_97 = arith.constant 0 : index
    %c0_98 = arith.constant 0 : index
    %c0_99 = arith.constant 0 : index
    %203 = vector.load %arg16[%c0_96, %c0_97, %c0_98, %c0_99] : memref<2x9x8x128xf32, #tpu.memory_space<vmem>>, vector<1x8x8x128xf32>
    %204 = vector.shape_cast %203 : vector<1x8x8x128xf32> to vector<8x8x128xf32>
    %205 = vector.shape_cast %202 : vector<8x8x128xf32> to vector<1x8x8x128xf32>
    tpu.vector_store %arg16[%c0_96, %c0_97, %c0_98, %c0_99], %205 {strides = array<i32>} : memref<2x9x8x128xf32, #tpu.memory_space<vmem>>, vector<1x8x8x128xf32>,
    %206 = vector.shape_cast %200 : vector<128x128xf32> to vector<8x16x128xf32>
    %207 = vector.extract_strided_slice %206 {offsets = [0, 0, 0], sizes = [8, 8, 128], strides = [1, 1, 1]} : vector<8x16x128xf32> to vector<8x8x128xf32>
    %c1_100 = arith.constant 1 : index
    %c0_101 = arith.constant 0 : index
    %c0_102 = arith.constant 0 : index
    %c0_103 = arith.constant 0 : index
    %208 = vector.load %arg16[%c1_100, %c0_101, %c0_102, %c0_103] : memref<2x9x8x128xf32, #tpu.memory_space<vmem>>, vector<1x8x8x128xf32>
    %209 = vector.shape_cast %208 : vector<1x8x8x128xf32> to vector<8x8x128xf32>
    %210 = vector.shape_cast %207 : vector<8x8x128xf32> to vector<1x8x8x128xf32>
    tpu.vector_store %arg16[%c1_100, %c0_101, %c0_102, %c0_103], %210 {strides = array<i32>} : memref<2x9x8x128xf32, #tpu.memory_space<vmem>>, vector<1x8x8x128xf32>,
    %cst_104 = arith.constant 0.000000e+00 : f32
    %211 = vector.broadcast %cst_104 : f32 to vector<1x128xf32>
    %cst_105 = arith.constant 0.000000e+00 : f32
    %212 = vector.broadcast %cst_105 : f32 to vector<1x128xf32>
    %c0_106 = arith.constant 0 : index
    %c0_107 = arith.constant 0 : index
    %c0_108 = arith.constant 0 : index
    %c0_109 = arith.constant 0 : index
    %213 = vector.load %arg16[%c0_106, %c0_107, %c0_108, %c0_109] : memref<2x9x8x128xf32, #tpu.memory_space<vmem>>, vector<1x9x8x128xf32>
    %214 = vector.shape_cast %213 : vector<1x9x8x128xf32> to vector<9x8x128xf32>
    %215 = vector.shape_cast %214 : vector<9x8x128xf32> to vector<72x128xf32>
    %216 = vector.extract_strided_slice %215 {offsets = [0, 0], sizes = [48, 128], strides = [1, 1]} : vector<72x128xf32> to vector<48x128xf32>
    %217 = vector.extract_strided_slice %215 {offsets = [1, 0], sizes = [48, 128], strides = [1, 1]} : vector<72x128xf32> to vector<48x128xf32>
    %218 = vector.extract_strided_slice %215 {offsets = [2, 0], sizes = [48, 128], strides = [1, 1]} : vector<72x128xf32> to vector<48x128xf32>
    %219 = vector.extract_strided_slice %215 {offsets = [8, 0], sizes = [48, 128], strides = [1, 1]} : vector<72x128xf32> to vector<48x128xf32>
    %220 = vector.extract_strided_slice %215 {offsets = [9, 0], sizes = [48, 128], strides = [1, 1]} : vector<72x128xf32> to vector<48x128xf32>
    %221 = vector.extract_strided_slice %215 {offsets = [10, 0], sizes = [48, 128], strides = [1, 1]} : vector<72x128xf32> to vector<48x128xf32>
    %222 = vector.extract_strided_slice %215 {offsets = [16, 0], sizes = [48, 128], strides = [1, 1]} : vector<72x128xf32> to vector<48x128xf32>
    %223 = vector.extract_strided_slice %215 {offsets = [17, 0], sizes = [48, 128], strides = [1, 1]} : vector<72x128xf32> to vector<48x128xf32>
    %224 = vector.extract_strided_slice %215 {offsets = [18, 0], sizes = [48, 128], strides = [1, 1]} : vector<72x128xf32> to vector<48x128xf32>
    %225 = tpu.concatenate %216, %217, %218, %219, %220, %221, %222, %223, %224 in 1 : vector<48x128xf32>, vector<48x128xf32>, vector<48x128xf32>, vector<48x128xf32>, vector<48x128xf32>, vector<48x128xf32>, vector<48x128xf32>, vector<48x128xf32>, vector<48x128xf32> -> vector<48x1152xf32>
    %c0_110 = arith.constant 0 : index
    %c0_111 = arith.constant 0 : index
    %226 = vector.load %arg4[%c0_110, %c0_111] : memref<1152x128xf32, #tpu.memory_space<vmem>>, vector<1152x128xf32>
    %cst_112 = arith.constant dense<0.000000e+00> : vector<48x128xf32>
    %227 = tpu.matmul %225, %226, %cst_112 {dimension_numbers = #tpu.dot_dimension_numbers<[1], [0], [0], [1], [0, 0, 1, 1], [], []>} : vector<48x1152xf32>, vector<1152x128xf32>, vector<48x128xf32> -> vector<48x128xf32>
    %228 = tpu.iota {dimensions = array<i32: 0>} : vector<48x1xi32>
    %c8_i32_113 = arith.constant 8 : i32
    %c0_i32_114 = arith.constant 0 : i32
    %229 = arith.cmpi eq, %c8_i32_113, %c0_i32_114 : i32
    %c1_i32_115 = arith.constant 1 : i32
    %230 = arith.select %229, %c1_i32_115, %c8_i32_113 : i32
    %231 = vector.broadcast %230 : i32 to vector<48x1xi32>
    %232 = arith.remsi %228, %231 : vector<48x1xi32>
    %c0_i32_116 = arith.constant 0 : i32
    %233 = vector.broadcast %c0_i32_116 : i32 to vector<48x1xi32>
    %234 = arith.cmpi ne, %232, %233 : vector<48x1xi32>
    %c0_i32_117 = arith.constant 0 : i32
    %235 = vector.broadcast %c0_i32_117 : i32 to vector<48x1xi32>
    %236 = arith.cmpi slt, %232, %235 : vector<48x1xi32>
    %c0_i32_118 = arith.constant 0 : i32
    %237 = arith.cmpi slt, %230, %c0_i32_118 : i32
    %238 = vector.broadcast %237 : i1 to vector<48x1xi1>
    %239 = vector.broadcast %238 : vector<48x1xi1> to vector<48x1xi1>
    %240 = arith.xori %236, %239 : vector<48x1xi1>
    %241 = arith.andi %240, %234 : vector<48x1xi1>
    %242 = vector.broadcast %230 : i32 to vector<48x1xi32>
    %243 = arith.addi %232, %242 : vector<48x1xi32>
    %244 = arith.select %241, %243, %232 : vector<48x1xi1>, vector<48x1xi32>
    %c6_i32 = arith.constant 6 : i32
    %245 = vector.broadcast %c6_i32 : i32 to vector<48x1xi32>
    %246 = arith.cmpi slt, %244, %245 : vector<48x1xi32>
    %cst_119 = arith.constant 0.000000e+00 : f32
    %247 = vector.shape_cast %246 : vector<48x1xi1> to vector<48x1xi1>
    %248 = vector.broadcast %247 : vector<48x1xi1> to vector<48x128xi1>
    %249 = vector.broadcast %cst_119 : f32 to vector<48x128xf32>
    %250 = arith.select %248, %227, %249 : vector<48x128xi1>, vector<48x128xf32>
    %cst_120 = arith.constant dense<0.000000e+00> : vector<128xf32>
    %251 = vector.multi_reduction <add>, %250, %cst_120 [0] : vector<48x128xf32> to vector<128xf32>
    %252 = vector.shape_cast %251 : vector<128xf32> to vector<1x128xf32>
    %253 = arith.mulf %250, %250 : vector<48x128xf32>
    %cst_121 = arith.constant dense<0.000000e+00> : vector<128xf32>
    %254 = vector.multi_reduction <add>, %253, %cst_121 [0] : vector<48x128xf32> to vector<128xf32>
    %255 = vector.shape_cast %254 : vector<128xf32> to vector<1x128xf32>
    %256 = arith.addf %211, %252 : vector<1x128xf32>
    %257 = arith.addf %212, %255 : vector<1x128xf32>
    %c1_122 = arith.constant 1 : index
    %c0_123 = arith.constant 0 : index
    %c0_124 = arith.constant 0 : index
    %c0_125 = arith.constant 0 : index
    %258 = vector.load %arg16[%c1_122, %c0_123, %c0_124, %c0_125] : memref<2x9x8x128xf32, #tpu.memory_space<vmem>>, vector<1x9x8x128xf32>
    %259 = vector.shape_cast %258 : vector<1x9x8x128xf32> to vector<9x8x128xf32>
    %260 = vector.shape_cast %259 : vector<9x8x128xf32> to vector<72x128xf32>
    %261 = vector.extract_strided_slice %260 {offsets = [0, 0], sizes = [48, 128], strides = [1, 1]} : vector<72x128xf32> to vector<48x128xf32>
    %262 = vector.extract_strided_slice %260 {offsets = [1, 0], sizes = [48, 128], strides = [1, 1]} : vector<72x128xf32> to vector<48x128xf32>
    %263 = vector.extract_strided_slice %260 {offsets = [2, 0], sizes = [48, 128], strides = [1, 1]} : vector<72x128xf32> to vector<48x128xf32>
    %264 = vector.extract_strided_slice %260 {offsets = [8, 0], sizes = [48, 128], strides = [1, 1]} : vector<72x128xf32> to vector<48x128xf32>
    %265 = vector.extract_strided_slice %260 {offsets = [9, 0], sizes = [48, 128], strides = [1, 1]} : vector<72x128xf32> to vector<48x128xf32>
    %266 = vector.extract_strided_slice %260 {offsets = [10, 0], sizes = [48, 128], strides = [1, 1]} : vector<72x128xf32> to vector<48x128xf32>
    %267 = vector.extract_strided_slice %260 {offsets = [16, 0], sizes = [48, 128], strides = [1, 1]} : vector<72x128xf32> to vector<48x128xf32>
    %268 = vector.extract_strided_slice %260 {offsets = [17, 0], sizes = [48, 128], strides = [1, 1]} : vector<72x128xf32> to vector<48x128xf32>
    %269 = vector.extract_strided_slice %260 {offsets = [18, 0], sizes = [48, 128], strides = [1, 1]} : vector<72x128xf32> to vector<48x128xf32>
    %270 = tpu.concatenate %261, %262, %263, %264, %265, %266, %267, %268, %269 in 1 : vector<48x128xf32>, vector<48x128xf32>, vector<48x128xf32>, vector<48x128xf32>, vector<48x128xf32>, vector<48x128xf32>, vector<48x128xf32>, vector<48x128xf32>, vector<48x128xf32> -> vector<48x1152xf32>
    %c0_126 = arith.constant 0 : index
    %c0_127 = arith.constant 0 : index
    %271 = vector.load %arg4[%c0_126, %c0_127] : memref<1152x128xf32, #tpu.memory_space<vmem>>, vector<1152x128xf32>
    %cst_128 = arith.constant dense<0.000000e+00> : vector<48x128xf32>
    %272 = tpu.matmul %270, %271, %cst_128 {dimension_numbers = #tpu.dot_dimension_numbers<[1], [0], [0], [1], [0, 0, 1, 1], [], []>} : vector<48x1152xf32>, vector<1152x128xf32>, vector<48x128xf32> -> vector<48x128xf32>
    %273 = tpu.iota {dimensions = array<i32: 0>} : vector<48x1xi32>
    %c8_i32_129 = arith.constant 8 : i32
    %c0_i32_130 = arith.constant 0 : i32
    %274 = arith.cmpi eq, %c8_i32_129, %c0_i32_130 : i32
    %c1_i32_131 = arith.constant 1 : i32
    %275 = arith.select %274, %c1_i32_131, %c8_i32_129 : i32
    %276 = vector.broadcast %275 : i32 to vector<48x1xi32>
    %277 = arith.remsi %273, %276 : vector<48x1xi32>
    %c0_i32_132 = arith.constant 0 : i32
    %278 = vector.broadcast %c0_i32_132 : i32 to vector<48x1xi32>
    %279 = arith.cmpi ne, %277, %278 : vector<48x1xi32>
    %c0_i32_133 = arith.constant 0 : i32
    %280 = vector.broadcast %c0_i32_133 : i32 to vector<48x1xi32>
    %281 = arith.cmpi slt, %277, %280 : vector<48x1xi32>
    %c0_i32_134 = arith.constant 0 : i32
    %282 = arith.cmpi slt, %275, %c0_i32_134 : i32
    %283 = vector.broadcast %282 : i1 to vector<48x1xi1>
    %284 = vector.broadcast %283 : vector<48x1xi1> to vector<48x1xi1>
    %285 = arith.xori %281, %284 : vector<48x1xi1>
    %286 = arith.andi %285, %279 : vector<48x1xi1>
    %287 = vector.broadcast %275 : i32 to vector<48x1xi32>
    %288 = arith.addi %277, %287 : vector<48x1xi32>
    %289 = arith.select %286, %288, %277 : vector<48x1xi1>, vector<48x1xi32>
    %c6_i32_135 = arith.constant 6 : i32
    %290 = vector.broadcast %c6_i32_135 : i32 to vector<48x1xi32>
    %291 = arith.cmpi slt, %289, %290 : vector<48x1xi32>
    %cst_136 = arith.constant 0.000000e+00 : f32
    %292 = vector.shape_cast %291 : vector<48x1xi1> to vector<48x1xi1>
    %293 = vector.broadcast %292 : vector<48x1xi1> to vector<48x128xi1>
    %294 = vector.broadcast %cst_136 : f32 to vector<48x128xf32>
    %295 = arith.select %293, %272, %294 : vector<48x128xi1>, vector<48x128xf32>
    %cst_137 = arith.constant dense<0.000000e+00> : vector<128xf32>
    %296 = vector.multi_reduction <add>, %295, %cst_137 [0] : vector<48x128xf32> to vector<128xf32>
    %297 = vector.shape_cast %296 : vector<128xf32> to vector<1x128xf32>
    %298 = arith.mulf %295, %295 : vector<48x128xf32>
    %cst_138 = arith.constant dense<0.000000e+00> : vector<128xf32>
    %299 = vector.multi_reduction <add>, %298, %cst_138 [0] : vector<48x128xf32> to vector<128xf32>
    %300 = vector.shape_cast %299 : vector<128xf32> to vector<1x128xf32>
    %301 = arith.addf %256, %297 : vector<1x128xf32>
    %302 = arith.addf %257, %300 : vector<1x128xf32>
    %cst_139 = arith.constant 7.200000e+01 : f32
    %303 = vector.broadcast %cst_139 : f32 to vector<1x128xf32>
    %304 = arith.divf %301, %303 : vector<1x128xf32>
    %cst_140 = arith.constant 7.200000e+01 : f32
    %305 = vector.broadcast %cst_140 : f32 to vector<1x128xf32>
    %306 = arith.divf %302, %305 : vector<1x128xf32>
    %307 = arith.mulf %304, %304 : vector<1x128xf32>
    %308 = arith.subf %306, %307 : vector<1x128xf32>
    %c0_141 = arith.constant 0 : index
    %c0_142 = arith.constant 0 : index
    %309 = vector.load %arg9[%c0_141, %c0_142] : memref<1x128xf32, #tpu.memory_space<vmem>>, vector<1x128xf32>
    %cst_143 = arith.constant 9.99999974E-6 : f32
    %310 = vector.broadcast %cst_143 : f32 to vector<1x128xf32>
    %311 = arith.addf %308, %310 : vector<1x128xf32>
    %312 = math.rsqrt %311 : vector<1x128xf32>
    %313 = arith.mulf %309, %312 : vector<1x128xf32>
    %c0_144 = arith.constant 0 : index
    %c0_145 = arith.constant 0 : index
    %314 = vector.load %arg10[%c0_144, %c0_145] : memref<1x128xf32, #tpu.memory_space<vmem>>, vector<1x128xf32>
    %315 = arith.mulf %304, %313 : vector<1x128xf32>
    %316 = arith.subf %314, %315 : vector<1x128xf32>
    %317 = vector.broadcast %313 : vector<1x128xf32> to vector<48x128xf32>
    %318 = arith.mulf %227, %317 : vector<48x128xf32>
    %319 = vector.broadcast %316 : vector<1x128xf32> to vector<48x128xf32>
    %320 = arith.addf %318, %319 : vector<48x128xf32>
    %cst_146 = arith.constant 0.000000e+00 : f32
    %321 = vector.broadcast %cst_146 : f32 to vector<48x128xf32>
    %322 = arith.maximumf %320, %321 : vector<48x128xf32>
    %323 = vector.broadcast %313 : vector<1x128xf32> to vector<48x128xf32>
    %324 = arith.mulf %272, %323 : vector<48x128xf32>
    %325 = vector.broadcast %316 : vector<1x128xf32> to vector<48x128xf32>
    %326 = arith.addf %324, %325 : vector<48x128xf32>
    %cst_147 = arith.constant 0.000000e+00 : f32
    %327 = vector.broadcast %cst_147 : f32 to vector<48x128xf32>
    %328 = arith.maximumf %326, %327 : vector<48x128xf32>
    %329 = vector.shape_cast %322 : vector<48x128xf32> to vector<6x8x128xf32>
    %330 = vector.extract_strided_slice %329 {offsets = [0, 0, 0], sizes = [6, 6, 128], strides = [1, 1, 1]} : vector<6x8x128xf32> to vector<6x6x128xf32>
    %c0_148 = arith.constant 0 : index
    %c1_149 = arith.constant 1 : index
    %c1_150 = arith.constant 1 : index
    %c0_151 = arith.constant 0 : index
    %331 = vector.load %arg17[%c0_148, %c1_149, %c1_150, %c0_151] : memref<2x9x8x128xf32, #tpu.memory_space<vmem>>, vector<1x6x6x128xf32>
    %332 = vector.shape_cast %331 : vector<1x6x6x128xf32> to vector<6x6x128xf32>
    %333 = vector.shape_cast %330 : vector<6x6x128xf32> to vector<1x6x6x128xf32>
    tpu.vector_store %arg17[%c0_148, %c1_149, %c1_150, %c0_151], %333 {strides = array<i32>} : memref<2x9x8x128xf32, #tpu.memory_space<vmem>>, vector<1x6x6x128xf32>,
    %334 = vector.shape_cast %328 : vector<48x128xf32> to vector<6x8x128xf32>
    %335 = vector.extract_strided_slice %334 {offsets = [0, 0, 0], sizes = [6, 6, 128], strides = [1, 1, 1]} : vector<6x8x128xf32> to vector<6x6x128xf32>
    %c1_152 = arith.constant 1 : index
    %c1_153 = arith.constant 1 : index
    %c1_154 = arith.constant 1 : index
    %c0_155 = arith.constant 0 : index
    %336 = vector.load %arg17[%c1_152, %c1_153, %c1_154, %c0_155] : memref<2x9x8x128xf32, #tpu.memory_space<vmem>>, vector<1x6x6x128xf32>
    %337 = vector.shape_cast %336 : vector<1x6x6x128xf32> to vector<6x6x128xf32>
    %338 = vector.shape_cast %335 : vector<6x6x128xf32> to vector<1x6x6x128xf32>
    tpu.vector_store %arg17[%c1_152, %c1_153, %c1_154, %c0_155], %338 {strides = array<i32>} : memref<2x9x8x128xf32, #tpu.memory_space<vmem>>, vector<1x6x6x128xf32>,
    %cst_156 = arith.constant 0.000000e+00 : f32
    %339 = vector.broadcast %cst_156 : f32 to vector<1x128xf32>
    %cst_157 = arith.constant 0.000000e+00 : f32
    %340 = vector.broadcast %cst_157 : f32 to vector<1x128xf32>
    %c0_158 = arith.constant 0 : index
    %c0_159 = arith.constant 0 : index
    %c0_160 = arith.constant 0 : index
    %c0_161 = arith.constant 0 : index
    %341 = vector.load %arg17[%c0_158, %c0_159, %c0_160, %c0_161] : memref<2x9x8x128xf32, #tpu.memory_space<vmem>>, vector<1x9x8x128xf32>
    %342 = vector.shape_cast %341 : vector<1x9x8x128xf32> to vector<9x8x128xf32>
    %343 = vector.shape_cast %342 : vector<9x8x128xf32> to vector<72x128xf32>
    %344 = vector.extract_strided_slice %343 {offsets = [0, 0], sizes = [48, 128], strides = [1, 1]} : vector<72x128xf32> to vector<48x128xf32>
    %345 = vector.extract_strided_slice %343 {offsets = [1, 0], sizes = [48, 128], strides = [1, 1]} : vector<72x128xf32> to vector<48x128xf32>
    %346 = vector.extract_strided_slice %343 {offsets = [2, 0], sizes = [48, 128], strides = [1, 1]} : vector<72x128xf32> to vector<48x128xf32>
    %347 = vector.extract_strided_slice %343 {offsets = [8, 0], sizes = [48, 128], strides = [1, 1]} : vector<72x128xf32> to vector<48x128xf32>
    %348 = vector.extract_strided_slice %343 {offsets = [9, 0], sizes = [48, 128], strides = [1, 1]} : vector<72x128xf32> to vector<48x128xf32>
    %349 = vector.extract_strided_slice %343 {offsets = [10, 0], sizes = [48, 128], strides = [1, 1]} : vector<72x128xf32> to vector<48x128xf32>
    %350 = vector.extract_strided_slice %343 {offsets = [16, 0], sizes = [48, 128], strides = [1, 1]} : vector<72x128xf32> to vector<48x128xf32>
    %351 = vector.extract_strided_slice %343 {offsets = [17, 0], sizes = [48, 128], strides = [1, 1]} : vector<72x128xf32> to vector<48x128xf32>
    %352 = vector.extract_strided_slice %343 {offsets = [18, 0], sizes = [48, 128], strides = [1, 1]} : vector<72x128xf32> to vector<48x128xf32>
    %353 = tpu.concatenate %344, %345, %346, %347, %348, %349, %350, %351, %352 in 1 : vector<48x128xf32>, vector<48x128xf32>, vector<48x128xf32>, vector<48x128xf32>, vector<48x128xf32>, vector<48x128xf32>, vector<48x128xf32>, vector<48x128xf32>, vector<48x128xf32> -> vector<48x1152xf32>
    %c0_162 = arith.constant 0 : index
    %c0_163 = arith.constant 0 : index
    %354 = vector.load %arg5[%c0_162, %c0_163] : memref<1152x128xf32, #tpu.memory_space<vmem>>, vector<1152x128xf32>
    %cst_164 = arith.constant dense<0.000000e+00> : vector<48x128xf32>
    %355 = tpu.matmul %353, %354, %cst_164 {dimension_numbers = #tpu.dot_dimension_numbers<[1], [0], [0], [1], [0, 0, 1, 1], [], []>} : vector<48x1152xf32>, vector<1152x128xf32>, vector<48x128xf32> -> vector<48x128xf32>
    %356 = tpu.iota {dimensions = array<i32: 0>} : vector<48x1xi32>
    %c8_i32_165 = arith.constant 8 : i32
    %c0_i32_166 = arith.constant 0 : i32
    %357 = arith.cmpi eq, %c8_i32_165, %c0_i32_166 : i32
    %c1_i32_167 = arith.constant 1 : i32
    %358 = arith.select %357, %c1_i32_167, %c8_i32_165 : i32
    %359 = vector.broadcast %358 : i32 to vector<48x1xi32>
    %360 = arith.remsi %356, %359 : vector<48x1xi32>
    %c0_i32_168 = arith.constant 0 : i32
    %361 = vector.broadcast %c0_i32_168 : i32 to vector<48x1xi32>
    %362 = arith.cmpi ne, %360, %361 : vector<48x1xi32>
    %c0_i32_169 = arith.constant 0 : i32
    %363 = vector.broadcast %c0_i32_169 : i32 to vector<48x1xi32>
    %364 = arith.cmpi slt, %360, %363 : vector<48x1xi32>
    %c0_i32_170 = arith.constant 0 : i32
    %365 = arith.cmpi slt, %358, %c0_i32_170 : i32
    %366 = vector.broadcast %365 : i1 to vector<48x1xi1>
    %367 = vector.broadcast %366 : vector<48x1xi1> to vector<48x1xi1>
    %368 = arith.xori %364, %367 : vector<48x1xi1>
    %369 = arith.andi %368, %362 : vector<48x1xi1>
    %370 = vector.broadcast %358 : i32 to vector<48x1xi32>
    %371 = arith.addi %360, %370 : vector<48x1xi32>
    %372 = arith.select %369, %371, %360 : vector<48x1xi1>, vector<48x1xi32>
    %c6_i32_171 = arith.constant 6 : i32
    %373 = vector.broadcast %c6_i32_171 : i32 to vector<48x1xi32>
    %374 = arith.cmpi slt, %372, %373 : vector<48x1xi32>
    %cst_172 = arith.constant 0.000000e+00 : f32
    %375 = vector.shape_cast %374 : vector<48x1xi1> to vector<48x1xi1>
    %376 = vector.broadcast %375 : vector<48x1xi1> to vector<48x128xi1>
    %377 = vector.broadcast %cst_172 : f32 to vector<48x128xf32>
    %378 = arith.select %376, %355, %377 : vector<48x128xi1>, vector<48x128xf32>
    %cst_173 = arith.constant dense<0.000000e+00> : vector<128xf32>
    %379 = vector.multi_reduction <add>, %378, %cst_173 [0] : vector<48x128xf32> to vector<128xf32>
    %380 = vector.shape_cast %379 : vector<128xf32> to vector<1x128xf32>
    %381 = arith.mulf %378, %378 : vector<48x128xf32>
    %cst_174 = arith.constant dense<0.000000e+00> : vector<128xf32>
    %382 = vector.multi_reduction <add>, %381, %cst_174 [0] : vector<48x128xf32> to vector<128xf32>
    %383 = vector.shape_cast %382 : vector<128xf32> to vector<1x128xf32>
    %384 = arith.addf %339, %380 : vector<1x128xf32>
    %385 = arith.addf %340, %383 : vector<1x128xf32>
    %c1_175 = arith.constant 1 : index
    %c0_176 = arith.constant 0 : index
    %c0_177 = arith.constant 0 : index
    %c0_178 = arith.constant 0 : index
    %386 = vector.load %arg17[%c1_175, %c0_176, %c0_177, %c0_178] : memref<2x9x8x128xf32, #tpu.memory_space<vmem>>, vector<1x9x8x128xf32>
    %387 = vector.shape_cast %386 : vector<1x9x8x128xf32> to vector<9x8x128xf32>
    %388 = vector.shape_cast %387 : vector<9x8x128xf32> to vector<72x128xf32>
    %389 = vector.extract_strided_slice %388 {offsets = [0, 0], sizes = [48, 128], strides = [1, 1]} : vector<72x128xf32> to vector<48x128xf32>
    %390 = vector.extract_strided_slice %388 {offsets = [1, 0], sizes = [48, 128], strides = [1, 1]} : vector<72x128xf32> to vector<48x128xf32>
    %391 = vector.extract_strided_slice %388 {offsets = [2, 0], sizes = [48, 128], strides = [1, 1]} : vector<72x128xf32> to vector<48x128xf32>
    %392 = vector.extract_strided_slice %388 {offsets = [8, 0], sizes = [48, 128], strides = [1, 1]} : vector<72x128xf32> to vector<48x128xf32>
    %393 = vector.extract_strided_slice %388 {offsets = [9, 0], sizes = [48, 128], strides = [1, 1]} : vector<72x128xf32> to vector<48x128xf32>
    %394 = vector.extract_strided_slice %388 {offsets = [10, 0], sizes = [48, 128], strides = [1, 1]} : vector<72x128xf32> to vector<48x128xf32>
    %395 = vector.extract_strided_slice %388 {offsets = [16, 0], sizes = [48, 128], strides = [1, 1]} : vector<72x128xf32> to vector<48x128xf32>
    %396 = vector.extract_strided_slice %388 {offsets = [17, 0], sizes = [48, 128], strides = [1, 1]} : vector<72x128xf32> to vector<48x128xf32>
    %397 = vector.extract_strided_slice %388 {offsets = [18, 0], sizes = [48, 128], strides = [1, 1]} : vector<72x128xf32> to vector<48x128xf32>
    %398 = tpu.concatenate %389, %390, %391, %392, %393, %394, %395, %396, %397 in 1 : vector<48x128xf32>, vector<48x128xf32>, vector<48x128xf32>, vector<48x128xf32>, vector<48x128xf32>, vector<48x128xf32>, vector<48x128xf32>, vector<48x128xf32>, vector<48x128xf32> -> vector<48x1152xf32>
    %c0_179 = arith.constant 0 : index
    %c0_180 = arith.constant 0 : index
    %399 = vector.load %arg5[%c0_179, %c0_180] : memref<1152x128xf32, #tpu.memory_space<vmem>>, vector<1152x128xf32>
    %cst_181 = arith.constant dense<0.000000e+00> : vector<48x128xf32>
    %400 = tpu.matmul %398, %399, %cst_181 {dimension_numbers = #tpu.dot_dimension_numbers<[1], [0], [0], [1], [0, 0, 1, 1], [], []>} : vector<48x1152xf32>, vector<1152x128xf32>, vector<48x128xf32> -> vector<48x128xf32>
    %401 = tpu.iota {dimensions = array<i32: 0>} : vector<48x1xi32>
    %c8_i32_182 = arith.constant 8 : i32
    %c0_i32_183 = arith.constant 0 : i32
    %402 = arith.cmpi eq, %c8_i32_182, %c0_i32_183 : i32
    %c1_i32_184 = arith.constant 1 : i32
    %403 = arith.select %402, %c1_i32_184, %c8_i32_182 : i32
    %404 = vector.broadcast %403 : i32 to vector<48x1xi32>
    %405 = arith.remsi %401, %404 : vector<48x1xi32>
    %c0_i32_185 = arith.constant 0 : i32
    %406 = vector.broadcast %c0_i32_185 : i32 to vector<48x1xi32>
    %407 = arith.cmpi ne, %405, %406 : vector<48x1xi32>
    %c0_i32_186 = arith.constant 0 : i32
    %408 = vector.broadcast %c0_i32_186 : i32 to vector<48x1xi32>
    %409 = arith.cmpi slt, %405, %408 : vector<48x1xi32>
    %c0_i32_187 = arith.constant 0 : i32
    %410 = arith.cmpi slt, %403, %c0_i32_187 : i32
    %411 = vector.broadcast %410 : i1 to vector<48x1xi1>
    %412 = vector.broadcast %411 : vector<48x1xi1> to vector<48x1xi1>
    %413 = arith.xori %409, %412 : vector<48x1xi1>
    %414 = arith.andi %413, %407 : vector<48x1xi1>
    %415 = vector.broadcast %403 : i32 to vector<48x1xi32>
    %416 = arith.addi %405, %415 : vector<48x1xi32>
    %417 = arith.select %414, %416, %405 : vector<48x1xi1>, vector<48x1xi32>
    %c6_i32_188 = arith.constant 6 : i32
    %418 = vector.broadcast %c6_i32_188 : i32 to vector<48x1xi32>
    %419 = arith.cmpi slt, %417, %418 : vector<48x1xi32>
    %cst_189 = arith.constant 0.000000e+00 : f32
    %420 = vector.shape_cast %419 : vector<48x1xi1> to vector<48x1xi1>
    %421 = vector.broadcast %420 : vector<48x1xi1> to vector<48x128xi1>
    %422 = vector.broadcast %cst_189 : f32 to vector<48x128xf32>
    %423 = arith.select %421, %400, %422 : vector<48x128xi1>, vector<48x128xf32>
    %cst_190 = arith.constant dense<0.000000e+00> : vector<128xf32>
    %424 = vector.multi_reduction <add>, %423, %cst_190 [0] : vector<48x128xf32> to vector<128xf32>
    %425 = vector.shape_cast %424 : vector<128xf32> to vector<1x128xf32>
    %426 = arith.mulf %423, %423 : vector<48x128xf32>
    %cst_191 = arith.constant dense<0.000000e+00> : vector<128xf32>
    %427 = vector.multi_reduction <add>, %426, %cst_191 [0] : vector<48x128xf32> to vector<128xf32>
    %428 = vector.shape_cast %427 : vector<128xf32> to vector<1x128xf32>
    %429 = arith.addf %384, %425 : vector<1x128xf32>
    %430 = arith.addf %385, %428 : vector<1x128xf32>
    %cst_192 = arith.constant 7.200000e+01 : f32
    %431 = vector.broadcast %cst_192 : f32 to vector<1x128xf32>
    %432 = arith.divf %429, %431 : vector<1x128xf32>
    %cst_193 = arith.constant 7.200000e+01 : f32
    %433 = vector.broadcast %cst_193 : f32 to vector<1x128xf32>
    %434 = arith.divf %430, %433 : vector<1x128xf32>
    %435 = arith.mulf %432, %432 : vector<1x128xf32>
    %436 = arith.subf %434, %435 : vector<1x128xf32>
    %c0_194 = arith.constant 0 : index
    %c0_195 = arith.constant 0 : index
    %437 = vector.load %arg9[%c0_194, %c0_195] : memref<1x128xf32, #tpu.memory_space<vmem>>, vector<1x128xf32>
    %cst_196 = arith.constant 9.99999974E-6 : f32
    %438 = vector.broadcast %cst_196 : f32 to vector<1x128xf32>
    %439 = arith.addf %436, %438 : vector<1x128xf32>
    %440 = math.rsqrt %439 : vector<1x128xf32>
    %441 = arith.mulf %437, %440 : vector<1x128xf32>
    %c0_197 = arith.constant 0 : index
    %c0_198 = arith.constant 0 : index
    %442 = vector.load %arg10[%c0_197, %c0_198] : memref<1x128xf32, #tpu.memory_space<vmem>>, vector<1x128xf32>
    %443 = arith.mulf %432, %441 : vector<1x128xf32>
    %444 = arith.subf %442, %443 : vector<1x128xf32>
    %445 = vector.broadcast %441 : vector<1x128xf32> to vector<48x128xf32>
    %446 = arith.mulf %355, %445 : vector<48x128xf32>
    %447 = vector.broadcast %444 : vector<1x128xf32> to vector<48x128xf32>
    %448 = arith.addf %446, %447 : vector<48x128xf32>
    %cst_199 = arith.constant 0.000000e+00 : f32
    %449 = vector.broadcast %cst_199 : f32 to vector<48x128xf32>
    %450 = arith.maximumf %448, %449 : vector<48x128xf32>
    %451 = vector.broadcast %441 : vector<1x128xf32> to vector<48x128xf32>
    %452 = arith.mulf %400, %451 : vector<48x128xf32>
    %453 = vector.broadcast %444 : vector<1x128xf32> to vector<48x128xf32>
    %454 = arith.addf %452, %453 : vector<48x128xf32>
    %cst_200 = arith.constant 0.000000e+00 : f32
    %455 = vector.broadcast %cst_200 : f32 to vector<48x128xf32>
    %456 = arith.maximumf %454, %455 : vector<48x128xf32>
    %457 = vector.shape_cast %450 : vector<48x128xf32> to vector<6x8x128xf32>
    %458 = vector.extract_strided_slice %457 {offsets = [0, 0, 0], sizes = [1, 8, 128], strides = [1, 1, 1]} : vector<6x8x128xf32> to vector<1x8x128xf32>
    %459 = vector.shape_cast %458 : vector<1x8x128xf32> to vector<8x128xf32>
    %460 = vector.extract_strided_slice %457 {offsets = [1, 0, 0], sizes = [1, 8, 128], strides = [1, 1, 1]} : vector<6x8x128xf32> to vector<1x8x128xf32>
    %461 = vector.shape_cast %460 : vector<1x8x128xf32> to vector<8x128xf32>
    %462 = arith.maximumf %459, %461 : vector<8x128xf32>
    %463 = vector.extract_strided_slice %457 {offsets = [2, 0, 0], sizes = [1, 8, 128], strides = [1, 1, 1]} : vector<6x8x128xf32> to vector<1x8x128xf32>
    %464 = vector.shape_cast %463 : vector<1x8x128xf32> to vector<8x128xf32>
    %465 = arith.maximumf %462, %464 : vector<8x128xf32>
    %466 = vector.extract_strided_slice %457 {offsets = [3, 0, 0], sizes = [1, 8, 128], strides = [1, 1, 1]} : vector<6x8x128xf32> to vector<1x8x128xf32>
    %467 = vector.shape_cast %466 : vector<1x8x128xf32> to vector<8x128xf32>
    %468 = arith.maximumf %465, %467 : vector<8x128xf32>
    %469 = vector.extract_strided_slice %457 {offsets = [4, 0, 0], sizes = [1, 8, 128], strides = [1, 1, 1]} : vector<6x8x128xf32> to vector<1x8x128xf32>
    %470 = vector.shape_cast %469 : vector<1x8x128xf32> to vector<8x128xf32>
    %471 = arith.maximumf %468, %470 : vector<8x128xf32>
    %472 = vector.extract_strided_slice %457 {offsets = [5, 0, 0], sizes = [1, 8, 128], strides = [1, 1, 1]} : vector<6x8x128xf32> to vector<1x8x128xf32>
    %473 = vector.shape_cast %472 : vector<1x8x128xf32> to vector<8x128xf32>
    %474 = arith.maximumf %471, %473 : vector<8x128xf32>
    %c0_201 = arith.constant 0 : index
    %c0_202 = arith.constant 0 : index
    %475 = vector.load %arg19[%c0_201, %c0_202] : memref<8x128xf32, #tpu.memory_space<vmem>>, vector<8x128xf32>
    tpu.vector_store %arg19[%c0_201, %c0_202], %474 {strides = array<i32>} : memref<8x128xf32, #tpu.memory_space<vmem>>, vector<8x128xf32>,
    %c0_203 = arith.constant 0 : index
    %c0_204 = arith.constant 0 : index
    %476 = tpu.strided_load %arg19[%c0_203, %c0_204] {strides = array<i32: 2, 1>} : memref<8x128xf32, #tpu.memory_space<vmem>>, vector<3x128xf32>
    %c1_205 = arith.constant 1 : index
    %c0_206 = arith.constant 0 : index
    %477 = tpu.strided_load %arg19[%c1_205, %c0_206] {strides = array<i32: 2, 1>} : memref<8x128xf32, #tpu.memory_space<vmem>>, vector<3x128xf32>
    %478 = arith.maximumf %476, %477 : vector<3x128xf32>
    %479 = vector.shape_cast %478 : vector<3x128xf32> to vector<1x3x128xf32>
    %c0_207 = arith.constant 0 : index
    %c1_208 = arith.constant 1 : index
    %c1_209 = arith.constant 1 : index
    %c0_210 = arith.constant 0 : index
    %480 = vector.load %arg18[%c0_207, %c1_208, %c1_209, %c0_210] : memref<2x4x8x128xf32, #tpu.memory_space<vmem>>, vector<1x1x3x128xf32>
    %481 = vector.shape_cast %480 : vector<1x1x3x128xf32> to vector<1x3x128xf32>
    %482 = vector.shape_cast %479 : vector<1x3x128xf32> to vector<1x1x3x128xf32>
    tpu.vector_store %arg18[%c0_207, %c1_208, %c1_209, %c0_210], %482 {strides = array<i32>} : memref<2x4x8x128xf32, #tpu.memory_space<vmem>>, vector<1x1x3x128xf32>,
    %483 = vector.shape_cast %456 : vector<48x128xf32> to vector<6x8x128xf32>
    %484 = vector.extract_strided_slice %483 {offsets = [0, 0, 0], sizes = [1, 8, 128], strides = [1, 1, 1]} : vector<6x8x128xf32> to vector<1x8x128xf32>
    %485 = vector.shape_cast %484 : vector<1x8x128xf32> to vector<8x128xf32>
    %486 = vector.extract_strided_slice %483 {offsets = [1, 0, 0], sizes = [1, 8, 128], strides = [1, 1, 1]} : vector<6x8x128xf32> to vector<1x8x128xf32>
    %487 = vector.shape_cast %486 : vector<1x8x128xf32> to vector<8x128xf32>
    %488 = arith.maximumf %485, %487 : vector<8x128xf32>
    %489 = vector.extract_strided_slice %483 {offsets = [2, 0, 0], sizes = [1, 8, 128], strides = [1, 1, 1]} : vector<6x8x128xf32> to vector<1x8x128xf32>
    %490 = vector.shape_cast %489 : vector<1x8x128xf32> to vector<8x128xf32>
    %491 = arith.maximumf %488, %490 : vector<8x128xf32>
    %492 = vector.extract_strided_slice %483 {offsets = [3, 0, 0], sizes = [1, 8, 128], strides = [1, 1, 1]} : vector<6x8x128xf32> to vector<1x8x128xf32>
    %493 = vector.shape_cast %492 : vector<1x8x128xf32> to vector<8x128xf32>
    %494 = arith.maximumf %491, %493 : vector<8x128xf32>
    %495 = vector.extract_strided_slice %483 {offsets = [4, 0, 0], sizes = [1, 8, 128], strides = [1, 1, 1]} : vector<6x8x128xf32> to vector<1x8x128xf32>
    %496 = vector.shape_cast %495 : vector<1x8x128xf32> to vector<8x128xf32>
    %497 = arith.maximumf %494, %496 : vector<8x128xf32>
    %498 = vector.extract_strided_slice %483 {offsets = [5, 0, 0], sizes = [1, 8, 128], strides = [1, 1, 1]} : vector<6x8x128xf32> to vector<1x8x128xf32>
    %499 = vector.shape_cast %498 : vector<1x8x128xf32> to vector<8x128xf32>
    %500 = arith.maximumf %497, %499 : vector<8x128xf32>
    %c0_211 = arith.constant 0 : index
    %c0_212 = arith.constant 0 : index
    %501 = vector.load %arg19[%c0_211, %c0_212] : memref<8x128xf32, #tpu.memory_space<vmem>>, vector<8x128xf32>
    tpu.vector_store %arg19[%c0_211, %c0_212], %500 {strides = array<i32>} : memref<8x128xf32, #tpu.memory_space<vmem>>, vector<8x128xf32>,
    %c0_213 = arith.constant 0 : index
    %c0_214 = arith.constant 0 : index
    %502 = tpu.strided_load %arg19[%c0_213, %c0_214] {strides = array<i32: 2, 1>} : memref<8x128xf32, #tpu.memory_space<vmem>>, vector<3x128xf32>
    %c1_215 = arith.constant 1 : index
    %c0_216 = arith.constant 0 : index
    %503 = tpu.strided_load %arg19[%c1_215, %c0_216] {strides = array<i32: 2, 1>} : memref<8x128xf32, #tpu.memory_space<vmem>>, vector<3x128xf32>
    %504 = arith.maximumf %502, %503 : vector<3x128xf32>
    %505 = vector.shape_cast %504 : vector<3x128xf32> to vector<1x3x128xf32>
    %c1_217 = arith.constant 1 : index
    %c1_218 = arith.constant 1 : index
    %c1_219 = arith.constant 1 : index
    %c0_220 = arith.constant 0 : index
    %506 = vector.load %arg18[%c1_217, %c1_218, %c1_219, %c0_220] : memref<2x4x8x128xf32, #tpu.memory_space<vmem>>, vector<1x1x3x128xf32>
    %507 = vector.shape_cast %506 : vector<1x1x3x128xf32> to vector<1x3x128xf32>
    %508 = vector.shape_cast %505 : vector<1x3x128xf32> to vector<1x1x3x128xf32>
    tpu.vector_store %arg18[%c1_217, %c1_218, %c1_219, %c0_220], %508 {strides = array<i32>} : memref<2x4x8x128xf32, #tpu.memory_space<vmem>>, vector<1x1x3x128xf32>,
    %cst_221 = arith.constant 0.000000e+00 : f32
    %509 = vector.broadcast %cst_221 : f32 to vector<1x128xf32>
    %cst_222 = arith.constant 0.000000e+00 : f32
    %510 = vector.broadcast %cst_222 : f32 to vector<1x128xf32>
    %c0_223 = arith.constant 0 : index
    %c0_224 = arith.constant 0 : index
    %c0_225 = arith.constant 0 : index
    %c0_226 = arith.constant 0 : index
    %511 = vector.load %arg18[%c0_223, %c0_224, %c0_225, %c0_226] : memref<2x4x8x128xf32, #tpu.memory_space<vmem>>, vector<1x4x8x128xf32>
    %512 = vector.shape_cast %511 : vector<1x4x8x128xf32> to vector<4x8x128xf32>
    %513 = vector.shape_cast %512 : vector<4x8x128xf32> to vector<32x128xf32>
    %514 = vector.extract_strided_slice %513 {offsets = [0, 0], sizes = [8, 128], strides = [1, 1]} : vector<32x128xf32> to vector<8x128xf32>
    %515 = vector.extract_strided_slice %513 {offsets = [1, 0], sizes = [8, 128], strides = [1, 1]} : vector<32x128xf32> to vector<8x128xf32>
    %516 = vector.extract_strided_slice %513 {offsets = [2, 0], sizes = [8, 128], strides = [1, 1]} : vector<32x128xf32> to vector<8x128xf32>
    %517 = vector.extract_strided_slice %513 {offsets = [8, 0], sizes = [8, 128], strides = [1, 1]} : vector<32x128xf32> to vector<8x128xf32>
    %518 = vector.extract_strided_slice %513 {offsets = [9, 0], sizes = [8, 128], strides = [1, 1]} : vector<32x128xf32> to vector<8x128xf32>
    %519 = vector.extract_strided_slice %513 {offsets = [10, 0], sizes = [8, 128], strides = [1, 1]} : vector<32x128xf32> to vector<8x128xf32>
    %520 = vector.extract_strided_slice %513 {offsets = [16, 0], sizes = [8, 128], strides = [1, 1]} : vector<32x128xf32> to vector<8x128xf32>
    %521 = vector.extract_strided_slice %513 {offsets = [17, 0], sizes = [8, 128], strides = [1, 1]} : vector<32x128xf32> to vector<8x128xf32>
    %522 = vector.extract_strided_slice %513 {offsets = [18, 0], sizes = [8, 128], strides = [1, 1]} : vector<32x128xf32> to vector<8x128xf32>
    %523 = tpu.concatenate %514, %515, %516, %517, %518, %519, %520, %521, %522 in 1 : vector<8x128xf32>, vector<8x128xf32>, vector<8x128xf32>, vector<8x128xf32>, vector<8x128xf32>, vector<8x128xf32>, vector<8x128xf32>, vector<8x128xf32>, vector<8x128xf32> -> vector<8x1152xf32>
    %c0_227 = arith.constant 0 : index
    %c0_228 = arith.constant 0 : index
    %524 = vector.load %arg6[%c0_227, %c0_228] : memref<1152x128xf32, #tpu.memory_space<vmem>>, vector<1152x128xf32>
    %cst_229 = arith.constant dense<0.000000e+00> : vector<8x128xf32>
    %525 = tpu.matmul %523, %524, %cst_229 {dimension_numbers = #tpu.dot_dimension_numbers<[1], [0], [0], [1], [0, 0, 1, 1], [], []>} : vector<8x1152xf32>, vector<1152x128xf32>, vector<8x128xf32> -> vector<8x128xf32>
    %526 = tpu.iota {dimensions = array<i32: 0>} : vector<8x1xi32>
    %c8_i32_230 = arith.constant 8 : i32
    %c0_i32_231 = arith.constant 0 : i32
    %527 = arith.cmpi eq, %c8_i32_230, %c0_i32_231 : i32
    %c1_i32_232 = arith.constant 1 : i32
    %528 = arith.select %527, %c1_i32_232, %c8_i32_230 : i32
    %529 = vector.broadcast %528 : i32 to vector<8x1xi32>
    %530 = arith.remsi %526, %529 : vector<8x1xi32>
    %c0_i32_233 = arith.constant 0 : i32
    %531 = vector.broadcast %c0_i32_233 : i32 to vector<8x1xi32>
    %532 = arith.cmpi ne, %530, %531 : vector<8x1xi32>
    %c0_i32_234 = arith.constant 0 : i32
    %533 = vector.broadcast %c0_i32_234 : i32 to vector<8x1xi32>
    %534 = arith.cmpi slt, %530, %533 : vector<8x1xi32>
    %c0_i32_235 = arith.constant 0 : i32
    %535 = arith.cmpi slt, %528, %c0_i32_235 : i32
    %536 = vector.broadcast %535 : i1 to vector<8x1xi1>
    %537 = vector.broadcast %536 : vector<8x1xi1> to vector<8x1xi1>
    %538 = arith.xori %534, %537 : vector<8x1xi1>
    %539 = arith.andi %538, %532 : vector<8x1xi1>
    %540 = vector.broadcast %528 : i32 to vector<8x1xi32>
    %541 = arith.addi %530, %540 : vector<8x1xi32>
    %542 = arith.select %539, %541, %530 : vector<8x1xi1>, vector<8x1xi32>
    %c3_i32 = arith.constant 3 : i32
    %543 = vector.broadcast %c3_i32 : i32 to vector<8x1xi32>
    %544 = arith.cmpi slt, %542, %543 : vector<8x1xi32>
    %cst_236 = arith.constant 0.000000e+00 : f32
    %545 = vector.shape_cast %544 : vector<8x1xi1> to vector<8x1xi1>
    %546 = vector.broadcast %545 : vector<8x1xi1> to vector<8x128xi1>
    %547 = vector.broadcast %cst_236 : f32 to vector<8x128xf32>
    %548 = arith.select %546, %525, %547 : vector<8x128xi1>, vector<8x128xf32>
    %cst_237 = arith.constant dense<0.000000e+00> : vector<128xf32>
    %549 = vector.multi_reduction <add>, %548, %cst_237 [0] : vector<8x128xf32> to vector<128xf32>
    %550 = vector.shape_cast %549 : vector<128xf32> to vector<1x128xf32>
    %551 = arith.mulf %548, %548 : vector<8x128xf32>
    %cst_238 = arith.constant dense<0.000000e+00> : vector<128xf32>
    %552 = vector.multi_reduction <add>, %551, %cst_238 [0] : vector<8x128xf32> to vector<128xf32>
    %553 = vector.shape_cast %552 : vector<128xf32> to vector<1x128xf32>
    %554 = arith.addf %509, %550 : vector<1x128xf32>
    %555 = arith.addf %510, %553 : vector<1x128xf32>
    %c1_239 = arith.constant 1 : index
    %c0_240 = arith.constant 0 : index
    %c0_241 = arith.constant 0 : index
    %c0_242 = arith.constant 0 : index
    %556 = vector.load %arg18[%c1_239, %c0_240, %c0_241, %c0_242] : memref<2x4x8x128xf32, #tpu.memory_space<vmem>>, vector<1x4x8x128xf32>
    %557 = vector.shape_cast %556 : vector<1x4x8x128xf32> to vector<4x8x128xf32>
    %558 = vector.shape_cast %557 : vector<4x8x128xf32> to vector<32x128xf32>
    %559 = vector.extract_strided_slice %558 {offsets = [0, 0], sizes = [8, 128], strides = [1, 1]} : vector<32x128xf32> to vector<8x128xf32>
    %560 = vector.extract_strided_slice %558 {offsets = [1, 0], sizes = [8, 128], strides = [1, 1]} : vector<32x128xf32> to vector<8x128xf32>
    %561 = vector.extract_strided_slice %558 {offsets = [2, 0], sizes = [8, 128], strides = [1, 1]} : vector<32x128xf32> to vector<8x128xf32>
    %562 = vector.extract_strided_slice %558 {offsets = [8, 0], sizes = [8, 128], strides = [1, 1]} : vector<32x128xf32> to vector<8x128xf32>
    %563 = vector.extract_strided_slice %558 {offsets = [9, 0], sizes = [8, 128], strides = [1, 1]} : vector<32x128xf32> to vector<8x128xf32>
    %564 = vector.extract_strided_slice %558 {offsets = [10, 0], sizes = [8, 128], strides = [1, 1]} : vector<32x128xf32> to vector<8x128xf32>
    %565 = vector.extract_strided_slice %558 {offsets = [16, 0], sizes = [8, 128], strides = [1, 1]} : vector<32x128xf32> to vector<8x128xf32>
    %566 = vector.extract_strided_slice %558 {offsets = [17, 0], sizes = [8, 128], strides = [1, 1]} : vector<32x128xf32> to vector<8x128xf32>
    %567 = vector.extract_strided_slice %558 {offsets = [18, 0], sizes = [8, 128], strides = [1, 1]} : vector<32x128xf32> to vector<8x128xf32>
    %568 = tpu.concatenate %559, %560, %561, %562, %563, %564, %565, %566, %567 in 1 : vector<8x128xf32>, vector<8x128xf32>, vector<8x128xf32>, vector<8x128xf32>, vector<8x128xf32>, vector<8x128xf32>, vector<8x128xf32>, vector<8x128xf32>, vector<8x128xf32> -> vector<8x1152xf32>
    %c0_243 = arith.constant 0 : index
    %c0_244 = arith.constant 0 : index
    %569 = vector.load %arg6[%c0_243, %c0_244] : memref<1152x128xf32, #tpu.memory_space<vmem>>, vector<1152x128xf32>
    %cst_245 = arith.constant dense<0.000000e+00> : vector<8x128xf32>
    %570 = tpu.matmul %568, %569, %cst_245 {dimension_numbers = #tpu.dot_dimension_numbers<[1], [0], [0], [1], [0, 0, 1, 1], [], []>} : vector<8x1152xf32>, vector<1152x128xf32>, vector<8x128xf32> -> vector<8x128xf32>
    %571 = tpu.iota {dimensions = array<i32: 0>} : vector<8x1xi32>
    %c8_i32_246 = arith.constant 8 : i32
    %c0_i32_247 = arith.constant 0 : i32
    %572 = arith.cmpi eq, %c8_i32_246, %c0_i32_247 : i32
    %c1_i32_248 = arith.constant 1 : i32
    %573 = arith.select %572, %c1_i32_248, %c8_i32_246 : i32
    %574 = vector.broadcast %573 : i32 to vector<8x1xi32>
    %575 = arith.remsi %571, %574 : vector<8x1xi32>
    %c0_i32_249 = arith.constant 0 : i32
    %576 = vector.broadcast %c0_i32_249 : i32 to vector<8x1xi32>
    %577 = arith.cmpi ne, %575, %576 : vector<8x1xi32>
    %c0_i32_250 = arith.constant 0 : i32
    %578 = vector.broadcast %c0_i32_250 : i32 to vector<8x1xi32>
    %579 = arith.cmpi slt, %575, %578 : vector<8x1xi32>
    %c0_i32_251 = arith.constant 0 : i32
    %580 = arith.cmpi slt, %573, %c0_i32_251 : i32
    %581 = vector.broadcast %580 : i1 to vector<8x1xi1>
    %582 = vector.broadcast %581 : vector<8x1xi1> to vector<8x1xi1>
    %583 = arith.xori %579, %582 : vector<8x1xi1>
    %584 = arith.andi %583, %577 : vector<8x1xi1>
    %585 = vector.broadcast %573 : i32 to vector<8x1xi32>
    %586 = arith.addi %575, %585 : vector<8x1xi32>
    %587 = arith.select %584, %586, %575 : vector<8x1xi1>, vector<8x1xi32>
    %c3_i32_252 = arith.constant 3 : i32
    %588 = vector.broadcast %c3_i32_252 : i32 to vector<8x1xi32>
    %589 = arith.cmpi slt, %587, %588 : vector<8x1xi32>
    %cst_253 = arith.constant 0.000000e+00 : f32
    %590 = vector.shape_cast %589 : vector<8x1xi1> to vector<8x1xi1>
    %591 = vector.broadcast %590 : vector<8x1xi1> to vector<8x128xi1>
    %592 = vector.broadcast %cst_253 : f32 to vector<8x128xf32>
    %593 = arith.select %591, %570, %592 : vector<8x128xi1>, vector<8x128xf32>
    %cst_254 = arith.constant dense<0.000000e+00> : vector<128xf32>
    %594 = vector.multi_reduction <add>, %593, %cst_254 [0] : vector<8x128xf32> to vector<128xf32>
    %595 = vector.shape_cast %594 : vector<128xf32> to vector<1x128xf32>
    %596 = arith.mulf %593, %593 : vector<8x128xf32>
    %cst_255 = arith.constant dense<0.000000e+00> : vector<128xf32>
    %597 = vector.multi_reduction <add>, %596, %cst_255 [0] : vector<8x128xf32> to vector<128xf32>
    %598 = vector.shape_cast %597 : vector<128xf32> to vector<1x128xf32>
    %599 = arith.addf %554, %595 : vector<1x128xf32>
    %600 = arith.addf %555, %598 : vector<1x128xf32>
    %cst_256 = arith.constant 6.000000e+00 : f32
    %601 = vector.broadcast %cst_256 : f32 to vector<1x128xf32>
    %602 = arith.divf %599, %601 : vector<1x128xf32>
    %cst_257 = arith.constant 6.000000e+00 : f32
    %603 = vector.broadcast %cst_257 : f32 to vector<1x128xf32>
    %604 = arith.divf %600, %603 : vector<1x128xf32>
    %605 = arith.mulf %602, %602 : vector<1x128xf32>
    %606 = arith.subf %604, %605 : vector<1x128xf32>
    %c0_258 = arith.constant 0 : index
    %c0_259 = arith.constant 0 : index
    %607 = vector.load %arg11[%c0_258, %c0_259] : memref<1x128xf32, #tpu.memory_space<vmem>>, vector<1x128xf32>
    %cst_260 = arith.constant 9.99999974E-6 : f32
    %608 = vector.broadcast %cst_260 : f32 to vector<1x128xf32>
    %609 = arith.addf %606, %608 : vector<1x128xf32>
    %610 = math.rsqrt %609 : vector<1x128xf32>
    %611 = arith.mulf %607, %610 : vector<1x128xf32>
    %c0_261 = arith.constant 0 : index
    %c0_262 = arith.constant 0 : index
    %612 = vector.load %arg12[%c0_261, %c0_262] : memref<1x128xf32, #tpu.memory_space<vmem>>, vector<1x128xf32>
    %613 = arith.mulf %602, %611 : vector<1x128xf32>
    %614 = arith.subf %612, %613 : vector<1x128xf32>
    %615 = vector.broadcast %611 : vector<1x128xf32> to vector<8x128xf32>
    %616 = arith.mulf %525, %615 : vector<8x128xf32>
    %617 = vector.broadcast %614 : vector<1x128xf32> to vector<8x128xf32>
    %618 = arith.addf %616, %617 : vector<8x128xf32>
    %cst_263 = arith.constant 0.000000e+00 : f32
    %619 = vector.broadcast %cst_263 : f32 to vector<8x128xf32>
    %620 = arith.maximumf %618, %619 : vector<8x128xf32>
    %621 = vector.broadcast %611 : vector<1x128xf32> to vector<8x128xf32>
    %622 = arith.mulf %570, %621 : vector<8x128xf32>
    %623 = vector.broadcast %614 : vector<1x128xf32> to vector<8x128xf32>
    %624 = arith.addf %622, %623 : vector<8x128xf32>
    %cst_264 = arith.constant 0.000000e+00 : f32
    %625 = vector.broadcast %cst_264 : f32 to vector<8x128xf32>
    %626 = arith.maximumf %624, %625 : vector<8x128xf32>
    %627 = vector.extract_strided_slice %620 {offsets = [0, 0], sizes = [3, 128], strides = [1, 1]} : vector<8x128xf32> to vector<3x128xf32>
    %628 = vector.shape_cast %627 : vector<3x128xf32> to vector<1x3x128xf32>
    %c0_265 = arith.constant 0 : index
    %c0_266 = arith.constant 0 : index
    %c0_267 = arith.constant 0 : index
    %c0_268 = arith.constant 0 : index
    %629 = vector.load %arg13[%c0_265, %c0_266, %c0_267, %c0_268] : memref<2x1x3x128xf32, #tpu.memory_space<vmem>>, vector<1x1x3x128xf32>
    %630 = vector.shape_cast %629 : vector<1x1x3x128xf32> to vector<1x3x128xf32>
    %631 = vector.shape_cast %628 : vector<1x3x128xf32> to vector<1x1x3x128xf32>
    tpu.vector_store %arg13[%c0_265, %c0_266, %c0_267, %c0_268], %631 {strides = array<i32>} : memref<2x1x3x128xf32, #tpu.memory_space<vmem>>, vector<1x1x3x128xf32>,
    %632 = vector.extract_strided_slice %626 {offsets = [0, 0], sizes = [3, 128], strides = [1, 1]} : vector<8x128xf32> to vector<3x128xf32>
    %633 = vector.shape_cast %632 : vector<3x128xf32> to vector<1x3x128xf32>
    %c1_269 = arith.constant 1 : index
    %c0_270 = arith.constant 0 : index
    %c0_271 = arith.constant 0 : index
    %c0_272 = arith.constant 0 : index
    %634 = vector.load %arg13[%c1_269, %c0_270, %c0_271, %c0_272] : memref<2x1x3x128xf32, #tpu.memory_space<vmem>>, vector<1x1x3x128xf32>
    %635 = vector.shape_cast %634 : vector<1x1x3x128xf32> to vector<1x3x128xf32>
    %636 = vector.shape_cast %633 : vector<1x3x128xf32> to vector<1x1x3x128xf32>
    tpu.vector_store %arg13[%c1_269, %c0_270, %c0_271, %c0_272], %636 {strides = array<i32>} : memref<2x1x3x128xf32, #tpu.memory_space<vmem>>, vector<1x1x3x128xf32>,
    return
  }
  func.func @transform_0(%arg0: i32) -> (i32, i32, i32) {
    %c0_i32 = arith.constant 0 : i32
    %c0_i32_0 = arith.constant 0 : i32
    %c0_i32_1 = arith.constant 0 : i32
    %c0_i32_2 = arith.constant 0 : i32
    return %c0_i32, %c0_i32_0, %c0_i32_1 : i32, i32, i32
  }
  func.func @transform_1(%arg0: i32) -> (i32, i32) {
    %c0_i32 = arith.constant 0 : i32
    %c0_i32_0 = arith.constant 0 : i32
    %c0_i32_1 = arith.constant 0 : i32
    return %c0_i32, %c0_i32_0 : i32, i32
  }
  func.func @transform_2(%arg0: i32) -> (i32, i32) {
    %c0_i32 = arith.constant 0 : i32
    %c0_i32_0 = arith.constant 0 : i32
    %c0_i32_1 = arith.constant 0 : i32
    return %c0_i32, %c0_i32_0 : i32, i32
  }
  func.func @transform_3(%arg0: i32) -> (i32, i32) {
    %c0_i32 = arith.constant 0 : i32
    %c0_i32_0 = arith.constant 0 : i32
    %c0_i32_1 = arith.constant 0 : i32
    return %c0_i32, %c0_i32_0 : i32, i32
  }
  func.func @transform_4(%arg0: i32) -> (i32, i32) {
    %c0_i32 = arith.constant 0 : i32
    %c0_i32_0 = arith.constant 0 : i32
    %c0_i32_1 = arith.constant 0 : i32
    return %c0_i32, %c0_i32_0 : i32, i32
  }
  func.func @transform_5(%arg0: i32) -> (i32, i32) {
    %c0_i32 = arith.constant 0 : i32
    %c0_i32_0 = arith.constant 0 : i32
    %c0_i32_1 = arith.constant 0 : i32
    return %c0_i32, %c0_i32_0 : i32, i32
  }
  func.func @transform_6(%arg0: i32) -> (i32, i32) {
    %c0_i32 = arith.constant 0 : i32
    %c0_i32_0 = arith.constant 0 : i32
    %c0_i32_1 = arith.constant 0 : i32
    return %c0_i32, %c0_i32_0 : i32, i32
  }
  func.func @transform_7(%arg0: i32) -> (i32, i32) {
    %c0_i32 = arith.constant 0 : i32
    %c0_i32_0 = arith.constant 0 : i32
    %c0_i32_1 = arith.constant 0 : i32
    return %c0_i32, %c0_i32_0 : i32, i32
  }
  func.func @transform_8(%arg0: i32) -> (i32, i32) {
    %c0_i32 = arith.constant 0 : i32
    %c0_i32_0 = arith.constant 0 : i32
    %c0_i32_1 = arith.constant 0 : i32
    return %c0_i32, %c0_i32_0 : i32, i32
  }
  func.func @transform_9(%arg0: i32) -> (i32, i32) {
    %c0_i32 = arith.constant 0 : i32
    %c0_i32_0 = arith.constant 0 : i32
    %c0_i32_1 = arith.constant 0 : i32
    return %c0_i32, %c0_i32_0 : i32, i32
  }
  func.func @transform_10(%arg0: i32) -> (i32, i32) {
    %c0_i32 = arith.constant 0 : i32
    %c0_i32_0 = arith.constant 0 : i32
    %c0_i32_1 = arith.constant 0 : i32
    return %c0_i32, %c0_i32_0 : i32, i32
  }
  func.func @transform_11(%arg0: i32) -> (i32, i32) {
    %c0_i32 = arith.constant 0 : i32
    %c0_i32_0 = arith.constant 0 : i32
    %c0_i32_1 = arith.constant 0 : i32
    return %c0_i32, %c0_i32_0 : i32, i32
  }
  func.func @transform_12(%arg0: i32) -> (i32, i32, i32, i32) {
    %c0_i32 = arith.constant 0 : i32
    %c0_i32_0 = arith.constant 0 : i32
    %c0_i32_1 = arith.constant 0 : i32
    %c0_i32_2 = arith.constant 0 : i32
    %c0_i32_3 = arith.constant 0 : i32
    return %c0_i32, %c0_i32_0, %c0_i32_1, %c0_i32_2 : i32, i32, i32, i32
  }
}

</mosaic_0001>

<llo_original>
// kernel: cnn_forward.1
$region0: #{cnn_forward.1}
  #allocation0 [shape = 'u32[]', space=smem, size = 0x4, offset = 0x4, fixed_abs, tag = 'smem constant byte address 0x4 - core index']
  #allocation1 [shape = 'u32[144,128]{1,0:T(1,128)}', space=vmem, size = 0x12000, scoped, tag = 'internal scratch']
  #allocation2 [shape = 'f32[1536,64]{1,0:T(8,128)}', space=vmem, size = 0xc0000, scoped, tag = 'scratch operand']
  #allocation3 [shape = 'f32[2,11,16,64]{3,2,1,0:T(8,128)}', space=vmem, size = 0x2c000, scoped, tag = 'scratch operand']
  #allocation4 [shape = 'f32[2,9,8,128]{3,2,1,0:T(8,128)}', space=vmem, size = 0x12000, scoped, tag = 'scratch operand']
  #allocation5 [shape = 'f32[2,9,8,128]{3,2,1,0:T(8,128)}', space=vmem, size = 0x12000, scoped, tag = 'scratch operand']
  #allocation6 [shape = 'f32[2,4,8,128]{3,2,1,0:T(8,128)}', space=vmem, size = 0x8000, scoped, tag = 'scratch operand']
  #allocation7 [shape = 'f32[8,128]{1,0:T(8,128)}', space=vmem, size = 0x1000, scoped, tag = 'scratch operand']
  %s0 = inlined_call_operand.vmem [shape: f32[2,768,27], index: 0, kind: input, shape index: {}]
  %s1 = inlined_call_operand.hbm [shape: f32[27,64], index: 1, kind: input, shape index: {}]
  %s2 = inlined_call_operand.vmem [shape: f32[576,128], index: 2, kind: input, shape index: {}]
  %s3 = inlined_call_operand.vmem [shape: f32[1152,128], index: 3, kind: input, shape index: {}]
  %s4 = inlined_call_operand.vmem [shape: f32[1152,128], index: 4, kind: input, shape index: {}]
  %s5 = inlined_call_operand.vmem [shape: f32[1152,128], index: 5, kind: input, shape index: {}]
  %s6 = inlined_call_operand.vmem [shape: f32[1,64], index: 6, kind: input, shape index: {}]
  %s7 = inlined_call_operand.hbm [shape: f32[1,64], index: 7, kind: input, shape index: {}]
  %s8 = inlined_call_operand.hbm [shape: f32[1,128], index: 8, kind: input, shape index: {}]
  %s9 = inlined_call_operand.hbm [shape: f32[1,128], index: 9, kind: input, shape index: {}]
  %s10 = inlined_call_operand.hbm [shape: f32[1,128], index: 10, kind: input, shape index: {}]
  %s11 = inlined_call_operand.hbm [shape: f32[1,128], index: 11, kind: input, shape index: {}]
  %s12 = inlined_call_operand.vmem [shape: f32[2,1,3,128], index: 12, kind: output, shape index: {}]
  %s13 = sld [smem:[#allocation0]]
  $region82: #{cnn_forward.1} parent=0
    _
  %s15 = ssub.s32 1, %s13
  %s16 = scalar_select 0, %s15, %s13
  $region1: #{cnn_forward.1} parent=0
    #allocation8 [shape = 'u8[16384]{0}', space=vmem, size = 0x4000, scoped, tag = 'input window, operand 1, single buffered']
    #allocation9 [shape = 's32[1]{0}', space=sflag, size = 0x4, scoped, tag = 'scoped memory for cnn_forward.1']
    #allocation10 [shape = 'u8[512]{0}', space=vmem, size = 0x400, scoped, tag = 'input window, operand 7, single buffered']
    #allocation11 [shape = 's32[1]{0}', space=sflag, size = 0x4, scoped, tag = 'scoped memory for cnn_forward.1']
    #allocation12 [shape = 'u8[512]{0}', space=vmem, size = 0x400, scoped, tag = 'input window, operand 8, single buffered']
    #allocation13 [shape = 'u8[512]{0}', space=vmem, size = 0x400, scoped, tag = 'input window, operand 9, single buffered']
    #allocation14 [shape = 's32[1]{0}', space=sflag, size = 0x4, scoped, tag = 'scoped memory for cnn_forward.1']
    #allocation15 [shape = 'u8[512]{0}', space=vmem, size = 0x400, scoped, tag = 'input window, operand 10, single buffered']
    #allocation16 [shape = 'u8[512]{0}', space=vmem, size = 0x400, scoped, tag = 'input window, operand 11, single buffered']
    #allocation17 [shape = 's32[1]{0}', space=sflag, size = 0x4, scoped, tag = 'scoped memory for cnn_forward.1']
    %17 = vsyncpa [#allocation9], 0
    %18 = vsyncpa [#allocation11], 0
    %19 = vsyncpa [#allocation14], 0
    %20 = vsyncpa [#allocation17], 0
    // Predicated region
    $region2: #{cnn_forward.1} parent=1 // pred_check
      _
    $region3: #{cnn_forward.1} parent=1 // pred_check_branch
      %22 = sbr.rel (0) target = $region5
    $region4: #{cnn_forward.1} parent=1 // pred_region
      _
    $region5: #{cnn_forward.1} parent=1 // pred_fallthru
      _
    // Predicated region
    $region6: #{cnn_forward.1} parent=1 // pred_check
      _
    $region7: #{cnn_forward.1} parent=1 // pred_check_branch
      %24 = sbr.rel (0) target = $region9
    $region8: #{cnn_forward.1} parent=1 // pred_region
      %s26 = ssub.s32 512, 512
      %27 = vsyncadd [#allocation9], %s26
      %s28 = sshll.u32 [#allocation8], 4
      %s29 = int_to_ptr.vmem [resolvable:$true] %s28
      %34 = dma.hbm_to_vmem [thread:$0]  %s1, 512, %s29, [#allocation9], 128, 128, 8
    $region9: #{cnn_forward.1} parent=1 // pred_fallthru
      _
    // Predicated region
    $region10: #{cnn_forward.1} parent=1 // pred_check
      _
    $region11: #{cnn_forward.1} parent=1 // pred_check_branch
      %36 = sbr.rel (0) target = $region13
    $region12: #{cnn_forward.1} parent=1 // pred_region
      _
    $region13: #{cnn_forward.1} parent=1 // pred_fallthru
      _
    // Predicated region
    $region14: #{cnn_forward.1} parent=1 // pred_check
      _
    $region15: #{cnn_forward.1} parent=1 // pred_check_branch
      %38 = sbr.rel (0) target = $region17
    $region16: #{cnn_forward.1} parent=1 // pred_region
      _
    $region17: #{cnn_forward.1} parent=1 // pred_fallthru
      _
    // Predicated region
    $region18: #{cnn_forward.1} parent=1 // pred_check
      _
    $region19: #{cnn_forward.1} parent=1 // pred_check_branch
      %40 = sbr.rel (0) target = $region21
    $region20: #{cnn_forward.1} parent=1 // pred_region
      _
    $region21: #{cnn_forward.1} parent=1 // pred_fallthru
      _
    // Predicated region
    $region22: #{cnn_forward.1} parent=1 // pred_check
      _
    $region23: #{cnn_forward.1} parent=1 // pred_check_branch
      %42 = sbr.rel (0) target = $region25
    $region24: #{cnn_forward.1} parent=1 // pred_region
      _
    $region25: #{cnn_forward.1} parent=1 // pred_fallthru
      _
    // Predicated region
    $region26: #{cnn_forward.1} parent=1 // pred_check
      _
    $region27: #{cnn_forward.1} parent=1 // pred_check_branch
      %44 = sbr.rel (0) target = $region29
    $region28: #{cnn_forward.1} parent=1 // pred_region
      _
    $region29: #{cnn_forward.1} parent=1 // pred_fallthru
      _
    // Predicated region
    $region30: #{cnn_forward.1} parent=1 // pred_check
      _
    $region31: #{cnn_forward.1} parent=1 // pred_check_branch
      %46 = sbr.rel (0) target = $region33
    $region32: #{cnn_forward.1} parent=1 // pred_region
      %s48 = ssub.s32 16, 16
      %49 = vsyncadd [#allocation11], %s48
      %s51 = sshll.u32 [#allocation10], 4
      %s52 = int_to_ptr.vmem [resolvable:$true] %s51
      %54 = dma.hbm_to_vmem [thread:$0]  %s7, 16, %s52, [#allocation11]
    $region33: #{cnn_forward.1} parent=1 // pred_fallthru
      _
    // Predicated region
    $region34: #{cnn_forward.1} parent=1 // pred_check
      _
    $region35: #{cnn_forward.1} parent=1 // pred_check_branch
      %56 = sbr.rel (0) target = $region37
    $region36: #{cnn_forward.1} parent=1 // pred_region
      %s58 = ssub.s32 16, 16
      %59 = vsyncadd [#allocation11], %s58
      %s61 = sshll.u32 [#allocation12], 4
      %s62 = int_to_ptr.vmem [resolvable:$true] %s61
      %64 = dma.hbm_to_vmem [thread:$0]  %s8, 16, %s62, [#allocation11]
    $region37: #{cnn_forward.1} parent=1 // pred_fallthru
      _
    // Predicated region
    $region38: #{cnn_forward.1} parent=1 // pred_check
      _
    $region39: #{cnn_forward.1} parent=1 // pred_check_branch
      %66 = sbr.rel (0) target = $region41
    $region40: #{cnn_forward.1} parent=1 // pred_region
      %s68 = ssub.s32 16, 16
      %69 = vsyncadd [#allocation14], %s68
      %s71 = sshll.u32 [#allocation13], 4
      %s72 = int_to_ptr.vmem [resolvable:$true] %s71
      %74 = dma.hbm_to_vmem [thread:$0]  %s9, 16, %s72, [#allocation14]
    $region41: #{cnn_forward.1} parent=1 // pred_fallthru
      _
    // Predicated region
    $region42: #{cnn_forward.1} parent=1 // pred_check
      _
    $region43: #{cnn_forward.1} parent=1 // pred_check_branch
      %76 = sbr.rel (0) target = $region45
    $region44: #{cnn_forward.1} parent=1 // pred_region
      %s78 = ssub.s32 16, 16
      %79 = vsyncadd [#allocation14], %s78
      %s81 = sshll.u32 [#allocation15], 4
      %s82 = int_to_ptr.vmem [resolvable:$true] %s81
      %84 = dma.hbm_to_vmem [thread:$0]  %s10, 16, %s82, [#allocation14]
    $region45: #{cnn_forward.1} parent=1 // pred_fallthru
      _
    // Predicated region
    $region46: #{cnn_forward.1} parent=1 // pred_check
      _
    $region47: #{cnn_forward.1} parent=1 // pred_check_branch
      %86 = sbr.rel (0) target = $region49
    $region48: #{cnn_forward.1} parent=1 // pred_region
      %s88 = ssub.s32 16, 16
      %89 = vsyncadd [#allocation17], %s88
      %s91 = sshll.u32 [#allocation16], 4
      %s92 = int_to_ptr.vmem [resolvable:$true] %s91
      %94 = dma.hbm_to_vmem [thread:$0]  %s11, 16, %s92, [#allocation17]
    $region49: #{cnn_forward.1} parent=1 // pred_fallthru
      _
    // Predicated region
    $region50: #{cnn_forward.1} parent=1 // pred_check
      _
    $region51: #{cnn_forward.1} parent=1 // pred_check_branch
      %96 = sbr.rel (0) target = $region53
    $region52: #{cnn_forward.1} parent=1 // pred_region
      %97 = dma.done [#allocation9], 512
    $region53: #{cnn_forward.1} parent=1 // pred_fallthru
      _
    // Predicated region
    $region54: #{cnn_forward.1} parent=1 // pred_check
      _
    $region55: #{cnn_forward.1} parent=1 // pred_check_branch
      %99 = sbr.rel (0) target = $region57
    $region56: #{cnn_forward.1} parent=1 // pred_region
      %100 = dma.done [#allocation11], 16
    $region57: #{cnn_forward.1} parent=1 // pred_fallthru
      _
    // Predicated region
    $region58: #{cnn_forward.1} parent=1 // pred_check
      _
    $region59: #{cnn_forward.1} parent=1 // pred_check_branch
      %102 = sbr.rel (0) target = $region61
    $region60: #{cnn_forward.1} parent=1 // pred_region
      %103 = dma.done [#allocation11], 16
    $region61: #{cnn_forward.1} parent=1 // pred_fallthru
      _
    // Predicated region
    $region62: #{cnn_forward.1} parent=1 // pred_check
      _
    $region63: #{cnn_forward.1} parent=1 // pred_check_branch
      %105 = sbr.rel (0) target = $region65
    $region64: #{cnn_forward.1} parent=1 // pred_region
      %106 = dma.done [#allocation14], 16
    $region65: #{cnn_forward.1} parent=1 // pred_fallthru
      _
    // Predicated region
    $region66: #{cnn_forward.1} parent=1 // pred_check
      _
    $region67: #{cnn_forward.1} parent=1 // pred_check_branch
      %108 = sbr.rel (0) target = $region69
    $region68: #{cnn_forward.1} parent=1 // pred_region
      %109 = dma.done [#allocation14], 16
    $region69: #{cnn_forward.1} parent=1 // pred_fallthru
      _
    // Predicated region
    $region70: #{cnn_forward.1} parent=1 // pred_check
      _
    $region71: #{cnn_forward.1} parent=1 // pred_check_branch
      %111 = sbr.rel (0) target = $region73
    $region72: #{cnn_forward.1} parent=1 // pred_region
      %112 = dma.done [#allocation17], 16
    $region73: #{cnn_forward.1} parent=1 // pred_fallthru
      _
    %vm113 = vcmask 523264
    %114 = vst.msk [vmem:[#allocation3] sm:$0xff] %vm113, 0.0
    %115 = vst.msk [vmem:[#allocation3 + $0x8] sm:$0xff] %vm113, 0.0
    %116 = vst.msk [vmem:[#allocation3 + $0x10] sm:$0xff] %vm113, 0.0
    %117 = vst.msk [vmem:[#allocation3 + $0x18] sm:$0xff] %vm113, 0.0
    %118 = vst.msk [vmem:[#allocation3 + $0x20] sm:$0xff] %vm113, 0.0
    %119 = vst.msk [vmem:[#allocation3 + $0x28] sm:$0xff] %vm113, 0.0
    %120 = vst.msk [vmem:[#allocation3 + $0x30] sm:$0xff] %vm113, 0.0
    %121 = vst.msk [vmem:[#allocation3 + $0x38] sm:$0xff] %vm113, 0.0
    %122 = vst.msk [vmem:[#allocation3 + $0x40] sm:$0xff] %vm113, 0.0
    %123 = vst.msk [vmem:[#allocation3 + $0x48] sm:$0xff] %vm113, 0.0
    %124 = vst.msk [vmem:[#allocation3 + $0x50] sm:$0xff] %vm113, 0.0
    %125 = vst.msk [vmem:[#allocation3 + $0x58] sm:$0xff] %vm113, 0.0
    %126 = vst.msk [vmem:[#allocation3 + $0x60] sm:$0xff] %vm113, 0.0
    %127 = vst.msk [vmem:[#allocation3 + $0x68] sm:$0xff] %vm113, 0.0
    %128 = vst.msk [vmem:[#allocation3 + $0x70] sm:$0xff] %vm113, 0.0
    %129 = vst.msk [vmem:[#allocation3 + $0x78] sm:$0xff] %vm113, 0.0
    %130 = vst.msk [vmem:[#allocation3 + $0x80] sm:$0xff] %vm113, 0.0
    %131 = vst.msk [vmem:[#allocation3 + $0x88] sm:$0xff] %vm113, 0.0
    %132 = vst.msk [vmem:[#allocation3 + $0x90] sm:$0xff] %vm113, 0.0
    %133 = vst.msk [vmem:[#allocation3 + $0x98] sm:$0xff] %vm113, 0.0
    %134 = vst.msk [vmem:[#allocation3 + $0xa0] sm:$0xff] %vm113, 0.0
    %135 = vst.msk [vmem:[#allocation3 + $0xa8] sm:$0xff] %vm113, 0.0
    %136 = vst.msk [vmem:[#allocation3 + $0xb0] sm:$0xff] %vm113, 0.0
    %137 = vst.msk [vmem:[#allocation3 + $0xb8] sm:$0xff] %vm113, 0.0
    %138 = vst.msk [vmem:[#allocation3 + $0xc0] sm:$0xff] %vm113, 0.0
    %139 = vst.msk [vmem:[#allocation3 + $0xc8] sm:$0xff] %vm113, 0.0
    %140 = vst.msk [vmem:[#allocation3 + $0xd0] sm:$0xff] %vm113, 0.0
    %141 = vst.msk [vmem:[#allocation3 + $0xd8] sm:$0xff] %vm113, 0.0
    %142 = vst.msk [vmem:[#allocation3 + $0xe0] sm:$0xff] %vm113, 0.0
    %143 = vst.msk [vmem:[#allocation3 + $0xe8] sm:$0xff] %vm113, 0.0
    %144 = vst.msk [vmem:[#allocation3 + $0xf0] sm:$0xff] %vm113, 0.0
    %145 = vst.msk [vmem:[#allocation3 + $0xf8] sm:$0xff] %vm113, 0.0
    %146 = vst.msk [vmem:[#allocation3 + $0x100] sm:$0xff] %vm113, 0.0
    %147 = vst.msk [vmem:[#allocation3 + $0x108] sm:$0xff] %vm113, 0.0
    %148 = vst.msk [vmem:[#allocation3 + $0x110] sm:$0xff] %vm113, 0.0
    %149 = vst.msk [vmem:[#allocation3 + $0x118] sm:$0xff] %vm113, 0.0
    %150 = vst.msk [vmem:[#allocation3 + $0x120] sm:$0xff] %vm113, 0.0
    %151 = vst.msk [vmem:[#allocation3 + $0x128] sm:$0xff] %vm113, 0.0
    %152 = vst.msk [vmem:[#allocation3 + $0x130] sm:$0xff] %vm113, 0.0
    %153 = vst.msk [vmem:[#allocation3 + $0x138] sm:$0xff] %vm113, 0.0
    %154 = vst.msk [vmem:[#allocation3 + $0x140] sm:$0xff] %vm113, 0.0
    %155 = vst.msk [vmem:[#allocation3 + $0x148] sm:$0xff] %vm113, 0.0
    %156 = vst.msk [vmem:[#allocation3 + $0x150] sm:$0xff] %vm113, 0.0
    %157 = vst.msk [vmem:[#allocation3 + $0x158] sm:$0xff] %vm113, 0.0
    %158 = vst [vmem:[#allocation4] sm:$0xff] 0.0
    %159 = vst [vmem:[#allocation4 + $0x8] sm:$0xff] 0.0
    %160 = vst [vmem:[#allocation4 + $0x10] sm:$0xff] 0.0
    %161 = vst [vmem:[#allocation4 + $0x18] sm:$0xff] 0.0
    %162 = vst [vmem:[#allocation4 + $0x20] sm:$0xff] 0.0
    %163 = vst [vmem:[#allocation4 + $0x28] sm:$0xff] 0.0
    %164 = vst [vmem:[#allocation4 + $0x30] sm:$0xff] 0.0
    %165 = vst [vmem:[#allocation4 + $0x38] sm:$0xff] 0.0
    %166 = vst [vmem:[#allocation4 + $0x40] sm:$0xff] 0.0
    %167 = vst [vmem:[#allocation4 + $0x48] sm:$0xff] 0.0
    %168 = vst [vmem:[#allocation4 + $0x50] sm:$0xff] 0.0
    %169 = vst [vmem:[#allocation4 + $0x58] sm:$0xff] 0.0
    %170 = vst [vmem:[#allocation4 + $0x60] sm:$0xff] 0.0
    %171 = vst [vmem:[#allocation4 + $0x68] sm:$0xff] 0.0
    %172 = vst [vmem:[#allocation4 + $0x70] sm:$0xff] 0.0
    %173 = vst [vmem:[#allocation4 + $0x78] sm:$0xff] 0.0
    %174 = vst [vmem:[#allocation4 + $0x80] sm:$0xff] 0.0
    %175 = vst [vmem:[#allocation4 + $0x88] sm:$0xff] 0.0
    %176 = vst [vmem:[#allocation5] sm:$0xff] 0.0
    %177 = vst [vmem:[#allocation5 + $0x8] sm:$0xff] 0.0
    %178 = vst [vmem:[#allocation5 + $0x10] sm:$0xff] 0.0
    %179 = vst [vmem:[#allocation5 + $0x18] sm:$0xff] 0.0
    %180 = vst [vmem:[#allocation5 + $0x20] sm:$0xff] 0.0
    %181 = vst [vmem:[#allocation5 + $0x28] sm:$0xff] 0.0
    %182 = vst [vmem:[#allocation5 + $0x30] sm:$0xff] 0.0
    %183 = vst [vmem:[#allocation5 + $0x38] sm:$0xff] 0.0
    %184 = vst [vmem:[#allocation5 + $0x40] sm:$0xff] 0.0
    %185 = vst [vmem:[#allocation5 + $0x48] sm:$0xff] 0.0
    %186 = vst [vmem:[#allocation5 + $0x50] sm:$0xff] 0.0
    %187 = vst [vmem:[#allocation5 + $0x58] sm:$0xff] 0.0
    %188 = vst [vmem:[#allocation5 + $0x60] sm:$0xff] 0.0
    %189 = vst [vmem:[#allocation5 + $0x68] sm:$0xff] 0.0
    %190 = vst [vmem:[#allocation5 + $0x70] sm:$0xff] 0.0
    %191 = vst [vmem:[#allocation5 + $0x78] sm:$0xff] 0.0
    %192 = vst [vmem:[#allocation5 + $0x80] sm:$0xff] 0.0
    %193 = vst [vmem:[#allocation5 + $0x88] sm:$0xff] 0.0
    %194 = vst [vmem:[#allocation6] sm:$0xff] 0.0
    %195 = vst [vmem:[#allocation6 + $0x8] sm:$0xff] 0.0
    %196 = vst [vmem:[#allocation6 + $0x10] sm:$0xff] 0.0
    %197 = vst [vmem:[#allocation6 + $0x18] sm:$0xff] 0.0
    %198 = vst [vmem:[#allocation6 + $0x20] sm:$0xff] 0.0
    %199 = vst [vmem:[#allocation6 + $0x28] sm:$0xff] 0.0
    %200 = vst [vmem:[#allocation6 + $0x30] sm:$0xff] 0.0
    %201 = vst [vmem:[#allocation6 + $0x38] sm:$0xff] 0.0
    %v202 = vld [vmem:[%s0] sm:$0xff]
    %v203 = vld [vmem:[%s0 + $0x8] sm:$0xff]
    %v204 = vld [vmem:[%s0 + $0x10] sm:$0xff]
    %v205 = vld [vmem:[%s0 + $0x18] sm:$0xff]
    %v206 = vld [vmem:[%s0 + $0x20] sm:$0xff]
    %v207 = vld [vmem:[%s0 + $0x28] sm:$0xff]
    %v208 = vld [vmem:[%s0 + $0x30] sm:$0xff]
    %v209 = vld [vmem:[%s0 + $0x38] sm:$0xff]
    %v210 = vld [vmem:[%s0 + $0x40] sm:$0xff]
    %v211 = vld [vmem:[%s0 + $0x48] sm:$0xff]
    %v212 = vld [vmem:[%s0 + $0x50] sm:$0xff]
    %v213 = vld [vmem:[%s0 + $0x58] sm:$0xff]
    %v214 = vld [vmem:[%s0 + $0x60] sm:$0xff]
    %v215 = vld [vmem:[%s0 + $0x68] sm:$0xff]
    %v216 = vld [vmem:[%s0 + $0x70] sm:$0xff]
    %v217 = vld [vmem:[%s0 + $0x78] sm:$0xff]
    %v218 = vld [vmem:[%s0 + $0x80] sm:$0xff]
    %v219 = vld [vmem:[%s0 + $0x88] sm:$0xff]
    %v220 = vld [vmem:[%s0 + $0x90] sm:$0xff]
    %v221 = vld [vmem:[%s0 + $0x98] sm:$0xff]
    %v222 = vld [vmem:[%s0 + $0xa0] sm:$0xff]
    %v223 = vld [vmem:[%s0 + $0xa8] sm:$0xff]
    %v224 = vld [vmem:[%s0 + $0xb0] sm:$0xff]
    %v225 = vld [vmem:[%s0 + $0xb8] sm:$0xff]
    %v226 = vld [vmem:[%s0 + $0xc0] sm:$0xff]
    %v227 = vld [vmem:[%s0 + $0xc8] sm:$0xff]
    %v228 = vld [vmem:[%s0 + $0xd0] sm:$0xff]
    %v229 = vld [vmem:[%s0 + $0xd8] sm:$0xff]
    %v230 = vld [vmem:[%s0 + $0xe0] sm:$0xff]
    %v231 = vld [vmem:[%s0 + $0xe8] sm:$0xff]
    %v232 = vld [vmem:[%s0 + $0xf0] sm:$0xff]
    %v233 = vld [vmem:[%s0 + $0xf8] sm:$0xff]
    %v234 = vld [vmem:[%s0 + $0x100] sm:$0xff]
    %v235 = vld [vmem:[%s0 + $0x108] sm:$0xff]
    %v236 = vld [vmem:[%s0 + $0x110] sm:$0xff]
    %v237 = vld [vmem:[%s0 + $0x118] sm:$0xff]
    %v238 = vld [vmem:[%s0 + $0x120] sm:$0xff]
    %v239 = vld [vmem:[%s0 + $0x128] sm:$0xff]
    %v240 = vld [vmem:[%s0 + $0x130] sm:$0xff]
    %v241 = vld [vmem:[%s0 + $0x138] sm:$0xff]
    %v242 = vld [vmem:[%s0 + $0x140] sm:$0xff]
    %v243 = vld [vmem:[%s0 + $0x148] sm:$0xff]
    %v244 = vld [vmem:[%s0 + $0x150] sm:$0xff]
    %v245 = vld [vmem:[%s0 + $0x158] sm:$0xff]
    %v246 = vld [vmem:[%s0 + $0x160] sm:$0xff]
    %v247 = vld [vmem:[%s0 + $0x168] sm:$0xff]
    %v248 = vld [vmem:[%s0 + $0x170] sm:$0xff]
    %v249 = vld [vmem:[%s0 + $0x178] sm:$0xff]
    %v250 = vld [vmem:[%s0 + $0x180] sm:$0xff]
    %v251 = vld [vmem:[%s0 + $0x188] sm:$0xff]
    %v252 = vld [vmem:[%s0 + $0x190] sm:$0xff]
    %v253 = vld [vmem:[%s0 + $0x198] sm:$0xff]
    %v254 = vld [vmem:[%s0 + $0x1a0] sm:$0xff]
    %v255 = vld [vmem:[%s0 + $0x1a8] sm:$0xff]
    %v256 = vld [vmem:[%s0 + $0x1b0] sm:$0xff]
    %v257 = vld [vmem:[%s0 + $0x1b8] sm:$0xff]
    %v258 = vld [vmem:[%s0 + $0x1c0] sm:$0xff]
    %v259 = vld [vmem:[%s0 + $0x1c8] sm:$0xff]
    %v260 = vld [vmem:[%s0 + $0x1d0] sm:$0xff]
    %v261 = vld [vmem:[%s0 + $0x1d8] sm:$0xff]
    %v262 = vld [vmem:[%s0 + $0x1e0] sm:$0xff]
    %v263 = vld [vmem:[%s0 + $0x1e8] sm:$0xff]
    %v264 = vld [vmem:[%s0 + $0x1f0] sm:$0xff]
    %v265 = vld [vmem:[%s0 + $0x1f8] sm:$0xff]
    %v266 = vld [vmem:[%s0 + $0x200] sm:$0xff]
    %v267 = vld [vmem:[%s0 + $0x208] sm:$0xff]
    %v268 = vld [vmem:[%s0 + $0x210] sm:$0xff]
    %v269 = vld [vmem:[%s0 + $0x218] sm:$0xff]
    %v270 = vld [vmem:[%s0 + $0x220] sm:$0xff]
    %v271 = vld [vmem:[%s0 + $0x228] sm:$0xff]
    %v272 = vld [vmem:[%s0 + $0x230] sm:$0xff]
    %v273 = vld [vmem:[%s0 + $0x238] sm:$0xff]
    %v274 = vld [vmem:[%s0 + $0x240] sm:$0xff]
    %v275 = vld [vmem:[%s0 + $0x248] sm:$0xff]
    %v276 = vld [vmem:[%s0 + $0x250] sm:$0xff]
    %v277 = vld [vmem:[%s0 + $0x258] sm:$0xff]
    %v278 = vld [vmem:[%s0 + $0x260] sm:$0xff]
    %v279 = vld [vmem:[%s0 + $0x268] sm:$0xff]
    %v280 = vld [vmem:[%s0 + $0x270] sm:$0xff]
    %v281 = vld [vmem:[%s0 + $0x278] sm:$0xff]
    %v282 = vld [vmem:[%s0 + $0x280] sm:$0xff]
    %v283 = vld [vmem:[%s0 + $0x288] sm:$0xff]
    %v284 = vld [vmem:[%s0 + $0x290] sm:$0xff]
    %v285 = vld [vmem:[%s0 + $0x298] sm:$0xff]
    %v286 = vld [vmem:[%s0 + $0x2a0] sm:$0xff]
    %v287 = vld [vmem:[%s0 + $0x2a8] sm:$0xff]
    %v288 = vld [vmem:[%s0 + $0x2b0] sm:$0xff]
    %v289 = vld [vmem:[%s0 + $0x2b8] sm:$0xff]
    %v290 = vld [vmem:[%s0 + $0x2c0] sm:$0xff]
    %v291 = vld [vmem:[%s0 + $0x2c8] sm:$0xff]
    %v292 = vld [vmem:[%s0 + $0x2d0] sm:$0xff]
    %v293 = vld [vmem:[%s0 + $0x2d8] sm:$0xff]
    %v294 = vld [vmem:[%s0 + $0x2e0] sm:$0xff]
    %v295 = vld [vmem:[%s0 + $0x2e8] sm:$0xff]
    %v296 = vld [vmem:[%s0 + $0x2f0] sm:$0xff]
    %v297 = vld [vmem:[%s0 + $0x2f8] sm:$0xff]
    %v298 = vld [vmem:[#allocation8] sm:$0xff]
    %v299 = vld [vmem:[#allocation8 + $0x8] sm:$0xff]
    %v300 = vld [vmem:[#allocation8 + $0x10] sm:$0xff]
    %v301 = vld [vmem:[#allocation8 + $0x18] sm:$0x7]
    %vm302 = vcmask 220160
    %v304 = vsel %vm302, %v202, 0
    %v307 = vsel %vm302, %v203, 0
    %v310 = vsel %vm302, %v204, 0
    %v313 = vsel %vm302, %v205, 0
    %v316 = vsel %vm302, %v206, 0
    %v319 = vsel %vm302, %v207, 0
    %v322 = vsel %vm302, %v208, 0
    %v325 = vsel %vm302, %v209, 0
    %v328 = vsel %vm302, %v210, 0
    %v331 = vsel %vm302, %v211, 0
    %v334 = vsel %vm302, %v212, 0
    %v337 = vsel %vm302, %v213, 0
    %v340 = vsel %vm302, %v214, 0
    %v343 = vsel %vm302, %v215, 0
    %v346 = vsel %vm302, %v216, 0
    %v349 = vsel %vm302, %v217, 0
    %v352 = vsel %vm302, %v218, 0
    %v355 = vsel %vm302, %v219, 0
    %v358 = vsel %vm302, %v220, 0
    %v361 = vsel %vm302, %v221, 0
    %v364 = vsel %vm302, %v222, 0
    %v367 = vsel %vm302, %v223, 0
    %v370 = vsel %vm302, %v224, 0
    %v373 = vsel %vm302, %v225, 0
    %v376 = vsel %vm302, %v226, 0
    %v379 = vsel %vm302, %v227, 0
    %v382 = vsel %vm302, %v228, 0
    %v385 = vsel %vm302, %v229, 0
    %v388 = vsel %vm302, %v230, 0
    %v391 = vsel %vm302, %v231, 0
    %v394 = vsel %vm302, %v232, 0
    %v397 = vsel %vm302, %v233, 0
    %v400 = vsel %vm302, %v234, 0
    %v403 = vsel %vm302, %v235, 0
    %v406 = vsel %vm302, %v236, 0
    %v409 = vsel %vm302, %v237, 0
    %v412 = vsel %vm302, %v238, 0
    %v415 = vsel %vm302, %v239, 0
    %v418 = vsel %vm302, %v240, 0
    %v421 = vsel %vm302, %v241, 0
    %v424 = vsel %vm302, %v242, 0
    %v427 = vsel %vm302, %v243, 0
    %v430 = vsel %vm302, %v244, 0
    %v433 = vsel %vm302, %v245, 0
    %v436 = vsel %vm302, %v246, 0
    %v439 = vsel %vm302, %v247, 0
    %v442 = vsel %vm302, %v248, 0
    %v445 = vsel %vm302, %v249, 0
    %v448 = vsel %vm302, %v250, 0
    %v451 = vsel %vm302, %v251, 0
    %v454 = vsel %vm302, %v252, 0
    %v457 = vsel %vm302, %v253, 0
    %v460 = vsel %vm302, %v254, 0
    %v463 = vsel %vm302, %v255, 0
    %v466 = vsel %vm302, %v256, 0
    %v469 = vsel %vm302, %v257, 0
    %v472 = vsel %vm302, %v258, 0
    %v475 = vsel %vm302, %v259, 0
    %v478 = vsel %vm302, %v260, 0
    %v481 = vsel %vm302, %v261, 0
    %v484 = vsel %vm302, %v262, 0
    %v487 = vsel %vm302, %v263, 0
    %v490 = vsel %vm302, %v264, 0
    %v493 = vsel %vm302, %v265, 0
    %v496 = vsel %vm302, %v266, 0
    %v499 = vsel %vm302, %v267, 0
    %v502 = vsel %vm302, %v268, 0
    %v505 = vsel %vm302, %v269, 0
    %v508 = vsel %vm302, %v270, 0
    %v511 = vsel %vm302, %v271, 0
    %v514 = vsel %vm302, %v272, 0
    %v517 = vsel %vm302, %v273, 0
    %v520 = vsel %vm302, %v274, 0
    %v523 = vsel %vm302, %v275, 0
    %v526 = vsel %vm302, %v276, 0
    %v529 = vsel %vm302, %v277, 0
    %v532 = vsel %vm302, %v278, 0
    %v535 = vsel %vm302, %v279, 0
    %v538 = vsel %vm302, %v280, 0
    %v541 = vsel %vm302, %v281, 0
    %v544 = vsel %vm302, %v282, 0
    %v547 = vsel %vm302, %v283, 0
    %v550 = vsel %vm302, %v284, 0
    %v553 = vsel %vm302, %v285, 0
    %v556 = vsel %vm302, %v286, 0
    %v559 = vsel %vm302, %v287, 0
    %v562 = vsel %vm302, %v288, 0
    %v565 = vsel %vm302, %v289, 0
    %v568 = vsel %vm302, %v290, 0
    %v571 = vsel %vm302, %v291, 0
    %v574 = vsel %vm302, %v292, 0
    %v577 = vsel %vm302, %v293, 0
    %v580 = vsel %vm302, %v294, 0
    %v583 = vsel %vm302, %v295, 0
    %v586 = vsel %vm302, %v296, 0
    %v589 = vsel %vm302, %v297, 0
    %vm591 = vcmask 1042432
    %v593 = vsel %vm591, %v301, 0
    %595 = vmatprep.subr.mxu0 0.0
    %596 = vmatpush1.msra.mxu0 0.0
    %597 = vmatprep.subr.mxu0 0.0
    %598 = vmatpush1.msra.mxu0 0.0
    %599 = vmatprep.subr.mxu0 0.0
    %600 = vmatpush1.msra.mxu0 0.0
    %601 = vmatprep.subr.mxu0 0.0
    %602 = vmatpush1.msra.mxu0 0.0
    %603 = vmatprep.subr.mxu0 0.0
    %604 = vmatpush1.msra.mxu0 0.0
    %605 = vmatprep.subr.mxu0 0.0
    %606 = vmatpush1.msra.mxu0 0.0
    %607 = vmatprep.subr.mxu0 0.0
    %608 = vmatpush1.msra.mxu0 0.0
    %609 = vmatprep.subr.mxu0 0.0
    %610 = vmatpush1.msra.mxu0 0.0
    %611 = vmatprep.subr.mxu0 0.0
    %612 = vmatpush1.msra.mxu0 0.0
    %613 = vmatprep.subr.mxu0 0.0
    %614 = vmatpush1.msra.mxu0 0.0
    %615 = vmatprep.subr.mxu0 0.0
    %616 = vmatpush1.msra.mxu0 0.0
    %617 = vmatprep.subr.mxu0 0.0
    %618 = vmatpush1.msra.mxu0 0.0
    %619 = vmatprep.subr.mxu0 0.0
    %620 = vmatpush1.msra.mxu0 %v593
    %621 = vmatprep.subr.mxu0 0.0
    %622 = vmatpush1.msra.mxu0 %v300
    %623 = vmatprep.subr.mxu0 0.0
    %624 = vmatpush1.msra.mxu0 %v299
    %625 = vmatprep.subr.mxu0 0.0
    %626 = vmatpush1.msra.mxu0 %v298
    %627 = vmatprep.subr.mxu0 0.0
    %628 = vmatpush2.msra.mxu0 0.0
    %629 = vmatprep.subr.mxu0 0.0
    %630 = vmatpush2.msra.mxu0 0.0
    %631 = vmatprep.subr.mxu0 0.0
    %632 = vmatpush2.msra.mxu0 0.0
    %633 = vmatprep.subr.mxu0 0.0
    %634 = vmatpush2.msra.mxu0 0.0
    %635 = vmatprep.subr.mxu0 0.0
    %636 = vmatpush2.msra.mxu0 0.0
    %637 = vmatprep.subr.mxu0 0.0
    %638 = vmatpush2.msra.mxu0 0.0
    %639 = vmatprep.subr.mxu0 0.0
    %640 = vmatpush2.msra.mxu0 0.0
    %641 = vmatprep.subr.mxu0 0.0
    %642 = vmatpush2.msra.mxu0 0.0
    %643 = vmatprep.subr.mxu0 0.0
    %644 = vmatpush2.msra.mxu0 0.0
    %645 = vmatprep.subr.mxu0 0.0
    %646 = vmatpush2.msra.mxu0 0.0
    %647 = vmatprep.subr.mxu0 0.0
    %648 = vmatpush2.msra.mxu0 0.0
    %649 = vmatprep.subr.mxu0 0.0
    %650 = vmatpush2.msra.mxu0 0.0
    %651 = vmatprep.subr.mxu0 0.0
    %652 = vmatpush2.msra.mxu0 0.0
    %653 = vmatprep.subr.mxu0 0.0
    %654 = vmatpush2.msra.mxu0 0.0
    %655 = vmatprep.subr.mxu0 0.0
    %656 = vmatpush2.msra.mxu0 0.0
    %657 = vmatprep.subr.mxu0 0.0
    %658 = vmatpush2.msra.mxu0 0.0
    %659 = vmatprep.mubr.f32.mxu0 0.0
    %660 = vmatmul.mubr.f32.gmra.mxu0 %v304
    %v661 = vpop.f32.mrf.mxu0
    %v662 = vadd.f32 0.0, %v661
    %v663 = vpop.f32.mrf.mxu0
    %664 = vmatprep.mubr.f32.mxu0 0.0
    %665 = vmatmul.mubr.f32.gmra.mxu0 %v307
    %v666 = vpop.f32.mrf.mxu0
    %v667 = vadd.f32 0.0, %v666
    %v668 = vpop.f32.mrf.mxu0
    %669 = vmatprep.mubr.f32.mxu0 0.0
    %670 = vmatmul.mubr.f32.gmra.mxu0 %v310
    %v671 = vpop.f32.mrf.mxu0
    %v672 = vadd.f32 0.0, %v671
    %v673 = vpop.f32.mrf.mxu0
    %674 = vmatprep.mubr.f32.mxu0 0.0
    %675 = vmatmul.mubr.f32.gmra.mxu0 %v313
    %v676 = vpop.f32.mrf.mxu0
    %v677 = vadd.f32 0.0, %v676
    %v678 = vpop.f32.mrf.mxu0
    %679 = vmatprep.mubr.f32.mxu0 0.0
    %680 = vmatmul.mubr.f32.gmra.mxu0 %v316
    %v681 = vpop.f32.mrf.mxu0
    %v682 = vadd.f32 0.0, %v681
    %v683 = vpop.f32.mrf.mxu0
    %684 = vmatprep.mubr.f32.mxu0 0.0
    %685 = vmatmul.mubr.f32.gmra.mxu0 %v319
    %v686 = vpop.f32.mrf.mxu0
    %v687 = vadd.f32 0.0, %v686
    %v688 = vpop.f32.mrf.mxu0
    %689 = vmatprep.mubr.f32.mxu0 0.0
    %690 = vmatmul.mubr.f32.gmra.mxu0 %v322
    %v691 = vpop.f32.mrf.mxu0
    %v692 = vadd.f32 0.0, %v691
    %v693 = vpop.f32.mrf.mxu0
    %694 = vmatprep.mubr.f32.mxu0 0.0
    %695 = vmatmul.mubr.f32.gmra.mxu0 %v325
    %v696 = vpop.f32.mrf.mxu0
    %v697 = vadd.f32 0.0, %v696
    %v698 = vpop.f32.mrf.mxu0
    %699 = vmatprep.mubr.f32.mxu0 0.0
    %700 = vmatmul.mubr.f32.gmra.mxu0 %v328
    %v701 = vpop.f32.mrf.mxu0
    %v702 = vadd.f32 0.0, %v701
    %v703 = vpop.f32.mrf.mxu0
    %704 = vmatprep.mubr.f32.mxu0 0.0
    %705 = vmatmul.mubr.f32.gmra.mxu0 %v331
    %v706 = vpop.f32.mrf.mxu0
    %v707 = vadd.f32 0.0, %v706
    %v708 = vpop.f32.mrf.mxu0
    %709 = vmatprep.mubr.f32.mxu0 0.0
    %710 = vmatmul.mubr.f32.gmra.mxu0 %v334
    %v711 = vpop.f32.mrf.mxu0
    %v712 = vadd.f32 0.0, %v711
    %v713 = vpop.f32.mrf.mxu0
    %714 = vmatprep.mubr.f32.mxu0 0.0
    %715 = vmatmul.mubr.f32.gmra.mxu0 %v337
    %v716 = vpop.f32.mrf.mxu0
    %v717 = vadd.f32 0.0, %v716
    %v718 = vpop.f32.mrf.mxu0
    %719 = vmatprep.mubr.f32.mxu0 0.0
    %720 = vmatmul.mubr.f32.gmra.mxu0 %v340
    %v721 = vpop.f32.mrf.mxu0
    %v722 = vadd.f32 0.0, %v721
    %v723 = vpop.f32.mrf.mxu0
    %724 = vmatprep.mubr.f32.mxu0 0.0
    %725 = vmatmul.mubr.f32.gmra.mxu0 %v343
    %v726 = vpop.f32.mrf.mxu0
    %v727 = vadd.f32 0.0, %v726
    %v728 = vpop.f32.mrf.mxu0
    %729 = vmatprep.mubr.f32.mxu0 0.0
    %730 = vmatmul.mubr.f32.gmra.mxu0 %v346
    %v731 = vpop.f32.mrf.mxu0
    %v732 = vadd.f32 0.0, %v731
    %v733 = vpop.f32.mrf.mxu0
    %734 = vmatprep.mubr.f32.mxu0 0.0
    %735 = vmatmul.mubr.f32.gmra.mxu0 %v349
    %v736 = vpop.f32.mrf.mxu0
    %v737 = vadd.f32 0.0, %v736
    %v738 = vpop.f32.mrf.mxu0
    %739 = vmatprep.mubr.f32.mxu0 0.0
    %740 = vmatmul.mubr.f32.gmra.mxu0 %v352
    %v741 = vpop.f32.mrf.mxu0
    %v742 = vadd.f32 0.0, %v741
    %v743 = vpop.f32.mrf.mxu0
    %744 = vmatprep.mubr.f32.mxu0 0.0
    %745 = vmatmul.mubr.f32.gmra.mxu0 %v355
    %v746 = vpop.f32.mrf.mxu0
    %v747 = vadd.f32 0.0, %v746
    %v748 = vpop.f32.mrf.mxu0
    %749 = vmatprep.mubr.f32.mxu0 0.0
    %750 = vmatmul.mubr.f32.gmra.mxu0 %v358
    %v751 = vpop.f32.mrf.mxu0
    %v752 = vadd.f32 0.0, %v751
    %v753 = vpop.f32.mrf.mxu0
    %754 = vmatprep.mubr.f32.mxu0 0.0
    %755 = vmatmul.mubr.f32.gmra.mxu0 %v361
    %v756 = vpop.f32.mrf.mxu0
    %v757 = vadd.f32 0.0, %v756
    %v758 = vpop.f32.mrf.mxu0
    %759 = vmatprep.mubr.f32.mxu0 0.0
    %760 = vmatmul.mubr.f32.gmra.mxu0 %v364
    %v761 = vpop.f32.mrf.mxu0
    %v762 = vadd.f32 0.0, %v761
    %v763 = vpop.f32.mrf.mxu0
    %764 = vmatprep.mubr.f32.mxu0 0.0
    %765 = vmatmul.mubr.f32.gmra.mxu0 %v367
    %v766 = vpop.f32.mrf.mxu0
    %v767 = vadd.f32 0.0, %v766
    %v768 = vpop.f32.mrf.mxu0
    %769 = vmatprep.mubr.f32.mxu0 0.0
    %770 = vmatmul.mubr.f32.gmra.mxu0 %v370
    %v771 = vpop.f32.mrf.mxu0
    %v772 = vadd.f32 0.0, %v771
    %v773 = vpop.f32.mrf.mxu0
    %774 = vmatprep.mubr.f32.mxu0 0.0
    %775 = vmatmul.mubr.f32.gmra.mxu0 %v373
    %v776 = vpop.f32.mrf.mxu0
    %v777 = vadd.f32 0.0, %v776
    %v778 = vpop.f32.mrf.mxu0
    %779 = vmatprep.mubr.f32.mxu0 0.0
    %780 = vmatmul.mubr.f32.gmra.mxu0 %v376
    %v781 = vpop.f32.mrf.mxu0
    %v782 = vadd.f32 0.0, %v781
    %v783 = vpop.f32.mrf.mxu0
    %784 = vmatprep.mubr.f32.mxu0 0.0
    %785 = vmatmul.mubr.f32.gmra.mxu0 %v379
    %v786 = vpop.f32.mrf.mxu0
    %v787 = vadd.f32 0.0, %v786
    %v788 = vpop.f32.mrf.mxu0
    %789 = vmatprep.mubr.f32.mxu0 0.0
    %790 = vmatmul.mubr.f32.gmra.mxu0 %v382
    %v791 = vpop.f32.mrf.mxu0
    %v792 = vadd.f32 0.0, %v791
    %v793 = vpop.f32.mrf.mxu0
    %794 = vmatprep.mubr.f32.mxu0 0.0
    %795 = vmatmul.mubr.f32.gmra.mxu0 %v385
    %v796 = vpop.f32.mrf.mxu0
    %v797 = vadd.f32 0.0, %v796
    %v798 = vpop.f32.mrf.mxu0
    %799 = vmatprep.mubr.f32.mxu0 0.0
    %800 = vmatmul.mubr.f32.gmra.mxu0 %v388
    %v801 = vpop.f32.mrf.mxu0
    %v802 = vadd.f32 0.0, %v801
    %v803 = vpop.f32.mrf.mxu0
    %804 = vmatprep.mubr.f32.mxu0 0.0
    %805 = vmatmul.mubr.f32.gmra.mxu0 %v391
    %v806 = vpop.f32.mrf.mxu0
    %v807 = vadd.f32 0.0, %v806
    %v808 = vpop.f32.mrf.mxu0
    %809 = vmatprep.mubr.f32.mxu0 0.0
    %810 = vmatmul.mubr.f32.gmra.mxu0 %v394
    %v811 = vpop.f32.mrf.mxu0
    %v812 = vadd.f32 0.0, %v811
    %v813 = vpop.f32.mrf.mxu0
    %814 = vmatprep.mubr.f32.mxu0 0.0
    %815 = vmatmul.mubr.f32.gmra.mxu0 %v397
    %v816 = vpop.f32.mrf.mxu0
    %v817 = vadd.f32 0.0, %v816
    %v818 = vpop.f32.mrf.mxu0
    %819 = vmatprep.mubr.f32.mxu0 0.0
    %820 = vmatmul.mubr.f32.gmra.mxu0 %v400
    %v821 = vpop.f32.mrf.mxu0
    %v822 = vadd.f32 0.0, %v821
    %v823 = vpop.f32.mrf.mxu0
    %824 = vmatprep.mubr.f32.mxu0 0.0
    %825 = vmatmul.mubr.f32.gmra.mxu0 %v403
    %v826 = vpop.f32.mrf.mxu0
    %v827 = vadd.f32 0.0, %v826
    %v828 = vpop.f32.mrf.mxu0
    %829 = vmatprep.mubr.f32.mxu0 0.0
    %830 = vmatmul.mubr.f32.gmra.mxu0 %v406
    %v831 = vpop.f32.mrf.mxu0
    %v832 = vadd.f32 0.0, %v831
    %v833 = vpop.f32.mrf.mxu0
    %834 = vmatprep.mubr.f32.mxu0 0.0
    %835 = vmatmul.mubr.f32.gmra.mxu0 %v409
    %v836 = vpop.f32.mrf.mxu0
    %v837 = vadd.f32 0.0, %v836
    %v838 = vpop.f32.mrf.mxu0
    %839 = vmatprep.mubr.f32.mxu0 0.0
    %840 = vmatmul.mubr.f32.gmra.mxu0 %v412
    %v841 = vpop.f32.mrf.mxu0
    %v842 = vadd.f32 0.0, %v841
    %v843 = vpop.f32.mrf.mxu0
    %844 = vmatprep.mubr.f32.mxu0 0.0
    %845 = vmatmul.mubr.f32.gmra.mxu0 %v415
    %v846 = vpop.f32.mrf.mxu0
    %v847 = vadd.f32 0.0, %v846
    %v848 = vpop.f32.mrf.mxu0
    %849 = vmatprep.mubr.f32.mxu0 0.0
    %850 = vmatmul.mubr.f32.gmra.mxu0 %v418
    %v851 = vpop.f32.mrf.mxu0
    %v852 = vadd.f32 0.0, %v851
    %v853 = vpop.f32.mrf.mxu0
    %854 = vmatprep.mubr.f32.mxu0 0.0
    %855 = vmatmul.mubr.f32.gmra.mxu0 %v421
    %v856 = vpop.f32.mrf.mxu0
    %v857 = vadd.f32 0.0, %v856
    %v858 = vpop.f32.mrf.mxu0
    %859 = vmatprep.mubr.f32.mxu0 0.0
    %860 = vmatmul.mubr.f32.gmra.mxu0 %v424
    %v861 = vpop.f32.mrf.mxu0
    %v862 = vadd.f32 0.0, %v861
    %v863 = vpop.f32.mrf.mxu0
    %864 = vmatprep.mubr.f32.mxu0 0.0
    %865 = vmatmul.mubr.f32.gmra.mxu0 %v427
    %v866 = vpop.f32.mrf.mxu0
    %v867 = vadd.f32 0.0, %v866
    %v868 = vpop.f32.mrf.mxu0
    %869 = vmatprep.mubr.f32.mxu0 0.0
    %870 = vmatmul.mubr.f32.gmra.mxu0 %v430
    %v871 = vpop.f32.mrf.mxu0
    %v872 = vadd.f32 0.0, %v871
    %v873 = vpop.f32.mrf.mxu0
    %874 = vmatprep.mubr.f32.mxu0 0.0
    %875 = vmatmul.mubr.f32.gmra.mxu0 %v433
    %v876 = vpop.f32.mrf.mxu0
    %v877 = vadd.f32 0.0, %v876
    %v878 = vpop.f32.mrf.mxu0
    %879 = vmatprep.mubr.f32.mxu0 0.0
    %880 = vmatmul.mubr.f32.gmra.mxu0 %v436
    %v881 = vpop.f32.mrf.mxu0
    %v882 = vadd.f32 0.0, %v881
    %v883 = vpop.f32.mrf.mxu0
    %884 = vmatprep.mubr.f32.mxu0 0.0
    %885 = vmatmul.mubr.f32.gmra.mxu0 %v439
    %v886 = vpop.f32.mrf.mxu0
    %v887 = vadd.f32 0.0, %v886
    %v888 = vpop.f32.mrf.mxu0
    %889 = vmatprep.mubr.f32.mxu0 0.0
    %890 = vmatmul.mubr.f32.gmra.mxu0 %v442
    %v891 = vpop.f32.mrf.mxu0
    %v892 = vadd.f32 0.0, %v891
    %v893 = vpop.f32.mrf.mxu0
    %894 = vmatprep.mubr.f32.mxu0 0.0
    %895 = vmatmul.mubr.f32.gmra.mxu0 %v445
    %v896 = vpop.f32.mrf.mxu0
    %v897 = vadd.f32 0.0, %v896
    %v898 = vpop.f32.mrf.mxu0
    %899 = vmatprep.mubr.f32.mxu0 0.0
    %900 = vmatmul.mubr.f32.gmra.mxu0 %v448
    %v901 = vpop.f32.mrf.mxu0
    %v902 = vadd.f32 0.0, %v901
    %v903 = vpop.f32.mrf.mxu0
    %904 = vmatprep.mubr.f32.mxu0 0.0
    %905 = vmatmul.mubr.f32.gmra.mxu0 %v451
    %v906 = vpop.f32.mrf.mxu0
    %v907 = vadd.f32 0.0, %v906
    %v908 = vpop.f32.mrf.mxu0
    %909 = vmatprep.mubr.f32.mxu0 0.0
    %910 = vmatmul.mubr.f32.gmra.mxu0 %v454
    %v911 = vpop.f32.mrf.mxu0
    %v912 = vadd.f32 0.0, %v911
    %v913 = vpop.f32.mrf.mxu0
    %914 = vmatprep.mubr.f32.mxu0 0.0
    %915 = vmatmul.mubr.f32.gmra.mxu0 %v457
    %v916 = vpop.f32.mrf.mxu0
    %v917 = vadd.f32 0.0, %v916
    %v918 = vpop.f32.mrf.mxu0
    %919 = vmatprep.mubr.f32.mxu0 0.0
    %920 = vmatmul.mubr.f32.gmra.mxu0 %v460
    %v921 = vpop.f32.mrf.mxu0
    %v922 = vadd.f32 0.0, %v921
    %v923 = vpop.f32.mrf.mxu0
    %924 = vmatprep.mubr.f32.mxu0 0.0
    %925 = vmatmul.mubr.f32.gmra.mxu0 %v463
    %v926 = vpop.f32.mrf.mxu0
    %v927 = vadd.f32 0.0, %v926
    %v928 = vpop.f32.mrf.mxu0
    %929 = vmatprep.mubr.f32.mxu0 0.0
    %930 = vmatmul.mubr.f32.gmra.mxu0 %v466
    %v931 = vpop.f32.mrf.mxu0
    %v932 = vadd.f32 0.0, %v931
    %v933 = vpop.f32.mrf.mxu0
    %934 = vmatprep.mubr.f32.mxu0 0.0
    %935 = vmatmul.mubr.f32.gmra.mxu0 %v469
    %v936 = vpop.f32.mrf.mxu0
    %v937 = vadd.f32 0.0, %v936
    %v938 = vpop.f32.mrf.mxu0
    %939 = vmatprep.mubr.f32.mxu0 0.0
    %940 = vmatmul.mubr.f32.gmra.mxu0 %v472
    %v941 = vpop.f32.mrf.mxu0
    %v942 = vadd.f32 0.0, %v941
    %v943 = vpop.f32.mrf.mxu0
    %944 = vmatprep.mubr.f32.mxu0 0.0
    %945 = vmatmul.mubr.f32.gmra.mxu0 %v475
    %v946 = vpop.f32.mrf.mxu0
    %v947 = vadd.f32 0.0, %v946
    %v948 = vpop.f32.mrf.mxu0
    %949 = vmatprep.mubr.f32.mxu0 0.0
    %950 = vmatmul.mubr.f32.gmra.mxu0 %v478
    %v951 = vpop.f32.mrf.mxu0
    %v952 = vadd.f32 0.0, %v951
    %v953 = vpop.f32.mrf.mxu0
    %954 = vmatprep.mubr.f32.mxu0 0.0
    %955 = vmatmul.mubr.f32.gmra.mxu0 %v481
    %v956 = vpop.f32.mrf.mxu0
    %v957 = vadd.f32 0.0, %v956
    %v958 = vpop.f32.mrf.mxu0
    %959 = vmatprep.mubr.f32.mxu0 0.0
    %960 = vmatmul.mubr.f32.gmra.mxu0 %v484
    %v961 = vpop.f32.mrf.mxu0
    %v962 = vadd.f32 0.0, %v961
    %v963 = vpop.f32.mrf.mxu0
    %964 = vmatprep.mubr.f32.mxu0 0.0
    %965 = vmatmul.mubr.f32.gmra.mxu0 %v487
    %v966 = vpop.f32.mrf.mxu0
    %v967 = vadd.f32 0.0, %v966
    %v968 = vpop.f32.mrf.mxu0
    %969 = vmatprep.mubr.f32.mxu0 0.0
    %970 = vmatmul.mubr.f32.gmra.mxu0 %v490
    %v971 = vpop.f32.mrf.mxu0
    %v972 = vadd.f32 0.0, %v971
    %v973 = vpop.f32.mrf.mxu0
    %974 = vmatprep.mubr.f32.mxu0 0.0
    %975 = vmatmul.mubr.f32.gmra.mxu0 %v493
    %v976 = vpop.f32.mrf.mxu0
    %v977 = vadd.f32 0.0, %v976
    %v978 = vpop.f32.mrf.mxu0
    %979 = vmatprep.mubr.f32.mxu0 0.0
    %980 = vmatmul.mubr.f32.gmra.mxu0 %v496
    %v981 = vpop.f32.mrf.mxu0
    %v982 = vadd.f32 0.0, %v981
    %v983 = vpop.f32.mrf.mxu0
    %984 = vmatprep.mubr.f32.mxu0 0.0
    %985 = vmatmul.mubr.f32.gmra.mxu0 %v499
    %v986 = vpop.f32.mrf.mxu0
    %v987 = vadd.f32 0.0, %v986
    %v988 = vpop.f32.mrf.mxu0
    %989 = vmatprep.mubr.f32.mxu0 0.0
    %990 = vmatmul.mubr.f32.gmra.mxu0 %v502
    %v991 = vpop.f32.mrf.mxu0
    %v992 = vadd.f32 0.0, %v991
    %v993 = vpop.f32.mrf.mxu0
    %994 = vmatprep.mubr.f32.mxu0 0.0
    %995 = vmatmul.mubr.f32.gmra.mxu0 %v505
    %v996 = vpop.f32.mrf.mxu0
    %v997 = vadd.f32 0.0, %v996
    %v998 = vpop.f32.mrf.mxu0
    %999 = vmatprep.mubr.f32.mxu0 0.0
    %1000 = vmatmul.mubr.f32.gmra.mxu0 %v508
    %v1001 = vpop.f32.mrf.mxu0
    %v1002 = vadd.f32 0.0, %v1001
    %v1003 = vpop.f32.mrf.mxu0
    %1004 = vmatprep.mubr.f32.mxu0 0.0
    %1005 = vmatmul.mubr.f32.gmra.mxu0 %v511
    %v1006 = vpop.f32.mrf.mxu0
    %v1007 = vadd.f32 0.0, %v1006
    %v1008 = vpop.f32.mrf.mxu0
    %1009 = vmatprep.mubr.f32.mxu0 0.0
    %1010 = vmatmul.mubr.f32.gmra.mxu0 %v514
    %v1011 = vpop.f32.mrf.mxu0
    %v1012 = vadd.f32 0.0, %v1011
    %v1013 = vpop.f32.mrf.mxu0
    %1014 = vmatprep.mubr.f32.mxu0 0.0
    %1015 = vmatmul.mubr.f32.gmra.mxu0 %v517
    %v1016 = vpop.f32.mrf.mxu0
    %v1017 = vadd.f32 0.0, %v1016
    %v1018 = vpop.f32.mrf.mxu0
    %1019 = vmatprep.mubr.f32.mxu0 0.0
    %1020 = vmatmul.mubr.f32.gmra.mxu0 %v520
    %v1021 = vpop.f32.mrf.mxu0
    %v1022 = vadd.f32 0.0, %v1021
    %v1023 = vpop.f32.mrf.mxu0
    %1024 = vmatprep.mubr.f32.mxu0 0.0
    %1025 = vmatmul.mubr.f32.gmra.mxu0 %v523
    %v1026 = vpop.f32.mrf.mxu0
    %v1027 = vadd.f32 0.0, %v1026
    %v1028 = vpop.f32.mrf.mxu0
    %1029 = vmatprep.mubr.f32.mxu0 0.0
    %1030 = vmatmul.mubr.f32.gmra.mxu0 %v526
    %v1031 = vpop.f32.mrf.mxu0
    %v1032 = vadd.f32 0.0, %v1031
    %v1033 = vpop.f32.mrf.mxu0
    %1034 = vmatprep.mubr.f32.mxu0 0.0
    %1035 = vmatmul.mubr.f32.gmra.mxu0 %v529
    %v1036 = vpop.f32.mrf.mxu0
    %v1037 = vadd.f32 0.0, %v1036
    %v1038 = vpop.f32.mrf.mxu0
    %1039 = vmatprep.mubr.f32.mxu0 0.0
    %1040 = vmatmul.mubr.f32.gmra.mxu0 %v532
    %v1041 = vpop.f32.mrf.mxu0
    %v1042 = vadd.f32 0.0, %v1041
    %v1043 = vpop.f32.mrf.mxu0
    %1044 = vmatprep.mubr.f32.mxu0 0.0
    %1045 = vmatmul.mubr.f32.gmra.mxu0 %v535
    %v1046 = vpop.f32.mrf.mxu0
    %v1047 = vadd.f32 0.0, %v1046
    %v1048 = vpop.f32.mrf.mxu0
    %1049 = vmatprep.mubr.f32.mxu0 0.0
    %1050 = vmatmul.mubr.f32.gmra.mxu0 %v538
    %v1051 = vpop.f32.mrf.mxu0
    %v1052 = vadd.f32 0.0, %v1051
    %v1053 = vpop.f32.mrf.mxu0
    %1054 = vmatprep.mubr.f32.mxu0 0.0
    %1055 = vmatmul.mubr.f32.gmra.mxu0 %v541
    %v1056 = vpop.f32.mrf.mxu0
    %v1057 = vadd.f32 0.0, %v1056
    %v1058 = vpop.f32.mrf.mxu0
    %1059 = vmatprep.mubr.f32.mxu0 0.0
    %1060 = vmatmul.mubr.f32.gmra.mxu0 %v544
    %v1061 = vpop.f32.mrf.mxu0
    %v1062 = vadd.f32 0.0, %v1061
    %v1063 = vpop.f32.mrf.mxu0
    %1064 = vmatprep.mubr.f32.mxu0 0.0
    %1065 = vmatmul.mubr.f32.gmra.mxu0 %v547
    %v1066 = vpop.f32.mrf.mxu0
    %v1067 = vadd.f32 0.0, %v1066
    %v1068 = vpop.f32.mrf.mxu0
    %1069 = vmatprep.mubr.f32.mxu0 0.0
    %1070 = vmatmul.mubr.f32.gmra.mxu0 %v550
    %v1071 = vpop.f32.mrf.mxu0
    %v1072 = vadd.f32 0.0, %v1071
    %v1073 = vpop.f32.mrf.mxu0
    %1074 = vmatprep.mubr.f32.mxu0 0.0
    %1075 = vmatmul.mubr.f32.gmra.mxu0 %v553
    %v1076 = vpop.f32.mrf.mxu0
    %v1077 = vadd.f32 0.0, %v1076
    %v1078 = vpop.f32.mrf.mxu0
    %1079 = vmatprep.mubr.f32.mxu0 0.0
    %1080 = vmatmul.mubr.f32.gmra.mxu0 %v556
    %v1081 = vpop.f32.mrf.mxu0
    %v1082 = vadd.f32 0.0, %v1081
    %v1083 = vpop.f32.mrf.mxu0
    %1084 = vmatprep.mubr.f32.mxu0 0.0
    %1085 = vmatmul.mubr.f32.gmra.mxu0 %v559
    %v1086 = vpop.f32.mrf.mxu0
    %v1087 = vadd.f32 0.0, %v1086
    %v1088 = vpop.f32.mrf.mxu0
    %1089 = vmatprep.mubr.f32.mxu0 0.0
    %1090 = vmatmul.mubr.f32.gmra.mxu0 %v562
    %v1091 = vpop.f32.mrf.mxu0
    %v1092 = vadd.f32 0.0, %v1091
    %v1093 = vpop.f32.mrf.mxu0
    %1094 = vmatprep.mubr.f32.mxu0 0.0
    %1095 = vmatmul.mubr.f32.gmra.mxu0 %v565
    %v1096 = vpop.f32.mrf.mxu0
    %v1097 = vadd.f32 0.0, %v1096
    %v1098 = vpop.f32.mrf.mxu0
    %1099 = vmatprep.mubr.f32.mxu0 0.0
    %1100 = vmatmul.mubr.f32.gmra.mxu0 %v568
    %v1101 = vpop.f32.mrf.mxu0
    %v1102 = vadd.f32 0.0, %v1101
    %v1103 = vpop.f32.mrf.mxu0
    %1104 = vmatprep.mubr.f32.mxu0 0.0
    %1105 = vmatmul.mubr.f32.gmra.mxu0 %v571
    %v1106 = vpop.f32.mrf.mxu0
    %v1107 = vadd.f32 0.0, %v1106
    %v1108 = vpop.f32.mrf.mxu0
    %1109 = vmatprep.mubr.f32.mxu0 0.0
    %1110 = vmatmul.mubr.f32.gmra.mxu0 %v574
    %v1111 = vpop.f32.mrf.mxu0
    %v1112 = vadd.f32 0.0, %v1111
    %v1113 = vpop.f32.mrf.mxu0
    %1114 = vmatprep.mubr.f32.mxu0 0.0
    %1115 = vmatmul.mubr.f32.gmra.mxu0 %v577
    %v1116 = vpop.f32.mrf.mxu0
    %v1117 = vadd.f32 0.0, %v1116
    %v1118 = vpop.f32.mrf.mxu0
    %1119 = vmatprep.mubr.f32.mxu0 0.0
    %1120 = vmatmul.mubr.f32.gmra.mxu0 %v580
    %v1121 = vpop.f32.mrf.mxu0
    %v1122 = vadd.f32 0.0, %v1121
    %v1123 = vpop.f32.mrf.mxu0
    %1124 = vmatprep.mubr.f32.mxu0 0.0
    %1125 = vmatmul.mubr.f32.gmra.mxu0 %v583
    %v1126 = vpop.f32.mrf.mxu0
    %v1127 = vadd.f32 0.0, %v1126
    %v1128 = vpop.f32.mrf.mxu0
    %1129 = vmatprep.mubr.f32.mxu0 0.0
    %1130 = vmatmul.mubr.f32.gmra.mxu0 %v586
    %v1131 = vpop.f32.mrf.mxu0
    %v1132 = vadd.f32 0.0, %v1131
    %v1133 = vpop.f32.mrf.mxu0
    %1134 = vmatprep.mubr.f32.mxu0 0.0
    %1135 = vmatmul.mubr.f32.gmra.mxu0 %v589
    %v1136 = vpop.f32.mrf.mxu0
    %v1137 = vadd.f32 0.0, %v1136
    %v1138 = vpop.f32.mrf.mxu0
    %1139 = vdwg.mxu0
    %v1140 = vsel %vm113, %v662, 0.0
    %v1141 = vsel %vm113, %v667, 0.0
    %v1142 = vadd.f32 %v1140, %v1141
    %v1143 = vsel %vm113, %v672, 0.0
    %v1144 = vadd.f32 %v1142, %v1143
    %v1145 = vsel %vm113, %v677, 0.0
    %v1146 = vadd.f32 %v1144, %v1145
    %v1147 = vsel %vm113, %v682, 0.0
    %v1148 = vadd.f32 %v1146, %v1147
    %v1149 = vsel %vm113, %v687, 0.0
    %v1150 = vadd.f32 %v1148, %v1149
    %v1151 = vsel %vm113, %v692, 0.0
    %v1152 = vadd.f32 %v1150, %v1151
    %v1153 = vsel %vm113, %v697, 0.0
    %v1154 = vadd.f32 %v1152, %v1153
    %v1155 = vsel %vm113, %v702, 0.0
    %v1156 = vadd.f32 %v1154, %v1155
    %v1157 = vsel %vm113, %v707, 0.0
    %v1158 = vadd.f32 %v1156, %v1157
    %v1159 = vsel %vm113, %v712, 0.0
    %v1160 = vadd.f32 %v1158, %v1159
    %v1161 = vsel %vm113, %v717, 0.0
    %v1162 = vadd.f32 %v1160, %v1161
    %v1163 = vsel %vm113, %v722, 0.0
    %v1164 = vadd.f32 %v1162, %v1163
    %v1165 = vsel %vm113, %v727, 0.0
    %v1166 = vadd.f32 %v1164, %v1165
    %v1167 = vsel %vm113, %v732, 0.0
    %v1168 = vadd.f32 %v1166, %v1167
    %v1169 = vsel %vm113, %v737, 0.0
    %v1170 = vadd.f32 %v1168, %v1169
    %v1171 = vsel %vm113, %v742, 0.0
    %v1172 = vadd.f32 %v1170, %v1171
    %v1173 = vsel %vm113, %v747, 0.0
    %v1174 = vadd.f32 %v1172, %v1173
    %v1175 = vsel %vm113, %v752, 0.0
    %v1176 = vadd.f32 %v1174, %v1175
    %v1177 = vsel %vm113, %v757, 0.0
    %v1178 = vadd.f32 %v1176, %v1177
    %v1179 = vsel %vm113, %v762, 0.0
    %v1180 = vadd.f32 %v1178, %v1179
    %v1181 = vsel %vm113, %v767, 0.0
    %v1182 = vadd.f32 %v1180, %v1181
    %v1183 = vsel %vm113, %v772, 0.0
    %v1184 = vadd.f32 %v1182, %v1183
    %v1185 = vsel %vm113, %v777, 0.0
    %v1186 = vadd.f32 %v1184, %v1185
    %v1187 = vsel %vm113, %v782, 0.0
    %v1188 = vadd.f32 %v1186, %v1187
    %v1189 = vsel %vm113, %v787, 0.0
    %v1190 = vadd.f32 %v1188, %v1189
    %v1191 = vsel %vm113, %v792, 0.0
    %v1192 = vadd.f32 %v1190, %v1191
    %v1193 = vsel %vm113, %v797, 0.0
    %v1194 = vadd.f32 %v1192, %v1193
    %v1195 = vsel %vm113, %v802, 0.0
    %v1196 = vadd.f32 %v1194, %v1195
    %v1197 = vsel %vm113, %v807, 0.0
    %v1198 = vadd.f32 %v1196, %v1197
    %v1199 = vsel %vm113, %v812, 0.0
    %v1200 = vadd.f32 %v1198, %v1199
    %v1201 = vsel %vm113, %v817, 0.0
    %v1202 = vadd.f32 %v1200, %v1201
    %v1203 = vsel %vm113, %v822, 0.0
    %v1204 = vadd.f32 %v1202, %v1203
    %v1205 = vsel %vm113, %v827, 0.0
    %v1206 = vadd.f32 %v1204, %v1205
    %v1207 = vsel %vm113, %v832, 0.0
    %v1208 = vadd.f32 %v1206, %v1207
    %v1209 = vsel %vm113, %v837, 0.0
    %v1210 = vadd.f32 %v1208, %v1209
    %v1211 = vsel %vm113, %v842, 0.0
    %v1212 = vadd.f32 %v1210, %v1211
    %v1213 = vsel %vm113, %v847, 0.0
    %v1214 = vadd.f32 %v1212, %v1213
    %v1215 = vsel %vm113, %v852, 0.0
    %v1216 = vadd.f32 %v1214, %v1215
    %v1217 = vsel %vm113, %v857, 0.0
    %v1218 = vadd.f32 %v1216, %v1217
    %v1219 = vsel %vm113, %v862, 0.0
    %v1220 = vadd.f32 %v1218, %v1219
    %v1221 = vsel %vm113, %v867, 0.0
    %v1222 = vadd.f32 %v1220, %v1221
    %v1223 = vsel %vm113, %v872, 0.0
    %v1224 = vadd.f32 %v1222, %v1223
    %v1225 = vsel %vm113, %v877, 0.0
    %v1226 = vadd.f32 %v1224, %v1225
    %v1227 = vsel %vm113, %v882, 0.0
    %v1228 = vadd.f32 %v1226, %v1227
    %v1229 = vsel %vm113, %v887, 0.0
    %v1230 = vadd.f32 %v1228, %v1229
    %v1231 = vsel %vm113, %v892, 0.0
    %v1232 = vadd.f32 %v1230, %v1231
    %v1233 = vsel %vm113, %v897, 0.0
    %v1234 = vadd.f32 %v1232, %v1233
    %v1235 = vsel %vm113, %v902, 0.0
    %v1236 = vadd.f32 %v1234, %v1235
    %v1237 = vsel %vm113, %v907, 0.0
    %v1238 = vadd.f32 %v1236, %v1237
    %v1239 = vsel %vm113, %v912, 0.0
    %v1240 = vadd.f32 %v1238, %v1239
    %v1241 = vsel %vm113, %v917, 0.0
    %v1242 = vadd.f32 %v1240, %v1241
    %v1243 = vsel %vm113, %v922, 0.0
    %v1244 = vadd.f32 %v1242, %v1243
    %v1245 = vsel %vm113, %v927, 0.0
    %v1246 = vadd.f32 %v1244, %v1245
    %v1247 = vsel %vm113, %v932, 0.0
    %v1248 = vadd.f32 %v1246, %v1247
    %v1249 = vsel %vm113, %v937, 0.0
    %v1250 = vadd.f32 %v1248, %v1249
    %v1251 = vsel %vm113, %v942, 0.0
    %v1252 = vadd.f32 %v1250, %v1251
    %v1253 = vsel %vm113, %v947, 0.0
    %v1254 = vadd.f32 %v1252, %v1253
    %v1255 = vsel %vm113, %v952, 0.0
    %v1256 = vadd.f32 %v1254, %v1255
    %v1257 = vsel %vm113, %v957, 0.0
    %v1258 = vadd.f32 %v1256, %v1257
    %v1259 = vsel %vm113, %v962, 0.0
    %v1260 = vadd.f32 %v1258, %v1259
    %v1261 = vsel %vm113, %v967, 0.0
    %v1262 = vadd.f32 %v1260, %v1261
    %v1263 = vsel %vm113, %v972, 0.0
    %v1264 = vadd.f32 %v1262, %v1263
    %v1265 = vsel %vm113, %v977, 0.0
    %v1266 = vadd.f32 %v1264, %v1265
    %v1267 = vsel %vm113, %v982, 0.0
    %v1268 = vadd.f32 %v1266, %v1267
    %v1269 = vsel %vm113, %v987, 0.0
    %v1270 = vadd.f32 %v1268, %v1269
    %v1271 = vsel %vm113, %v992, 0.0
    %v1272 = vadd.f32 %v1270, %v1271
    %v1273 = vsel %vm113, %v997, 0.0
    %v1274 = vadd.f32 %v1272, %v1273
    %v1275 = vsel %vm113, %v1002, 0.0
    %v1276 = vadd.f32 %v1274, %v1275
    %v1277 = vsel %vm113, %v1007, 0.0
    %v1278 = vadd.f32 %v1276, %v1277
    %v1279 = vsel %vm113, %v1012, 0.0
    %v1280 = vadd.f32 %v1278, %v1279
    %v1281 = vsel %vm113, %v1017, 0.0
    %v1282 = vadd.f32 %v1280, %v1281
    %v1283 = vsel %vm113, %v1022, 0.0
    %v1284 = vadd.f32 %v1282, %v1283
    %v1285 = vsel %vm113, %v1027, 0.0
    %v1286 = vadd.f32 %v1284, %v1285
    %v1287 = vsel %vm113, %v1032, 0.0
    %v1288 = vadd.f32 %v1286, %v1287
    %v1289 = vsel %vm113, %v1037, 0.0
    %v1290 = vadd.f32 %v1288, %v1289
    %v1291 = vsel %vm113, %v1042, 0.0
    %v1292 = vadd.f32 %v1290, %v1291
    %v1293 = vsel %vm113, %v1047, 0.0
    %v1294 = vadd.f32 %v1292, %v1293
    %v1295 = vsel %vm113, %v1052, 0.0
    %v1296 = vadd.f32 %v1294, %v1295
    %v1297 = vsel %vm113, %v1057, 0.0
    %v1298 = vadd.f32 %v1296, %v1297
    %v1299 = vsel %vm113, %v1062, 0.0
    %v1300 = vadd.f32 %v1298, %v1299
    %v1301 = vsel %vm113, %v1067, 0.0
    %v1302 = vadd.f32 %v1300, %v1301
    %v1303 = vsel %vm113, %v1072, 0.0
    %v1304 = vadd.f32 %v1302, %v1303
    %v1305 = vsel %vm113, %v1077, 0.0
    %v1306 = vadd.f32 %v1304, %v1305
    %v1307 = vsel %vm113, %v1082, 0.0
    %v1308 = vadd.f32 %v1306, %v1307
    %v1309 = vsel %vm113, %v1087, 0.0
    %v1310 = vadd.f32 %v1308, %v1309
    %v1311 = vsel %vm113, %v1092, 0.0
    %v1312 = vadd.f32 %v1310, %v1311
    %v1313 = vsel %vm113, %v1097, 0.0
    %v1314 = vadd.f32 %v1312, %v1313
    %v1315 = vsel %vm113, %v1102, 0.0
    %v1316 = vadd.f32 %v1314, %v1315
    %v1317 = vsel %vm113, %v1107, 0.0
    %v1318 = vadd.f32 %v1316, %v1317
    %v1319 = vsel %vm113, %v1112, 0.0
    %v1320 = vadd.f32 %v1318, %v1319
    %v1321 = vsel %vm113, %v1117, 0.0
    %v1322 = vadd.f32 %v1320, %v1321
    %v1323 = vsel %vm113, %v1122, 0.0
    %v1324 = vadd.f32 %v1322, %v1323
    %v1325 = vsel %vm113, %v1127, 0.0
    %v1326 = vadd.f32 %v1324, %v1325
    %v1327 = vsel %vm113, %v1132, 0.0
    %v1328 = vadd.f32 %v1326, %v1327
    %v1329 = vsel %vm113, %v1137, 0.0
    %v1330 = vadd.f32 %v1328, %v1329
    %v1331 = vrot.slane %v1330, 4
    %v1332 = vadd.f32 %v1330, %v1331
    %v1333 = vrot.slane %v1332, 2
    %v1334 = vadd.f32 %v1332, %v1333
    %v1335 = vrot.slane %v1334, 1
    %v1336 = vadd.f32 %v1334, %v1335
    %v1337 = vadd.f32 %v1336, 0.0
    %v1338 = vmul.f32 %v662, %v662
    %v1339 = vmul.f32 %v667, %v667
    %v1340 = vmul.f32 %v672, %v672
    %v1341 = vmul.f32 %v677, %v677
    %v1342 = vmul.f32 %v682, %v682
    %v1343 = vmul.f32 %v687, %v687
    %v1344 = vmul.f32 %v692, %v692
    %v1345 = vmul.f32 %v697, %v697
    %v1346 = vmul.f32 %v702, %v702
    %v1347 = vmul.f32 %v707, %v707
    %v1348 = vmul.f32 %v712, %v712
    %v1349 = vmul.f32 %v717, %v717
    %v1350 = vmul.f32 %v722, %v722
    %v1351 = vmul.f32 %v727, %v727
    %v1352 = vmul.f32 %v732, %v732
    %v1353 = vmul.f32 %v737, %v737
    %v1354 = vmul.f32 %v742, %v742
    %v1355 = vmul.f32 %v747, %v747
    %v1356 = vmul.f32 %v752, %v752
    %v1357 = vmul.f32 %v757, %v757
    %v1358 = vmul.f32 %v762, %v762
    %v1359 = vmul.f32 %v767, %v767
    %v1360 = vmul.f32 %v772, %v772
    %v1361 = vmul.f32 %v777, %v777
    %v1362 = vmul.f32 %v782, %v782
    %v1363 = vmul.f32 %v787, %v787
    %v1364 = vmul.f32 %v792, %v792
    %v1365 = vmul.f32 %v797, %v797
    %v1366 = vmul.f32 %v802, %v802
    %v1367 = vmul.f32 %v807, %v807
    %v1368 = vmul.f32 %v812, %v812
    %v1369 = vmul.f32 %v817, %v817
    %v1370 = vmul.f32 %v822, %v822
    %v1371 = vmul.f32 %v827, %v827
    %v1372 = vmul.f32 %v832, %v832
    %v1373 = vmul.f32 %v837, %v837
    %v1374 = vmul.f32 %v842, %v842
    %v1375 = vmul.f32 %v847, %v847
    %v1376 = vmul.f32 %v852, %v852
    %v1377 = vmul.f32 %v857, %v857
    %v1378 = vmul.f32 %v862, %v862
    %v1379 = vmul.f32 %v867, %v867
    %v1380 = vmul.f32 %v872, %v872
    %v1381 = vmul.f32 %v877, %v877
    %v1382 = vmul.f32 %v882, %v882
    %v1383 = vmul.f32 %v887, %v887
    %v1384 = vmul.f32 %v892, %v892
    %v1385 = vmul.f32 %v897, %v897
    %v1386 = vmul.f32 %v902, %v902
    %v1387 = vmul.f32 %v907, %v907
    %v1388 = vmul.f32 %v912, %v912
    %v1389 = vmul.f32 %v917, %v917
    %v1390 = vmul.f32 %v922, %v922
    %v1391 = vmul.f32 %v927, %v927
    %v1392 = vmul.f32 %v932, %v932
    %v1393 = vmul.f32 %v937, %v937
    %v1394 = vmul.f32 %v942, %v942
    %v1395 = vmul.f32 %v947, %v947
    %v1396 = vmul.f32 %v952, %v952
    %v1397 = vmul.f32 %v957, %v957
    %v1398 = vmul.f32 %v962, %v962
    %v1399 = vmul.f32 %v967, %v967
    %v1400 = vmul.f32 %v972, %v972
    %v1401 = vmul.f32 %v977, %v977
    %v1402 = vmul.f32 %v982, %v982
    %v1403 = vmul.f32 %v987, %v987
    %v1404 = vmul.f32 %v992, %v992
    %v1405 = vmul.f32 %v997, %v997
    %v1406 = vmul.f32 %v1002, %v1002
    %v1407 = vmul.f32 %v1007, %v1007
    %v1408 = vmul.f32 %v1012, %v1012
    %v1409 = vmul.f32 %v1017, %v1017
    %v1410 = vmul.f32 %v1022, %v1022
    %v1411 = vmul.f32 %v1027, %v1027
    %v1412 = vmul.f32 %v1032, %v1032
    %v1413 = vmul.f32 %v1037, %v1037
    %v1414 = vmul.f32 %v1042, %v1042
    %v1415 = vmul.f32 %v1047, %v1047
    %v1416 = vmul.f32 %v1052, %v1052
    %v1417 = vmul.f32 %v1057, %v1057
    %v1418 = vmul.f32 %v1062, %v1062
    %v1419 = vmul.f32 %v1067, %v1067
    %v1420 = vmul.f32 %v1072, %v1072
    %v1421 = vmul.f32 %v1077, %v1077
    %v1422 = vmul.f32 %v1082, %v1082
    %v1423 = vmul.f32 %v1087, %v1087
    %v1424 = vmul.f32 %v1092, %v1092
    %v1425 = vmul.f32 %v1097, %v1097
    %v1426 = vmul.f32 %v1102, %v1102
    %v1427 = vmul.f32 %v1107, %v1107
    %v1428 = vmul.f32 %v1112, %v1112
    %v1429 = vmul.f32 %v1117, %v1117
    %v1430 = vmul.f32 %v1122, %v1122
    %v1431 = vmul.f32 %v1127, %v1127
    %v1432 = vmul.f32 %v1132, %v1132
    %v1433 = vmul.f32 %v1137, %v1137
    %v1434 = vsel %vm113, %v1338, 0.0
    %v1435 = vsel %vm113, %v1339, 0.0
    %v1436 = vadd.f32 %v1434, %v1435
    %v1437 = vsel %vm113, %v1340, 0.0
    %v1438 = vadd.f32 %v1436, %v1437
    %v1439 = vsel %vm113, %v1341, 0.0
    %v1440 = vadd.f32 %v1438, %v1439
    %v1441 = vsel %vm113, %v1342, 0.0
    %v1442 = vadd.f32 %v1440, %v1441
    %v1443 = vsel %vm113, %v1343, 0.0
    %v1444 = vadd.f32 %v1442, %v1443
    %v1445 = vsel %vm113, %v1344, 0.0
    %v1446 = vadd.f32 %v1444, %v1445
    %v1447 = vsel %vm113, %v1345, 0.0
    %v1448 = vadd.f32 %v1446, %v1447
    %v1449 = vsel %vm113, %v1346, 0.0
    %v1450 = vadd.f32 %v1448, %v1449
    %v1451 = vsel %vm113, %v1347, 0.0
    %v1452 = vadd.f32 %v1450, %v1451
    %v1453 = vsel %vm113, %v1348, 0.0
    %v1454 = vadd.f32 %v1452, %v1453
    %v1455 = vsel %vm113, %v1349, 0.0
    %v1456 = vadd.f32 %v1454, %v1455
    %v1457 = vsel %vm113, %v1350, 0.0
    %v1458 = vadd.f32 %v1456, %v1457
    %v1459 = vsel %vm113, %v1351, 0.0
    %v1460 = vadd.f32 %v1458, %v1459
    %v1461 = vsel %vm113, %v1352, 0.0
    %v1462 = vadd.f32 %v1460, %v1461
    %v1463 = vsel %vm113, %v1353, 0.0
    %v1464 = vadd.f32 %v1462, %v1463
    %v1465 = vsel %vm113, %v1354, 0.0
    %v1466 = vadd.f32 %v1464, %v1465
    %v1467 = vsel %vm113, %v1355, 0.0
    %v1468 = vadd.f32 %v1466, %v1467
    %v1469 = vsel %vm113, %v1356, 0.0
    %v1470 = vadd.f32 %v1468, %v1469
    %v1471 = vsel %vm113, %v1357, 0.0
    %v1472 = vadd.f32 %v1470, %v1471
    %v1473 = vsel %vm113, %v1358, 0.0
    %v1474 = vadd.f32 %v1472, %v1473
    %v1475 = vsel %vm113, %v1359, 0.0
    %v1476 = vadd.f32 %v1474, %v1475
    %v1477 = vsel %vm113, %v1360, 0.0
    %v1478 = vadd.f32 %v1476, %v1477
    %v1479 = vsel %vm113, %v1361, 0.0
    %v1480 = vadd.f32 %v1478, %v1479
    %v1481 = vsel %vm113, %v1362, 0.0
    %v1482 = vadd.f32 %v1480, %v1481
    %v1483 = vsel %vm113, %v1363, 0.0
    %v1484 = vadd.f32 %v1482, %v1483
    %v1485 = vsel %vm113, %v1364, 0.0
    %v1486 = vadd.f32 %v1484, %v1485
    %v1487 = vsel %vm113, %v1365, 0.0
    %v1488 = vadd.f32 %v1486, %v1487
    %v1489 = vsel %vm113, %v1366, 0.0
    %v1490 = vadd.f32 %v1488, %v1489
    %v1491 = vsel %vm113, %v1367, 0.0
    %v1492 = vadd.f32 %v1490, %v1491
    %v1493 = vsel %vm113, %v1368, 0.0
    %v1494 = vadd.f32 %v1492, %v1493
    %v1495 = vsel %vm113, %v1369, 0.0
    %v1496 = vadd.f32 %v1494, %v1495
    %v1497 = vsel %vm113, %v1370, 0.0
    %v1498 = vadd.f32 %v1496, %v1497
    %v1499 = vsel %vm113, %v1371, 0.0
    %v1500 = vadd.f32 %v1498, %v1499
    %v1501 = vsel %vm113, %v1372, 0.0
    %v1502 = vadd.f32 %v1500, %v1501
    %v1503 = vsel %vm113, %v1373, 0.0
    %v1504 = vadd.f32 %v1502, %v1503
    %v1505 = vsel %vm113, %v1374, 0.0
    %v1506 = vadd.f32 %v1504, %v1505
    %v1507 = vsel %vm113, %v1375, 0.0
    %v1508 = vadd.f32 %v1506, %v1507
    %v1509 = vsel %vm113, %v1376, 0.0
    %v1510 = vadd.f32 %v1508, %v1509
    %v1511 = vsel %vm113, %v1377, 0.0
    %v1512 = vadd.f32 %v1510, %v1511
    %v1513 = vsel %vm113, %v1378, 0.0
    %v1514 = vadd.f32 %v1512, %v1513
    %v1515 = vsel %vm113, %v1379, 0.0
    %v1516 = vadd.f32 %v1514, %v1515
    %v1517 = vsel %vm113, %v1380, 0.0
    %v1518 = vadd.f32 %v1516, %v1517
    %v1519 = vsel %vm113, %v1381, 0.0
    %v1520 = vadd.f32 %v1518, %v1519
    %v1521 = vsel %vm113, %v1382, 0.0
    %v1522 = vadd.f32 %v1520, %v1521
    %v1523 = vsel %vm113, %v1383, 0.0
    %v1524 = vadd.f32 %v1522, %v1523
    %v1525 = vsel %vm113, %v1384, 0.0
    %v1526 = vadd.f32 %v1524, %v1525
    %v1527 = vsel %vm113, %v1385, 0.0
    %v1528 = vadd.f32 %v1526, %v1527
    %v1529 = vsel %vm113, %v1386, 0.0
    %v1530 = vadd.f32 %v1528, %v1529
    %v1531 = vsel %vm113, %v1387, 0.0
    %v1532 = vadd.f32 %v1530, %v1531
    %v1533 = vsel %vm113, %v1388, 0.0
    %v1534 = vadd.f32 %v1532, %v1533
    %v1535 = vsel %vm113, %v1389, 0.0
    %v1536 = vadd.f32 %v1534, %v1535
    %v1537 = vsel %vm113, %v1390, 0.0
    %v1538 = vadd.f32 %v1536, %v1537
    %v1539 = vsel %vm113, %v1391, 0.0
    %v1540 = vadd.f32 %v1538, %v1539
    %v1541 = vsel %vm113, %v1392, 0.0
    %v1542 = vadd.f32 %v1540, %v1541
    %v1543 = vsel %vm113, %v1393, 0.0
    %v1544 = vadd.f32 %v1542, %v1543
    %v1545 = vsel %vm113, %v1394, 0.0
    %v1546 = vadd.f32 %v1544, %v1545
    %v1547 = vsel %vm113, %v1395, 0.0
    %v1548 = vadd.f32 %v1546, %v1547
    %v1549 = vsel %vm113, %v1396, 0.0
    %v1550 = vadd.f32 %v1548, %v1549
    %v1551 = vsel %vm113, %v1397, 0.0
    %v1552 = vadd.f32 %v1550, %v1551
    %v1553 = vsel %vm113, %v1398, 0.0
    %v1554 = vadd.f32 %v1552, %v1553
    %v1555 = vsel %vm113, %v1399, 0.0
    %v1556 = vadd.f32 %v1554, %v1555
    %v1557 = vsel %vm113, %v1400, 0.0
    %v1558 = vadd.f32 %v1556, %v1557
    %v1559 = vsel %vm113, %v1401, 0.0
    %v1560 = vadd.f32 %v1558, %v1559
    %v1561 = vsel %vm113, %v1402, 0.0
    %v1562 = vadd.f32 %v1560, %v1561
    %v1563 = vsel %vm113, %v1403, 0.0
    %v1564 = vadd.f32 %v1562, %v1563
    %v1565 = vsel %vm113, %v1404, 0.0
    %v1566 = vadd.f32 %v1564, %v1565
    %v1567 = vsel %vm113, %v1405, 0.0
    %v1568 = vadd.f32 %v1566, %v1567
    %v1569 = vsel %vm113, %v1406, 0.0
    %v1570 = vadd.f32 %v1568, %v1569
    %v1571 = vsel %vm113, %v1407, 0.0
    %v1572 = vadd.f32 %v1570, %v1571
    %v1573 = vsel %vm113, %v1408, 0.0
    %v1574 = vadd.f32 %v1572, %v1573
    %v1575 = vsel %vm113, %v1409, 0.0
    %v1576 = vadd.f32 %v1574, %v1575
    %v1577 = vsel %vm113, %v1410, 0.0
    %v1578 = vadd.f32 %v1576, %v1577
    %v1579 = vsel %vm113, %v1411, 0.0
    %v1580 = vadd.f32 %v1578, %v1579
    %v1581 = vsel %vm113, %v1412, 0.0
    %v1582 = vadd.f32 %v1580, %v1581
    %v1583 = vsel %vm113, %v1413, 0.0
    %v1584 = vadd.f32 %v1582, %v1583
    %v1585 = vsel %vm113, %v1414, 0.0
    %v1586 = vadd.f32 %v1584, %v1585
    %v1587 = vsel %vm113, %v1415, 0.0
    %v1588 = vadd.f32 %v1586, %v1587
    %v1589 = vsel %vm113, %v1416, 0.0
    %v1590 = vadd.f32 %v1588, %v1589
    %v1591 = vsel %vm113, %v1417, 0.0
    %v1592 = vadd.f32 %v1590, %v1591
    %v1593 = vsel %vm113, %v1418, 0.0
    %v1594 = vadd.f32 %v1592, %v1593
    %v1595 = vsel %vm113, %v1419, 0.0
    %v1596 = vadd.f32 %v1594, %v1595
    %v1597 = vsel %vm113, %v1420, 0.0
    %v1598 = vadd.f32 %v1596, %v1597
    %v1599 = vsel %vm113, %v1421, 0.0
    %v1600 = vadd.f32 %v1598, %v1599
    %v1601 = vsel %vm113, %v1422, 0.0
    %v1602 = vadd.f32 %v1600, %v1601
    %v1603 = vsel %vm113, %v1423, 0.0
    %v1604 = vadd.f32 %v1602, %v1603
    %v1605 = vsel %vm113, %v1424, 0.0
    %v1606 = vadd.f32 %v1604, %v1605
    %v1607 = vsel %vm113, %v1425, 0.0
    %v1608 = vadd.f32 %v1606, %v1607
    %v1609 = vsel %vm113, %v1426, 0.0
    %v1610 = vadd.f32 %v1608, %v1609
    %v1611 = vsel %vm113, %v1427, 0.0
    %v1612 = vadd.f32 %v1610, %v1611
    %v1613 = vsel %vm113, %v1428, 0.0
    %v1614 = vadd.f32 %v1612, %v1613
    %v1615 = vsel %vm113, %v1429, 0.0
    %v1616 = vadd.f32 %v1614, %v1615
    %v1617 = vsel %vm113, %v1430, 0.0
    %v1618 = vadd.f32 %v1616, %v1617
    %v1619 = vsel %vm113, %v1431, 0.0
    %v1620 = vadd.f32 %v1618, %v1619
    %v1621 = vsel %vm113, %v1432, 0.0
    %v1622 = vadd.f32 %v1620, %v1621
    %v1623 = vsel %vm113, %v1433, 0.0
    %v1624 = vadd.f32 %v1622, %v1623
    %v1625 = vrot.slane %v1624, 4
    %v1626 = vadd.f32 %v1624, %v1625
    %v1627 = vrot.slane %v1626, 2
    %v1628 = vadd.f32 %v1626, %v1627
    %v1629 = vrot.slane %v1628, 1
    %v1630 = vadd.f32 %v1628, %v1629
    %v1631 = vadd.f32 %v1630, 0.0
    %s1632 = scalar_lea.vmem %s0, 768
    %v1633 = vld [vmem:[%s1632] sm:$0xff]
    %v1634 = vld [vmem:[%s1632 + $0x8] sm:$0xff]
    %v1635 = vld [vmem:[%s1632 + $0x10] sm:$0xff]
    %v1636 = vld [vmem:[%s1632 + $0x18] sm:$0xff]
    %v1637 = vld [vmem:[%s1632 + $0x20] sm:$0xff]
    %v1638 = vld [vmem:[%s1632 + $0x28] sm:$0xff]
    %v1639 = vld [vmem:[%s1632 + $0x30] sm:$0xff]
    %v1640 = vld [vmem:[%s1632 + $0x38] sm:$0xff]
    %v1641 = vld [vmem:[%s1632 + $0x40] sm:$0xff]
    %v1642 = vld [vmem:[%s1632 + $0x48] sm:$0xff]
    %v1643 = vld [vmem:[%s1632 + $0x50] sm:$0xff]
    %v1644 = vld [vmem:[%s1632 + $0x58] sm:$0xff]
    %v1645 = vld [vmem:[%s1632 + $0x60] sm:$0xff]
    %v1646 = vld [vmem:[%s1632 + $0x68] sm:$0xff]
    %v1647 = vld [vmem:[%s1632 + $0x70] sm:$0xff]
    %v1648 = vld [vmem:[%s1632 + $0x78] sm:$0xff]
    %v1649 = vld [vmem:[%s1632 + $0x80] sm:$0xff]
    %v1650 = vld [vmem:[%s1632 + $0x88] sm:$0xff]
    %v1651 = vld [vmem:[%s1632 + $0x90] sm:$0xff]
    %v1652 = vld [vmem:[%s1632 + $0x98] sm:$0xff]
    %v1653 = vld [vmem:[%s1632 + $0xa0] sm:$0xff]
    %v1654 = vld [vmem:[%s1632 + $0xa8] sm:$0xff]
    %v1655 = vld [vmem:[%s1632 + $0xb0] sm:$0xff]
    %v1656 = vld [vmem:[%s1632 + $0xb8] sm:$0xff]
    %v1657 = vld [vmem:[%s1632 + $0xc0] sm:$0xff]
    %v1658 = vld [vmem:[%s1632 + $0xc8] sm:$0xff]
    %v1659 = vld [vmem:[%s1632 + $0xd0] sm:$0xff]
    %v1660 = vld [vmem:[%s1632 + $0xd8] sm:$0xff]
    %v1661 = vld [vmem:[%s1632 + $0xe0] sm:$0xff]
    %v1662 = vld [vmem:[%s1632 + $0xe8] sm:$0xff]
    %v1663 = vld [vmem:[%s1632 + $0xf0] sm:$0xff]
    %v1664 = vld [vmem:[%s1632 + $0xf8] sm:$0xff]
    %v1665 = vld [vmem:[%s1632 + $0x100] sm:$0xff]
    %v1666 = vld [vmem:[%s1632 + $0x108] sm:$0xff]
    %v1667 = vld [vmem:[%s1632 + $0x110] sm:$0xff]
    %v1668 = vld [vmem:[%s1632 + $0x118] sm:$0xff]
    %v1669 = vld [vmem:[%s1632 + $0x120] sm:$0xff]
    %v1670 = vld [vmem:[%s1632 + $0x128] sm:$0xff]
    %v1671 = vld [vmem:[%s1632 + $0x130] sm:$0xff]
    %v1672 = vld [vmem:[%s1632 + $0x138] sm:$0xff]
    %v1673 = vld [vmem:[%s1632 + $0x140] sm:$0xff]
    %v1674 = vld [vmem:[%s1632 + $0x148] sm:$0xff]
    %v1675 = vld [vmem:[%s1632 + $0x150] sm:$0xff]
    %v1676 = vld [vmem:[%s1632 + $0x158] sm:$0xff]
    %v1677 = vld [vmem:[%s1632 + $0x160] sm:$0xff]
    %v1678 = vld [vmem:[%s1632 + $0x168] sm:$0xff]
    %v1679 = vld [vmem:[%s1632 + $0x170] sm:$0xff]
    %v1680 = vld [vmem:[%s1632 + $0x178] sm:$0xff]
    %v1681 = vld [vmem:[%s1632 + $0x180] sm:$0xff]
    %v1682 = vld [vmem:[%s1632 + $0x188] sm:$0xff]
    %v1683 = vld [vmem:[%s1632 + $0x190] sm:$0xff]
    %v1684 = vld [vmem:[%s1632 + $0x198] sm:$0xff]
    %v1685 = vld [vmem:[%s1632 + $0x1a0] sm:$0xff]
    %v1686 = vld [vmem:[%s1632 + $0x1a8] sm:$0xff]
    %v1687 = vld [vmem:[%s1632 + $0x1b0] sm:$0xff]
    %v1688 = vld [vmem:[%s1632 + $0x1b8] sm:$0xff]
    %v1689 = vld [vmem:[%s1632 + $0x1c0] sm:$0xff]
    %v1690 = vld [vmem:[%s1632 + $0x1c8] sm:$0xff]
    %v1691 = vld [vmem:[%s1632 + $0x1d0] sm:$0xff]
    %v1692 = vld [vmem:[%s1632 + $0x1d8] sm:$0xff]
    %v1693 = vld [vmem:[%s1632 + $0x1e0] sm:$0xff]
    %v1694 = vld [vmem:[%s1632 + $0x1e8] sm:$0xff]
    %v1695 = vld [vmem:[%s1632 + $0x1f0] sm:$0xff]
    %v1696 = vld [vmem:[%s1632 + $0x1f8] sm:$0xff]
    %v1697 = vld [vmem:[%s1632 + $0x200] sm:$0xff]
    %v1698 = vld [vmem:[%s1632 + $0x208] sm:$0xff]
    %v1699 = vld [vmem:[%s1632 + $0x210] sm:$0xff]
    %v1700 = vld [vmem:[%s1632 + $0x218] sm:$0xff]
    %v1701 = vld [vmem:[%s1632 + $0x220] sm:$0xff]
    %v1702 = vld [vmem:[%s1632 + $0x228] sm:$0xff]
    %v1703 = vld [vmem:[%s1632 + $0x230] sm:$0xff]
    %v1704 = vld [vmem:[%s1632 + $0x238] sm:$0xff]
    %v1705 = vld [vmem:[%s1632 + $0x240] sm:$0xff]
    %v1706 = vld [vmem:[%s1632 + $0x248] sm:$0xff]
    %v1707 = vld [vmem:[%s1632 + $0x250] sm:$0xff]
    %v1708 = vld [vmem:[%s1632 + $0x258] sm:$0xff]
    %v1709 = vld [vmem:[%s1632 + $0x260] sm:$0xff]
    %v1710 = vld [vmem:[%s1632 + $0x268] sm:$0xff]
    %v1711 = vld [vmem:[%s1632 + $0x270] sm:$0xff]
    %v1712 = vld [vmem:[%s1632 + $0x278] sm:$0xff]
    %v1713 = vld [vmem:[%s1632 + $0x280] sm:$0xff]
    %v1714 = vld [vmem:[%s1632 + $0x288] sm:$0xff]
    %v1715 = vld [vmem:[%s1632 + $0x290] sm:$0xff]
    %v1716 = vld [vmem:[%s1632 + $0x298] sm:$0xff]
    %v1717 = vld [vmem:[%s1632 + $0x2a0] sm:$0xff]
    %v1718 = vld [vmem:[%s1632 + $0x2a8] sm:$0xff]
    %v1719 = vld [vmem:[%s1632 + $0x2b0] sm:$0xff]
    %v1720 = vld [vmem:[%s1632 + $0x2b8] sm:$0xff]
    %v1721 = vld [vmem:[%s1632 + $0x2c0] sm:$0xff]
    %v1722 = vld [vmem:[%s1632 + $0x2c8] sm:$0xff]
    %v1723 = vld [vmem:[%s1632 + $0x2d0] sm:$0xff]
    %v1724 = vld [vmem:[%s1632 + $0x2d8] sm:$0xff]
    %v1725 = vld [vmem:[%s1632 + $0x2e0] sm:$0xff]
    %v1726 = vld [vmem:[%s1632 + $0x2e8] sm:$0xff]
    %v1727 = vld [vmem:[%s1632 + $0x2f0] sm:$0xff]
    %v1728 = vld [vmem:[%s1632 + $0x2f8] sm:$0xff]
    %v1730 = vsel %vm302, %v1633, 0
    %v1733 = vsel %vm302, %v1634, 0
    %v1736 = vsel %vm302, %v1635, 0
    %v1739 = vsel %vm302, %v1636, 0
    %v1742 = vsel %vm302, %v1637, 0
    %v1745 = vsel %vm302, %v1638, 0
    %v1748 = vsel %vm302, %v1639, 0
    %v1751 = vsel %vm302, %v1640, 0
    %v1754 = vsel %vm302, %v1641, 0
    %v1757 = vsel %vm302, %v1642, 0
    %v1760 = vsel %vm302, %v1643, 0
    %v1763 = vsel %vm302, %v1644, 0
    %v1766 = vsel %vm302, %v1645, 0
    %v1769 = vsel %vm302, %v1646, 0
    %v1772 = vsel %vm302, %v1647, 0
    %v1775 = vsel %vm302, %v1648, 0
    %v1778 = vsel %vm302, %v1649, 0
    %v1781 = vsel %vm302, %v1650, 0
    %v1784 = vsel %vm302, %v1651, 0
    %v1787 = vsel %vm302, %v1652, 0
    %v1790 = vsel %vm302, %v1653, 0
    %v1793 = vsel %vm302, %v1654, 0
    %v1796 = vsel %vm302, %v1655, 0
    %v1799 = vsel %vm302, %v1656, 0
    %v1802 = vsel %vm302, %v1657, 0
    %v1805 = vsel %vm302, %v1658, 0
    %v1808 = vsel %vm302, %v1659, 0
    %v1811 = vsel %vm302, %v1660, 0
    %v1814 = vsel %vm302, %v1661, 0
    %v1817 = vsel %vm302, %v1662, 0
    %v1820 = vsel %vm302, %v1663, 0
    %v1823 = vsel %vm302, %v1664, 0
    %v1826 = vsel %vm302, %v1665, 0
    %v1829 = vsel %vm302, %v1666, 0
    %v1832 = vsel %vm302, %v1667, 0
    %v1835 = vsel %vm302, %v1668, 0
    %v1838 = vsel %vm302, %v1669, 0
    %v1841 = vsel %vm302, %v1670, 0
    %v1844 = vsel %vm302, %v1671, 0
    %v1847 = vsel %vm302, %v1672, 0
    %v1850 = vsel %vm302, %v1673, 0
    %v1853 = vsel %vm302, %v1674, 0
    %v1856 = vsel %vm302, %v1675, 0
    %v1859 = vsel %vm302, %v1676, 0
    %v1862 = vsel %vm302, %v1677, 0
    %v1865 = vsel %vm302, %v1678, 0
    %v1868 = vsel %vm302, %v1679, 0
    %v1871 = vsel %vm302, %v1680, 0
    %v1874 = vsel %vm302, %v1681, 0
    %v1877 = vsel %vm302, %v1682, 0
    %v1880 = vsel %vm302, %v1683, 0
    %v1883 = vsel %vm302, %v1684, 0
    %v1886 = vsel %vm302, %v1685, 0
    %v1889 = vsel %vm302, %v1686, 0
    %v1892 = vsel %vm302, %v1687, 0
    %v1895 = vsel %vm302, %v1688, 0
    %v1898 = vsel %vm302, %v1689, 0
    %v1901 = vsel %vm302, %v1690, 0
    %v1904 = vsel %vm302, %v1691, 0
    %v1907 = vsel %vm302, %v1692, 0
    %v1910 = vsel %vm302, %v1693, 0
    %v1913 = vsel %vm302, %v1694, 0
    %v1916 = vsel %vm302, %v1695, 0
    %v1919 = vsel %vm302, %v1696, 0
    %v1922 = vsel %vm302, %v1697, 0
    %v1925 = vsel %vm302, %v1698, 0
    %v1928 = vsel %vm302, %v1699, 0
    %v1931 = vsel %vm302, %v1700, 0
    %v1934 = vsel %vm302, %v1701, 0
    %v1937 = vsel %vm302, %v1702, 0
    %v1940 = vsel %vm302, %v1703, 0
    %v1943 = vsel %vm302, %v1704, 0
    %v1946 = vsel %vm302, %v1705, 0
    %v1949 = vsel %vm302, %v1706, 0
    %v1952 = vsel %vm302, %v1707, 0
    %v1955 = vsel %vm302, %v1708, 0
    %v1958 = vsel %vm302, %v1709, 0
    %v1961 = vsel %vm302, %v1710, 0
    %v1964 = vsel %vm302, %v1711, 0
    %v1967 = vsel %vm302, %v1712, 0
    %v1970 = vsel %vm302, %v1713, 0
    %v1973 = vsel %vm302, %v1714, 0
    %v1976 = vsel %vm302, %v1715, 0
    %v1979 = vsel %vm302, %v1716, 0
    %v1982 = vsel %vm302, %v1717, 0
    %v1985 = vsel %vm302, %v1718, 0
    %v1988 = vsel %vm302, %v1719, 0
    %v1991 = vsel %vm302, %v1720, 0
    %v1994 = vsel %vm302, %v1721, 0
    %v1997 = vsel %vm302, %v1722, 0
    %v2000 = vsel %vm302, %v1723, 0
    %v2003 = vsel %vm302, %v1724, 0
    %v2006 = vsel %vm302, %v1725, 0
    %v2009 = vsel %vm302, %v1726, 0
    %v2012 = vsel %vm302, %v1727, 0
    %v2015 = vsel %vm302, %v1728, 0
    %2017 = vmatprep.subr.mxu0 0.0
    %2018 = vmatpush1.msra.mxu0 0.0
    %2019 = vmatprep.subr.mxu0 0.0
    %2020 = vmatpush1.msra.mxu0 0.0
    %2021 = vmatprep.subr.mxu0 0.0
    %2022 = vmatpush1.msra.mxu0 0.0
    %2023 = vmatprep.subr.mxu0 0.0
    %2024 = vmatpush1.msra.mxu0 0.0
    %2025 = vmatprep.subr.mxu0 0.0
    %2026 = vmatpush1.msra.mxu0 0.0
    %2027 = vmatprep.subr.mxu0 0.0
    %2028 = vmatpush1.msra.mxu0 0.0
    %2029 = vmatprep.subr.mxu0 0.0
    %2030 = vmatpush1.msra.mxu0 0.0
    %2031 = vmatprep.subr.mxu0 0.0
    %2032 = vmatpush1.msra.mxu0 0.0
    %2033 = vmatprep.subr.mxu0 0.0
    %2034 = vmatpush1.msra.mxu0 0.0
    %2035 = vmatprep.subr.mxu0 0.0
    %2036 = vmatpush1.msra.mxu0 0.0
    %2037 = vmatprep.subr.mxu0 0.0
    %2038 = vmatpush1.msra.mxu0 0.0
    %2039 = vmatprep.subr.mxu0 0.0
    %2040 = vmatpush1.msra.mxu0 0.0
    %2041 = vmatprep.subr.mxu0 0.0
    %2042 = vmatpush1.msra.mxu0 %v593
    %2043 = vmatprep.subr.mxu0 0.0
    %2044 = vmatpush1.msra.mxu0 %v300
    %2045 = vmatprep.subr.mxu0 0.0
    %2046 = vmatpush1.msra.mxu0 %v299
    %2047 = vmatprep.subr.mxu0 0.0
    %2048 = vmatpush1.msra.mxu0 %v298
    %2049 = vmatprep.subr.mxu0 0.0
    %2050 = vmatpush2.msra.mxu0 0.0
    %2051 = vmatprep.subr.mxu0 0.0
    %2052 = vmatpush2.msra.mxu0 0.0
    %2053 = vmatprep.subr.mxu0 0.0
    %2054 = vmatpush2.msra.mxu0 0.0
    %2055 = vmatprep.subr.mxu0 0.0
    %2056 = vmatpush2.msra.mxu0 0.0
    %2057 = vmatprep.subr.mxu0 0.0
    %2058 = vmatpush2.msra.mxu0 0.0
    %2059 = vmatprep.subr.mxu0 0.0
    %2060 = vmatpush2.msra.mxu0 0.0
    %2061 = vmatprep.subr.mxu0 0.0
    %2062 = vmatpush2.msra.mxu0 0.0
    %2063 = vmatprep.subr.mxu0 0.0
    %2064 = vmatpush2.msra.mxu0 0.0
    %2065 = vmatprep.subr.mxu0 0.0
    %2066 = vmatpush2.msra.mxu0 0.0
    %2067 = vmatprep.subr.mxu0 0.0
    %2068 = vmatpush2.msra.mxu0 0.0
    %2069 = vmatprep.subr.mxu0 0.0
    %2070 = vmatpush2.msra.mxu0 0.0
    %2071 = vmatprep.subr.mxu0 0.0
    %2072 = vmatpush2.msra.mxu0 0.0
    %2073 = vmatprep.subr.mxu0 0.0
    %2074 = vmatpush2.msra.mxu0 0.0
    %2075 = vmatprep.subr.mxu0 0.0
    %2076 = vmatpush2.msra.mxu0 0.0
    %2077 = vmatprep.subr.mxu0 0.0
    %2078 = vmatpush2.msra.mxu0 0.0
    %2079 = vmatprep.subr.mxu0 0.0
    %2080 = vmatpush2.msra.mxu0 0.0
    %2081 = vmatprep.mubr.f32.mxu0 0.0
    %2082 = vmatmul.mubr.f32.gmra.mxu0 %v1730
    %v2083 = vpop.f32.mrf.mxu0
    %v2084 = vadd.f32 0.0, %v2083
    %v2085 = vpop.f32.mrf.mxu0
    %2086 = vmatprep.mubr.f32.mxu0 0.0
    %2087 = vmatmul.mubr.f32.gmra.mxu0 %v1733
    %v2088 = vpop.f32.mrf.mxu0
    %v2089 = vadd.f32 0.0, %v2088
    %v2090 = vpop.f32.mrf.mxu0
    %2091 = vmatprep.mubr.f32.mxu0 0.0
    %2092 = vmatmul.mubr.f32.gmra.mxu0 %v1736
    %v2093 = vpop.f32.mrf.mxu0
    %v2094 = vadd.f32 0.0, %v2093
    %v2095 = vpop.f32.mrf.mxu0
    %2096 = vmatprep.mubr.f32.mxu0 0.0
    %2097 = vmatmul.mubr.f32.gmra.mxu0 %v1739
    %v2098 = vpop.f32.mrf.mxu0
    %v2099 = vadd.f32 0.0, %v2098
    %v2100 = vpop.f32.mrf.mxu0
    %2101 = vmatprep.mubr.f32.mxu0 0.0
    %2102 = vmatmul.mubr.f32.gmra.mxu0 %v1742
    %v2103 = vpop.f32.mrf.mxu0
    %v2104 = vadd.f32 0.0, %v2103
    %v2105 = vpop.f32.mrf.mxu0
    %2106 = vmatprep.mubr.f32.mxu0 0.0
    %2107 = vmatmul.mubr.f32.gmra.mxu0 %v1745
    %v2108 = vpop.f32.mrf.mxu0
    %v2109 = vadd.f32 0.0, %v2108
    %v2110 = vpop.f32.mrf.mxu0
    %2111 = vmatprep.mubr.f32.mxu0 0.0
    %2112 = vmatmul.mubr.f32.gmra.mxu0 %v1748
    %v2113 = vpop.f32.mrf.mxu0
    %v2114 = vadd.f32 0.0, %v2113
    %v2115 = vpop.f32.mrf.mxu0
    %2116 = vmatprep.mubr.f32.mxu0 0.0
    %2117 = vmatmul.mubr.f32.gmra.mxu0 %v1751
    %v2118 = vpop.f32.mrf.mxu0
    %v2119 = vadd.f32 0.0, %v2118
    %v2120 = vpop.f32.mrf.mxu0
    %2121 = vmatprep.mubr.f32.mxu0 0.0
    %2122 = vmatmul.mubr.f32.gmra.mxu0 %v1754
    %v2123 = vpop.f32.mrf.mxu0
    %v2124 = vadd.f32 0.0, %v2123
    %v2125 = vpop.f32.mrf.mxu0
    %2126 = vmatprep.mubr.f32.mxu0 0.0
    %2127 = vmatmul.mubr.f32.gmra.mxu0 %v1757
    %v2128 = vpop.f32.mrf.mxu0
    %v2129 = vadd.f32 0.0, %v2128
    %v2130 = vpop.f32.mrf.mxu0
    %2131 = vmatprep.mubr.f32.mxu0 0.0
    %2132 = vmatmul.mubr.f32.gmra.mxu0 %v1760
    %v2133 = vpop.f32.mrf.mxu0
    %v2134 = vadd.f32 0.0, %v2133
    %v2135 = vpop.f32.mrf.mxu0
    %2136 = vmatprep.mubr.f32.mxu0 0.0
    %2137 = vmatmul.mubr.f32.gmra.mxu0 %v1763
    %v2138 = vpop.f32.mrf.mxu0
    %v2139 = vadd.f32 0.0, %v2138
    %v2140 = vpop.f32.mrf.mxu0
    %2141 = vmatprep.mubr.f32.mxu0 0.0
    %2142 = vmatmul.mubr.f32.gmra.mxu0 %v1766
    %v2143 = vpop.f32.mrf.mxu0
    %v2144 = vadd.f32 0.0, %v2143
    %v2145 = vpop.f32.mrf.mxu0
    %2146 = vmatprep.mubr.f32.mxu0 0.0
    %2147 = vmatmul.mubr.f32.gmra.mxu0 %v1769
    %v2148 = vpop.f32.mrf.mxu0
    %v2149 = vadd.f32 0.0, %v2148
    %v2150 = vpop.f32.mrf.mxu0
    %2151 = vmatprep.mubr.f32.mxu0 0.0
    %2152 = vmatmul.mubr.f32.gmra.mxu0 %v1772
    %v2153 = vpop.f32.mrf.mxu0
    %v2154 = vadd.f32 0.0, %v2153
    %v2155 = vpop.f32.mrf.mxu0
    %2156 = vmatprep.mubr.f32.mxu0 0.0
    %2157 = vmatmul.mubr.f32.gmra.mxu0 %v1775
    %v2158 = vpop.f32.mrf.mxu0
    %v2159 = vadd.f32 0.0, %v2158
    %v2160 = vpop.f32.mrf.mxu0
    %2161 = vmatprep.mubr.f32.mxu0 0.0
    %2162 = vmatmul.mubr.f32.gmra.mxu0 %v1778
    %v2163 = vpop.f32.mrf.mxu0
    %v2164 = vadd.f32 0.0, %v2163
    %v2165 = vpop.f32.mrf.mxu0
    %2166 = vmatprep.mubr.f32.mxu0 0.0
    %2167 = vmatmul.mubr.f32.gmra.mxu0 %v1781
    %v2168 = vpop.f32.mrf.mxu0
    %v2169 = vadd.f32 0.0, %v2168
    %v2170 = vpop.f32.mrf.mxu0
    %2171 = vmatprep.mubr.f32.mxu0 0.0
    %2172 = vmatmul.mubr.f32.gmra.mxu0 %v1784
    %v2173 = vpop.f32.mrf.mxu0
    %v2174 = vadd.f32 0.0, %v2173
    %v2175 = vpop.f32.mrf.mxu0
    %2176 = vmatprep.mubr.f32.mxu0 0.0
    %2177 = vmatmul.mubr.f32.gmra.mxu0 %v1787
    %v2178 = vpop.f32.mrf.mxu0
    %v2179 = vadd.f32 0.0, %v2178
    %v2180 = vpop.f32.mrf.mxu0
    %2181 = vmatprep.mubr.f32.mxu0 0.0
    %2182 = vmatmul.mubr.f32.gmra.mxu0 %v1790
    %v2183 = vpop.f32.mrf.mxu0
    %v2184 = vadd.f32 0.0, %v2183
    %v2185 = vpop.f32.mrf.mxu0
    %2186 = vmatprep.mubr.f32.mxu0 0.0
    %2187 = vmatmul.mubr.f32.gmra.mxu0 %v1793
    %v2188 = vpop.f32.mrf.mxu0
    %v2189 = vadd.f32 0.0, %v2188
    %v2190 = vpop.f32.mrf.mxu0
    %2191 = vmatprep.mubr.f32.mxu0 0.0
    %2192 = vmatmul.mubr.f32.gmra.mxu0 %v1796
    %v2193 = vpop.f32.mrf.mxu0
    %v2194 = vadd.f32 0.0, %v2193
    %v2195 = vpop.f32.mrf.mxu0
    %2196 = vmatprep.mubr.f32.mxu0 0.0
    %2197 = vmatmul.mubr.f32.gmra.mxu0 %v1799
    %v2198 = vpop.f32.mrf.mxu0
    %v2199 = vadd.f32 0.0, %v2198
    %v2200 = vpop.f32.mrf.mxu0
    %2201 = vmatprep.mubr.f32.mxu0 0.0
    %2202 = vmatmul.mubr.f32.gmra.mxu0 %v1802
    %v2203 = vpop.f32.mrf.mxu0
    %v2204 = vadd.f32 0.0, %v2203
    %v2205 = vpop.f32.mrf.mxu0
    %2206 = vmatprep.mubr.f32.mxu0 0.0
    %2207 = vmatmul.mubr.f32.gmra.mxu0 %v1805
    %v2208 = vpop.f32.mrf.mxu0
    %v2209 = vadd.f32 0.0, %v2208
    %v2210 = vpop.f32.mrf.mxu0
    %2211 = vmatprep.mubr.f32.mxu0 0.0
    %2212 = vmatmul.mubr.f32.gmra.mxu0 %v1808
    %v2213 = vpop.f32.mrf.mxu0
    %v2214 = vadd.f32 0.0, %v2213
    %v2215 = vpop.f32.mrf.mxu0
    %2216 = vmatprep.mubr.f32.mxu0 0.0
    %2217 = vmatmul.mubr.f32.gmra.mxu0 %v1811
    %v2218 = vpop.f32.mrf.mxu0
    %v2219 = vadd.f32 0.0, %v2218
    %v2220 = vpop.f32.mrf.mxu0
    %2221 = vmatprep.mubr.f32.mxu0 0.0
    %2222 = vmatmul.mubr.f32.gmra.mxu0 %v1814
    %v2223 = vpop.f32.mrf.mxu0
    %v2224 = vadd.f32 0.0, %v2223
    %v2225 = vpop.f32.mrf.mxu0
    %2226 = vmatprep.mubr.f32.mxu0 0.0
    %2227 = vmatmul.mubr.f32.gmra.mxu0 %v1817
    %v2228 = vpop.f32.mrf.mxu0
    %v2229 = vadd.f32 0.0, %v2228
    %v2230 = vpop.f32.mrf.mxu0
    %2231 = vmatprep.mubr.f32.mxu0 0.0
    %2232 = vmatmul.mubr.f32.gmra.mxu0 %v1820
    %v2233 = vpop.f32.mrf.mxu0
    %v2234 = vadd.f32 0.0, %v2233
    %v2235 = vpop.f32.mrf.mxu0
    %2236 = vmatprep.mubr.f32.mxu0 0.0
    %2237 = vmatmul.mubr.f32.gmra.mxu0 %v1823
    %v2238 = vpop.f32.mrf.mxu0
    %v2239 = vadd.f32 0.0, %v2238
    %v2240 = vpop.f32.mrf.mxu0
    %2241 = vmatprep.mubr.f32.mxu0 0.0
    %2242 = vmatmul.mubr.f32.gmra.mxu0 %v1826
    %v2243 = vpop.f32.mrf.mxu0
    %v2244 = vadd.f32 0.0, %v2243
    %v2245 = vpop.f32.mrf.mxu0
    %2246 = vmatprep.mubr.f32.mxu0 0.0
    %2247 = vmatmul.mubr.f32.gmra.mxu0 %v1829
    %v2248 = vpop.f32.mrf.mxu0
    %v2249 = vadd.f32 0.0, %v2248
    %v2250 = vpop.f32.mrf.mxu0
    %2251 = vmatprep.mubr.f32.mxu0 0.0
    %2252 = vmatmul.mubr.f32.gmra.mxu0 %v1832
    %v2253 = vpop.f32.mrf.mxu0
    %v2254 = vadd.f32 0.0, %v2253
    %v2255 = vpop.f32.mrf.mxu0
    %2256 = vmatprep.mubr.f32.mxu0 0.0
    %2257 = vmatmul.mubr.f32.gmra.mxu0 %v1835
    %v2258 = vpop.f32.mrf.mxu0
    %v2259 = vadd.f32 0.0, %v2258
    %v2260 = vpop.f32.mrf.mxu0
    %2261 = vmatprep.mubr.f32.mxu0 0.0
    %2262 = vmatmul.mubr.f32.gmra.mxu0 %v1838
    %v2263 = vpop.f32.mrf.mxu0
    %v2264 = vadd.f32 0.0, %v2263
    %v2265 = vpop.f32.mrf.mxu0
    %2266 = vmatprep.mubr.f32.mxu0 0.0
    %2267 = vmatmul.mubr.f32.gmra.mxu0 %v1841
    %v2268 = vpop.f32.mrf.mxu0
    %v2269 = vadd.f32 0.0, %v2268
    %v2270 = vpop.f32.mrf.mxu0
    %2271 = vmatprep.mubr.f32.mxu0 0.0
    %2272 = vmatmul.mubr.f32.gmra.mxu0 %v1844
    %v2273 = vpop.f32.mrf.mxu0
    %v2274 = vadd.f32 0.0, %v2273
    %v2275 = vpop.f32.mrf.mxu0
    %2276 = vmatprep.mubr.f32.mxu0 0.0
    %2277 = vmatmul.mubr.f32.gmra.mxu0 %v1847
    %v2278 = vpop.f32.mrf.mxu0
    %v2279 = vadd.f32 0.0, %v2278
    %v2280 = vpop.f32.mrf.mxu0
    %2281 = vmatprep.mubr.f32.mxu0 0.0
    %2282 = vmatmul.mubr.f32.gmra.mxu0 %v1850
    %v2283 = vpop.f32.mrf.mxu0
    %v2284 = vadd.f32 0.0, %v2283
    %v2285 = vpop.f32.mrf.mxu0
    %2286 = vmatprep.mubr.f32.mxu0 0.0
    %2287 = vmatmul.mubr.f32.gmra.mxu0 %v1853
    %v2288 = vpop.f32.mrf.mxu0
    %v2289 = vadd.f32 0.0, %v2288
    %v2290 = vpop.f32.mrf.mxu0
    %2291 = vmatprep.mubr.f32.mxu0 0.0
    %2292 = vmatmul.mubr.f32.gmra.mxu0 %v1856
    %v2293 = vpop.f32.mrf.mxu0
    %v2294 = vadd.f32 0.0, %v2293
    %v2295 = vpop.f32.mrf.mxu0
    %2296 = vmatprep.mubr.f32.mxu0 0.0
    %2297 = vmatmul.mubr.f32.gmra.mxu0 %v1859
    %v2298 = vpop.f32.mrf.mxu0
    %v2299 = vadd.f32 0.0, %v2298
    %v2300 = vpop.f32.mrf.mxu0
    %2301 = vmatprep.mubr.f32.mxu0 0.0
    %2302 = vmatmul.mubr.f32.gmra.mxu0 %v1862
    %v2303 = vpop.f32.mrf.mxu0
    %v2304 = vadd.f32 0.0, %v2303
    %v2305 = vpop.f32.mrf.mxu0
    %2306 = vmatprep.mubr.f32.mxu0 0.0
    %2307 = vmatmul.mubr.f32.gmra.mxu0 %v1865
    %v2308 = vpop.f32.mrf.mxu0
    %v2309 = vadd.f32 0.0, %v2308
    %v2310 = vpop.f32.mrf.mxu0
    %2311 = vmatprep.mubr.f32.mxu0 0.0
    %2312 = vmatmul.mubr.f32.gmra.mxu0 %v1868
    %v2313 = vpop.f32.mrf.mxu0
    %v2314 = vadd.f32 0.0, %v2313
    %v2315 = vpop.f32.mrf.mxu0
    %2316 = vmatprep.mubr.f32.mxu0 0.0
    %2317 = vmatmul.mubr.f32.gmra.mxu0 %v1871
    %v2318 = vpop.f32.mrf.mxu0
    %v2319 = vadd.f32 0.0, %v2318
    %v2320 = vpop.f32.mrf.mxu0
    %2321 = vmatprep.mubr.f32.mxu0 0.0
    %2322 = vmatmul.mubr.f32.gmra.mxu0 %v1874
    %v2323 = vpop.f32.mrf.mxu0
    %v2324 = vadd.f32 0.0, %v2323
    %v2325 = vpop.f32.mrf.mxu0
    %2326 = vmatprep.mubr.f32.mxu0 0.0
    %2327 = vmatmul.mubr.f32.gmra.mxu0 %v1877
    %v2328 = vpop.f32.mrf.mxu0
    %v2329 = vadd.f32 0.0, %v2328
    %v2330 = vpop.f32.mrf.mxu0
    %2331 = vmatprep.mubr.f32.mxu0 0.0
    %2332 = vmatmul.mubr.f32.gmra.mxu0 %v1880
    %v2333 = vpop.f32.mrf.mxu0
    %v2334 = vadd.f32 0.0, %v2333
    %v2335 = vpop.f32.mrf.mxu0
    %2336 = vmatprep.mubr.f32.mxu0 0.0
    %2337 = vmatmul.mubr.f32.gmra.mxu0 %v1883
    %v2338 = vpop.f32.mrf.mxu0
    %v2339 = vadd.f32 0.0, %v2338
    %v2340 = vpop.f32.mrf.mxu0
    %2341 = vmatprep.mubr.f32.mxu0 0.0
    %2342 = vmatmul.mubr.f32.gmra.mxu0 %v1886
    %v2343 = vpop.f32.mrf.mxu0
    %v2344 = vadd.f32 0.0, %v2343
    %v2345 = vpop.f32.mrf.mxu0
    %2346 = vmatprep.mubr.f32.mxu0 0.0
    %2347 = vmatmul.mubr.f32.gmra.mxu0 %v1889
    %v2348 = vpop.f32.mrf.mxu0
    %v2349 = vadd.f32 0.0, %v2348
    %v2350 = vpop.f32.mrf.mxu0
    %2351 = vmatprep.mubr.f32.mxu0 0.0
    %2352 = vmatmul.mubr.f32.gmra.mxu0 %v1892
    %v2353 = vpop.f32.mrf.mxu0
    %v2354 = vadd.f32 0.0, %v2353
    %v2355 = vpop.f32.mrf.mxu0
    %2356 = vmatprep.mubr.f32.mxu0 0.0
    %2357 = vmatmul.mubr.f32.gmra.mxu0 %v1895
    %v2358 = vpop.f32.mrf.mxu0
    %v2359 = vadd.f32 0.0, %v2358
    %v2360 = vpop.f32.mrf.mxu0
    %2361 = vmatprep.mubr.f32.mxu0 0.0
    %2362 = vmatmul.mubr.f32.gmra.mxu0 %v1898
    %v2363 = vpop.f32.mrf.mxu0
    %v2364 = vadd.f32 0.0, %v2363
    %v2365 = vpop.f32.mrf.mxu0
    %2366 = vmatprep.mubr.f32.mxu0 0.0
    %2367 = vmatmul.mubr.f32.gmra.mxu0 %v1901
    %v2368 = vpop.f32.mrf.mxu0
    %v2369 = vadd.f32 0.0, %v2368
    %v2370 = vpop.f32.mrf.mxu0
    %2371 = vmatprep.mubr.f32.mxu0 0.0
    %2372 = vmatmul.mubr.f32.gmra.mxu0 %v1904
    %v2373 = vpop.f32.mrf.mxu0
    %v2374 = vadd.f32 0.0, %v2373
    %v2375 = vpop.f32.mrf.mxu0
    %2376 = vmatprep.mubr.f32.mxu0 0.0
    %2377 = vmatmul.mubr.f32.gmra.mxu0 %v1907
    %v2378 = vpop.f32.mrf.mxu0
    %v2379 = vadd.f32 0.0, %v2378
    %v2380 = vpop.f32.mrf.mxu0
    %2381 = vmatprep.mubr.f32.mxu0 0.0
    %2382 = vmatmul.mubr.f32.gmra.mxu0 %v1910
    %v2383 = vpop.f32.mrf.mxu0
    %v2384 = vadd.f32 0.0, %v2383
    %v2385 = vpop.f32.mrf.mxu0
    %2386 = vmatprep.mubr.f32.mxu0 0.0
    %2387 = vmatmul.mubr.f32.gmra.mxu0 %v1913
    %v2388 = vpop.f32.mrf.mxu0
    %v2389 = vadd.f32 0.0, %v2388
    %v2390 = vpop.f32.mrf.mxu0
    %2391 = vmatprep.mubr.f32.mxu0 0.0
    %2392 = vmatmul.mubr.f32.gmra.mxu0 %v1916
    %v2393 = vpop.f32.mrf.mxu0
    %v2394 = vadd.f32 0.0, %v2393
    %v2395 = vpop.f32.mrf.mxu0
    %2396 = vmatprep.mubr.f32.mxu0 0.0
    %2397 = vmatmul.mubr.f32.gmra.mxu0 %v1919
    %v2398 = vpop.f32.mrf.mxu0
    %v2399 = vadd.f32 0.0, %v2398
    %v2400 = vpop.f32.mrf.mxu0
    %2401 = vmatprep.mubr.f32.mxu0 0.0
    %2402 = vmatmul.mubr.f32.gmra.mxu0 %v1922
    %v2403 = vpop.f32.mrf.mxu0
    %v2404 = vadd.f32 0.0, %v2403
    %v2405 = vpop.f32.mrf.mxu0
    %2406 = vmatprep.mubr.f32.mxu0 0.0
    %2407 = vmatmul.mubr.f32.gmra.mxu0 %v1925
    %v2408 = vpop.f32.mrf.mxu0
    %v2409 = vadd.f32 0.0, %v2408
    %v2410 = vpop.f32.mrf.mxu0
    %2411 = vmatprep.mubr.f32.mxu0 0.0
    %2412 = vmatmul.mubr.f32.gmra.mxu0 %v1928
    %v2413 = vpop.f32.mrf.mxu0
    %v2414 = vadd.f32 0.0, %v2413
    %v2415 = vpop.f32.mrf.mxu0
    %2416 = vmatprep.mubr.f32.mxu0 0.0
    %2417 = vmatmul.mubr.f32.gmra.mxu0 %v1931
    %v2418 = vpop.f32.mrf.mxu0
    %v2419 = vadd.f32 0.0, %v2418
    %v2420 = vpop.f32.mrf.mxu0
    %2421 = vmatprep.mubr.f32.mxu0 0.0
    %2422 = vmatmul.mubr.f32.gmra.mxu0 %v1934
    %v2423 = vpop.f32.mrf.mxu0
    %v2424 = vadd.f32 0.0, %v2423
    %v2425 = vpop.f32.mrf.mxu0
    %2426 = vmatprep.mubr.f32.mxu0 0.0
    %2427 = vmatmul.mubr.f32.gmra.mxu0 %v1937
    %v2428 = vpop.f32.mrf.mxu0
    %v2429 = vadd.f32 0.0, %v2428
    %v2430 = vpop.f32.mrf.mxu0
    %2431 = vmatprep.mubr.f32.mxu0 0.0
    %2432 = vmatmul.mubr.f32.gmra.mxu0 %v1940
    %v2433 = vpop.f32.mrf.mxu0
    %v2434 = vadd.f32 0.0, %v2433
    %v2435 = vpop.f32.mrf.mxu0
    %2436 = vmatprep.mubr.f32.mxu0 0.0
    %2437 = vmatmul.mubr.f32.gmra.mxu0 %v1943
    %v2438 = vpop.f32.mrf.mxu0
    %v2439 = vadd.f32 0.0, %v2438
    %v2440 = vpop.f32.mrf.mxu0
    %2441 = vmatprep.mubr.f32.mxu0 0.0
    %2442 = vmatmul.mubr.f32.gmra.mxu0 %v1946
    %v2443 = vpop.f32.mrf.mxu0
    %v2444 = vadd.f32 0.0, %v2443
    %v2445 = vpop.f32.mrf.mxu0
    %2446 = vmatprep.mubr.f32.mxu0 0.0
    %2447 = vmatmul.mubr.f32.gmra.mxu0 %v1949
    %v2448 = vpop.f32.mrf.mxu0
    %v2449 = vadd.f32 0.0, %v2448
    %v2450 = vpop.f32.mrf.mxu0
    %2451 = vmatprep.mubr.f32.mxu0 0.0
    %2452 = vmatmul.mubr.f32.gmra.mxu0 %v1952
    %v2453 = vpop.f32.mrf.mxu0
    %v2454 = vadd.f32 0.0, %v2453
    %v2455 = vpop.f32.mrf.mxu0
    %2456 = vmatprep.mubr.f32.mxu0 0.0
    %2457 = vmatmul.mubr.f32.gmra.mxu0 %v1955
    %v2458 = vpop.f32.mrf.mxu0
    %v2459 = vadd.f32 0.0, %v2458
    %v2460 = vpop.f32.mrf.mxu0
    %2461 = vmatprep.mubr.f32.mxu0 0.0
    %2462 = vmatmul.mubr.f32.gmra.mxu0 %v1958
    %v2463 = vpop.f32.mrf.mxu0
    %v2464 = vadd.f32 0.0, %v2463
    %v2465 = vpop.f32.mrf.mxu0
    %2466 = vmatprep.mubr.f32.mxu0 0.0
    %2467 = vmatmul.mubr.f32.gmra.mxu0 %v1961
    %v2468 = vpop.f32.mrf.mxu0
    %v2469 = vadd.f32 0.0, %v2468
    %v2470 = vpop.f32.mrf.mxu0
    %2471 = vmatprep.mubr.f32.mxu0 0.0
    %2472 = vmatmul.mubr.f32.gmra.mxu0 %v1964
    %v2473 = vpop.f32.mrf.mxu0
    %v2474 = vadd.f32 0.0, %v2473
    %v2475 = vpop.f32.mrf.mxu0
    %2476 = vmatprep.mubr.f32.mxu0 0.0
    %2477 = vmatmul.mubr.f32.gmra.mxu0 %v1967
    %v2478 = vpop.f32.mrf.mxu0
    %v2479 = vadd.f32 0.0, %v2478
    %v2480 = vpop.f32.mrf.mxu0
    %2481 = vmatprep.mubr.f32.mxu0 0.0
    %2482 = vmatmul.mubr.f32.gmra.mxu0 %v1970
    %v2483 = vpop.f32.mrf.mxu0
    %v2484 = vadd.f32 0.0, %v2483
    %v2485 = vpop.f32.mrf.mxu0
    %2486 = vmatprep.mubr.f32.mxu0 0.0
    %2487 = vmatmul.mubr.f32.gmra.mxu0 %v1973
    %v2488 = vpop.f32.mrf.mxu0
    %v2489 = vadd.f32 0.0, %v2488
    %v2490 = vpop.f32.mrf.mxu0
    %2491 = vmatprep.mubr.f32.mxu0 0.0
    %2492 = vmatmul.mubr.f32.gmra.mxu0 %v1976
    %v2493 = vpop.f32.mrf.mxu0
    %v2494 = vadd.f32 0.0, %v2493
    %v2495 = vpop.f32.mrf.mxu0
    %2496 = vmatprep.mubr.f32.mxu0 0.0
    %2497 = vmatmul.mubr.f32.gmra.mxu0 %v1979
    %v2498 = vpop.f32.mrf.mxu0
    %v2499 = vadd.f32 0.0, %v2498
    %v2500 = vpop.f32.mrf.mxu0
    %2501 = vmatprep.mubr.f32.mxu0 0.0
    %2502 = vmatmul.mubr.f32.gmra.mxu0 %v1982
    %v2503 = vpop.f32.mrf.mxu0
    %v2504 = vadd.f32 0.0, %v2503
    %v2505 = vpop.f32.mrf.mxu0
    %2506 = vmatprep.mubr.f32.mxu0 0.0
    %2507 = vmatmul.mubr.f32.gmra.mxu0 %v1985
    %v2508 = vpop.f32.mrf.mxu0
    %v2509 = vadd.f32 0.0, %v2508
    %v2510 = vpop.f32.mrf.mxu0
    %2511 = vmatprep.mubr.f32.mxu0 0.0
    %2512 = vmatmul.mubr.f32.gmra.mxu0 %v1988
    %v2513 = vpop.f32.mrf.mxu0
    %v2514 = vadd.f32 0.0, %v2513
    %v2515 = vpop.f32.mrf.mxu0
    %2516 = vmatprep.mubr.f32.mxu0 0.0
    %2517 = vmatmul.mubr.f32.gmra.mxu0 %v1991
    %v2518 = vpop.f32.mrf.mxu0
    %v2519 = vadd.f32 0.0, %v2518
    %v2520 = vpop.f32.mrf.mxu0
    %2521 = vmatprep.mubr.f32.mxu0 0.0
    %2522 = vmatmul.mubr.f32.gmra.mxu0 %v1994
    %v2523 = vpop.f32.mrf.mxu0
    %v2524 = vadd.f32 0.0, %v2523
    %v2525 = vpop.f32.mrf.mxu0
    %2526 = vmatprep.mubr.f32.mxu0 0.0
    %2527 = vmatmul.mubr.f32.gmra.mxu0 %v1997
    %v2528 = vpop.f32.mrf.mxu0
    %v2529 = vadd.f32 0.0, %v2528
    %v2530 = vpop.f32.mrf.mxu0
    %2531 = vmatprep.mubr.f32.mxu0 0.0
    %2532 = vmatmul.mubr.f32.gmra.mxu0 %v2000
    %v2533 = vpop.f32.mrf.mxu0
    %v2534 = vadd.f32 0.0, %v2533
    %v2535 = vpop.f32.mrf.mxu0
    %2536 = vmatprep.mubr.f32.mxu0 0.0
    %2537 = vmatmul.mubr.f32.gmra.mxu0 %v2003
    %v2538 = vpop.f32.mrf.mxu0
    %v2539 = vadd.f32 0.0, %v2538
    %v2540 = vpop.f32.mrf.mxu0
    %2541 = vmatprep.mubr.f32.mxu0 0.0
    %2542 = vmatmul.mubr.f32.gmra.mxu0 %v2006
    %v2543 = vpop.f32.mrf.mxu0
    %v2544 = vadd.f32 0.0, %v2543
    %v2545 = vpop.f32.mrf.mxu0
    %2546 = vmatprep.mubr.f32.mxu0 0.0
    %2547 = vmatmul.mubr.f32.gmra.mxu0 %v2009
    %v2548 = vpop.f32.mrf.mxu0
    %v2549 = vadd.f32 0.0, %v2548
    %v2550 = vpop.f32.mrf.mxu0
    %2551 = vmatprep.mubr.f32.mxu0 0.0
    %2552 = vmatmul.mubr.f32.gmra.mxu0 %v2012
    %v2553 = vpop.f32.mrf.mxu0
    %v2554 = vadd.f32 0.0, %v2553
    %v2555 = vpop.f32.mrf.mxu0
    %2556 = vmatprep.mubr.f32.mxu0 0.0
    %2557 = vmatmul.mubr.f32.gmra.mxu0 %v2015
    %v2558 = vpop.f32.mrf.mxu0
    %v2559 = vadd.f32 0.0, %v2558
    %v2560 = vpop.f32.mrf.mxu0
    %2561 = vdwg.mxu0
    %v2562 = vsel %vm113, %v2084, 0.0
    %v2563 = vsel %vm113, %v2089, 0.0
    %v2564 = vadd.f32 %v2562, %v2563
    %v2565 = vsel %vm113, %v2094, 0.0
    %v2566 = vadd.f32 %v2564, %v2565
    %v2567 = vsel %vm113, %v2099, 0.0
    %v2568 = vadd.f32 %v2566, %v2567
    %v2569 = vsel %vm113, %v2104, 0.0
    %v2570 = vadd.f32 %v2568, %v2569
    %v2571 = vsel %vm113, %v2109, 0.0
    %v2572 = vadd.f32 %v2570, %v2571
    %v2573 = vsel %vm113, %v2114, 0.0
    %v2574 = vadd.f32 %v2572, %v2573
    %v2575 = vsel %vm113, %v2119, 0.0
    %v2576 = vadd.f32 %v2574, %v2575
    %v2577 = vsel %vm113, %v2124, 0.0
    %v2578 = vadd.f32 %v2576, %v2577
    %v2579 = vsel %vm113, %v2129, 0.0
    %v2580 = vadd.f32 %v2578, %v2579
    %v2581 = vsel %vm113, %v2134, 0.0
    %v2582 = vadd.f32 %v2580, %v2581
    %v2583 = vsel %vm113, %v2139, 0.0
    %v2584 = vadd.f32 %v2582, %v2583
    %v2585 = vsel %vm113, %v2144, 0.0
    %v2586 = vadd.f32 %v2584, %v2585
    %v2587 = vsel %vm113, %v2149, 0.0
    %v2588 = vadd.f32 %v2586, %v2587
    %v2589 = vsel %vm113, %v2154, 0.0
    %v2590 = vadd.f32 %v2588, %v2589
    %v2591 = vsel %vm113, %v2159, 0.0
    %v2592 = vadd.f32 %v2590, %v2591
    %v2593 = vsel %vm113, %v2164, 0.0
    %v2594 = vadd.f32 %v2592, %v2593
    %v2595 = vsel %vm113, %v2169, 0.0
    %v2596 = vadd.f32 %v2594, %v2595
    %v2597 = vsel %vm113, %v2174, 0.0
    %v2598 = vadd.f32 %v2596, %v2597
    %v2599 = vsel %vm113, %v2179, 0.0
    %v2600 = vadd.f32 %v2598, %v2599
    %v2601 = vsel %vm113, %v2184, 0.0
    %v2602 = vadd.f32 %v2600, %v2601
    %v2603 = vsel %vm113, %v2189, 0.0
    %v2604 = vadd.f32 %v2602, %v2603
    %v2605 = vsel %vm113, %v2194, 0.0
    %v2606 = vadd.f32 %v2604, %v2605
    %v2607 = vsel %vm113, %v2199, 0.0
    %v2608 = vadd.f32 %v2606, %v2607
    %v2609 = vsel %vm113, %v2204, 0.0
    %v2610 = vadd.f32 %v2608, %v2609
    %v2611 = vsel %vm113, %v2209, 0.0
    %v2612 = vadd.f32 %v2610, %v2611
    %v2613 = vsel %vm113, %v2214, 0.0
    %v2614 = vadd.f32 %v2612, %v2613
    %v2615 = vsel %vm113, %v2219, 0.0
    %v2616 = vadd.f32 %v2614, %v2615
    %v2617 = vsel %vm113, %v2224, 0.0
    %v2618 = vadd.f32 %v2616, %v2617
    %v2619 = vsel %vm113, %v2229, 0.0
    %v2620 = vadd.f32 %v2618, %v2619
    %v2621 = vsel %vm113, %v2234, 0.0
    %v2622 = vadd.f32 %v2620, %v2621
    %v2623 = vsel %vm113, %v2239, 0.0
    %v2624 = vadd.f32 %v2622, %v2623
    %v2625 = vsel %vm113, %v2244, 0.0
    %v2626 = vadd.f32 %v2624, %v2625
    %v2627 = vsel %vm113, %v2249, 0.0
    %v2628 = vadd.f32 %v2626, %v2627
    %v2629 = vsel %vm113, %v2254, 0.0
    %v2630 = vadd.f32 %v2628, %v2629
    %v2631 = vsel %vm113, %v2259, 0.0
    %v2632 = vadd.f32 %v2630, %v2631
    %v2633 = vsel %vm113, %v2264, 0.0
    %v2634 = vadd.f32 %v2632, %v2633
    %v2635 = vsel %vm113, %v2269, 0.0
    %v2636 = vadd.f32 %v2634, %v2635
    %v2637 = vsel %vm113, %v2274, 0.0
    %v2638 = vadd.f32 %v2636, %v2637
    %v2639 = vsel %vm113, %v2279, 0.0
    %v2640 = vadd.f32 %v2638, %v2639
    %v2641 = vsel %vm113, %v2284, 0.0
    %v2642 = vadd.f32 %v2640, %v2641
    %v2643 = vsel %vm113, %v2289, 0.0
    %v2644 = vadd.f32 %v2642, %v2643
    %v2645 = vsel %vm113, %v2294, 0.0
    %v2646 = vadd.f32 %v2644, %v2645
    %v2647 = vsel %vm113, %v2299, 0.0
    %v2648 = vadd.f32 %v2646, %v2647
    %v2649 = vsel %vm113, %v2304, 0.0
    %v2650 = vadd.f32 %v2648, %v2649
    %v2651 = vsel %vm113, %v2309, 0.0
    %v2652 = vadd.f32 %v2650, %v2651
    %v2653 = vsel %vm113, %v2314, 0.0
    %v2654 = vadd.f32 %v2652, %v2653
    %v2655 = vsel %vm113, %v2319, 0.0
    %v2656 = vadd.f32 %v2654, %v2655
    %v2657 = vsel %vm113, %v2324, 0.0
    %v2658 = vadd.f32 %v2656, %v2657
    %v2659 = vsel %vm113, %v2329, 0.0
    %v2660 = vadd.f32 %v2658, %v2659
    %v2661 = vsel %vm113, %v2334, 0.0
    %v2662 = vadd.f32 %v2660, %v2661
    %v2663 = vsel %vm113, %v2339, 0.0
    %v2664 = vadd.f32 %v2662, %v2663
    %v2665 = vsel %vm113, %v2344, 0.0
    %v2666 = vadd.f32 %v2664, %v2665
    %v2667 = vsel %vm113, %v2349, 0.0
    %v2668 = vadd.f32 %v2666, %v2667
    %v2669 = vsel %vm113, %v2354, 0.0
    %v2670 = vadd.f32 %v2668, %v2669
    %v2671 = vsel %vm113, %v2359, 0.0
    %v2672 = vadd.f32 %v2670, %v2671
    %v2673 = vsel %vm113, %v2364, 0.0
    %v2674 = vadd.f32 %v2672, %v2673
    %v2675 = vsel %vm113, %v2369, 0.0
    %v2676 = vadd.f32 %v2674, %v2675
    %v2677 = vsel %vm113, %v2374, 0.0
    %v2678 = vadd.f32 %v2676, %v2677
    %v2679 = vsel %vm113, %v2379, 0.0
    %v2680 = vadd.f32 %v2678, %v2679
    %v2681 = vsel %vm113, %v2384, 0.0
    %v2682 = vadd.f32 %v2680, %v2681
    %v2683 = vsel %vm113, %v2389, 0.0
    %v2684 = vadd.f32 %v2682, %v2683
    %v2685 = vsel %vm113, %v2394, 0.0
    %v2686 = vadd.f32 %v2684, %v2685
    %v2687 = vsel %vm113, %v2399, 0.0
    %v2688 = vadd.f32 %v2686, %v2687
    %v2689 = vsel %vm113, %v2404, 0.0
    %v2690 = vadd.f32 %v2688, %v2689
    %v2691 = vsel %vm113, %v2409, 0.0
    %v2692 = vadd.f32 %v2690, %v2691
    %v2693 = vsel %vm113, %v2414, 0.0
    %v2694 = vadd.f32 %v2692, %v2693
    %v2695 = vsel %vm113, %v2419, 0.0
    %v2696 = vadd.f32 %v2694, %v2695
    %v2697 = vsel %vm113, %v2424, 0.0
    %v2698 = vadd.f32 %v2696, %v2697
    %v2699 = vsel %vm113, %v2429, 0.0
    %v2700 = vadd.f32 %v2698, %v2699
    %v2701 = vsel %vm113, %v2434, 0.0
    %v2702 = vadd.f32 %v2700, %v2701
    %v2703 = vsel %vm113, %v2439, 0.0
    %v2704 = vadd.f32 %v2702, %v2703
    %v2705 = vsel %vm113, %v2444, 0.0
    %v2706 = vadd.f32 %v2704, %v2705
    %v2707 = vsel %vm113, %v2449, 0.0
    %v2708 = vadd.f32 %v2706, %v2707
    %v2709 = vsel %vm113, %v2454, 0.0
    %v2710 = vadd.f32 %v2708, %v2709
    %v2711 = vsel %vm113, %v2459, 0.0
    %v2712 = vadd.f32 %v2710, %v2711
    %v2713 = vsel %vm113, %v2464, 0.0
    %v2714 = vadd.f32 %v2712, %v2713
    %v2715 = vsel %vm113, %v2469, 0.0
    %v2716 = vadd.f32 %v2714, %v2715
    %v2717 = vsel %vm113, %v2474, 0.0
    %v2718 = vadd.f32 %v2716, %v2717
    %v2719 = vsel %vm113, %v2479, 0.0
    %v2720 = vadd.f32 %v2718, %v2719
    %v2721 = vsel %vm113, %v2484, 0.0
    %v2722 = vadd.f32 %v2720, %v2721
    %v2723 = vsel %vm113, %v2489, 0.0
    %v2724 = vadd.f32 %v2722, %v2723
    %v2725 = vsel %vm113, %v2494, 0.0
    %v2726 = vadd.f32 %v2724, %v2725
    %v2727 = vsel %vm113, %v2499, 0.0
    %v2728 = vadd.f32 %v2726, %v2727
    %v2729 = vsel %vm113, %v2504, 0.0
    %v2730 = vadd.f32 %v2728, %v2729
    %v2731 = vsel %vm113, %v2509, 0.0
    %v2732 = vadd.f32 %v2730, %v2731
    %v2733 = vsel %vm113, %v2514, 0.0
    %v2734 = vadd.f32 %v2732, %v2733
    %v2735 = vsel %vm113, %v2519, 0.0
    %v2736 = vadd.f32 %v2734, %v2735
    %v2737 = vsel %vm113, %v2524, 0.0
    %v2738 = vadd.f32 %v2736, %v2737
    %v2739 = vsel %vm113, %v2529, 0.0
    %v2740 = vadd.f32 %v2738, %v2739
    %v2741 = vsel %vm113, %v2534, 0.0
    %v2742 = vadd.f32 %v2740, %v2741
    %v2743 = vsel %vm113, %v2539, 0.0
    %v2744 = vadd.f32 %v2742, %v2743
    %v2745 = vsel %vm113, %v2544, 0.0
    %v2746 = vadd.f32 %v2744, %v2745
    %v2747 = vsel %vm113, %v2549, 0.0
    %v2748 = vadd.f32 %v2746, %v2747
    %v2749 = vsel %vm113, %v2554, 0.0
    %v2750 = vadd.f32 %v2748, %v2749
    %v2751 = vsel %vm113, %v2559, 0.0
    %v2752 = vadd.f32 %v2750, %v2751
    %v2753 = vrot.slane %v2752, 4
    %v2754 = vadd.f32 %v2752, %v2753
    %v2755 = vrot.slane %v2754, 2
    %v2756 = vadd.f32 %v2754, %v2755
    %v2757 = vrot.slane %v2756, 1
    %v2758 = vadd.f32 %v2756, %v2757
    %v2759 = vadd.f32 %v1337, %v2758
    %v2760 = vmul.f32 %v2084, %v2084
    %v2761 = vmul.f32 %v2089, %v2089
    %v2762 = vmul.f32 %v2094, %v2094
    %v2763 = vmul.f32 %v2099, %v2099
    %v2764 = vmul.f32 %v2104, %v2104
    %v2765 = vmul.f32 %v2109, %v2109
    %v2766 = vmul.f32 %v2114, %v2114
    %v2767 = vmul.f32 %v2119, %v2119
    %v2768 = vmul.f32 %v2124, %v2124
    %v2769 = vmul.f32 %v2129, %v2129
    %v2770 = vmul.f32 %v2134, %v2134
    %v2771 = vmul.f32 %v2139, %v2139
    %v2772 = vmul.f32 %v2144, %v2144
    %v2773 = vmul.f32 %v2149, %v2149
    %v2774 = vmul.f32 %v2154, %v2154
    %v2775 = vmul.f32 %v2159, %v2159
    %v2776 = vmul.f32 %v2164, %v2164
    %v2777 = vmul.f32 %v2169, %v2169
    %v2778 = vmul.f32 %v2174, %v2174
    %v2779 = vmul.f32 %v2179, %v2179
    %v2780 = vmul.f32 %v2184, %v2184
    %v2781 = vmul.f32 %v2189, %v2189
    %v2782 = vmul.f32 %v2194, %v2194
    %v2783 = vmul.f32 %v2199, %v2199
    %v2784 = vmul.f32 %v2204, %v2204
    %v2785 = vmul.f32 %v2209, %v2209
    %v2786 = vmul.f32 %v2214, %v2214
    %v2787 = vmul.f32 %v2219, %v2219
    %v2788 = vmul.f32 %v2224, %v2224
    %v2789 = vmul.f32 %v2229, %v2229
    %v2790 = vmul.f32 %v2234, %v2234
    %v2791 = vmul.f32 %v2239, %v2239
    %v2792 = vmul.f32 %v2244, %v2244
    %v2793 = vmul.f32 %v2249, %v2249
    %v2794 = vmul.f32 %v2254, %v2254
    %v2795 = vmul.f32 %v2259, %v2259
    %v2796 = vmul.f32 %v2264, %v2264
    %v2797 = vmul.f32 %v2269, %v2269
    %v2798 = vmul.f32 %v2274, %v2274
    %v2799 = vmul.f32 %v2279, %v2279
    %v2800 = vmul.f32 %v2284, %v2284
    %v2801 = vmul.f32 %v2289, %v2289
    %v2802 = vmul.f32 %v2294, %v2294
    %v2803 = vmul.f32 %v2299, %v2299
    %v2804 = vmul.f32 %v2304, %v2304
    %v2805 = vmul.f32 %v2309, %v2309
    %v2806 = vmul.f32 %v2314, %v2314
    %v2807 = vmul.f32 %v2319, %v2319
    %v2808 = vmul.f32 %v2324, %v2324
    %v2809 = vmul.f32 %v2329, %v2329
    %v2810 = vmul.f32 %v2334, %v2334
    %v2811 = vmul.f32 %v2339, %v2339
    %v2812 = vmul.f32 %v2344, %v2344
    %v2813 = vmul.f32 %v2349, %v2349
    %v2814 = vmul.f32 %v2354, %v2354
    %v2815 = vmul.f32 %v2359, %v2359
    %v2816 = vmul.f32 %v2364, %v2364
    %v2817 = vmul.f32 %v2369, %v2369
    %v2818 = vmul.f32 %v2374, %v2374
    %v2819 = vmul.f32 %v2379, %v2379
    %v2820 = vmul.f32 %v2384, %v2384
    %v2821 = vmul.f32 %v2389, %v2389
    %v2822 = vmul.f32 %v2394, %v2394
    %v2823 = vmul.f32 %v2399, %v2399
    %v2824 = vmul.f32 %v2404, %v2404
    %v2825 = vmul.f32 %v2409, %v2409
    %v2826 = vmul.f32 %v2414, %v2414
    %v2827 = vmul.f32 %v2419, %v2419
    %v2828 = vmul.f32 %v2424, %v2424
    %v2829 = vmul.f32 %v2429, %v2429
    %v2830 = vmul.f32 %v2434, %v2434
    %v2831 = vmul.f32 %v2439, %v2439
    %v2832 = vmul.f32 %v2444, %v2444
    %v2833 = vmul.f32 %v2449, %v2449
    %v2834 = vmul.f32 %v2454, %v2454
    %v2835 = vmul.f32 %v2459, %v2459
    %v2836 = vmul.f32 %v2464, %v2464
    %v2837 = vmul.f32 %v2469, %v2469
    %v2838 = vmul.f32 %v2474, %v2474
    %v2839 = vmul.f32 %v2479, %v2479
    %v2840 = vmul.f32 %v2484, %v2484
    %v2841 = vmul.f32 %v2489, %v2489
    %v2842 = vmul.f32 %v2494, %v2494
    %v2843 = vmul.f32 %v2499, %v2499
    %v2844 = vmul.f32 %v2504, %v2504
    %v2845 = vmul.f32 %v2509, %v2509
    %v2846 = vmul.f32 %v2514, %v2514
    %v2847 = vmul.f32 %v2519, %v2519
    %v2848 = vmul.f32 %v2524, %v2524
    %v2849 = vmul.f32 %v2529, %v2529
    %v2850 = vmul.f32 %v2534, %v2534
    %v2851 = vmul.f32 %v2539, %v2539
    %v2852 = vmul.f32 %v2544, %v2544
    %v2853 = vmul.f32 %v2549, %v2549
    %v2854 = vmul.f32 %v2554, %v2554
    %v2855 = vmul.f32 %v2559, %v2559
    %v2856 = vsel %vm113, %v2760, 0.0
    %v2857 = vsel %vm113, %v2761, 0.0
    %v2858 = vadd.f32 %v2856, %v2857
    %v2859 = vsel %vm113, %v2762, 0.0
    %v2860 = vadd.f32 %v2858, %v2859
    %v2861 = vsel %vm113, %v2763, 0.0
    %v2862 = vadd.f32 %v2860, %v2861
    %v2863 = vsel %vm113, %v2764, 0.0
    %v2864 = vadd.f32 %v2862, %v2863
    %v2865 = vsel %vm113, %v2765, 0.0
    %v2866 = vadd.f32 %v2864, %v2865
    %v2867 = vsel %vm113, %v2766, 0.0
    %v2868 = vadd.f32 %v2866, %v2867
    %v2869 = vsel %vm113, %v2767, 0.0
    %v2870 = vadd.f32 %v2868, %v2869
    %v2871 = vsel %vm113, %v2768, 0.0
    %v2872 = vadd.f32 %v2870, %v2871
    %v2873 = vsel %vm113, %v2769, 0.0
    %v2874 = vadd.f32 %v2872, %v2873
    %v2875 = vsel %vm113, %v2770, 0.0
    %v2876 = vadd.f32 %v2874, %v2875
    %v2877 = vsel %vm113, %v2771, 0.0
    %v2878 = vadd.f32 %v2876, %v2877
    %v2879 = vsel %vm113, %v2772, 0.0
    %v2880 = vadd.f32 %v2878, %v2879
    %v2881 = vsel %vm113, %v2773, 0.0
    %v2882 = vadd.f32 %v2880, %v2881
    %v2883 = vsel %vm113, %v2774, 0.0
    %v2884 = vadd.f32 %v2882, %v2883
    %v2885 = vsel %vm113, %v2775, 0.0
    %v2886 = vadd.f32 %v2884, %v2885
    %v2887 = vsel %vm113, %v2776, 0.0
    %v2888 = vadd.f32 %v2886, %v2887
    %v2889 = vsel %vm113, %v2777, 0.0
    %v2890 = vadd.f32 %v2888, %v2889
    %v2891 = vsel %vm113, %v2778, 0.0
    %v2892 = vadd.f32 %v2890, %v2891
    %v2893 = vsel %vm113, %v2779, 0.0
    %v2894 = vadd.f32 %v2892, %v2893
    %v2895 = vsel %vm113, %v2780, 0.0
    %v2896 = vadd.f32 %v2894, %v2895
    %v2897 = vsel %vm113, %v2781, 0.0
    %v2898 = vadd.f32 %v2896, %v2897
    %v2899 = vsel %vm113, %v2782, 0.0
    %v2900 = vadd.f32 %v2898, %v2899
    %v2901 = vsel %vm113, %v2783, 0.0
    %v2902 = vadd.f32 %v2900, %v2901
    %v2903 = vsel %vm113, %v2784, 0.0
    %v2904 = vadd.f32 %v2902, %v2903
    %v2905 = vsel %vm113, %v2785, 0.0
    %v2906 = vadd.f32 %v2904, %v2905
    %v2907 = vsel %vm113, %v2786, 0.0
    %v2908 = vadd.f32 %v2906, %v2907
    %v2909 = vsel %vm113, %v2787, 0.0
    %v2910 = vadd.f32 %v2908, %v2909
    %v2911 = vsel %vm113, %v2788, 0.0
    %v2912 = vadd.f32 %v2910, %v2911
    %v2913 = vsel %vm113, %v2789, 0.0
    %v2914 = vadd.f32 %v2912, %v2913
    %v2915 = vsel %vm113, %v2790, 0.0
    %v2916 = vadd.f32 %v2914, %v2915
    %v2917 = vsel %vm113, %v2791, 0.0
    %v2918 = vadd.f32 %v2916, %v2917
    %v2919 = vsel %vm113, %v2792, 0.0
    %v2920 = vadd.f32 %v2918, %v2919
    %v2921 = vsel %vm113, %v2793, 0.0
    %v2922 = vadd.f32 %v2920, %v2921
    %v2923 = vsel %vm113, %v2794, 0.0
    %v2924 = vadd.f32 %v2922, %v2923
    %v2925 = vsel %vm113, %v2795, 0.0
    %v2926 = vadd.f32 %v2924, %v2925
    %v2927 = vsel %vm113, %v2796, 0.0
    %v2928 = vadd.f32 %v2926, %v2927
    %v2929 = vsel %vm113, %v2797, 0.0
    %v2930 = vadd.f32 %v2928, %v2929
    %v2931 = vsel %vm113, %v2798, 0.0
    %v2932 = vadd.f32 %v2930, %v2931
    %v2933 = vsel %vm113, %v2799, 0.0
    %v2934 = vadd.f32 %v2932, %v2933
    %v2935 = vsel %vm113, %v2800, 0.0
    %v2936 = vadd.f32 %v2934, %v2935
    %v2937 = vsel %vm113, %v2801, 0.0
    %v2938 = vadd.f32 %v2936, %v2937
    %v2939 = vsel %vm113, %v2802, 0.0
    %v2940 = vadd.f32 %v2938, %v2939
    %v2941 = vsel %vm113, %v2803, 0.0
    %v2942 = vadd.f32 %v2940, %v2941
    %v2943 = vsel %vm113, %v2804, 0.0
    %v2944 = vadd.f32 %v2942, %v2943
    %v2945 = vsel %vm113, %v2805, 0.0
    %v2946 = vadd.f32 %v2944, %v2945
    %v2947 = vsel %vm113, %v2806, 0.0
    %v2948 = vadd.f32 %v2946, %v2947
    %v2949 = vsel %vm113, %v2807, 0.0
    %v2950 = vadd.f32 %v2948, %v2949
    %v2951 = vsel %vm113, %v2808, 0.0
    %v2952 = vadd.f32 %v2950, %v2951
    %v2953 = vsel %vm113, %v2809, 0.0
    %v2954 = vadd.f32 %v2952, %v2953
    %v2955 = vsel %vm113, %v2810, 0.0
    %v2956 = vadd.f32 %v2954, %v2955
    %v2957 = vsel %vm113, %v2811, 0.0
    %v2958 = vadd.f32 %v2956, %v2957
    %v2959 = vsel %vm113, %v2812, 0.0
    %v2960 = vadd.f32 %v2958, %v2959
    %v2961 = vsel %vm113, %v2813, 0.0
    %v2962 = vadd.f32 %v2960, %v2961
    %v2963 = vsel %vm113, %v2814, 0.0
    %v2964 = vadd.f32 %v2962, %v2963
    %v2965 = vsel %vm113, %v2815, 0.0
    %v2966 = vadd.f32 %v2964, %v2965
    %v2967 = vsel %vm113, %v2816, 0.0
    %v2968 = vadd.f32 %v2966, %v2967
    %v2969 = vsel %vm113, %v2817, 0.0
    %v2970 = vadd.f32 %v2968, %v2969
    %v2971 = vsel %vm113, %v2818, 0.0
    %v2972 = vadd.f32 %v2970, %v2971
    %v2973 = vsel %vm113, %v2819, 0.0
    %v2974 = vadd.f32 %v2972, %v2973
    %v2975 = vsel %vm113, %v2820, 0.0
    %v2976 = vadd.f32 %v2974, %v2975
    %v2977 = vsel %vm113, %v2821, 0.0
    %v2978 = vadd.f32 %v2976, %v2977
    %v2979 = vsel %vm113, %v2822, 0.0
    %v2980 = vadd.f32 %v2978, %v2979
    %v2981 = vsel %vm113, %v2823, 0.0
    %v2982 = vadd.f32 %v2980, %v2981
    %v2983 = vsel %vm113, %v2824, 0.0
    %v2984 = vadd.f32 %v2982, %v2983
    %v2985 = vsel %vm113, %v2825, 0.0
    %v2986 = vadd.f32 %v2984, %v2985
    %v2987 = vsel %vm113, %v2826, 0.0
    %v2988 = vadd.f32 %v2986, %v2987
    %v2989 = vsel %vm113, %v2827, 0.0
    %v2990 = vadd.f32 %v2988, %v2989
    %v2991 = vsel %vm113, %v2828, 0.0
    %v2992 = vadd.f32 %v2990, %v2991
    %v2993 = vsel %vm113, %v2829, 0.0
    %v2994 = vadd.f32 %v2992, %v2993
    %v2995 = vsel %vm113, %v2830, 0.0
    %v2996 = vadd.f32 %v2994, %v2995
    %v2997 = vsel %vm113, %v2831, 0.0
    %v2998 = vadd.f32 %v2996, %v2997
    %v2999 = vsel %vm113, %v2832, 0.0
    %v3000 = vadd.f32 %v2998, %v2999
    %v3001 = vsel %vm113, %v2833, 0.0
    %v3002 = vadd.f32 %v3000, %v3001
    %v3003 = vsel %vm113, %v2834, 0.0
    %v3004 = vadd.f32 %v3002, %v3003
    %v3005 = vsel %vm113, %v2835, 0.0
    %v3006 = vadd.f32 %v3004, %v3005
    %v3007 = vsel %vm113, %v2836, 0.0
    %v3008 = vadd.f32 %v3006, %v3007
    %v3009 = vsel %vm113, %v2837, 0.0
    %v3010 = vadd.f32 %v3008, %v3009
    %v3011 = vsel %vm113, %v2838, 0.0
    %v3012 = vadd.f32 %v3010, %v3011
    %v3013 = vsel %vm113, %v2839, 0.0
    %v3014 = vadd.f32 %v3012, %v3013
    %v3015 = vsel %vm113, %v2840, 0.0
    %v3016 = vadd.f32 %v3014, %v3015
    %v3017 = vsel %vm113, %v2841, 0.0
    %v3018 = vadd.f32 %v3016, %v3017
    %v3019 = vsel %vm113, %v2842, 0.0
    %v3020 = vadd.f32 %v3018, %v3019
    %v3021 = vsel %vm113, %v2843, 0.0
    %v3022 = vadd.f32 %v3020, %v3021
    %v3023 = vsel %vm113, %v2844, 0.0
    %v3024 = vadd.f32 %v3022, %v3023
    %v3025 = vsel %vm113, %v2845, 0.0
    %v3026 = vadd.f32 %v3024, %v3025
    %v3027 = vsel %vm113, %v2846, 0.0
    %v3028 = vadd.f32 %v3026, %v3027
    %v3029 = vsel %vm113, %v2847, 0.0
    %v3030 = vadd.f32 %v3028, %v3029
    %v3031 = vsel %vm113, %v2848, 0.0
    %v3032 = vadd.f32 %v3030, %v3031
    %v3033 = vsel %vm113, %v2849, 0.0
    %v3034 = vadd.f32 %v3032, %v3033
    %v3035 = vsel %vm113, %v2850, 0.0
    %v3036 = vadd.f32 %v3034, %v3035
    %v3037 = vsel %vm113, %v2851, 0.0
    %v3038 = vadd.f32 %v3036, %v3037
    %v3039 = vsel %vm113, %v2852, 0.0
    %v3040 = vadd.f32 %v3038, %v3039
    %v3041 = vsel %vm113, %v2853, 0.0
    %v3042 = vadd.f32 %v3040, %v3041
    %v3043 = vsel %vm113, %v2854, 0.0
    %v3044 = vadd.f32 %v3042, %v3043
    %v3045 = vsel %vm113, %v2855, 0.0
    %v3046 = vadd.f32 %v3044, %v3045
    %v3047 = vrot.slane %v3046, 4
    %v3048 = vadd.f32 %v3046, %v3047
    %v3049 = vrot.slane %v3048, 2
    %v3050 = vadd.f32 %v3048, %v3049
    %v3051 = vrot.slane %v3050, 1
    %v3052 = vadd.f32 %v3050, %v3051
    %v3053 = vadd.f32 %v1631, %v3052
    %v3054 = vrcp.pop 1536.0
    %v3055 = vmul.f32 %v2759, %v3054
    %v3056 = vmul.f32 %v3053, %v3054
    %v3057 = vmul.f32 %v3055, %v3055
    %v3058 = vsub.f32 %v3056, %v3057
    %v3059 = vld [vmem:[%s6] sm:$0x1]
    %v3060 = vadd.f32 %v3058, 1e-05
    %v3061 = vrsqrt.pop %v3060
    %v3062 = vmul.f32 %v3059, %v3061
    %v3063 = vld [vmem:[#allocation10] sm:$0x1]
    %v3064 = vmul.f32 %v3055, %v3062
    %v3065 = vsub.f32 %v3063, %v3064
    %v3067 = vlaneseq
    %v3068 = vshrl.u32 %v3067, 7
    %v3069 = vsub.s32 0, %v3068
    %v3070 = vrot.slane %v3062, %v3069
    %v3072 = vmul.f32 %v662, %v3070
    %v3073 = vmul.f32 %v667, %v3070
    %v3074 = vmul.f32 %v672, %v3070
    %v3075 = vmul.f32 %v677, %v3070
    %v3076 = vmul.f32 %v682, %v3070
    %v3077 = vmul.f32 %v687, %v3070
    %v3078 = vmul.f32 %v692, %v3070
    %v3079 = vmul.f32 %v697, %v3070
    %v3080 = vmul.f32 %v702, %v3070
    %v3081 = vmul.f32 %v707, %v3070
    %v3082 = vmul.f32 %v712, %v3070
    %v3083 = vmul.f32 %v717, %v3070
    %v3084 = vmul.f32 %v722, %v3070
    %v3085 = vmul.f32 %v727, %v3070
    %v3086 = vmul.f32 %v732, %v3070
    %v3087 = vmul.f32 %v737, %v3070
    %v3088 = vmul.f32 %v742, %v3070
    %v3089 = vmul.f32 %v747, %v3070
    %v3090 = vmul.f32 %v752, %v3070
    %v3091 = vmul.f32 %v757, %v3070
    %v3092 = vmul.f32 %v762, %v3070
    %v3093 = vmul.f32 %v767, %v3070
    %v3094 = vmul.f32 %v772, %v3070
    %v3095 = vmul.f32 %v777, %v3070
    %v3096 = vmul.f32 %v782, %v3070
    %v3097 = vmul.f32 %v787, %v3070
    %v3098 = vmul.f32 %v792, %v3070
    %v3099 = vmul.f32 %v797, %v3070
    %v3100 = vmul.f32 %v802, %v3070
    %v3101 = vmul.f32 %v807, %v3070
    %v3102 = vmul.f32 %v812, %v3070
    %v3103 = vmul.f32 %v817, %v3070
    %v3104 = vmul.f32 %v822, %v3070
    %v3105 = vmul.f32 %v827, %v3070
    %v3106 = vmul.f32 %v832, %v3070
    %v3107 = vmul.f32 %v837, %v3070
    %v3108 = vmul.f32 %v842, %v3070
    %v3109 = vmul.f32 %v847, %v3070
    %v3110 = vmul.f32 %v852, %v3070
    %v3111 = vmul.f32 %v857, %v3070
    %v3112 = vmul.f32 %v862, %v3070
    %v3113 = vmul.f32 %v867, %v3070
    %v3114 = vmul.f32 %v872, %v3070
    %v3115 = vmul.f32 %v877, %v3070
    %v3116 = vmul.f32 %v882, %v3070
    %v3117 = vmul.f32 %v887, %v3070
    %v3118 = vmul.f32 %v892, %v3070
    %v3119 = vmul.f32 %v897, %v3070
    %v3120 = vmul.f32 %v902, %v3070
    %v3121 = vmul.f32 %v907, %v3070
    %v3122 = vmul.f32 %v912, %v3070
    %v3123 = vmul.f32 %v917, %v3070
    %v3124 = vmul.f32 %v922, %v3070
    %v3125 = vmul.f32 %v927, %v3070
    %v3126 = vmul.f32 %v932, %v3070
    %v3127 = vmul.f32 %v937, %v3070
    %v3128 = vmul.f32 %v942, %v3070
    %v3129 = vmul.f32 %v947, %v3070
    %v3130 = vmul.f32 %v952, %v3070
    %v3131 = vmul.f32 %v957, %v3070
    %v3132 = vmul.f32 %v962, %v3070
    %v3133 = vmul.f32 %v967, %v3070
    %v3134 = vmul.f32 %v972, %v3070
    %v3135 = vmul.f32 %v977, %v3070
    %v3136 = vmul.f32 %v982, %v3070
    %v3137 = vmul.f32 %v987, %v3070
    %v3138 = vmul.f32 %v992, %v3070
    %v3139 = vmul.f32 %v997, %v3070
    %v3140 = vmul.f32 %v1002, %v3070
    %v3141 = vmul.f32 %v1007, %v3070
    %v3142 = vmul.f32 %v1012, %v3070
    %v3143 = vmul.f32 %v1017, %v3070
    %v3144 = vmul.f32 %v1022, %v3070
    %v3145 = vmul.f32 %v1027, %v3070
    %v3146 = vmul.f32 %v1032, %v3070
    %v3147 = vmul.f32 %v1037, %v3070
    %v3148 = vmul.f32 %v1042, %v3070
    %v3149 = vmul.f32 %v1047, %v3070
    %v3150 = vmul.f32 %v1052, %v3070
    %v3151 = vmul.f32 %v1057, %v3070
    %v3152 = vmul.f32 %v1062, %v3070
    %v3153 = vmul.f32 %v1067, %v3070
    %v3154 = vmul.f32 %v1072, %v3070
    %v3155 = vmul.f32 %v1077, %v3070
    %v3156 = vmul.f32 %v1082, %v3070
    %v3157 = vmul.f32 %v1087, %v3070
    %v3158 = vmul.f32 %v1092, %v3070
    %v3159 = vmul.f32 %v1097, %v3070
    %v3160 = vmul.f32 %v1102, %v3070
    %v3161 = vmul.f32 %v1107, %v3070
    %v3162 = vmul.f32 %v1112, %v3070
    %v3163 = vmul.f32 %v1117, %v3070
    %v3164 = vmul.f32 %v1122, %v3070
    %v3165 = vmul.f32 %v1127, %v3070
    %v3166 = vmul.f32 %v1132, %v3070
    %v3167 = vmul.f32 %v1137, %v3070
    %v3169 = vlaneseq
    %v3170 = vshrl.u32 %v3169, 7
    %v3171 = vsub.s32 0, %v3170
    %v3172 = vrot.slane %v3065, %v3171
    %v3174 = vadd.f32 %v3072, %v3172
    %v3175 = vadd.f32 %v3073, %v3172
    %v3176 = vadd.f32 %v3074, %v3172
    %v3177 = vadd.f32 %v3075, %v3172
    %v3178 = vadd.f32 %v3076, %v3172
    %v3179 = vadd.f32 %v3077, %v3172
    %v3180 = vadd.f32 %v3078, %v3172
    %v3181 = vadd.f32 %v3079, %v3172
    %v3182 = vadd.f32 %v3080, %v3172
    %v3183 = vadd.f32 %v3081, %v3172
    %v3184 = vadd.f32 %v3082, %v3172
    %v3185 = vadd.f32 %v3083, %v3172
    %v3186 = vadd.f32 %v3084, %v3172
    %v3187 = vadd.f32 %v3085, %v3172
    %v3188 = vadd.f32 %v3086, %v3172
    %v3189 = vadd.f32 %v3087, %v3172
    %v3190 = vadd.f32 %v3088, %v3172
    %v3191 = vadd.f32 %v3089, %v3172
    %v3192 = vadd.f32 %v3090, %v3172
    %v3193 = vadd.f32 %v3091, %v3172
    %v3194 = vadd.f32 %v3092, %v3172
    %v3195 = vadd.f32 %v3093, %v3172
    %v3196 = vadd.f32 %v3094, %v3172
    %v3197 = vadd.f32 %v3095, %v3172
    %v3198 = vadd.f32 %v3096, %v3172
    %v3199 = vadd.f32 %v3097, %v3172
    %v3200 = vadd.f32 %v3098, %v3172
    %v3201 = vadd.f32 %v3099, %v3172
    %v3202 = vadd.f32 %v3100, %v3172
    %v3203 = vadd.f32 %v3101, %v3172
    %v3204 = vadd.f32 %v3102, %v3172
    %v3205 = vadd.f32 %v3103, %v3172
    %v3206 = vadd.f32 %v3104, %v3172
    %v3207 = vadd.f32 %v3105, %v3172
    %v3208 = vadd.f32 %v3106, %v3172
    %v3209 = vadd.f32 %v3107, %v3172
    %v3210 = vadd.f32 %v3108, %v3172
    %v3211 = vadd.f32 %v3109, %v3172
    %v3212 = vadd.f32 %v3110, %v3172
    %v3213 = vadd.f32 %v3111, %v3172
    %v3214 = vadd.f32 %v3112, %v3172
    %v3215 = vadd.f32 %v3113, %v3172
    %v3216 = vadd.f32 %v3114, %v3172
    %v3217 = vadd.f32 %v3115, %v3172
    %v3218 = vadd.f32 %v3116, %v3172
    %v3219 = vadd.f32 %v3117, %v3172
    %v3220 = vadd.f32 %v3118, %v3172
    %v3221 = vadd.f32 %v3119, %v3172
    %v3222 = vadd.f32 %v3120, %v3172
    %v3223 = vadd.f32 %v3121, %v3172
    %v3224 = vadd.f32 %v3122, %v3172
    %v3225 = vadd.f32 %v3123, %v3172
    %v3226 = vadd.f32 %v3124, %v3172
    %v3227 = vadd.f32 %v3125, %v3172
    %v3228 = vadd.f32 %v3126, %v3172
    %v3229 = vadd.f32 %v3127, %v3172
    %v3230 = vadd.f32 %v3128, %v3172
    %v3231 = vadd.f32 %v3129, %v3172
    %v3232 = vadd.f32 %v3130, %v3172
    %v3233 = vadd.f32 %v3131, %v3172
    %v3234 = vadd.f32 %v3132, %v3172
    %v3235 = vadd.f32 %v3133, %v3172
    %v3236 = vadd.f32 %v3134, %v3172
    %v3237 = vadd.f32 %v3135, %v3172
    %v3238 = vadd.f32 %v3136, %v3172
    %v3239 = vadd.f32 %v3137, %v3172
    %v3240 = vadd.f32 %v3138, %v3172
    %v3241 = vadd.f32 %v3139, %v3172
    %v3242 = vadd.f32 %v3140, %v3172
    %v3243 = vadd.f32 %v3141, %v3172
    %v3244 = vadd.f32 %v3142, %v3172
    %v3245 = vadd.f32 %v3143, %v3172
    %v3246 = vadd.f32 %v3144, %v3172
    %v3247 = vadd.f32 %v3145, %v3172
    %v3248 = vadd.f32 %v3146, %v3172
    %v3249 = vadd.f32 %v3147, %v3172
    %v3250 = vadd.f32 %v3148, %v3172
    %v3251 = vadd.f32 %v3149, %v3172
    %v3252 = vadd.f32 %v3150, %v3172
    %v3253 = vadd.f32 %v3151, %v3172
    %v3254 = vadd.f32 %v3152, %v3172
    %v3255 = vadd.f32 %v3153, %v3172
    %v3256 = vadd.f32 %v3154, %v3172
    %v3257 = vadd.f32 %v3155, %v3172
    %v3258 = vadd.f32 %v3156, %v3172
    %v3259 = vadd.f32 %v3157, %v3172
    %v3260 = vadd.f32 %v3158, %v3172
    %v3261 = vadd.f32 %v3159, %v3172
    %v3262 = vadd.f32 %v3160, %v3172
    %v3263 = vadd.f32 %v3161, %v3172
    %v3264 = vadd.f32 %v3162, %v3172
    %v3265 = vadd.f32 %v3163, %v3172
    %v3266 = vadd.f32 %v3164, %v3172
    %v3267 = vadd.f32 %v3165, %v3172
    %v3268 = vadd.f32 %v3166, %v3172
    %v3269 = vadd.f32 %v3167, %v3172
    %v3270 = vmax.f32 %v3174, 0.0
    %v3271 = vmax.f32 %v3175, 0.0
    %v3272 = vmax.f32 %v3176, 0.0
    %v3273 = vmax.f32 %v3177, 0.0
    %v3274 = vmax.f32 %v3178, 0.0
    %v3275 = vmax.f32 %v3179, 0.0
    %v3276 = vmax.f32 %v3180, 0.0
    %v3277 = vmax.f32 %v3181, 0.0
    %v3278 = vmax.f32 %v3182, 0.0
    %v3279 = vmax.f32 %v3183, 0.0
    %v3280 = vmax.f32 %v3184, 0.0
    %v3281 = vmax.f32 %v3185, 0.0
    %v3282 = vmax.f32 %v3186, 0.0
    %v3283 = vmax.f32 %v3187, 0.0
    %v3284 = vmax.f32 %v3188, 0.0
    %v3285 = vmax.f32 %v3189, 0.0
    %v3286 = vmax.f32 %v3190, 0.0
    %v3287 = vmax.f32 %v3191, 0.0
    %v3288 = vmax.f32 %v3192, 0.0
    %v3289 = vmax.f32 %v3193, 0.0
    %v3290 = vmax.f32 %v3194, 0.0
    %v3291 = vmax.f32 %v3195, 0.0
    %v3292 = vmax.f32 %v3196, 0.0
    %v3293 = vmax.f32 %v3197, 0.0
    %v3294 = vmax.f32 %v3198, 0.0
    %v3295 = vmax.f32 %v3199, 0.0
    %v3296 = vmax.f32 %v3200, 0.0
    %v3297 = vmax.f32 %v3201, 0.0
    %v3298 = vmax.f32 %v3202, 0.0
    %v3299 = vmax.f32 %v3203, 0.0
    %v3300 = vmax.f32 %v3204, 0.0
    %v3301 = vmax.f32 %v3205, 0.0
    %v3302 = vmax.f32 %v3206, 0.0
    %v3303 = vmax.f32 %v3207, 0.0
    %v3304 = vmax.f32 %v3208, 0.0
    %v3305 = vmax.f32 %v3209, 0.0
    %v3306 = vmax.f32 %v3210, 0.0
    %v3307 = vmax.f32 %v3211, 0.0
    %v3308 = vmax.f32 %v3212, 0.0
    %v3309 = vmax.f32 %v3213, 0.0
    %v3310 = vmax.f32 %v3214, 0.0
    %v3311 = vmax.f32 %v3215, 0.0
    %v3312 = vmax.f32 %v3216, 0.0
    %v3313 = vmax.f32 %v3217, 0.0
    %v3314 = vmax.f32 %v3218, 0.0
    %v3315 = vmax.f32 %v3219, 0.0
    %v3316 = vmax.f32 %v3220, 0.0
    %v3317 = vmax.f32 %v3221, 0.0
    %v3318 = vmax.f32 %v3222, 0.0
    %v3319 = vmax.f32 %v3223, 0.0
    %v3320 = vmax.f32 %v3224, 0.0
    %v3321 = vmax.f32 %v3225, 0.0
    %v3322 = vmax.f32 %v3226, 0.0
    %v3323 = vmax.f32 %v3227, 0.0
    %v3324 = vmax.f32 %v3228, 0.0
    %v3325 = vmax.f32 %v3229, 0.0
    %v3326 = vmax.f32 %v3230, 0.0
    %v3327 = vmax.f32 %v3231, 0.0
    %v3328 = vmax.f32 %v3232, 0.0
    %v3329 = vmax.f32 %v3233, 0.0
    %v3330 = vmax.f32 %v3234, 0.0
    %v3331 = vmax.f32 %v3235, 0.0
    %v3332 = vmax.f32 %v3236, 0.0
    %v3333 = vmax.f32 %v3237, 0.0
    %v3334 = vmax.f32 %v3238, 0.0
    %v3335 = vmax.f32 %v3239, 0.0
    %v3336 = vmax.f32 %v3240, 0.0
    %v3337 = vmax.f32 %v3241, 0.0
    %v3338 = vmax.f32 %v3242, 0.0
    %v3339 = vmax.f32 %v3243, 0.0
    %v3340 = vmax.f32 %v3244, 0.0
    %v3341 = vmax.f32 %v3245, 0.0
    %v3342 = vmax.f32 %v3246, 0.0
    %v3343 = vmax.f32 %v3247, 0.0
    %v3344 = vmax.f32 %v3248, 0.0
    %v3345 = vmax.f32 %v3249, 0.0
    %v3346 = vmax.f32 %v3250, 0.0
    %v3347 = vmax.f32 %v3251, 0.0
    %v3348 = vmax.f32 %v3252, 0.0
    %v3349 = vmax.f32 %v3253, 0.0
    %v3350 = vmax.f32 %v3254, 0.0
    %v3351 = vmax.f32 %v3255, 0.0
    %v3352 = vmax.f32 %v3256, 0.0
    %v3353 = vmax.f32 %v3257, 0.0
    %v3354 = vmax.f32 %v3258, 0.0
    %v3355 = vmax.f32 %v3259, 0.0
    %v3356 = vmax.f32 %v3260, 0.0
    %v3357 = vmax.f32 %v3261, 0.0
    %v3358 = vmax.f32 %v3262, 0.0
    %v3359 = vmax.f32 %v3263, 0.0
    %v3360 = vmax.f32 %v3264, 0.0
    %v3361 = vmax.f32 %v3265, 0.0
    %v3362 = vmax.f32 %v3266, 0.0
    %v3363 = vmax.f32 %v3267, 0.0
    %v3364 = vmax.f32 %v3268, 0.0
    %v3365 = vmax.f32 %v3269, 0.0
    %3366 = vst.msk [vmem:[#allocation2] sm:$0xff] %vm113, %v3270
    %3367 = vst.msk [vmem:[#allocation2 + $0x8] sm:$0xff] %vm113, %v3271
    %3368 = vst.msk [vmem:[#allocation2 + $0x10] sm:$0xff] %vm113, %v3272
    %3369 = vst.msk [vmem:[#allocation2 + $0x18] sm:$0xff] %vm113, %v3273
    %3370 = vst.msk [vmem:[#allocation2 + $0x20] sm:$0xff] %vm113, %v3274
    %3371 = vst.msk [vmem:[#allocation2 + $0x28] sm:$0xff] %vm113, %v3275
    %3372 = vst.msk [vmem:[#allocation2 + $0x30] sm:$0xff] %vm113, %v3276
    %3373 = vst.msk [vmem:[#allocation2 + $0x38] sm:$0xff] %vm113, %v3277
    %3374 = vst.msk [vmem:[#allocation2 + $0x40] sm:$0xff] %vm113, %v3278
    %3375 = vst.msk [vmem:[#allocation2 + $0x48] sm:$0xff] %vm113, %v3279
    %3376 = vst.msk [vmem:[#allocation2 + $0x50] sm:$0xff] %vm113, %v3280
    %3377 = vst.msk [vmem:[#allocation2 + $0x58] sm:$0xff] %vm113, %v3281
    %3378 = vst.msk [vmem:[#allocation2 + $0x60] sm:$0xff] %vm113, %v3282
    %3379 = vst.msk [vmem:[#allocation2 + $0x68] sm:$0xff] %vm113, %v3283
    %3380 = vst.msk [vmem:[#allocation2 + $0x70] sm:$0xff] %vm113, %v3284
    %3381 = vst.msk [vmem:[#allocation2 + $0x78] sm:$0xff] %vm113, %v3285
    %3382 = vst.msk [vmem:[#allocation2 + $0x80] sm:$0xff] %vm113, %v3286
    %3383 = vst.msk [vmem:[#allocation2 + $0x88] sm:$0xff] %vm113, %v3287
    %3384 = vst.msk [vmem:[#allocation2 + $0x90] sm:$0xff] %vm113, %v3288
    %3385 = vst.msk [vmem:[#allocation2 + $0x98] sm:$0xff] %vm113, %v3289
    %3386 = vst.msk [vmem:[#allocation2 + $0xa0] sm:$0xff] %vm113, %v3290
    %3387 = vst.msk [vmem:[#allocation2 + $0xa8] sm:$0xff] %vm113, %v3291
    %3388 = vst.msk [vmem:[#allocation2 + $0xb0] sm:$0xff] %vm113, %v3292
    %3389 = vst.msk [vmem:[#allocation2 + $0xb8] sm:$0xff] %vm113, %v3293
    %3390 = vst.msk [vmem:[#allocation2 + $0xc0] sm:$0xff] %vm113, %v3294
    %3391 = vst.msk [vmem:[#allocation2 + $0xc8] sm:$0xff] %vm113, %v3295
    %3392 = vst.msk [vmem:[#allocation2 + $0xd0] sm:$0xff] %vm113, %v3296
    %3393 = vst.msk [vmem:[#allocation2 + $0xd8] sm:$0xff] %vm113, %v3297
    %3394 = vst.msk [vmem:[#allocation2 + $0xe0] sm:$0xff] %vm113, %v3298
    %3395 = vst.msk [vmem:[#allocation2 + $0xe8] sm:$0xff] %vm113, %v3299
    %3396 = vst.msk [vmem:[#allocation2 + $0xf0] sm:$0xff] %vm113, %v3300
    %3397 = vst.msk [vmem:[#allocation2 + $0xf8] sm:$0xff] %vm113, %v3301
    %3398 = vst.msk [vmem:[#allocation2 + $0x100] sm:$0xff] %vm113, %v3302
    %3399 = vst.msk [vmem:[#allocation2 + $0x108] sm:$0xff] %vm113, %v3303
    %3400 = vst.msk [vmem:[#allocation2 + $0x110] sm:$0xff] %vm113, %v3304
    %3401 = vst.msk [vmem:[#allocation2 + $0x118] sm:$0xff] %vm113, %v3305
    %3402 = vst.msk [vmem:[#allocation2 + $0x120] sm:$0xff] %vm113, %v3306
    %3403 = vst.msk [vmem:[#allocation2 + $0x128] sm:$0xff] %vm113, %v3307
    %3404 = vst.msk [vmem:[#allocation2 + $0x130] sm:$0xff] %vm113, %v3308
    %3405 = vst.msk [vmem:[#allocation2 + $0x138] sm:$0xff] %vm113, %v3309
    %3406 = vst.msk [vmem:[#allocation2 + $0x140] sm:$0xff] %vm113, %v3310
    %3407 = vst.msk [vmem:[#allocation2 + $0x148] sm:$0xff] %vm113, %v3311
    %3408 = vst.msk [vmem:[#allocation2 + $0x150] sm:$0xff] %vm113, %v3312
    %3409 = vst.msk [vmem:[#allocation2 + $0x158] sm:$0xff] %vm113, %v3313
    %3410 = vst.msk [vmem:[#allocation2 + $0x160] sm:$0xff] %vm113, %v3314
    %3411 = vst.msk [vmem:[#allocation2 + $0x168] sm:$0xff] %vm113, %v3315
    %3412 = vst.msk [vmem:[#allocation2 + $0x170] sm:$0xff] %vm113, %v3316
    %3413 = vst.msk [vmem:[#allocation2 + $0x178] sm:$0xff] %vm113, %v3317
    %3414 = vst.msk [vmem:[#allocation2 + $0x180] sm:$0xff] %vm113, %v3318
    %3415 = vst.msk [vmem:[#allocation2 + $0x188] sm:$0xff] %vm113, %v3319
    %3416 = vst.msk [vmem:[#allocation2 + $0x190] sm:$0xff] %vm113, %v3320
    %3417 = vst.msk [vmem:[#allocation2 + $0x198] sm:$0xff] %vm113, %v3321
    %3418 = vst.msk [vmem:[#allocation2 + $0x1a0] sm:$0xff] %vm113, %v3322
    %3419 = vst.msk [vmem:[#allocation2 + $0x1a8] sm:$0xff] %vm113, %v3323
    %3420 = vst.msk [vmem:[#allocation2 + $0x1b0] sm:$0xff] %vm113, %v3324
    %3421 = vst.msk [vmem:[#allocation2 + $0x1b8] sm:$0xff] %vm113, %v3325
    %3422 = vst.msk [vmem:[#allocation2 + $0x1c0] sm:$0xff] %vm113, %v3326
    %3423 = vst.msk [vmem:[#allocation2 + $0x1c8] sm:$0xff] %vm113, %v3327
    %3424 = vst.msk [vmem:[#allocation2 + $0x1d0] sm:$0xff] %vm113, %v3328
    %3425 = vst.msk [vmem:[#allocation2 + $0x1d8] sm:$0xff] %vm113, %v3329
    %3426 = vst.msk [vmem:[#allocation2 + $0x1e0] sm:$0xff] %vm113, %v3330
    %3427 = vst.msk [vmem:[#allocation2 + $0x1e8] sm:$0xff] %vm113, %v3331
    %3428 = vst.msk [vmem:[#allocation2 + $0x1f0] sm:$0xff] %vm113, %v3332
    %3429 = vst.msk [vmem:[#allocation2 + $0x1f8] sm:$0xff] %vm113, %v3333
    %3430 = vst.msk [vmem:[#allocation2 + $0x200] sm:$0xff] %vm113, %v3334
    %3431 = vst.msk [vmem:[#allocation2 + $0x208] sm:$0xff] %vm113, %v3335
    %3432 = vst.msk [vmem:[#allocation2 + $0x210] sm:$0xff] %vm113, %v3336
    %3433 = vst.msk [vmem:[#allocation2 + $0x218] sm:$0xff] %vm113, %v3337
    %3434 = vst.msk [vmem:[#allocation2 + $0x220] sm:$0xff] %vm113, %v3338
    %3435 = vst.msk [vmem:[#allocation2 + $0x228] sm:$0xff] %vm113, %v3339
    %3436 = vst.msk [vmem:[#allocation2 + $0x230] sm:$0xff] %vm113, %v3340
    %3437 = vst.msk [vmem:[#allocation2 + $0x238] sm:$0xff] %vm113, %v3341
    %3438 = vst.msk [vmem:[#allocation2 + $0x240] sm:$0xff] %vm113, %v3342
    %3439 = vst.msk [vmem:[#allocation2 + $0x248] sm:$0xff] %vm113, %v3343
    %3440 = vst.msk [vmem:[#allocation2 + $0x250] sm:$0xff] %vm113, %v3344
    %3441 = vst.msk [vmem:[#allocation2 + $0x258] sm:$0xff] %vm113, %v3345
    %3442 = vst.msk [vmem:[#allocation2 + $0x260] sm:$0xff] %vm113, %v3346
    %3443 = vst.msk [vmem:[#allocation2 + $0x268] sm:$0xff] %vm113, %v3347
    %3444 = vst.msk [vmem:[#allocation2 + $0x270] sm:$0xff] %vm113, %v3348
    %3445 = vst.msk [vmem:[#allocation2 + $0x278] sm:$0xff] %vm113, %v3349
    %3446 = vst.msk [vmem:[#allocation2 + $0x280] sm:$0xff] %vm113, %v3350
    %3447 = vst.msk [vmem:[#allocation2 + $0x288] sm:$0xff] %vm113, %v3351
    %3448 = vst.msk [vmem:[#allocation2 + $0x290] sm:$0xff] %vm113, %v3352
    %3449 = vst.msk [vmem:[#allocation2 + $0x298] sm:$0xff] %vm113, %v3353
    %3450 = vst.msk [vmem:[#allocation2 + $0x2a0] sm:$0xff] %vm113, %v3354
    %3451 = vst.msk [vmem:[#allocation2 + $0x2a8] sm:$0xff] %vm113, %v3355
    %3452 = vst.msk [vmem:[#allocation2 + $0x2b0] sm:$0xff] %vm113, %v3356
    %3453 = vst.msk [vmem:[#allocation2 + $0x2b8] sm:$0xff] %vm113, %v3357
    %3454 = vst.msk [vmem:[#allocation2 + $0x2c0] sm:$0xff] %vm113, %v3358
    %3455 = vst.msk [vmem:[#allocation2 + $0x2c8] sm:$0xff] %vm113, %v3359
    %3456 = vst.msk [vmem:[#allocation2 + $0x2d0] sm:$0xff] %vm113, %v3360
    %3457 = vst.msk [vmem:[#allocation2 + $0x2d8] sm:$0xff] %vm113, %v3361
    %3458 = vst.msk [vmem:[#allocation2 + $0x2e0] sm:$0xff] %vm113, %v3362
    %3459 = vst.msk [vmem:[#allocation2 + $0x2e8] sm:$0xff] %vm113, %v3363
    %3460 = vst.msk [vmem:[#allocation2 + $0x2f0] sm:$0xff] %vm113, %v3364
    %3461 = vst.msk [vmem:[#allocation2 + $0x2f8] sm:$0xff] %vm113, %v3365
    %v3462 = vmul.f32 %v2084, %v3070
    %v3463 = vmul.f32 %v2089, %v3070
    %v3464 = vmul.f32 %v2094, %v3070
    %v3465 = vmul.f32 %v2099, %v3070
    %v3466 = vmul.f32 %v2104, %v3070
    %v3467 = vmul.f32 %v2109, %v3070
    %v3468 = vmul.f32 %v2114, %v3070
    %v3469 = vmul.f32 %v2119, %v3070
    %v3470 = vmul.f32 %v2124, %v3070
    %v3471 = vmul.f32 %v2129, %v3070
    %v3472 = vmul.f32 %v2134, %v3070
    %v3473 = vmul.f32 %v2139, %v3070
    %v3474 = vmul.f32 %v2144, %v3070
    %v3475 = vmul.f32 %v2149, %v3070
    %v3476 = vmul.f32 %v2154, %v3070
    %v3477 = vmul.f32 %v2159, %v3070
    %v3478 = vmul.f32 %v2164, %v3070
    %v3479 = vmul.f32 %v2169, %v3070
    %v3480 = vmul.f32 %v2174, %v3070
    %v3481 = vmul.f32 %v2179, %v3070
    %v3482 = vmul.f32 %v2184, %v3070
    %v3483 = vmul.f32 %v2189, %v3070
    %v3484 = vmul.f32 %v2194, %v3070
    %v3485 = vmul.f32 %v2199, %v3070
    %v3486 = vmul.f32 %v2204, %v3070
    %v3487 = vmul.f32 %v2209, %v3070
    %v3488 = vmul.f32 %v2214, %v3070
    %v3489 = vmul.f32 %v2219, %v3070
    %v3490 = vmul.f32 %v2224, %v3070
    %v3491 = vmul.f32 %v2229, %v3070
    %v3492 = vmul.f32 %v2234, %v3070
    %v3493 = vmul.f32 %v2239, %v3070
    %v3494 = vmul.f32 %v2244, %v3070
    %v3495 = vmul.f32 %v2249, %v3070
    %v3496 = vmul.f32 %v2254, %v3070
    %v3497 = vmul.f32 %v2259, %v3070
    %v3498 = vmul.f32 %v2264, %v3070
    %v3499 = vmul.f32 %v2269, %v3070
    %v3500 = vmul.f32 %v2274, %v3070
    %v3501 = vmul.f32 %v2279, %v3070
    %v3502 = vmul.f32 %v2284, %v3070
    %v3503 = vmul.f32 %v2289, %v3070
    %v3504 = vmul.f32 %v2294, %v3070
    %v3505 = vmul.f32 %v2299, %v3070
    %v3506 = vmul.f32 %v2304, %v3070
    %v3507 = vmul.f32 %v2309, %v3070
    %v3508 = vmul.f32 %v2314, %v3070
    %v3509 = vmul.f32 %v2319, %v3070
    %v3510 = vmul.f32 %v2324, %v3070
    %v3511 = vmul.f32 %v2329, %v3070
    %v3512 = vmul.f32 %v2334, %v3070
    %v3513 = vmul.f32 %v2339, %v3070
    %v3514 = vmul.f32 %v2344, %v3070
    %v3515 = vmul.f32 %v2349, %v3070
    %v3516 = vmul.f32 %v2354, %v3070
    %v3517 = vmul.f32 %v2359, %v3070
    %v3518 = vmul.f32 %v2364, %v3070
    %v3519 = vmul.f32 %v2369, %v3070
    %v3520 = vmul.f32 %v2374, %v3070
    %v3521 = vmul.f32 %v2379, %v3070
    %v3522 = vmul.f32 %v2384, %v3070
    %v3523 = vmul.f32 %v2389, %v3070
    %v3524 = vmul.f32 %v2394, %v3070
    %v3525 = vmul.f32 %v2399, %v3070
    %v3526 = vmul.f32 %v2404, %v3070
    %v3527 = vmul.f32 %v2409, %v3070
    %v3528 = vmul.f32 %v2414, %v3070
    %v3529 = vmul.f32 %v2419, %v3070
    %v3530 = vmul.f32 %v2424, %v3070
    %v3531 = vmul.f32 %v2429, %v3070
    %v3532 = vmul.f32 %v2434, %v3070
    %v3533 = vmul.f32 %v2439, %v3070
    %v3534 = vmul.f32 %v2444, %v3070
    %v3535 = vmul.f32 %v2449, %v3070
    %v3536 = vmul.f32 %v2454, %v3070
    %v3537 = vmul.f32 %v2459, %v3070
    %v3538 = vmul.f32 %v2464, %v3070
    %v3539 = vmul.f32 %v2469, %v3070
    %v3540 = vmul.f32 %v2474, %v3070
    %v3541 = vmul.f32 %v2479, %v3070
    %v3542 = vmul.f32 %v2484, %v3070
    %v3543 = vmul.f32 %v2489, %v3070
    %v3544 = vmul.f32 %v2494, %v3070
    %v3545 = vmul.f32 %v2499, %v3070
    %v3546 = vmul.f32 %v2504, %v3070
    %v3547 = vmul.f32 %v2509, %v3070
    %v3548 = vmul.f32 %v2514, %v3070
    %v3549 = vmul.f32 %v2519, %v3070
    %v3550 = vmul.f32 %v2524, %v3070
    %v3551 = vmul.f32 %v2529, %v3070
    %v3552 = vmul.f32 %v2534, %v3070
    %v3553 = vmul.f32 %v2539, %v3070
    %v3554 = vmul.f32 %v2544, %v3070
    %v3555 = vmul.f32 %v2549, %v3070
    %v3556 = vmul.f32 %v2554, %v3070
    %v3557 = vmul.f32 %v2559, %v3070
    %v3558 = vadd.f32 %v3462, %v3172
    %v3559 = vadd.f32 %v3463, %v3172
    %v3560 = vadd.f32 %v3464, %v3172
    %v3561 = vadd.f32 %v3465, %v3172
    %v3562 = vadd.f32 %v3466, %v3172
    %v3563 = vadd.f32 %v3467, %v3172
    %v3564 = vadd.f32 %v3468, %v3172
    %v3565 = vadd.f32 %v3469, %v3172
    %v3566 = vadd.f32 %v3470, %v3172
    %v3567 = vadd.f32 %v3471, %v3172
    %v3568 = vadd.f32 %v3472, %v3172
    %v3569 = vadd.f32 %v3473, %v3172
    %v3570 = vadd.f32 %v3474, %v3172
    %v3571 = vadd.f32 %v3475, %v3172
    %v3572 = vadd.f32 %v3476, %v3172
    %v3573 = vadd.f32 %v3477, %v3172
    %v3574 = vadd.f32 %v3478, %v3172
    %v3575 = vadd.f32 %v3479, %v3172
    %v3576 = vadd.f32 %v3480, %v3172
    %v3577 = vadd.f32 %v3481, %v3172
    %v3578 = vadd.f32 %v3482, %v3172
    %v3579 = vadd.f32 %v3483, %v3172
    %v3580 = vadd.f32 %v3484, %v3172
    %v3581 = vadd.f32 %v3485, %v3172
    %v3582 = vadd.f32 %v3486, %v3172
    %v3583 = vadd.f32 %v3487, %v3172
    %v3584 = vadd.f32 %v3488, %v3172
    %v3585 = vadd.f32 %v3489, %v3172
    %v3586 = vadd.f32 %v3490, %v3172
    %v3587 = vadd.f32 %v3491, %v3172
    %v3588 = vadd.f32 %v3492, %v3172
    %v3589 = vadd.f32 %v3493, %v3172
    %v3590 = vadd.f32 %v3494, %v3172
    %v3591 = vadd.f32 %v3495, %v3172
    %v3592 = vadd.f32 %v3496, %v3172
    %v3593 = vadd.f32 %v3497, %v3172
    %v3594 = vadd.f32 %v3498, %v3172
    %v3595 = vadd.f32 %v3499, %v3172
    %v3596 = vadd.f32 %v3500, %v3172
    %v3597 = vadd.f32 %v3501, %v3172
    %v3598 = vadd.f32 %v3502, %v3172
    %v3599 = vadd.f32 %v3503, %v3172
    %v3600 = vadd.f32 %v3504, %v3172
    %v3601 = vadd.f32 %v3505, %v3172
    %v3602 = vadd.f32 %v3506, %v3172
    %v3603 = vadd.f32 %v3507, %v3172
    %v3604 = vadd.f32 %v3508, %v3172
    %v3605 = vadd.f32 %v3509, %v3172
    %v3606 = vadd.f32 %v3510, %v3172
    %v3607 = vadd.f32 %v3511, %v3172
    %v3608 = vadd.f32 %v3512, %v3172
    %v3609 = vadd.f32 %v3513, %v3172
    %v3610 = vadd.f32 %v3514, %v3172
    %v3611 = vadd.f32 %v3515, %v3172
    %v3612 = vadd.f32 %v3516, %v3172
    %v3613 = vadd.f32 %v3517, %v3172
    %v3614 = vadd.f32 %v3518, %v3172
    %v3615 = vadd.f32 %v3519, %v3172
    %v3616 = vadd.f32 %v3520, %v3172
    %v3617 = vadd.f32 %v3521, %v3172
    %v3618 = vadd.f32 %v3522, %v3172
    %v3619 = vadd.f32 %v3523, %v3172
    %v3620 = vadd.f32 %v3524, %v3172
    %v3621 = vadd.f32 %v3525, %v3172
    %v3622 = vadd.f32 %v3526, %v3172
    %v3623 = vadd.f32 %v3527, %v3172
    %v3624 = vadd.f32 %v3528, %v3172
    %v3625 = vadd.f32 %v3529, %v3172
    %v3626 = vadd.f32 %v3530, %v3172
    %v3627 = vadd.f32 %v3531, %v3172
    %v3628 = vadd.f32 %v3532, %v3172
    %v3629 = vadd.f32 %v3533, %v3172
    %v3630 = vadd.f32 %v3534, %v3172
    %v3631 = vadd.f32 %v3535, %v3172
    %v3632 = vadd.f32 %v3536, %v3172
    %v3633 = vadd.f32 %v3537, %v3172
    %v3634 = vadd.f32 %v3538, %v3172
    %v3635 = vadd.f32 %v3539, %v3172
    %v3636 = vadd.f32 %v3540, %v3172
    %v3637 = vadd.f32 %v3541, %v3172
    %v3638 = vadd.f32 %v3542, %v3172
    %v3639 = vadd.f32 %v3543, %v3172
    %v3640 = vadd.f32 %v3544, %v3172
    %v3641 = vadd.f32 %v3545, %v3172
    %v3642 = vadd.f32 %v3546, %v3172
    %v3643 = vadd.f32 %v3547, %v3172
    %v3644 = vadd.f32 %v3548, %v3172
    %v3645 = vadd.f32 %v3549, %v3172
    %v3646 = vadd.f32 %v3550, %v3172
    %v3647 = vadd.f32 %v3551, %v3172
    %v3648 = vadd.f32 %v3552, %v3172
    %v3649 = vadd.f32 %v3553, %v3172
    %v3650 = vadd.f32 %v3554, %v3172
    %v3651 = vadd.f32 %v3555, %v3172
    %v3652 = vadd.f32 %v3556, %v3172
    %v3653 = vadd.f32 %v3557, %v3172
    %v3654 = vmax.f32 %v3558, 0.0
    %v3655 = vmax.f32 %v3559, 0.0
    %v3656 = vmax.f32 %v3560, 0.0
    %v3657 = vmax.f32 %v3561, 0.0
    %v3658 = vmax.f32 %v3562, 0.0
    %v3659 = vmax.f32 %v3563, 0.0
    %v3660 = vmax.f32 %v3564, 0.0
    %v3661 = vmax.f32 %v3565, 0.0
    %v3662 = vmax.f32 %v3566, 0.0
    %v3663 = vmax.f32 %v3567, 0.0
    %v3664 = vmax.f32 %v3568, 0.0
    %v3665 = vmax.f32 %v3569, 0.0
    %v3666 = vmax.f32 %v3570, 0.0
    %v3667 = vmax.f32 %v3571, 0.0
    %v3668 = vmax.f32 %v3572, 0.0
    %v3669 = vmax.f32 %v3573, 0.0
    %v3670 = vmax.f32 %v3574, 0.0
    %v3671 = vmax.f32 %v3575, 0.0
    %v3672 = vmax.f32 %v3576, 0.0
    %v3673 = vmax.f32 %v3577, 0.0
    %v3674 = vmax.f32 %v3578, 0.0
    %v3675 = vmax.f32 %v3579, 0.0
    %v3676 = vmax.f32 %v3580, 0.0
    %v3677 = vmax.f32 %v3581, 0.0
    %v3678 = vmax.f32 %v3582, 0.0
    %v3679 = vmax.f32 %v3583, 0.0
    %v3680 = vmax.f32 %v3584, 0.0
    %v3681 = vmax.f32 %v3585, 0.0
    %v3682 = vmax.f32 %v3586, 0.0
    %v3683 = vmax.f32 %v3587, 0.0
    %v3684 = vmax.f32 %v3588, 0.0
    %v3685 = vmax.f32 %v3589, 0.0
    %v3686 = vmax.f32 %v3590, 0.0
    %v3687 = vmax.f32 %v3591, 0.0
    %v3688 = vmax.f32 %v3592, 0.0
    %v3689 = vmax.f32 %v3593, 0.0
    %v3690 = vmax.f32 %v3594, 0.0
    %v3691 = vmax.f32 %v3595, 0.0
    %v3692 = vmax.f32 %v3596, 0.0
    %v3693 = vmax.f32 %v3597, 0.0
    %v3694 = vmax.f32 %v3598, 0.0
    %v3695 = vmax.f32 %v3599, 0.0
    %v3696 = vmax.f32 %v3600, 0.0
    %v3697 = vmax.f32 %v3601, 0.0
    %v3698 = vmax.f32 %v3602, 0.0
    %v3699 = vmax.f32 %v3603, 0.0
    %v3700 = vmax.f32 %v3604, 0.0
    %v3701 = vmax.f32 %v3605, 0.0
    %v3702 = vmax.f32 %v3606, 0.0
    %v3703 = vmax.f32 %v3607, 0.0
    %v3704 = vmax.f32 %v3608, 0.0
    %v3705 = vmax.f32 %v3609, 0.0
    %v3706 = vmax.f32 %v3610, 0.0
    %v3707 = vmax.f32 %v3611, 0.0
    %v3708 = vmax.f32 %v3612, 0.0
    %v3709 = vmax.f32 %v3613, 0.0
    %v3710 = vmax.f32 %v3614, 0.0
    %v3711 = vmax.f32 %v3615, 0.0
    %v3712 = vmax.f32 %v3616, 0.0
    %v3713 = vmax.f32 %v3617, 0.0
    %v3714 = vmax.f32 %v3618, 0.0
    %v3715 = vmax.f32 %v3619, 0.0
    %v3716 = vmax.f32 %v3620, 0.0
    %v3717 = vmax.f32 %v3621, 0.0
    %v3718 = vmax.f32 %v3622, 0.0
    %v3719 = vmax.f32 %v3623, 0.0
    %v3720 = vmax.f32 %v3624, 0.0
    %v3721 = vmax.f32 %v3625, 0.0
    %v3722 = vmax.f32 %v3626, 0.0
    %v3723 = vmax.f32 %v3627, 0.0
    %v3724 = vmax.f32 %v3628, 0.0
    %v3725 = vmax.f32 %v3629, 0.0
    %v3726 = vmax.f32 %v3630, 0.0
    %v3727 = vmax.f32 %v3631, 0.0
    %v3728 = vmax.f32 %v3632, 0.0
    %v3729 = vmax.f32 %v3633, 0.0
    %v3730 = vmax.f32 %v3634, 0.0
    %v3731 = vmax.f32 %v3635, 0.0
    %v3732 = vmax.f32 %v3636, 0.0
    %v3733 = vmax.f32 %v3637, 0.0
    %v3734 = vmax.f32 %v3638, 0.0
    %v3735 = vmax.f32 %v3639, 0.0
    %v3736 = vmax.f32 %v3640, 0.0
    %v3737 = vmax.f32 %v3641, 0.0
    %v3738 = vmax.f32 %v3642, 0.0
    %v3739 = vmax.f32 %v3643, 0.0
    %v3740 = vmax.f32 %v3644, 0.0
    %v3741 = vmax.f32 %v3645, 0.0
    %v3742 = vmax.f32 %v3646, 0.0
    %v3743 = vmax.f32 %v3647, 0.0
    %v3744 = vmax.f32 %v3648, 0.0
    %v3745 = vmax.f32 %v3649, 0.0
    %v3746 = vmax.f32 %v3650, 0.0
    %v3747 = vmax.f32 %v3651, 0.0
    %v3748 = vmax.f32 %v3652, 0.0
    %v3749 = vmax.f32 %v3653, 0.0
    %3750 = vst.msk [vmem:[#allocation2 + $0x300] sm:$0xff] %vm113, %v3654
    %3751 = vst.msk [vmem:[#allocation2 + $0x308] sm:$0xff] %vm113, %v3655
    %3752 = vst.msk [vmem:[#allocation2 + $0x310] sm:$0xff] %vm113, %v3656
    %3753 = vst.msk [vmem:[#allocation2 + $0x318] sm:$0xff] %vm113, %v3657
    %3754 = vst.msk [vmem:[#allocation2 + $0x320] sm:$0xff] %vm113, %v3658
    %3755 = vst.msk [vmem:[#allocation2 + $0x328] sm:$0xff] %vm113, %v3659
    %3756 = vst.msk [vmem:[#allocation2 + $0x330] sm:$0xff] %vm113, %v3660
    %3757 = vst.msk [vmem:[#allocation2 + $0x338] sm:$0xff] %vm113, %v3661
    %3758 = vst.msk [vmem:[#allocation2 + $0x340] sm:$0xff] %vm113, %v3662
    %3759 = vst.msk [vmem:[#allocation2 + $0x348] sm:$0xff] %vm113, %v3663
    %3760 = vst.msk [vmem:[#allocation2 + $0x350] sm:$0xff] %vm113, %v3664
    %3761 = vst.msk [vmem:[#allocation2 + $0x358] sm:$0xff] %vm113, %v3665
    %3762 = vst.msk [vmem:[#allocation2 + $0x360] sm:$0xff] %vm113, %v3666
    %3763 = vst.msk [vmem:[#allocation2 + $0x368] sm:$0xff] %vm113, %v3667
    %3764 = vst.msk [vmem:[#allocation2 + $0x370] sm:$0xff] %vm113, %v3668
    %3765 = vst.msk [vmem:[#allocation2 + $0x378] sm:$0xff] %vm113, %v3669
    %3766 = vst.msk [vmem:[#allocation2 + $0x380] sm:$0xff] %vm113, %v3670
    %3767 = vst.msk [vmem:[#allocation2 + $0x388] sm:$0xff] %vm113, %v3671
    %3768 = vst.msk [vmem:[#allocation2 + $0x390] sm:$0xff] %vm113, %v3672
    %3769 = vst.msk [vmem:[#allocation2 + $0x398] sm:$0xff] %vm113, %v3673
    %3770 = vst.msk [vmem:[#allocation2 + $0x3a0] sm:$0xff] %vm113, %v3674
    %3771 = vst.msk [vmem:[#allocation2 + $0x3a8] sm:$0xff] %vm113, %v3675
    %3772 = vst.msk [vmem:[#allocation2 + $0x3b0] sm:$0xff] %vm113, %v3676
    %3773 = vst.msk [vmem:[#allocation2 + $0x3b8] sm:$0xff] %vm113, %v3677
    %3774 = vst.msk [vmem:[#allocation2 + $0x3c0] sm:$0xff] %vm113, %v3678
    %3775 = vst.msk [vmem:[#allocation2 + $0x3c8] sm:$0xff] %vm113, %v3679
    %3776 = vst.msk [vmem:[#allocation2 + $0x3d0] sm:$0xff] %vm113, %v3680
    %3777 = vst.msk [vmem:[#allocation2 + $0x3d8] sm:$0xff] %vm113, %v3681
    %3778 = vst.msk [vmem:[#allocation2 + $0x3e0] sm:$0xff] %vm113, %v3682
    %3779 = vst.msk [vmem:[#allocation2 + $0x3e8] sm:$0xff] %vm113, %v3683
    %3780 = vst.msk [vmem:[#allocation2 + $0x3f0] sm:$0xff] %vm113, %v3684
    %3781 = vst.msk [vmem:[#allocation2 + $0x3f8] sm:$0xff] %vm113, %v3685
    %3782 = vst.msk [vmem:[#allocation2 + $0x400] sm:$0xff] %vm113, %v3686
    %3783 = vst.msk [vmem:[#allocation2 + $0x408] sm:$0xff] %vm113, %v3687
    %3784 = vst.msk [vmem:[#allocation2 + $0x410] sm:$0xff] %vm113, %v3688
    %3785 = vst.msk [vmem:[#allocation2 + $0x418] sm:$0xff] %vm113, %v3689
    %3786 = vst.msk [vmem:[#allocation2 + $0x420] sm:$0xff] %vm113, %v3690
    %3787 = vst.msk [vmem:[#allocation2 + $0x428] sm:$0xff] %vm113, %v3691
    %3788 = vst.msk [vmem:[#allocation2 + $0x430] sm:$0xff] %vm113, %v3692
    %3789 = vst.msk [vmem:[#allocation2 + $0x438] sm:$0xff] %vm113, %v3693
    %3790 = vst.msk [vmem:[#allocation2 + $0x440] sm:$0xff] %vm113, %v3694
    %3791 = vst.msk [vmem:[#allocation2 + $0x448] sm:$0xff] %vm113, %v3695
    %3792 = vst.msk [vmem:[#allocation2 + $0x450] sm:$0xff] %vm113, %v3696
    %3793 = vst.msk [vmem:[#allocation2 + $0x458] sm:$0xff] %vm113, %v3697
    %3794 = vst.msk [vmem:[#allocation2 + $0x460] sm:$0xff] %vm113, %v3698
    %3795 = vst.msk [vmem:[#allocation2 + $0x468] sm:$0xff] %vm113, %v3699
    %3796 = vst.msk [vmem:[#allocation2 + $0x470] sm:$0xff] %vm113, %v3700
    %3797 = vst.msk [vmem:[#allocation2 + $0x478] sm:$0xff] %vm113, %v3701
    %3798 = vst.msk [vmem:[#allocation2 + $0x480] sm:$0xff] %vm113, %v3702
    %3799 = vst.msk [vmem:[#allocation2 + $0x488] sm:$0xff] %vm113, %v3703
    %3800 = vst.msk [vmem:[#allocation2 + $0x490] sm:$0xff] %vm113, %v3704
    %3801 = vst.msk [vmem:[#allocation2 + $0x498] sm:$0xff] %vm113, %v3705
    %3802 = vst.msk [vmem:[#allocation2 + $0x4a0] sm:$0xff] %vm113, %v3706
    %3803 = vst.msk [vmem:[#allocation2 + $0x4a8] sm:$0xff] %vm113, %v3707
    %3804 = vst.msk [vmem:[#allocation2 + $0x4b0] sm:$0xff] %vm113, %v3708
    %3805 = vst.msk [vmem:[#allocation2 + $0x4b8] sm:$0xff] %vm113, %v3709
    %3806 = vst.msk [vmem:[#allocation2 + $0x4c0] sm:$0xff] %vm113, %v3710
    %3807 = vst.msk [vmem:[#allocation2 + $0x4c8] sm:$0xff] %vm113, %v3711
    %3808 = vst.msk [vmem:[#allocation2 + $0x4d0] sm:$0xff] %vm113, %v3712
    %3809 = vst.msk [vmem:[#allocation2 + $0x4d8] sm:$0xff] %vm113, %v3713
    %3810 = vst.msk [vmem:[#allocation2 + $0x4e0] sm:$0xff] %vm113, %v3714
    %3811 = vst.msk [vmem:[#allocation2 + $0x4e8] sm:$0xff] %vm113, %v3715
    %3812 = vst.msk [vmem:[#allocation2 + $0x4f0] sm:$0xff] %vm113, %v3716
    %3813 = vst.msk [vmem:[#allocation2 + $0x4f8] sm:$0xff] %vm113, %v3717
    %3814 = vst.msk [vmem:[#allocation2 + $0x500] sm:$0xff] %vm113, %v3718
    %3815 = vst.msk [vmem:[#allocation2 + $0x508] sm:$0xff] %vm113, %v3719
    %3816 = vst.msk [vmem:[#allocation2 + $0x510] sm:$0xff] %vm113, %v3720
    %3817 = vst.msk [vmem:[#allocation2 + $0x518] sm:$0xff] %vm113, %v3721
    %3818 = vst.msk [vmem:[#allocation2 + $0x520] sm:$0xff] %vm113, %v3722
    %3819 = vst.msk [vmem:[#allocation2 + $0x528] sm:$0xff] %vm113, %v3723
    %3820 = vst.msk [vmem:[#allocation2 + $0x530] sm:$0xff] %vm113, %v3724
    %3821 = vst.msk [vmem:[#allocation2 + $0x538] sm:$0xff] %vm113, %v3725
    %3822 = vst.msk [vmem:[#allocation2 + $0x540] sm:$0xff] %vm113, %v3726
    %3823 = vst.msk [vmem:[#allocation2 + $0x548] sm:$0xff] %vm113, %v3727
    %3824 = vst.msk [vmem:[#allocation2 + $0x550] sm:$0xff] %vm113, %v3728
    %3825 = vst.msk [vmem:[#allocation2 + $0x558] sm:$0xff] %vm113, %v3729
    %3826 = vst.msk [vmem:[#allocation2 + $0x560] sm:$0xff] %vm113, %v3730
    %3827 = vst.msk [vmem:[#allocation2 + $0x568] sm:$0xff] %vm113, %v3731
    %3828 = vst.msk [vmem:[#allocation2 + $0x570] sm:$0xff] %vm113, %v3732
    %3829 = vst.msk [vmem:[#allocation2 + $0x578] sm:$0xff] %vm113, %v3733
    %3830 = vst.msk [vmem:[#allocation2 + $0x580] sm:$0xff] %vm113, %v3734
    %3831 = vst.msk [vmem:[#allocation2 + $0x588] sm:$0xff] %vm113, %v3735
    %3832 = vst.msk [vmem:[#allocation2 + $0x590] sm:$0xff] %vm113, %v3736
    %3833 = vst.msk [vmem:[#allocation2 + $0x598] sm:$0xff] %vm113, %v3737
    %3834 = vst.msk [vmem:[#allocation2 + $0x5a0] sm:$0xff] %vm113, %v3738
    %3835 = vst.msk [vmem:[#allocation2 + $0x5a8] sm:$0xff] %vm113, %v3739
    %3836 = vst.msk [vmem:[#allocation2 + $0x5b0] sm:$0xff] %vm113, %v3740
    %3837 = vst.msk [vmem:[#allocation2 + $0x5b8] sm:$0xff] %vm113, %v3741
    %3838 = vst.msk [vmem:[#allocation2 + $0x5c0] sm:$0xff] %vm113, %v3742
    %3839 = vst.msk [vmem:[#allocation2 + $0x5c8] sm:$0xff] %vm113, %v3743
    %3840 = vst.msk [vmem:[#allocation2 + $0x5d0] sm:$0xff] %vm113, %v3744
    %3841 = vst.msk [vmem:[#allocation2 + $0x5d8] sm:$0xff] %vm113, %v3745
    %3842 = vst.msk [vmem:[#allocation2 + $0x5e0] sm:$0xff] %vm113, %v3746
    %3843 = vst.msk [vmem:[#allocation2 + $0x5e8] sm:$0xff] %vm113, %v3747
    %3844 = vst.msk [vmem:[#allocation2 + $0x5f0] sm:$0xff] %vm113, %v3748
    %3845 = vst.msk [vmem:[#allocation2 + $0x5f8] sm:$0xff] %vm113, %v3749
    %v3846 = vld [vmem:[#allocation2] ss:$2 sm:$0xff]
    %s3847 = scalar_lea.vmem [#allocation2], 16
    %v3848 = vld [vmem:[%s3847] ss:$2 sm:$0xff]
    %s3849 = scalar_lea.vmem [#allocation2], 32
    %v3850 = vld [vmem:[%s3849] ss:$2 sm:$0xff]
    %s3851 = scalar_lea.vmem [#allocation2], 48
    %v3852 = vld [vmem:[%s3851] ss:$2 sm:$0xff]
    %s3853 = scalar_lea.vmem [#allocation2], 64
    %v3854 = vld [vmem:[%s3853] ss:$2 sm:$0xff]
    %s3855 = scalar_lea.vmem [#allocation2], 80
    %v3856 = vld [vmem:[%s3855] ss:$2 sm:$0xff]
    %s3857 = scalar_lea.vmem [#allocation2], 96
    %v3858 = vld [vmem:[%s3857] ss:$2 sm:$0xff]
    %s3859 = scalar_lea.vmem [#allocation2], 112
    %v3860 = vld [vmem:[%s3859] ss:$2 sm:$0xff]
    %s3861 = scalar_lea.vmem [#allocation2], 128
    %v3862 = vld [vmem:[%s3861] ss:$2 sm:$0xff]
    %s3863 = scalar_lea.vmem [#allocation2], 144
    %v3864 = vld [vmem:[%s3863] ss:$2 sm:$0xff]
    %s3865 = scalar_lea.vmem [#allocation2], 160
    %v3866 = vld [vmem:[%s3865] ss:$2 sm:$0xff]
    %s3867 = scalar_lea.vmem [#allocation2], 176
    %v3868 = vld [vmem:[%s3867] ss:$2 sm:$0xff]
    %s3869 = scalar_lea.vmem [#allocation2], 192
    %v3870 = vld [vmem:[%s3869] ss:$2 sm:$0xff]
    %s3871 = scalar_lea.vmem [#allocation2], 208
    %v3872 = vld [vmem:[%s3871] ss:$2 sm:$0xff]
    %s3873 = scalar_lea.vmem [#allocation2], 224
    %v3874 = vld [vmem:[%s3873] ss:$2 sm:$0xff]
    %s3875 = scalar_lea.vmem [#allocation2], 240
    %v3876 = vld [vmem:[%s3875] ss:$2 sm:$0xff]
    %s3877 = scalar_lea.vmem [#allocation2], 256
    %v3878 = vld [vmem:[%s3877] ss:$2 sm:$0xff]
    %s3879 = scalar_lea.vmem [#allocation2], 272
    %v3880 = vld [vmem:[%s3879] ss:$2 sm:$0xff]
    %s3881 = scalar_lea.vmem [#allocation2], 288
    %v3882 = vld [vmem:[%s3881] ss:$2 sm:$0xff]
    %s3883 = scalar_lea.vmem [#allocation2], 304
    %v3884 = vld [vmem:[%s3883] ss:$2 sm:$0xff]
    %s3885 = scalar_lea.vmem [#allocation2], 320
    %v3886 = vld [vmem:[%s3885] ss:$2 sm:$0xff]
    %s3887 = scalar_lea.vmem [#allocation2], 336
    %v3888 = vld [vmem:[%s3887] ss:$2 sm:$0xff]
    %s3889 = scalar_lea.vmem [#allocation2], 352
    %v3890 = vld [vmem:[%s3889] ss:$2 sm:$0xff]
    %s3891 = scalar_lea.vmem [#allocation2], 368
    %v3892 = vld [vmem:[%s3891] ss:$2 sm:$0xff]
    %s3893 = scalar_lea.vmem [#allocation2], 384
    %v3894 = vld [vmem:[%s3893] ss:$2 sm:$0xff]
    %s3895 = scalar_lea.vmem [#allocation2], 400
    %v3896 = vld [vmem:[%s3895] ss:$2 sm:$0xff]
    %s3897 = scalar_lea.vmem [#allocation2], 416
    %v3898 = vld [vmem:[%s3897] ss:$2 sm:$0xff]
    %s3899 = scalar_lea.vmem [#allocation2], 432
    %v3900 = vld [vmem:[%s3899] ss:$2 sm:$0xff]
    %s3901 = scalar_lea.vmem [#allocation2], 448
    %v3902 = vld [vmem:[%s3901] ss:$2 sm:$0xff]
    %s3903 = scalar_lea.vmem [#allocation2], 464
    %v3904 = vld [vmem:[%s3903] ss:$2 sm:$0xff]
    %s3905 = scalar_lea.vmem [#allocation2], 480
    %v3906 = vld [vmem:[%s3905] ss:$2 sm:$0xff]
    %s3907 = scalar_lea.vmem [#allocation2], 496
    %v3908 = vld [vmem:[%s3907] ss:$2 sm:$0xff]
    %s3909 = scalar_lea.vmem [#allocation2], 512
    %v3910 = vld [vmem:[%s3909] ss:$2 sm:$0xff]
    %s3911 = scalar_lea.vmem [#allocation2], 528
    %v3912 = vld [vmem:[%s3911] ss:$2 sm:$0xff]
    %s3913 = scalar_lea.vmem [#allocation2], 544
    %v3914 = vld [vmem:[%s3913] ss:$2 sm:$0xff]
    %s3915 = scalar_lea.vmem [#allocation2], 560
    %v3916 = vld [vmem:[%s3915] ss:$2 sm:$0xff]
    %s3917 = scalar_lea.vmem [#allocation2], 576
    %v3918 = vld [vmem:[%s3917] ss:$2 sm:$0xff]
    %s3919 = scalar_lea.vmem [#allocation2], 592
    %v3920 = vld [vmem:[%s3919] ss:$2 sm:$0xff]
    %s3921 = scalar_lea.vmem [#allocation2], 608
    %v3922 = vld [vmem:[%s3921] ss:$2 sm:$0xff]
    %s3923 = scalar_lea.vmem [#allocation2], 624
    %v3924 = vld [vmem:[%s3923] ss:$2 sm:$0xff]
    %s3925 = scalar_lea.vmem [#allocation2], 640
    %v3926 = vld [vmem:[%s3925] ss:$2 sm:$0xff]
    %s3927 = scalar_lea.vmem [#allocation2], 656
    %v3928 = vld [vmem:[%s3927] ss:$2 sm:$0xff]
    %s3929 = scalar_lea.vmem [#allocation2], 672
    %v3930 = vld [vmem:[%s3929] ss:$2 sm:$0xff]
    %s3931 = scalar_lea.vmem [#allocation2], 688
    %v3932 = vld [vmem:[%s3931] ss:$2 sm:$0xff]
    %s3933 = scalar_lea.vmem [#allocation2], 704
    %v3934 = vld [vmem:[%s3933] ss:$2 sm:$0xff]
    %s3935 = scalar_lea.vmem [#allocation2], 720
    %v3936 = vld [vmem:[%s3935] ss:$2 sm:$0xff]
    %s3937 = scalar_lea.vmem [#allocation2], 736
    %v3938 = vld [vmem:[%s3937] ss:$2 sm:$0xff]
    %s3939 = scalar_lea.vmem [#allocation2], 752
    %v3940 = vld [vmem:[%s3939] ss:$2 sm:$0xff]
    %s3941 = scalar_lea.vmem [#allocation2], 768
    %v3942 = vld [vmem:[%s3941] ss:$2 sm:$0xff]
    %s3943 = scalar_lea.vmem [#allocation2], 784
    %v3944 = vld [vmem:[%s3943] ss:$2 sm:$0xff]
    %s3945 = scalar_lea.vmem [#allocation2], 800
    %v3946 = vld [vmem:[%s3945] ss:$2 sm:$0xff]
    %s3947 = scalar_lea.vmem [#allocation2], 816
    %v3948 = vld [vmem:[%s3947] ss:$2 sm:$0xff]
    %s3949 = scalar_lea.vmem [#allocation2], 832
    %v3950 = vld [vmem:[%s3949] ss:$2 sm:$0xff]
    %s3951 = scalar_lea.vmem [#allocation2], 848
    %v3952 = vld [vmem:[%s3951] ss:$2 sm:$0xff]
    %s3953 = scalar_lea.vmem [#allocation2], 864
    %v3954 = vld [vmem:[%s3953] ss:$2 sm:$0xff]
    %s3955 = scalar_lea.vmem [#allocation2], 880
    %v3956 = vld [vmem:[%s3955] ss:$2 sm:$0xff]
    %s3957 = scalar_lea.vmem [#allocation2], 896
    %v3958 = vld [vmem:[%s3957] ss:$2 sm:$0xff]
    %s3959 = scalar_lea.vmem [#allocation2], 912
    %v3960 = vld [vmem:[%s3959] ss:$2 sm:$0xff]
    %s3961 = scalar_lea.vmem [#allocation2], 928
    %v3962 = vld [vmem:[%s3961] ss:$2 sm:$0xff]
    %s3963 = scalar_lea.vmem [#allocation2], 944
    %v3964 = vld [vmem:[%s3963] ss:$2 sm:$0xff]
    %s3965 = scalar_lea.vmem [#allocation2], 960
    %v3966 = vld [vmem:[%s3965] ss:$2 sm:$0xff]
    %s3967 = scalar_lea.vmem [#allocation2], 976
    %v3968 = vld [vmem:[%s3967] ss:$2 sm:$0xff]
    %s3969 = scalar_lea.vmem [#allocation2], 992
    %v3970 = vld [vmem:[%s3969] ss:$2 sm:$0xff]
    %s3971 = scalar_lea.vmem [#allocation2], 1008
    %v3972 = vld [vmem:[%s3971] ss:$2 sm:$0xff]
    %s3973 = scalar_lea.vmem [#allocation2], 1024
    %v3974 = vld [vmem:[%s3973] ss:$2 sm:$0xff]
    %s3975 = scalar_lea.vmem [#allocation2], 1040
    %v3976 = vld [vmem:[%s3975] ss:$2 sm:$0xff]
    %s3977 = scalar_lea.vmem [#allocation2], 1056
    %v3978 = vld [vmem:[%s3977] ss:$2 sm:$0xff]
    %s3979 = scalar_lea.vmem [#allocation2], 1072
    %v3980 = vld [vmem:[%s3979] ss:$2 sm:$0xff]
    %s3981 = scalar_lea.vmem [#allocation2], 1088
    %v3982 = vld [vmem:[%s3981] ss:$2 sm:$0xff]
    %s3983 = scalar_lea.vmem [#allocation2], 1104
    %v3984 = vld [vmem:[%s3983] ss:$2 sm:$0xff]
    %s3985 = scalar_lea.vmem [#allocation2], 1120
    %v3986 = vld [vmem:[%s3985] ss:$2 sm:$0xff]
    %s3987 = scalar_lea.vmem [#allocation2], 1136
    %v3988 = vld [vmem:[%s3987] ss:$2 sm:$0xff]
    %s3989 = scalar_lea.vmem [#allocation2], 1152
    %v3990 = vld [vmem:[%s3989] ss:$2 sm:$0xff]
    %s3991 = scalar_lea.vmem [#allocation2], 1168
    %v3992 = vld [vmem:[%s3991] ss:$2 sm:$0xff]
    %s3993 = scalar_lea.vmem [#allocation2], 1184
    %v3994 = vld [vmem:[%s3993] ss:$2 sm:$0xff]
    %s3995 = scalar_lea.vmem [#allocation2], 1200
    %v3996 = vld [vmem:[%s3995] ss:$2 sm:$0xff]
    %s3997 = scalar_lea.vmem [#allocation2], 1216
    %v3998 = vld [vmem:[%s3997] ss:$2 sm:$0xff]
    %s3999 = scalar_lea.vmem [#allocation2], 1232
    %v4000 = vld [vmem:[%s3999] ss:$2 sm:$0xff]
    %s4001 = scalar_lea.vmem [#allocation2], 1248
    %v4002 = vld [vmem:[%s4001] ss:$2 sm:$0xff]
    %s4003 = scalar_lea.vmem [#allocation2], 1264
    %v4004 = vld [vmem:[%s4003] ss:$2 sm:$0xff]
    %s4005 = scalar_lea.vmem [#allocation2], 1280
    %v4006 = vld [vmem:[%s4005] ss:$2 sm:$0xff]
    %s4007 = scalar_lea.vmem [#allocation2], 1296
    %v4008 = vld [vmem:[%s4007] ss:$2 sm:$0xff]
    %s4009 = scalar_lea.vmem [#allocation2], 1312
    %v4010 = vld [vmem:[%s4009] ss:$2 sm:$0xff]
    %s4011 = scalar_lea.vmem [#allocation2], 1328
    %v4012 = vld [vmem:[%s4011] ss:$2 sm:$0xff]
    %s4013 = scalar_lea.vmem [#allocation2], 1344
    %v4014 = vld [vmem:[%s4013] ss:$2 sm:$0xff]
    %s4015 = scalar_lea.vmem [#allocation2], 1360
    %v4016 = vld [vmem:[%s4015] ss:$2 sm:$0xff]
    %s4017 = scalar_lea.vmem [#allocation2], 1376
    %v4018 = vld [vmem:[%s4017] ss:$2 sm:$0xff]
    %s4019 = scalar_lea.vmem [#allocation2], 1392
    %v4020 = vld [vmem:[%s4019] ss:$2 sm:$0xff]
    %s4021 = scalar_lea.vmem [#allocation2], 1408
    %v4022 = vld [vmem:[%s4021] ss:$2 sm:$0xff]
    %s4023 = scalar_lea.vmem [#allocation2], 1424
    %v4024 = vld [vmem:[%s4023] ss:$2 sm:$0xff]
    %s4025 = scalar_lea.vmem [#allocation2], 1440
    %v4026 = vld [vmem:[%s4025] ss:$2 sm:$0xff]
    %s4027 = scalar_lea.vmem [#allocation2], 1456
    %v4028 = vld [vmem:[%s4027] ss:$2 sm:$0xff]
    %s4029 = scalar_lea.vmem [#allocation2], 1472
    %v4030 = vld [vmem:[%s4029] ss:$2 sm:$0xff]
    %s4031 = scalar_lea.vmem [#allocation2], 1488
    %v4032 = vld [vmem:[%s4031] ss:$2 sm:$0xff]
    %s4033 = scalar_lea.vmem [#allocation2], 1504
    %v4034 = vld [vmem:[%s4033] ss:$2 sm:$0xff]
    %s4035 = scalar_lea.vmem [#allocation2], 1520
    %v4036 = vld [vmem:[%s4035] ss:$2 sm:$0xff]
    %s4037 = scalar_lea.vmem [#allocation2], 1
    %v4038 = vld [vmem:[%s4037] ss:$2 sm:$0xff]
    %s4039 = scalar_lea.vmem [#allocation2], 17
    %v4040 = vld [vmem:[%s4039] ss:$2 sm:$0xff]
    %s4041 = scalar_lea.vmem [#allocation2], 33
    %v4042 = vld [vmem:[%s4041] ss:$2 sm:$0xff]
    %s4043 = scalar_lea.vmem [#allocation2], 49
    %v4044 = vld [vmem:[%s4043] ss:$2 sm:$0xff]
    %s4045 = scalar_lea.vmem [#allocation2], 65
    %v4046 = vld [vmem:[%s4045] ss:$2 sm:$0xff]
    %s4047 = scalar_lea.vmem [#allocation2], 81
    %v4048 = vld [vmem:[%s4047] ss:$2 sm:$0xff]
    %s4049 = scalar_lea.vmem [#allocation2], 97
    %v4050 = vld [vmem:[%s4049] ss:$2 sm:$0xff]
    %s4051 = scalar_lea.vmem [#allocation2], 113
    %v4052 = vld [vmem:[%s4051] ss:$2 sm:$0xff]
    %s4053 = scalar_lea.vmem [#allocation2], 129
    %v4054 = vld [vmem:[%s4053] ss:$2 sm:$0xff]
    %s4055 = scalar_lea.vmem [#allocation2], 145
    %v4056 = vld [vmem:[%s4055] ss:$2 sm:$0xff]
    %s4057 = scalar_lea.vmem [#allocation2], 161
    %v4058 = vld [vmem:[%s4057] ss:$2 sm:$0xff]
    %s4059 = scalar_lea.vmem [#allocation2], 177
    %v4060 = vld [vmem:[%s4059] ss:$2 sm:$0xff]
    %s4061 = scalar_lea.vmem [#allocation2], 193
    %v4062 = vld [vmem:[%s4061] ss:$2 sm:$0xff]
    %s4063 = scalar_lea.vmem [#allocation2], 209
    %v4064 = vld [vmem:[%s4063] ss:$2 sm:$0xff]
    %s4065 = scalar_lea.vmem [#allocation2], 225
    %v4066 = vld [vmem:[%s4065] ss:$2 sm:$0xff]
    %s4067 = scalar_lea.vmem [#allocation2], 241
    %v4068 = vld [vmem:[%s4067] ss:$2 sm:$0xff]
    %s4069 = scalar_lea.vmem [#allocation2], 257
    %v4070 = vld [vmem:[%s4069] ss:$2 sm:$0xff]
    %s4071 = scalar_lea.vmem [#allocation2], 273
    %v4072 = vld [vmem:[%s4071] ss:$2 sm:$0xff]
    %s4073 = scalar_lea.vmem [#allocation2], 289
    %v4074 = vld [vmem:[%s4073] ss:$2 sm:$0xff]
    %s4075 = scalar_lea.vmem [#allocation2], 305
    %v4076 = vld [vmem:[%s4075] ss:$2 sm:$0xff]
    %s4077 = scalar_lea.vmem [#allocation2], 321
    %v4078 = vld [vmem:[%s4077] ss:$2 sm:$0xff]
    %s4079 = scalar_lea.vmem [#allocation2], 337
    %v4080 = vld [vmem:[%s4079] ss:$2 sm:$0xff]
    %s4081 = scalar_lea.vmem [#allocation2], 353
    %v4082 = vld [vmem:[%s4081] ss:$2 sm:$0xff]
    %s4083 = scalar_lea.vmem [#allocation2], 369
    %v4084 = vld [vmem:[%s4083] ss:$2 sm:$0xff]
    %s4085 = scalar_lea.vmem [#allocation2], 385
    %v4086 = vld [vmem:[%s4085] ss:$2 sm:$0xff]
    %s4087 = scalar_lea.vmem [#allocation2], 401
    %v4088 = vld [vmem:[%s4087] ss:$2 sm:$0xff]
    %s4089 = scalar_lea.vmem [#allocation2], 417
    %v4090 = vld [vmem:[%s4089] ss:$2 sm:$0xff]
    %s4091 = scalar_lea.vmem [#allocation2], 433
    %v4092 = vld [vmem:[%s4091] ss:$2 sm:$0xff]
    %s4093 = scalar_lea.vmem [#allocation2], 449
    %v4094 = vld [vmem:[%s4093] ss:$2 sm:$0xff]
    %s4095 = scalar_lea.vmem [#allocation2], 465
    %v4096 = vld [vmem:[%s4095] ss:$2 sm:$0xff]
    %s4097 = scalar_lea.vmem [#allocation2], 481
    %v4098 = vld [vmem:[%s4097] ss:$2 sm:$0xff]
    %s4099 = scalar_lea.vmem [#allocation2], 497
    %v4100 = vld [vmem:[%s4099] ss:$2 sm:$0xff]
    %s4101 = scalar_lea.vmem [#allocation2], 513
    %v4102 = vld [vmem:[%s4101] ss:$2 sm:$0xff]
    %s4103 = scalar_lea.vmem [#allocation2], 529
    %v4104 = vld [vmem:[%s4103] ss:$2 sm:$0xff]
    %s4105 = scalar_lea.vmem [#allocation2], 545
    %v4106 = vld [vmem:[%s4105] ss:$2 sm:$0xff]
    %s4107 = scalar_lea.vmem [#allocation2], 561
    %v4108 = vld [vmem:[%s4107] ss:$2 sm:$0xff]
    %s4109 = scalar_lea.vmem [#allocation2], 577
    %v4110 = vld [vmem:[%s4109] ss:$2 sm:$0xff]
    %s4111 = scalar_lea.vmem [#allocation2], 593
    %v4112 = vld [vmem:[%s4111] ss:$2 sm:$0xff]
    %s4113 = scalar_lea.vmem [#allocation2], 609
    %v4114 = vld [vmem:[%s4113] ss:$2 sm:$0xff]
    %s4115 = scalar_lea.vmem [#allocation2], 625
    %v4116 = vld [vmem:[%s4115] ss:$2 sm:$0xff]
    %s4117 = scalar_lea.vmem [#allocation2], 641
    %v4118 = vld [vmem:[%s4117] ss:$2 sm:$0xff]
    %s4119 = scalar_lea.vmem [#allocation2], 657
    %v4120 = vld [vmem:[%s4119] ss:$2 sm:$0xff]
    %s4121 = scalar_lea.vmem [#allocation2], 673
    %v4122 = vld [vmem:[%s4121] ss:$2 sm:$0xff]
    %s4123 = scalar_lea.vmem [#allocation2], 689
    %v4124 = vld [vmem:[%s4123] ss:$2 sm:$0xff]
    %s4125 = scalar_lea.vmem [#allocation2], 705
    %v4126 = vld [vmem:[%s4125] ss:$2 sm:$0xff]
    %s4127 = scalar_lea.vmem [#allocation2], 721
    %v4128 = vld [vmem:[%s4127] ss:$2 sm:$0xff]
    %s4129 = scalar_lea.vmem [#allocation2], 737
    %v4130 = vld [vmem:[%s4129] ss:$2 sm:$0xff]
    %s4131 = scalar_lea.vmem [#allocation2], 753
    %v4132 = vld [vmem:[%s4131] ss:$2 sm:$0xff]
    %s4133 = scalar_lea.vmem [#allocation2], 769
    %v4134 = vld [vmem:[%s4133] ss:$2 sm:$0xff]
    %s4135 = scalar_lea.vmem [#allocation2], 785
    %v4136 = vld [vmem:[%s4135] ss:$2 sm:$0xff]
    %s4137 = scalar_lea.vmem [#allocation2], 801
    %v4138 = vld [vmem:[%s4137] ss:$2 sm:$0xff]
    %s4139 = scalar_lea.vmem [#allocation2], 817
    %v4140 = vld [vmem:[%s4139] ss:$2 sm:$0xff]
    %s4141 = scalar_lea.vmem [#allocation2], 833
    %v4142 = vld [vmem:[%s4141] ss:$2 sm:$0xff]
    %s4143 = scalar_lea.vmem [#allocation2], 849
    %v4144 = vld [vmem:[%s4143] ss:$2 sm:$0xff]
    %s4145 = scalar_lea.vmem [#allocation2], 865
    %v4146 = vld [vmem:[%s4145] ss:$2 sm:$0xff]
    %s4147 = scalar_lea.vmem [#allocation2], 881
    %v4148 = vld [vmem:[%s4147] ss:$2 sm:$0xff]
    %s4149 = scalar_lea.vmem [#allocation2], 897
    %v4150 = vld [vmem:[%s4149] ss:$2 sm:$0xff]
    %s4151 = scalar_lea.vmem [#allocation2], 913
    %v4152 = vld [vmem:[%s4151] ss:$2 sm:$0xff]
    %s4153 = scalar_lea.vmem [#allocation2], 929
    %v4154 = vld [vmem:[%s4153] ss:$2 sm:$0xff]
    %s4155 = scalar_lea.vmem [#allocation2], 945
    %v4156 = vld [vmem:[%s4155] ss:$2 sm:$0xff]
    %s4157 = scalar_lea.vmem [#allocation2], 961
    %v4158 = vld [vmem:[%s4157] ss:$2 sm:$0xff]
    %s4159 = scalar_lea.vmem [#allocation2], 977
    %v4160 = vld [vmem:[%s4159] ss:$2 sm:$0xff]
    %s4161 = scalar_lea.vmem [#allocation2], 993
    %v4162 = vld [vmem:[%s4161] ss:$2 sm:$0xff]
    %s4163 = scalar_lea.vmem [#allocation2], 1009
    %v4164 = vld [vmem:[%s4163] ss:$2 sm:$0xff]
    %s4165 = scalar_lea.vmem [#allocation2], 1025
    %v4166 = vld [vmem:[%s4165] ss:$2 sm:$0xff]
    %s4167 = scalar_lea.vmem [#allocation2], 1041
    %v4168 = vld [vmem:[%s4167] ss:$2 sm:$0xff]
    %s4169 = scalar_lea.vmem [#allocation2], 1057
    %v4170 = vld [vmem:[%s4169] ss:$2 sm:$0xff]
    %s4171 = scalar_lea.vmem [#allocation2], 1073
    %v4172 = vld [vmem:[%s4171] ss:$2 sm:$0xff]
    %s4173 = scalar_lea.vmem [#allocation2], 1089
    %v4174 = vld [vmem:[%s4173] ss:$2 sm:$0xff]
    %s4175 = scalar_lea.vmem [#allocation2], 1105
    %v4176 = vld [vmem:[%s4175] ss:$2 sm:$0xff]
    %s4177 = scalar_lea.vmem [#allocation2], 1121
    %v4178 = vld [vmem:[%s4177] ss:$2 sm:$0xff]
    %s4179 = scalar_lea.vmem [#allocation2], 1137
    %v4180 = vld [vmem:[%s4179] ss:$2 sm:$0xff]
    %s4181 = scalar_lea.vmem [#allocation2], 1153
    %v4182 = vld [vmem:[%s4181] ss:$2 sm:$0xff]
    %s4183 = scalar_lea.vmem [#allocation2], 1169
    %v4184 = vld [vmem:[%s4183] ss:$2 sm:$0xff]
    %s4185 = scalar_lea.vmem [#allocation2], 1185
    %v4186 = vld [vmem:[%s4185] ss:$2 sm:$0xff]
    %s4187 = scalar_lea.vmem [#allocation2], 1201
    %v4188 = vld [vmem:[%s4187] ss:$2 sm:$0xff]
    %s4189 = scalar_lea.vmem [#allocation2], 1217
    %v4190 = vld [vmem:[%s4189] ss:$2 sm:$0xff]
    %s4191 = scalar_lea.vmem [#allocation2], 1233
    %v4192 = vld [vmem:[%s4191] ss:$2 sm:$0xff]
    %s4193 = scalar_lea.vmem [#allocation2], 1249
    %v4194 = vld [vmem:[%s4193] ss:$2 sm:$0xff]
    %s4195 = scalar_lea.vmem [#allocation2], 1265
    %v4196 = vld [vmem:[%s4195] ss:$2 sm:$0xff]
    %s4197 = scalar_lea.vmem [#allocation2], 1281
    %v4198 = vld [vmem:[%s4197] ss:$2 sm:$0xff]
    %s4199 = scalar_lea.vmem [#allocation2], 1297
    %v4200 = vld [vmem:[%s4199] ss:$2 sm:$0xff]
    %s4201 = scalar_lea.vmem [#allocation2], 1313
    %v4202 = vld [vmem:[%s4201] ss:$2 sm:$0xff]
    %s4203 = scalar_lea.vmem [#allocation2], 1329
    %v4204 = vld [vmem:[%s4203] ss:$2 sm:$0xff]
    %s4205 = scalar_lea.vmem [#allocation2], 1345
    %v4206 = vld [vmem:[%s4205] ss:$2 sm:$0xff]
    %s4207 = scalar_lea.vmem [#allocation2], 1361
    %v4208 = vld [vmem:[%s4207] ss:$2 sm:$0xff]
    %s4209 = scalar_lea.vmem [#allocation2], 1377
    %v4210 = vld [vmem:[%s4209] ss:$2 sm:$0xff]
    %s4211 = scalar_lea.vmem [#allocation2], 1393
    %v4212 = vld [vmem:[%s4211] ss:$2 sm:$0xff]
    %s4213 = scalar_lea.vmem [#allocation2], 1409
    %v4214 = vld [vmem:[%s4213] ss:$2 sm:$0xff]
    %s4215 = scalar_lea.vmem [#allocation2], 1425
    %v4216 = vld [vmem:[%s4215] ss:$2 sm:$0xff]
    %s4217 = scalar_lea.vmem [#allocation2], 1441
    %v4218 = vld [vmem:[%s4217] ss:$2 sm:$0xff]
    %s4219 = scalar_lea.vmem [#allocation2], 1457
    %v4220 = vld [vmem:[%s4219] ss:$2 sm:$0xff]
    %s4221 = scalar_lea.vmem [#allocation2], 1473
    %v4222 = vld [vmem:[%s4221] ss:$2 sm:$0xff]
    %s4223 = scalar_lea.vmem [#allocation2], 1489
    %v4224 = vld [vmem:[%s4223] ss:$2 sm:$0xff]
    %s4225 = scalar_lea.vmem [#allocation2], 1505
    %v4226 = vld [vmem:[%s4225] ss:$2 sm:$0xff]
    %s4227 = scalar_lea.vmem [#allocation2], 1521
    %v4228 = vld [vmem:[%s4227] ss:$2 sm:$0xff]
    %v4229 = vmax.f32 %v3846, %v4038
    %v4230 = vmax.f32 %v3848, %v4040
    %v4231 = vmax.f32 %v3850, %v4042
    %v4232 = vmax.f32 %v3852, %v4044
    %v4233 = vmax.f32 %v3854, %v4046
    %v4234 = vmax.f32 %v3856, %v4048
    %v4235 = vmax.f32 %v3858, %v4050
    %v4236 = vmax.f32 %v3860, %v4052
    %v4237 = vmax.f32 %v3862, %v4054
    %v4238 = vmax.f32 %v3864, %v4056
    %v4239 = vmax.f32 %v3866, %v4058
    %v4240 = vmax.f32 %v3868, %v4060
    %v4241 = vmax.f32 %v3870, %v4062
    %v4242 = vmax.f32 %v3872, %v4064
    %v4243 = vmax.f32 %v3874, %v4066
    %v4244 = vmax.f32 %v3876, %v4068
    %v4245 = vmax.f32 %v3878, %v4070
    %v4246 = vmax.f32 %v3880, %v4072
    %v4247 = vmax.f32 %v3882, %v4074
    %v4248 = vmax.f32 %v3884, %v4076
    %v4249 = vmax.f32 %v3886, %v4078
    %v4250 = vmax.f32 %v3888, %v4080
    %v4251 = vmax.f32 %v3890, %v4082
    %v4252 = vmax.f32 %v3892, %v4084
    %v4253 = vmax.f32 %v3894, %v4086
    %v4254 = vmax.f32 %v3896, %v4088
    %v4255 = vmax.f32 %v3898, %v4090
    %v4256 = vmax.f32 %v3900, %v4092
    %v4257 = vmax.f32 %v3902, %v4094
    %v4258 = vmax.f32 %v3904, %v4096
    %v4259 = vmax.f32 %v3906, %v4098
    %v4260 = vmax.f32 %v3908, %v4100
    %v4261 = vmax.f32 %v3910, %v4102
    %v4262 = vmax.f32 %v3912, %v4104
    %v4263 = vmax.f32 %v3914, %v4106
    %v4264 = vmax.f32 %v3916, %v4108
    %v4265 = vmax.f32 %v3918, %v4110
    %v4266 = vmax.f32 %v3920, %v4112
    %v4267 = vmax.f32 %v3922, %v4114
    %v4268 = vmax.f32 %v3924, %v4116
    %v4269 = vmax.f32 %v3926, %v4118
    %v4270 = vmax.f32 %v3928, %v4120
    %v4271 = vmax.f32 %v3930, %v4122
    %v4272 = vmax.f32 %v3932, %v4124
    %v4273 = vmax.f32 %v3934, %v4126
    %v4274 = vmax.f32 %v3936, %v4128
    %v4275 = vmax.f32 %v3938, %v4130
    %v4276 = vmax.f32 %v3940, %v4132
    %v4277 = vmax.f32 %v3942, %v4134
    %v4278 = vmax.f32 %v3944, %v4136
    %v4279 = vmax.f32 %v3946, %v4138
    %v4280 = vmax.f32 %v3948, %v4140
    %v4281 = vmax.f32 %v3950, %v4142
    %v4282 = vmax.f32 %v3952, %v4144
    %v4283 = vmax.f32 %v3954, %v4146
    %v4284 = vmax.f32 %v3956, %v4148
    %v4285 = vmax.f32 %v3958, %v4150
    %v4286 = vmax.f32 %v3960, %v4152
    %v4287 = vmax.f32 %v3962, %v4154
    %v4288 = vmax.f32 %v3964, %v4156
    %v4289 = vmax.f32 %v3966, %v4158
    %v4290 = vmax.f32 %v3968, %v4160
    %v4291 = vmax.f32 %v3970, %v4162
    %v4292 = vmax.f32 %v3972, %v4164
    %v4293 = vmax.f32 %v3974, %v4166
    %v4294 = vmax.f32 %v3976, %v4168
    %v4295 = vmax.f32 %v3978, %v4170
    %v4296 = vmax.f32 %v3980, %v4172
    %v4297 = vmax.f32 %v3982, %v4174
    %v4298 = vmax.f32 %v3984, %v4176
    %v4299 = vmax.f32 %v3986, %v4178
    %v4300 = vmax.f32 %v3988, %v4180
    %v4301 = vmax.f32 %v3990, %v4182
    %v4302 = vmax.f32 %v3992, %v4184
    %v4303 = vmax.f32 %v3994, %v4186
    %v4304 = vmax.f32 %v3996, %v4188
    %v4305 = vmax.f32 %v3998, %v4190
    %v4306 = vmax.f32 %v4000, %v4192
    %v4307 = vmax.f32 %v4002, %v4194
    %v4308 = vmax.f32 %v4004, %v4196
    %v4309 = vmax.f32 %v4006, %v4198
    %v4310 = vmax.f32 %v4008, %v4200
    %v4311 = vmax.f32 %v4010, %v4202
    %v4312 = vmax.f32 %v4012, %v4204
    %v4313 = vmax.f32 %v4014, %v4206
    %v4314 = vmax.f32 %v4016, %v4208
    %v4315 = vmax.f32 %v4018, %v4210
    %v4316 = vmax.f32 %v4020, %v4212
    %v4317 = vmax.f32 %v4022, %v4214
    %v4318 = vmax.f32 %v4024, %v4216
    %v4319 = vmax.f32 %v4026, %v4218
    %v4320 = vmax.f32 %v4028, %v4220
    %v4321 = vmax.f32 %v4030, %v4222
    %v4322 = vmax.f32 %v4032, %v4224
    %v4323 = vmax.f32 %v4034, %v4226
    %v4324 = vmax.f32 %v4036, %v4228
    %v4325 = vmax.f32 %v4229, %v4230
    %v4326 = vmax.f32 %v4235, %v4236
    %v4327 = vmax.f32 %v4241, %v4242
    %v4328 = vmax.f32 %v4247, %v4248
    %v4329 = vmax.f32 %v4253, %v4254
    %v4330 = vmax.f32 %v4259, %v4260
    %v4331 = vmax.f32 %v4265, %v4266
    %v4332 = vmax.f32 %v4271, %v4272
    %v4333 = vmax.f32 %v4277, %v4278
    %v4334 = vmax.f32 %v4283, %v4284
    %v4335 = vmax.f32 %v4289, %v4290
    %v4336 = vmax.f32 %v4295, %v4296
    %v4337 = vmax.f32 %v4301, %v4302
    %v4338 = vmax.f32 %v4307, %v4308
    %v4339 = vmax.f32 %v4313, %v4314
    %v4340 = vmax.f32 %v4319, %v4320
    %v4341 = vmax.f32 %v4325, %v4231
    %v4342 = vmax.f32 %v4326, %v4237
    %v4343 = vmax.f32 %v4327, %v4243
    %v4344 = vmax.f32 %v4328, %v4249
    %v4345 = vmax.f32 %v4329, %v4255
    %v4346 = vmax.f32 %v4330, %v4261
    %v4347 = vmax.f32 %v4331, %v4267
    %v4348 = vmax.f32 %v4332, %v4273
    %v4349 = vmax.f32 %v4333, %v4279
    %v4350 = vmax.f32 %v4334, %v4285
    %v4351 = vmax.f32 %v4335, %v4291
    %v4352 = vmax.f32 %v4336, %v4297
    %v4353 = vmax.f32 %v4337, %v4303
    %v4354 = vmax.f32 %v4338, %v4309
    %v4355 = vmax.f32 %v4339, %v4315
    %v4356 = vmax.f32 %v4340, %v4321
    %v4357 = vmax.f32 %v4341, %v4232
    %v4358 = vmax.f32 %v4342, %v4238
    %v4359 = vmax.f32 %v4343, %v4244
    %v4360 = vmax.f32 %v4344, %v4250
    %v4361 = vmax.f32 %v4345, %v4256
    %v4362 = vmax.f32 %v4346, %v4262
    %v4363 = vmax.f32 %v4347, %v4268
    %v4364 = vmax.f32 %v4348, %v4274
    %v4365 = vmax.f32 %v4349, %v4280
    %v4366 = vmax.f32 %v4350, %v4286
    %v4367 = vmax.f32 %v4351, %v4292
    %v4368 = vmax.f32 %v4352, %v4298
    %v4369 = vmax.f32 %v4353, %v4304
    %v4370 = vmax.f32 %v4354, %v4310
    %v4371 = vmax.f32 %v4355, %v4316
    %v4372 = vmax.f32 %v4356, %v4322
    %v4373 = vmax.f32 %v4357, %v4233
    %v4374 = vmax.f32 %v4358, %v4239
    %v4375 = vmax.f32 %v4359, %v4245
    %v4376 = vmax.f32 %v4360, %v4251
    %v4377 = vmax.f32 %v4361, %v4257
    %v4378 = vmax.f32 %v4362, %v4263
    %v4379 = vmax.f32 %v4363, %v4269
    %v4380 = vmax.f32 %v4364, %v4275
    %v4381 = vmax.f32 %v4365, %v4281
    %v4382 = vmax.f32 %v4366, %v4287
    %v4383 = vmax.f32 %v4367, %v4293
    %v4384 = vmax.f32 %v4368, %v4299
    %v4385 = vmax.f32 %v4369, %v4305
    %v4386 = vmax.f32 %v4370, %v4311
    %v4387 = vmax.f32 %v4371, %v4317
    %v4388 = vmax.f32 %v4372, %v4323
    %v4389 = vmax.f32 %v4373, %v4234
    %v4390 = vmax.f32 %v4374, %v4240
    %v4391 = vmax.f32 %v4375, %v4246
    %v4392 = vmax.f32 %v4376, %v4252
    %v4393 = vmax.f32 %v4377, %v4258
    %v4394 = vmax.f32 %v4378, %v4264
    %v4395 = vmax.f32 %v4379, %v4270
    %v4396 = vmax.f32 %v4380, %v4276
    %v4397 = vmax.f32 %v4381, %v4282
    %v4398 = vmax.f32 %v4382, %v4288
    %v4399 = vmax.f32 %v4383, %v4294
    %v4400 = vmax.f32 %v4384, %v4300
    %v4401 = vmax.f32 %v4385, %v4306
    %v4402 = vmax.f32 %v4386, %v4312
    %v4403 = vmax.f32 %v4387, %v4318
    %v4404 = vmax.f32 %v4388, %v4324
    %s4405 = scalar_lea.vmem [#allocation3], 16
    %4406 = vst.msk [vmem:[%s4405 + $0x1] sm:$0xff] %vm113, %v4389
    %4407 = vst.msk [vmem:[%s4405 + $0x11] sm:$0xff] %vm113, %v4390
    %4408 = vst.msk [vmem:[%s4405 + $0x21] sm:$0xff] %vm113, %v4391
    %4409 = vst.msk [vmem:[%s4405 + $0x31] sm:$0xff] %vm113, %v4392
    %4410 = vst.msk [vmem:[%s4405 + $0x41] sm:$0xff] %vm113, %v4393
    %4411 = vst.msk [vmem:[%s4405 + $0x51] sm:$0xff] %vm113, %v4394
    %4412 = vst.msk [vmem:[%s4405 + $0x61] sm:$0xff] %vm113, %v4395
    %4413 = vst.msk [vmem:[%s4405 + $0x71] sm:$0xff] %vm113, %v4396
    %4414 = vst.msk [vmem:[%s4405 + $0xb1] sm:$0xff] %vm113, %v4397
    %4415 = vst.msk [vmem:[%s4405 + $0xc1] sm:$0xff] %vm113, %v4398
    %4416 = vst.msk [vmem:[%s4405 + $0xd1] sm:$0xff] %vm113, %v4399
    %4417 = vst.msk [vmem:[%s4405 + $0xe1] sm:$0xff] %vm113, %v4400
    %4418 = vst.msk [vmem:[%s4405 + $0xf1] sm:$0xff] %vm113, %v4401
    %4419 = vst.msk [vmem:[%s4405 + $0x101] sm:$0xff] %vm113, %v4402
    %4420 = vst.msk [vmem:[%s4405 + $0x111] sm:$0xff] %vm113, %v4403
    %4421 = vst.msk [vmem:[%s4405 + $0x121] sm:$0xff] %vm113, %v4404
    %v4422 = vld [vmem:[#allocation3] sm:$0xff]
    %v4423 = vld [vmem:[#allocation3 + $0x8] sm:$0xff]
    %v4424 = vld [vmem:[#allocation3 + $0x10] sm:$0xff]
    %v4425 = vld [vmem:[#allocation3 + $0x18] sm:$0xff]
    %v4426 = vld [vmem:[#allocation3 + $0x20] sm:$0xff]
    %v4427 = vld [vmem:[#allocation3 + $0x28] sm:$0xff]
    %v4428 = vld [vmem:[#allocation3 + $0x30] sm:$0xff]
    %v4429 = vld [vmem:[#allocation3 + $0x38] sm:$0xff]
    %v4430 = vld [vmem:[#allocation3 + $0x40] sm:$0xff]
    %v4431 = vld [vmem:[#allocation3 + $0x48] sm:$0xff]
    %v4432 = vld [vmem:[#allocation3 + $0x50] sm:$0xff]
    %v4433 = vld [vmem:[#allocation3 + $0x58] sm:$0xff]
    %v4434 = vld [vmem:[#allocation3 + $0x60] sm:$0xff]
    %v4435 = vld [vmem:[#allocation3 + $0x68] sm:$0xff]
    %v4436 = vld [vmem:[#allocation3 + $0x70] sm:$0xff]
    %v4437 = vld [vmem:[#allocation3 + $0x78] sm:$0xff]
    %v4438 = vld [vmem:[#allocation3 + $0x80] sm:$0xff]
    %v4439 = vld [vmem:[#allocation3 + $0x88] sm:$0xff]
    %v4440 = vld [vmem:[#allocation3 + $0x90] sm:$0xff]
    %v4441 = vld [vmem:[#allocation3 + $0x98] sm:$0xff]
    %v4442 = vld [vmem:[#allocation3 + $0xa0] sm:$0xff]
    %vm4460 = vcmask 1046528
    %v4461 = vrot.slane %v4422, 1
    %v4462 = vrot.slane %v4423, 1
    %v4463 = vsel %vm4460, %v4461, %v4462
    %v4464 = vrot.slane %v4424, 1
    %v4465 = vsel %vm4460, %v4462, %v4464
    %v4466 = vrot.slane %v4425, 1
    %v4467 = vsel %vm4460, %v4464, %v4466
    %v4468 = vrot.slane %v4426, 1
    %v4469 = vsel %vm4460, %v4466, %v4468
    %v4470 = vrot.slane %v4427, 1
    %v4471 = vsel %vm4460, %v4468, %v4470
    %v4472 = vrot.slane %v4428, 1
    %v4473 = vsel %vm4460, %v4470, %v4472
    %v4474 = vrot.slane %v4429, 1
    %v4475 = vsel %vm4460, %v4472, %v4474
    %v4476 = vrot.slane %v4430, 1
    %v4477 = vsel %vm4460, %v4474, %v4476
    %v4478 = vrot.slane %v4431, 1
    %v4479 = vsel %vm4460, %v4476, %v4478
    %v4480 = vrot.slane %v4432, 1
    %v4481 = vsel %vm4460, %v4478, %v4480
    %v4482 = vrot.slane %v4433, 1
    %v4483 = vsel %vm4460, %v4480, %v4482
    %v4484 = vrot.slane %v4434, 1
    %v4485 = vsel %vm4460, %v4482, %v4484
    %v4486 = vrot.slane %v4435, 1
    %v4487 = vsel %vm4460, %v4484, %v4486
    %v4488 = vrot.slane %v4436, 1
    %v4489 = vsel %vm4460, %v4486, %v4488
    %v4490 = vrot.slane %v4437, 1
    %v4491 = vsel %vm4460, %v4488, %v4490
    %v4492 = vrot.slane %v4438, 1
    %v4493 = vsel %vm4460, %v4490, %v4492
    %4494 = vrot.lane.b32.xlu0 %v4463, 64
    %v4495 = vpop.permute.xlu0 %4494
    %4496 = vrot.lane.b32.xlu0 %v4465, 64
    %v4497 = vpop.permute.xlu0 %4496
    %4498 = vrot.lane.b32.xlu0 %v4467, 64
    %v4499 = vpop.permute.xlu0 %4498
    %4500 = vrot.lane.b32.xlu0 %v4469, 64
    %v4501 = vpop.permute.xlu0 %4500
    %4502 = vrot.lane.b32.xlu0 %v4471, 64
    %v4503 = vpop.permute.xlu0 %4502
    %4504 = vrot.lane.b32.xlu0 %v4473, 64
    %v4505 = vpop.permute.xlu0 %4504
    %4506 = vrot.lane.b32.xlu0 %v4475, 64
    %v4507 = vpop.permute.xlu0 %4506
    %4508 = vrot.lane.b32.xlu0 %v4477, 64
    %v4509 = vpop.permute.xlu0 %4508
    %4510 = vrot.lane.b32.xlu0 %v4479, 64
    %v4511 = vpop.permute.xlu0 %4510
    %4512 = vrot.lane.b32.xlu0 %v4481, 64
    %v4513 = vpop.permute.xlu0 %4512
    %4514 = vrot.lane.b32.xlu0 %v4483, 64
    %v4515 = vpop.permute.xlu0 %4514
    %4516 = vrot.lane.b32.xlu0 %v4485, 64
    %v4517 = vpop.permute.xlu0 %4516
    %4518 = vrot.lane.b32.xlu0 %v4487, 64
    %v4519 = vpop.permute.xlu0 %4518
    %4520 = vrot.lane.b32.xlu0 %v4489, 64
    %v4521 = vpop.permute.xlu0 %4520
    %4522 = vrot.lane.b32.xlu0 %v4491, 64
    %v4523 = vpop.permute.xlu0 %4522
    %4524 = vrot.lane.b32.xlu0 %v4493, 64
    %v4525 = vpop.permute.xlu0 %4524
    %vm4542 = vcmask 1045504
    %v4543 = vrot.slane %v4422, 2
    %v4544 = vrot.slane %v4423, 2
    %v4545 = vsel %vm4542, %v4543, %v4544
    %v4546 = vrot.slane %v4424, 2
    %v4547 = vsel %vm4542, %v4544, %v4546
    %v4548 = vrot.slane %v4425, 2
    %v4549 = vsel %vm4542, %v4546, %v4548
    %v4550 = vrot.slane %v4426, 2
    %v4551 = vsel %vm4542, %v4548, %v4550
    %v4552 = vrot.slane %v4427, 2
    %v4553 = vsel %vm4542, %v4550, %v4552
    %v4554 = vrot.slane %v4428, 2
    %v4555 = vsel %vm4542, %v4552, %v4554
    %v4556 = vrot.slane %v4429, 2
    %v4557 = vsel %vm4542, %v4554, %v4556
    %v4558 = vrot.slane %v4430, 2
    %v4559 = vsel %vm4542, %v4556, %v4558
    %v4560 = vrot.slane %v4431, 2
    %v4561 = vsel %vm4542, %v4558, %v4560
    %v4562 = vrot.slane %v4432, 2
    %v4563 = vsel %vm4542, %v4560, %v4562
    %v4564 = vrot.slane %v4433, 2
    %v4565 = vsel %vm4542, %v4562, %v4564
    %v4566 = vrot.slane %v4434, 2
    %v4567 = vsel %vm4542, %v4564, %v4566
    %v4568 = vrot.slane %v4435, 2
    %v4569 = vsel %vm4542, %v4566, %v4568
    %v4570 = vrot.slane %v4436, 2
    %v4571 = vsel %vm4542, %v4568, %v4570
    %v4572 = vrot.slane %v4437, 2
    %v4573 = vsel %vm4542, %v4570, %v4572
    %v4574 = vrot.slane %v4438, 2
    %v4575 = vsel %vm4542, %v4572, %v4574
    %4593 = vrot.lane.b32.xlu0 %v4424, 64
    %v4594 = vpop.permute.xlu0 %4593
    %4595 = vrot.lane.b32.xlu0 %v4425, 64
    %v4596 = vpop.permute.xlu0 %4595
    %4597 = vrot.lane.b32.xlu0 %v4426, 64
    %v4598 = vpop.permute.xlu0 %4597
    %4599 = vrot.lane.b32.xlu0 %v4427, 64
    %v4600 = vpop.permute.xlu0 %4599
    %4601 = vrot.lane.b32.xlu0 %v4428, 64
    %v4602 = vpop.permute.xlu0 %4601
    %4603 = vrot.lane.b32.xlu0 %v4429, 64
    %v4604 = vpop.permute.xlu0 %4603
    %4605 = vrot.lane.b32.xlu0 %v4430, 64
    %v4606 = vpop.permute.xlu0 %4605
    %4607 = vrot.lane.b32.xlu0 %v4431, 64
    %v4608 = vpop.permute.xlu0 %4607
    %4609 = vrot.lane.b32.xlu0 %v4432, 64
    %v4610 = vpop.permute.xlu0 %4609
    %4611 = vrot.lane.b32.xlu0 %v4433, 64
    %v4612 = vpop.permute.xlu0 %4611
    %4613 = vrot.lane.b32.xlu0 %v4434, 64
    %v4614 = vpop.permute.xlu0 %4613
    %4615 = vrot.lane.b32.xlu0 %v4435, 64
    %v4616 = vpop.permute.xlu0 %4615
    %4617 = vrot.lane.b32.xlu0 %v4436, 64
    %v4618 = vpop.permute.xlu0 %4617
    %4619 = vrot.lane.b32.xlu0 %v4437, 64
    %v4620 = vpop.permute.xlu0 %4619
    %4621 = vrot.lane.b32.xlu0 %v4438, 64
    %v4622 = vpop.permute.xlu0 %4621
    %4623 = vrot.lane.b32.xlu0 %v4439, 64
    %v4624 = vpop.permute.xlu0 %4623
    %v4642 = vrot.slane %v4439, 1
    %v4643 = vsel %vm4460, %v4492, %v4642
    %v4644 = vrot.slane %v4440, 1
    %v4645 = vsel %vm4460, %v4642, %v4644
    %v4662 = vrot.slane %v4439, 2
    %v4663 = vsel %vm4542, %v4574, %v4662
    %v4664 = vrot.slane %v4440, 2
    %v4665 = vsel %vm4542, %v4662, %v4664
    %4666 = vrot.lane.b32.xlu0 %v4549, 64
    %v4667 = vpop.permute.xlu0 %4666
    %4668 = vrot.lane.b32.xlu0 %v4551, 64
    %v4669 = vpop.permute.xlu0 %4668
    %4670 = vrot.lane.b32.xlu0 %v4553, 64
    %v4671 = vpop.permute.xlu0 %4670
    %4672 = vrot.lane.b32.xlu0 %v4555, 64
    %v4673 = vpop.permute.xlu0 %4672
    %4674 = vrot.lane.b32.xlu0 %v4557, 64
    %v4675 = vpop.permute.xlu0 %4674
    %4676 = vrot.lane.b32.xlu0 %v4559, 64
    %v4677 = vpop.permute.xlu0 %4676
    %4678 = vrot.lane.b32.xlu0 %v4561, 64
    %v4679 = vpop.permute.xlu0 %4678
    %4680 = vrot.lane.b32.xlu0 %v4563, 64
    %v4681 = vpop.permute.xlu0 %4680
    %4682 = vrot.lane.b32.xlu0 %v4565, 64
    %v4683 = vpop.permute.xlu0 %4682
    %4684 = vrot.lane.b32.xlu0 %v4567, 64
    %v4685 = vpop.permute.xlu0 %4684
    %4686 = vrot.lane.b32.xlu0 %v4569, 64
    %v4687 = vpop.permute.xlu0 %4686
    %4688 = vrot.lane.b32.xlu0 %v4571, 64
    %v4689 = vpop.permute.xlu0 %4688
    %4690 = vrot.lane.b32.xlu0 %v4573, 64
    %v4691 = vpop.permute.xlu0 %4690
    %4692 = vrot.lane.b32.xlu0 %v4575, 64
    %v4693 = vpop.permute.xlu0 %4692
    %4694 = vrot.lane.b32.xlu0 %v4663, 64
    %v4695 = vpop.permute.xlu0 %4694
    %4696 = vrot.lane.b32.xlu0 %v4665, 64
    %v4697 = vpop.permute.xlu0 %4696
    %v4716 = vrot.slane %v4441, 1
    %v4717 = vsel %vm4460, %v4644, %v4716
    %v4718 = vrot.slane %v4442, 1
    %v4719 = vsel %vm4460, %v4716, %v4718
    %4720 = vrot.lane.b32.xlu0 %v4643, 64
    %v4721 = vpop.permute.xlu0 %4720
    %4722 = vrot.lane.b32.xlu0 %v4645, 64
    %v4723 = vpop.permute.xlu0 %4722
    %4724 = vrot.lane.b32.xlu0 %v4717, 64
    %v4725 = vpop.permute.xlu0 %4724
    %4726 = vrot.lane.b32.xlu0 %v4719, 64
    %v4727 = vpop.permute.xlu0 %4726
    %v4732 = vrot.slane %v4441, 2
    %v4733 = vsel %vm4542, %v4664, %v4732
    %v4734 = vrot.slane %v4442, 2
    %v4735 = vsel %vm4542, %v4732, %v4734
    %v4736 = vsel %vm113, %v4422, %v4495
    %v4737 = vsel %vm113, %v4423, %v4497
    %v4738 = vsel %vm113, %v4424, %v4499
    %v4739 = vsel %vm113, %v4425, %v4501
    %v4740 = vsel %vm113, %v4426, %v4503
    %v4741 = vsel %vm113, %v4427, %v4505
    %v4742 = vsel %vm113, %v4428, %v4507
    %v4743 = vsel %vm113, %v4429, %v4509
    %v4744 = vsel %vm113, %v4430, %v4511
    %v4745 = vsel %vm113, %v4431, %v4513
    %v4746 = vsel %vm113, %v4432, %v4515
    %v4747 = vsel %vm113, %v4433, %v4517
    %v4748 = vsel %vm113, %v4434, %v4519
    %v4749 = vsel %vm113, %v4435, %v4521
    %v4750 = vsel %vm113, %v4436, %v4523
    %v4751 = vsel %vm113, %v4437, %v4525
    %v4752 = vsel %vm113, %v4545, %v4594
    %v4753 = vsel %vm113, %v4547, %v4596
    %v4754 = vsel %vm113, %v4549, %v4598
    %v4755 = vsel %vm113, %v4551, %v4600
    %v4756 = vsel %vm113, %v4553, %v4602
    %v4757 = vsel %vm113, %v4555, %v4604
    %v4758 = vsel %vm113, %v4557, %v4606
    %v4759 = vsel %vm113, %v4559, %v4608
    %v4760 = vsel %vm113, %v4561, %v4610
    %v4761 = vsel %vm113, %v4563, %v4612
    %v4762 = vsel %vm113, %v4565, %v4614
    %v4763 = vsel %vm113, %v4567, %v4616
    %v4764 = vsel %vm113, %v4569, %v4618
    %v4765 = vsel %vm113, %v4571, %v4620
    %v4766 = vsel %vm113, %v4573, %v4622
    %v4767 = vsel %vm113, %v4575, %v4624
    %v4768 = vsel %vm113, %v4467, %v4667
    %v4769 = vsel %vm113, %v4469, %v4669
    %v4770 = vsel %vm113, %v4471, %v4671
    %v4771 = vsel %vm113, %v4473, %v4673
    %v4772 = vsel %vm113, %v4475, %v4675
    %v4773 = vsel %vm113, %v4477, %v4677
    %v4774 = vsel %vm113, %v4479, %v4679
    %v4775 = vsel %vm113, %v4481, %v4681
    %v4776 = vsel %vm113, %v4483, %v4683
    %v4777 = vsel %vm113, %v4485, %v4685
    %v4778 = vsel %vm113, %v4487, %v4687
    %v4779 = vsel %vm113, %v4489, %v4689
    %v4780 = vsel %vm113, %v4491, %v4691
    %v4781 = vsel %vm113, %v4493, %v4693
    %v4782 = vsel %vm113, %v4643, %v4695
    %v4783 = vsel %vm113, %v4645, %v4697
    %v4784 = vsel %vm113, %v4438, %v4721
    %v4785 = vsel %vm113, %v4439, %v4723
    %v4786 = vsel %vm113, %v4440, %v4725
    %v4787 = vsel %vm113, %v4441, %v4727
    %v4788 = vld [vmem:[%s2] sm:$0xff]
    %v4789 = vld [vmem:[%s2 + $0x8] sm:$0xff]
    %v4790 = vld [vmem:[%s2 + $0x10] sm:$0xff]
    %v4791 = vld [vmem:[%s2 + $0x18] sm:$0xff]
    %v4792 = vld [vmem:[%s2 + $0x20] sm:$0xff]
    %v4793 = vld [vmem:[%s2 + $0x28] sm:$0xff]
    %v4794 = vld [vmem:[%s2 + $0x30] sm:$0xff]
    %v4795 = vld [vmem:[%s2 + $0x38] sm:$0xff]
    %v4796 = vld [vmem:[%s2 + $0x40] sm:$0xff]
    %v4797 = vld [vmem:[%s2 + $0x48] sm:$0xff]
    %v4798 = vld [vmem:[%s2 + $0x50] sm:$0xff]
    %v4799 = vld [vmem:[%s2 + $0x58] sm:$0xff]
    %v4800 = vld [vmem:[%s2 + $0x60] sm:$0xff]
    %v4801 = vld [vmem:[%s2 + $0x68] sm:$0xff]
    %v4802 = vld [vmem:[%s2 + $0x70] sm:$0xff]
    %v4803 = vld [vmem:[%s2 + $0x78] sm:$0xff]
    %v4804 = vld [vmem:[%s2 + $0x80] sm:$0xff]
    %v4805 = vld [vmem:[%s2 + $0x88] sm:$0xff]
    %v4806 = vld [vmem:[%s2 + $0x90] sm:$0xff]
    %v4807 = vld [vmem:[%s2 + $0x98] sm:$0xff]
    %v4808 = vld [vmem:[%s2 + $0xa0] sm:$0xff]
    %v4809 = vld [vmem:[%s2 + $0xa8] sm:$0xff]
    %v4810 = vld [vmem:[%s2 + $0xb0] sm:$0xff]
    %v4811 = vld [vmem:[%s2 + $0xb8] sm:$0xff]
    %v4812 = vld [vmem:[%s2 + $0xc0] sm:$0xff]
    %v4813 = vld [vmem:[%s2 + $0xc8] sm:$0xff]
    %v4814 = vld [vmem:[%s2 + $0xd0] sm:$0xff]
    %v4815 = vld [vmem:[%s2 + $0xd8] sm:$0xff]
    %v4816 = vld [vmem:[%s2 + $0xe0] sm:$0xff]
    %v4817 = vld [vmem:[%s2 + $0xe8] sm:$0xff]
    %v4818 = vld [vmem:[%s2 + $0xf0] sm:$0xff]
    %v4819 = vld [vmem:[%s2 + $0xf8] sm:$0xff]
    %v4820 = vld [vmem:[%s2 + $0x100] sm:$0xff]
    %v4821 = vld [vmem:[%s2 + $0x108] sm:$0xff]
    %v4822 = vld [vmem:[%s2 + $0x110] sm:$0xff]
    %v4823 = vld [vmem:[%s2 + $0x118] sm:$0xff]
    %v4824 = vld [vmem:[%s2 + $0x120] sm:$0xff]
    %v4825 = vld [vmem:[%s2 + $0x128] sm:$0xff]
    %v4826 = vld [vmem:[%s2 + $0x130] sm:$0xff]
    %v4827 = vld [vmem:[%s2 + $0x138] sm:$0xff]
    %v4828 = vld [vmem:[%s2 + $0x140] sm:$0xff]
    %v4829 = vld [vmem:[%s2 + $0x148] sm:$0xff]
    %v4830 = vld [vmem:[%s2 + $0x150] sm:$0xff]
    %v4831 = vld [vmem:[%s2 + $0x158] sm:$0xff]
    %v4832 = vld [vmem:[%s2 + $0x160] sm:$0xff]
    %v4833 = vld [vmem:[%s2 + $0x168] sm:$0xff]
    %v4834 = vld [vmem:[%s2 + $0x170] sm:$0xff]
    %v4835 = vld [vmem:[%s2 + $0x178] sm:$0xff]
    %v4836 = vld [vmem:[%s2 + $0x180] sm:$0xff]
    %v4837 = vld [vmem:[%s2 + $0x188] sm:$0xff]
    %v4838 = vld [vmem:[%s2 + $0x190] sm:$0xff]
    %v4839 = vld [vmem:[%s2 + $0x198] sm:$0xff]
    %v4840 = vld [vmem:[%s2 + $0x1a0] sm:$0xff]
    %v4841 = vld [vmem:[%s2 + $0x1a8] sm:$0xff]
    %v4842 = vld [vmem:[%s2 + $0x1b0] sm:$0xff]
    %v4843 = vld [vmem:[%s2 + $0x1b8] sm:$0xff]
    %v4844 = vld [vmem:[%s2 + $0x1c0] sm:$0xff]
    %v4845 = vld [vmem:[%s2 + $0x1c8] sm:$0xff]
    %v4846 = vld [vmem:[%s2 + $0x1d0] sm:$0xff]
    %v4847 = vld [vmem:[%s2 + $0x1d8] sm:$0xff]
    %v4848 = vld [vmem:[%s2 + $0x1e0] sm:$0xff]
    %v4849 = vld [vmem:[%s2 + $0x1e8] sm:$0xff]
    %v4850 = vld [vmem:[%s2 + $0x1f0] sm:$0xff]
    %v4851 = vld [vmem:[%s2 + $0x1f8] sm:$0xff]
    %v4852 = vld [vmem:[%s2 + $0x200] sm:$0xff]
    %v4853 = vld [vmem:[%s2 + $0x208] sm:$0xff]
    %v4854 = vld [vmem:[%s2 + $0x210] sm:$0xff]
    %v4855 = vld [vmem:[%s2 + $0x218] sm:$0xff]
    %v4856 = vld [vmem:[%s2 + $0x220] sm:$0xff]
    %v4857 = vld [vmem:[%s2 + $0x228] sm:$0xff]
    %v4858 = vld [vmem:[%s2 + $0x230] sm:$0xff]
    %v4859 = vld [vmem:[%s2 + $0x238] sm:$0xff]
    %v4860 = vsel %vm113, %v4553, 0
    %v4862 = vsel %vm113, %v4555, 0
    %v4864 = vsel %vm113, %v4557, 0
    %v4866 = vsel %vm113, %v4559, 0
    %v4868 = vsel %vm113, %v4561, 0
    %v4870 = vsel %vm113, %v4563, 0
    %v4872 = vsel %vm113, %v4565, 0
    %v4874 = vsel %vm113, %v4567, 0
    %v4876 = vsel %vm113, %v4569, 0
    %v4878 = vsel %vm113, %v4571, 0
    %v4880 = vsel %vm113, %v4573, 0
    %v4882 = vsel %vm113, %v4575, 0
    %v4884 = vsel %vm113, %v4663, 0
    %v4886 = vsel %vm113, %v4665, 0
    %v4888 = vsel %vm113, %v4733, 0
    %v4890 = vsel %vm113, %v4735, 0
    %4892 = vmatprep.subr.mxu0 0.0
    %4893 = vmatpush1.msra.mxu0 %v4803
    %4894 = vmatprep.subr.mxu0 0.0
    %4895 = vmatpush1.msra.mxu0 %v4802
    %4896 = vmatprep.subr.mxu0 0.0
    %4897 = vmatpush1.msra.mxu0 %v4801
    %4898 = vmatprep.subr.mxu0 0.0
    %4899 = vmatpush1.msra.mxu0 %v4800
    %4900 = vmatprep.subr.mxu0 0.0
    %4901 = vmatpush1.msra.mxu0 %v4799
    %4902 = vmatprep.subr.mxu0 0.0
    %4903 = vmatpush1.msra.mxu0 %v4798
    %4904 = vmatprep.subr.mxu0 0.0
    %4905 = vmatpush1.msra.mxu0 %v4797
    %4906 = vmatprep.subr.mxu0 0.0
    %4907 = vmatpush1.msra.mxu0 %v4796
    %4908 = vmatprep.subr.mxu0 0.0
    %4909 = vmatpush1.msra.mxu0 %v4795
    %4910 = vmatprep.subr.mxu0 0.0
    %4911 = vmatpush1.msra.mxu0 %v4794
    %4912 = vmatprep.subr.mxu0 0.0
    %4913 = vmatpush1.msra.mxu0 %v4793
    %4914 = vmatprep.subr.mxu0 0.0
    %4915 = vmatpush1.msra.mxu0 %v4792
    %4916 = vmatprep.subr.mxu0 0.0
    %4917 = vmatpush1.msra.mxu0 %v4791
    %4918 = vmatprep.subr.mxu0 0.0
    %4919 = vmatpush1.msra.mxu0 %v4790
    %4920 = vmatprep.subr.mxu0 0.0
    %4921 = vmatpush1.msra.mxu0 %v4789
    %4922 = vmatprep.subr.mxu0 0.0
    %4923 = vmatpush1.msra.mxu0 %v4788
    %4924 = vmatprep.subr.mxu0 0.0
    %4925 = vmatpush2.msra.mxu0 %v4819
    %4926 = vmatprep.subr.mxu0 0.0
    %4927 = vmatpush2.msra.mxu0 %v4818
    %4928 = vmatprep.subr.mxu0 0.0
    %4929 = vmatpush2.msra.mxu0 %v4817
    %4930 = vmatprep.subr.mxu0 0.0
    %4931 = vmatpush2.msra.mxu0 %v4816
    %4932 = vmatprep.subr.mxu0 0.0
    %4933 = vmatpush2.msra.mxu0 %v4815
    %4934 = vmatprep.subr.mxu0 0.0
    %4935 = vmatpush2.msra.mxu0 %v4814
    %4936 = vmatprep.subr.mxu0 0.0
    %4937 = vmatpush2.msra.mxu0 %v4813
    %4938 = vmatprep.subr.mxu0 0.0
    %4939 = vmatpush2.msra.mxu0 %v4812
    %4940 = vmatprep.subr.mxu0 0.0
    %4941 = vmatpush2.msra.mxu0 %v4811
    %4942 = vmatprep.subr.mxu0 0.0
    %4943 = vmatpush2.msra.mxu0 %v4810
    %4944 = vmatprep.subr.mxu0 0.0
    %4945 = vmatpush2.msra.mxu0 %v4809
    %4946 = vmatprep.subr.mxu0 0.0
    %4947 = vmatpush2.msra.mxu0 %v4808
    %4948 = vmatprep.subr.mxu0 0.0
    %4949 = vmatpush2.msra.mxu0 %v4807
    %4950 = vmatprep.subr.mxu0 0.0
    %4951 = vmatpush2.msra.mxu0 %v4806
    %4952 = vmatprep.subr.mxu0 0.0
    %4953 = vmatpush2.msra.mxu0 %v4805
    %4954 = vmatprep.subr.mxu0 0.0
    %4955 = vmatpush2.msra.mxu0 %v4804
    %4956 = vmatprep.mubr.f32.mxu0 %v4752
    %4957 = vmatmul.mubr.f32.gmra.mxu0 %v4736
    %v4958 = vpop.f32.mrf.mxu0
    %v4959 = vadd.f32 0.0, %v4958
    %v4960 = vpop.f32.mrf.mxu0
    %4961 = vmatprep.mubr.f32.mxu0 %v4753
    %4962 = vmatmul.mubr.f32.gmra.mxu0 %v4737
    %v4963 = vpop.f32.mrf.mxu0
    %v4964 = vadd.f32 0.0, %v4963
    %v4965 = vpop.f32.mrf.mxu0
    %4966 = vmatprep.mubr.f32.mxu0 %v4754
    %4967 = vmatmul.mubr.f32.gmra.mxu0 %v4738
    %v4968 = vpop.f32.mrf.mxu0
    %v4969 = vadd.f32 0.0, %v4968
    %v4970 = vpop.f32.mrf.mxu0
    %4971 = vmatprep.mubr.f32.mxu0 %v4755
    %4972 = vmatmul.mubr.f32.gmra.mxu0 %v4739
    %v4973 = vpop.f32.mrf.mxu0
    %v4974 = vadd.f32 0.0, %v4973
    %v4975 = vpop.f32.mrf.mxu0
    %4976 = vmatprep.mubr.f32.mxu0 %v4756
    %4977 = vmatmul.mubr.f32.gmra.mxu0 %v4740
    %v4978 = vpop.f32.mrf.mxu0
    %v4979 = vadd.f32 0.0, %v4978
    %v4980 = vpop.f32.mrf.mxu0
    %4981 = vmatprep.mubr.f32.mxu0 %v4757
    %4982 = vmatmul.mubr.f32.gmra.mxu0 %v4741
    %v4983 = vpop.f32.mrf.mxu0
    %v4984 = vadd.f32 0.0, %v4983
    %v4985 = vpop.f32.mrf.mxu0
    %4986 = vmatprep.mubr.f32.mxu0 %v4758
    %4987 = vmatmul.mubr.f32.gmra.mxu0 %v4742
    %v4988 = vpop.f32.mrf.mxu0
    %v4989 = vadd.f32 0.0, %v4988
    %v4990 = vpop.f32.mrf.mxu0
    %4991 = vmatprep.mubr.f32.mxu0 %v4759
    %4992 = vmatmul.mubr.f32.gmra.mxu0 %v4743
    %v4993 = vpop.f32.mrf.mxu0
    %v4994 = vadd.f32 0.0, %v4993
    %v4995 = vpop.f32.mrf.mxu0
    %4996 = vmatprep.mubr.f32.mxu0 %v4760
    %4997 = vmatmul.mubr.f32.gmra.mxu0 %v4744
    %v4998 = vpop.f32.mrf.mxu0
    %v4999 = vadd.f32 0.0, %v4998
    %v5000 = vpop.f32.mrf.mxu0
    %5001 = vmatprep.mubr.f32.mxu0 %v4761
    %5002 = vmatmul.mubr.f32.gmra.mxu0 %v4745
    %v5003 = vpop.f32.mrf.mxu0
    %v5004 = vadd.f32 0.0, %v5003
    %v5005 = vpop.f32.mrf.mxu0
    %5006 = vmatprep.mubr.f32.mxu0 %v4762
    %5007 = vmatmul.mubr.f32.gmra.mxu0 %v4746
    %v5008 = vpop.f32.mrf.mxu0
    %v5009 = vadd.f32 0.0, %v5008
    %v5010 = vpop.f32.mrf.mxu0
    %5011 = vmatprep.mubr.f32.mxu0 %v4763
    %5012 = vmatmul.mubr.f32.gmra.mxu0 %v4747
    %v5013 = vpop.f32.mrf.mxu0
    %v5014 = vadd.f32 0.0, %v5013
    %v5015 = vpop.f32.mrf.mxu0
    %5016 = vmatprep.mubr.f32.mxu0 %v4764
    %5017 = vmatmul.mubr.f32.gmra.mxu0 %v4748
    %v5018 = vpop.f32.mrf.mxu0
    %v5019 = vadd.f32 0.0, %v5018
    %v5020 = vpop.f32.mrf.mxu0
    %5021 = vmatprep.mubr.f32.mxu0 %v4765
    %5022 = vmatmul.mubr.f32.gmra.mxu0 %v4749
    %v5023 = vpop.f32.mrf.mxu0
    %v5024 = vadd.f32 0.0, %v5023
    %v5025 = vpop.f32.mrf.mxu0
    %5026 = vmatprep.mubr.f32.mxu0 %v4766
    %5027 = vmatmul.mubr.f32.gmra.mxu0 %v4750
    %v5028 = vpop.f32.mrf.mxu0
    %v5029 = vadd.f32 0.0, %v5028
    %v5030 = vpop.f32.mrf.mxu0
    %5031 = vmatprep.mubr.f32.mxu0 %v4767
    %5032 = vmatmul.mubr.f32.gmra.mxu0 %v4751
    %v5033 = vpop.f32.mrf.mxu0
    %v5034 = vadd.f32 0.0, %v5033
    %v5035 = vpop.f32.mrf.mxu0
    %5036 = vdwg.mxu0
    %5037 = vmatprep.subr.mxu0 0.0
    %5038 = vmatpush1.msra.mxu0 %v4835
    %5039 = vmatprep.subr.mxu0 0.0
    %5040 = vmatpush1.msra.mxu0 %v4834
    %5041 = vmatprep.subr.mxu0 0.0
    %5042 = vmatpush1.msra.mxu0 %v4833
    %5043 = vmatprep.subr.mxu0 0.0
    %5044 = vmatpush1.msra.mxu0 %v4832
    %5045 = vmatprep.subr.mxu0 0.0
    %5046 = vmatpush1.msra.mxu0 %v4831
    %5047 = vmatprep.subr.mxu0 0.0
    %5048 = vmatpush1.msra.mxu0 %v4830
    %5049 = vmatprep.subr.mxu0 0.0
    %5050 = vmatpush1.msra.mxu0 %v4829
    %5051 = vmatprep.subr.mxu0 0.0
    %5052 = vmatpush1.msra.mxu0 %v4828
    %5053 = vmatprep.subr.mxu0 0.0
    %5054 = vmatpush1.msra.mxu0 %v4827
    %5055 = vmatprep.subr.mxu0 0.0
    %5056 = vmatpush1.msra.mxu0 %v4826
    %5057 = vmatprep.subr.mxu0 0.0
    %5058 = vmatpush1.msra.mxu0 %v4825
    %5059 = vmatprep.subr.mxu0 0.0
    %5060 = vmatpush1.msra.mxu0 %v4824
    %5061 = vmatprep.subr.mxu0 0.0
    %5062 = vmatpush1.msra.mxu0 %v4823
    %5063 = vmatprep.subr.mxu0 0.0
    %5064 = vmatpush1.msra.mxu0 %v4822
    %5065 = vmatprep.subr.mxu0 0.0
    %5066 = vmatpush1.msra.mxu0 %v4821
    %5067 = vmatprep.subr.mxu0 0.0
    %5068 = vmatpush1.msra.mxu0 %v4820
    %5069 = vmatprep.subr.mxu0 0.0
    %5070 = vmatpush2.msra.mxu0 %v4851
    %5071 = vmatprep.subr.mxu0 0.0
    %5072 = vmatpush2.msra.mxu0 %v4850
    %5073 = vmatprep.subr.mxu0 0.0
    %5074 = vmatpush2.msra.mxu0 %v4849
    %5075 = vmatprep.subr.mxu0 0.0
    %5076 = vmatpush2.msra.mxu0 %v4848
    %5077 = vmatprep.subr.mxu0 0.0
    %5078 = vmatpush2.msra.mxu0 %v4847
    %5079 = vmatprep.subr.mxu0 0.0
    %5080 = vmatpush2.msra.mxu0 %v4846
    %5081 = vmatprep.subr.mxu0 0.0
    %5082 = vmatpush2.msra.mxu0 %v4845
    %5083 = vmatprep.subr.mxu0 0.0
    %5084 = vmatpush2.msra.mxu0 %v4844
    %5085 = vmatprep.subr.mxu0 0.0
    %5086 = vmatpush2.msra.mxu0 %v4843
    %5087 = vmatprep.subr.mxu0 0.0
    %5088 = vmatpush2.msra.mxu0 %v4842
    %5089 = vmatprep.subr.mxu0 0.0
    %5090 = vmatpush2.msra.mxu0 %v4841
    %5091 = vmatprep.subr.mxu0 0.0
    %5092 = vmatpush2.msra.mxu0 %v4840
    %5093 = vmatprep.subr.mxu0 0.0
    %5094 = vmatpush2.msra.mxu0 %v4839
    %5095 = vmatprep.subr.mxu0 0.0
    %5096 = vmatpush2.msra.mxu0 %v4838
    %5097 = vmatprep.subr.mxu0 0.0
    %5098 = vmatpush2.msra.mxu0 %v4837
    %5099 = vmatprep.subr.mxu0 0.0
    %5100 = vmatpush2.msra.mxu0 %v4836
    %5101 = vmatprep.mubr.f32.mxu0 %v4740
    %5102 = vmatmul.mubr.f32.gmra.mxu0 %v4768
    %v5103 = vpop.f32.mrf.mxu0
    %v5104 = vadd.f32 %v4959, %v5103
    %v5105 = vpop.f32.mrf.mxu0
    %5106 = vmatprep.mubr.f32.mxu0 %v4741
    %5107 = vmatmul.mubr.f32.gmra.mxu0 %v4769
    %v5108 = vpop.f32.mrf.mxu0
    %v5109 = vadd.f32 %v4964, %v5108
    %v5110 = vpop.f32.mrf.mxu0
    %5111 = vmatprep.mubr.f32.mxu0 %v4742
    %5112 = vmatmul.mubr.f32.gmra.mxu0 %v4770
    %v5113 = vpop.f32.mrf.mxu0
    %v5114 = vadd.f32 %v4969, %v5113
    %v5115 = vpop.f32.mrf.mxu0
    %5116 = vmatprep.mubr.f32.mxu0 %v4743
    %5117 = vmatmul.mubr.f32.gmra.mxu0 %v4771
    %v5118 = vpop.f32.mrf.mxu0
    %v5119 = vadd.f32 %v4974, %v5118
    %v5120 = vpop.f32.mrf.mxu0
    %5121 = vmatprep.mubr.f32.mxu0 %v4744
    %5122 = vmatmul.mubr.f32.gmra.mxu0 %v4772
    %v5123 = vpop.f32.mrf.mxu0
    %v5124 = vadd.f32 %v4979, %v5123
    %v5125 = vpop.f32.mrf.mxu0
    %5126 = vmatprep.mubr.f32.mxu0 %v4745
    %5127 = vmatmul.mubr.f32.gmra.mxu0 %v4773
    %v5128 = vpop.f32.mrf.mxu0
    %v5129 = vadd.f32 %v4984, %v5128
    %v5130 = vpop.f32.mrf.mxu0
    %5131 = vmatprep.mubr.f32.mxu0 %v4746
    %5132 = vmatmul.mubr.f32.gmra.mxu0 %v4774
    %v5133 = vpop.f32.mrf.mxu0
    %v5134 = vadd.f32 %v4989, %v5133
    %v5135 = vpop.f32.mrf.mxu0
    %5136 = vmatprep.mubr.f32.mxu0 %v4747
    %5137 = vmatmul.mubr.f32.gmra.mxu0 %v4775
    %v5138 = vpop.f32.mrf.mxu0
    %v5139 = vadd.f32 %v4994, %v5138
    %v5140 = vpop.f32.mrf.mxu0
    %5141 = vmatprep.mubr.f32.mxu0 %v4748
    %5142 = vmatmul.mubr.f32.gmra.mxu0 %v4776
    %v5143 = vpop.f32.mrf.mxu0
    %v5144 = vadd.f32 %v4999, %v5143
    %v5145 = vpop.f32.mrf.mxu0
    %5146 = vmatprep.mubr.f32.mxu0 %v4749
    %5147 = vmatmul.mubr.f32.gmra.mxu0 %v4777
    %v5148 = vpop.f32.mrf.mxu0
    %v5149 = vadd.f32 %v5004, %v5148
    %v5150 = vpop.f32.mrf.mxu0
    %5151 = vmatprep.mubr.f32.mxu0 %v4750
    %5152 = vmatmul.mubr.f32.gmra.mxu0 %v4778
    %v5153 = vpop.f32.mrf.mxu0
    %v5154 = vadd.f32 %v5009, %v5153
    %v5155 = vpop.f32.mrf.mxu0
    %5156 = vmatprep.mubr.f32.mxu0 %v4751
    %5157 = vmatmul.mubr.f32.gmra.mxu0 %v4779
    %v5158 = vpop.f32.mrf.mxu0
    %v5159 = vadd.f32 %v5014, %v5158
    %v5160 = vpop.f32.mrf.mxu0
    %5161 = vmatprep.mubr.f32.mxu0 %v4784
    %5162 = vmatmul.mubr.f32.gmra.mxu0 %v4780
    %v5163 = vpop.f32.mrf.mxu0
    %v5164 = vadd.f32 %v5019, %v5163
    %v5165 = vpop.f32.mrf.mxu0
    %5166 = vmatprep.mubr.f32.mxu0 %v4785
    %5167 = vmatmul.mubr.f32.gmra.mxu0 %v4781
    %v5168 = vpop.f32.mrf.mxu0
    %v5169 = vadd.f32 %v5024, %v5168
    %v5170 = vpop.f32.mrf.mxu0
    %5171 = vmatprep.mubr.f32.mxu0 %v4786
    %5172 = vmatmul.mubr.f32.gmra.mxu0 %v4782
    %v5173 = vpop.f32.mrf.mxu0
    %v5174 = vadd.f32 %v5029, %v5173
    %v5175 = vpop.f32.mrf.mxu0
    %5176 = vmatprep.mubr.f32.mxu0 %v4787
    %5177 = vmatmul.mubr.f32.gmra.mxu0 %v4783
    %v5178 = vpop.f32.mrf.mxu0
    %v5179 = vadd.f32 %v5034, %v5178
    %v5180 = vpop.f32.mrf.mxu0
    %5181 = vdwg.mxu0
    %5182 = vmatprep.subr.mxu0 0.0
    %5183 = vmatpush1.msra.mxu0 0.0
    %5184 = vmatprep.subr.mxu0 0.0
    %5185 = vmatpush1.msra.mxu0 0.0
    %5186 = vmatprep.subr.mxu0 0.0
    %5187 = vmatpush1.msra.mxu0 0.0
    %5188 = vmatprep.subr.mxu0 0.0
    %5189 = vmatpush1.msra.mxu0 0.0
    %5190 = vmatprep.subr.mxu0 0.0
    %5191 = vmatpush1.msra.mxu0 0.0
    %5192 = vmatprep.subr.mxu0 0.0
    %5193 = vmatpush1.msra.mxu0 0.0
    %5194 = vmatprep.subr.mxu0 0.0
    %5195 = vmatpush1.msra.mxu0 0.0
    %5196 = vmatprep.subr.mxu0 0.0
    %5197 = vmatpush1.msra.mxu0 0.0
    %5198 = vmatprep.subr.mxu0 0.0
    %5199 = vmatpush1.msra.mxu0 %v4859
    %5200 = vmatprep.subr.mxu0 0.0
    %5201 = vmatpush1.msra.mxu0 %v4858
    %5202 = vmatprep.subr.mxu0 0.0
    %5203 = vmatpush1.msra.mxu0 %v4857
    %5204 = vmatprep.subr.mxu0 0.0
    %5205 = vmatpush1.msra.mxu0 %v4856
    %5206 = vmatprep.subr.mxu0 0.0
    %5207 = vmatpush1.msra.mxu0 %v4855
    %5208 = vmatprep.subr.mxu0 0.0
    %5209 = vmatpush1.msra.mxu0 %v4854
    %5210 = vmatprep.subr.mxu0 0.0
    %5211 = vmatpush1.msra.mxu0 %v4853
    %5212 = vmatprep.subr.mxu0 0.0
    %5213 = vmatpush1.msra.mxu0 %v4852
    %5214 = vmatprep.subr.mxu0 0.0
    %5215 = vmatpush2.msra.mxu0 0.0
    %5216 = vmatprep.subr.mxu0 0.0
    %5217 = vmatpush2.msra.mxu0 0.0
    %5218 = vmatprep.subr.mxu0 0.0
    %5219 = vmatpush2.msra.mxu0 0.0
    %5220 = vmatprep.subr.mxu0 0.0
    %5221 = vmatpush2.msra.mxu0 0.0
    %5222 = vmatprep.subr.mxu0 0.0
    %5223 = vmatpush2.msra.mxu0 0.0
    %5224 = vmatprep.subr.mxu0 0.0
    %5225 = vmatpush2.msra.mxu0 0.0
    %5226 = vmatprep.subr.mxu0 0.0
    %5227 = vmatpush2.msra.mxu0 0.0
    %5228 = vmatprep.subr.mxu0 0.0
    %5229 = vmatpush2.msra.mxu0 0.0
    %5230 = vmatprep.subr.mxu0 0.0
    %5231 = vmatpush2.msra.mxu0 0.0
    %5232 = vmatprep.subr.mxu0 0.0
    %5233 = vmatpush2.msra.mxu0 0.0
    %5234 = vmatprep.subr.mxu0 0.0
    %5235 = vmatpush2.msra.mxu0 0.0
    %5236 = vmatprep.subr.mxu0 0.0
    %5237 = vmatpush2.msra.mxu0 0.0
    %5238 = vmatprep.subr.mxu0 0.0
    %5239 = vmatpush2.msra.mxu0 0.0
    %5240 = vmatprep.subr.mxu0 0.0
    %5241 = vmatpush2.msra.mxu0 0.0
    %5242 = vmatprep.subr.mxu0 0.0
    %5243 = vmatpush2.msra.mxu0 0.0
    %5244 = vmatprep.subr.mxu0 0.0
    %5245 = vmatpush2.msra.mxu0 0.0
    %5246 = vmatprep.mubr.f32.mxu0 0.0
    %5247 = vmatmul.mubr.f32.gmra.mxu0 %v4860
    %v5248 = vpop.f32.mrf.mxu0
    %v5249 = vadd.f32 %v5104, %v5248
    %v5250 = vpop.f32.mrf.mxu0
    %5251 = vmatprep.mubr.f32.mxu0 0.0
    %5252 = vmatmul.mubr.f32.gmra.mxu0 %v4862
    %v5253 = vpop.f32.mrf.mxu0
    %v5254 = vadd.f32 %v5109, %v5253
    %v5255 = vpop.f32.mrf.mxu0
    %5256 = vmatprep.mubr.f32.mxu0 0.0
    %5257 = vmatmul.mubr.f32.gmra.mxu0 %v4864
    %v5258 = vpop.f32.mrf.mxu0
    %v5259 = vadd.f32 %v5114, %v5258
    %v5260 = vpop.f32.mrf.mxu0
    %5261 = vmatprep.mubr.f32.mxu0 0.0
    %5262 = vmatmul.mubr.f32.gmra.mxu0 %v4866
    %v5263 = vpop.f32.mrf.mxu0
    %v5264 = vadd.f32 %v5119, %v5263
    %v5265 = vpop.f32.mrf.mxu0
    %5266 = vmatprep.mubr.f32.mxu0 0.0
    %5267 = vmatmul.mubr.f32.gmra.mxu0 %v4868
    %v5268 = vpop.f32.mrf.mxu0
    %v5269 = vadd.f32 %v5124, %v5268
    %v5270 = vpop.f32.mrf.mxu0
    %5271 = vmatprep.mubr.f32.mxu0 0.0
    %5272 = vmatmul.mubr.f32.gmra.mxu0 %v4870
    %v5273 = vpop.f32.mrf.mxu0
    %v5274 = vadd.f32 %v5129, %v5273
    %v5275 = vpop.f32.mrf.mxu0
    %5276 = vmatprep.mubr.f32.mxu0 0.0
    %5277 = vmatmul.mubr.f32.gmra.mxu0 %v4872
    %v5278 = vpop.f32.mrf.mxu0
    %v5279 = vadd.f32 %v5134, %v5278
    %v5280 = vpop.f32.mrf.mxu0
    %5281 = vmatprep.mubr.f32.mxu0 0.0
    %5282 = vmatmul.mubr.f32.gmra.mxu0 %v4874
    %v5283 = vpop.f32.mrf.mxu0
    %v5284 = vadd.f32 %v5139, %v5283
    %v5285 = vpop.f32.mrf.mxu0
    %5286 = vmatprep.mubr.f32.mxu0 0.0
    %5287 = vmatmul.mubr.f32.gmra.mxu0 %v4876
    %v5288 = vpop.f32.mrf.mxu0
    %v5289 = vadd.f32 %v5144, %v5288
    %v5290 = vpop.f32.mrf.mxu0
    %5291 = vmatprep.mubr.f32.mxu0 0.0
    %5292 = vmatmul.mubr.f32.gmra.mxu0 %v4878
    %v5293 = vpop.f32.mrf.mxu0
    %v5294 = vadd.f32 %v5149, %v5293
    %v5295 = vpop.f32.mrf.mxu0
    %5296 = vmatprep.mubr.f32.mxu0 0.0
    %5297 = vmatmul.mubr.f32.gmra.mxu0 %v4880
    %v5298 = vpop.f32.mrf.mxu0
    %v5299 = vadd.f32 %v5154, %v5298
    %v5300 = vpop.f32.mrf.mxu0
    %5301 = vmatprep.mubr.f32.mxu0 0.0
    %5302 = vmatmul.mubr.f32.gmra.mxu0 %v4882
    %v5303 = vpop.f32.mrf.mxu0
    %v5304 = vadd.f32 %v5159, %v5303
    %v5305 = vpop.f32.mrf.mxu0
    %5306 = vmatprep.mubr.f32.mxu0 0.0
    %5307 = vmatmul.mubr.f32.gmra.mxu0 %v4884
    %v5308 = vpop.f32.mrf.mxu0
    %v5309 = vadd.f32 %v5164, %v5308
    %v5310 = vpop.f32.mrf.mxu0
    %5311 = vmatprep.mubr.f32.mxu0 0.0
    %5312 = vmatmul.mubr.f32.gmra.mxu0 %v4886
    %v5313 = vpop.f32.mrf.mxu0
    %v5314 = vadd.f32 %v5169, %v5313
    %v5315 = vpop.f32.mrf.mxu0
    %5316 = vmatprep.mubr.f32.mxu0 0.0
    %5317 = vmatmul.mubr.f32.gmra.mxu0 %v4888
    %v5318 = vpop.f32.mrf.mxu0
    %v5319 = vadd.f32 %v5174, %v5318
    %v5320 = vpop.f32.mrf.mxu0
    %5321 = vmatprep.mubr.f32.mxu0 0.0
    %5322 = vmatmul.mubr.f32.gmra.mxu0 %v4890
    %v5323 = vpop.f32.mrf.mxu0
    %v5324 = vadd.f32 %v5179, %v5323
    %v5325 = vpop.f32.mrf.mxu0
    %5326 = vdwg.mxu0
    %v5327 = vlaneseq
    %v5328 = vshrl.u32 %v5327, 7
    %v5329 = vadd.s32 %v5328, 8
    %v5330 = vadd.s32 %v5328, 16
    %v5331 = vadd.s32 %v5328, 24
    %v5332 = vadd.s32 %v5328, 32
    %v5333 = vadd.s32 %v5328, 40
    %v5334 = vadd.s32 %v5328, 48
    %v5335 = vadd.s32 %v5328, 56
    %v5336 = vadd.s32 %v5328, 64
    %v5337 = vadd.s32 %v5328, 72
    %v5338 = vadd.s32 %v5328, 80
    %v5339 = vadd.s32 %v5328, 88
    %v5340 = vadd.s32 %v5328, 96
    %v5341 = vadd.s32 %v5328, 104
    %v5342 = vadd.s32 %v5328, 112
    %v5343 = vadd.s32 %v5328, 120
    %vm5344 = vcmp.lt.s32.totalorder %v5328, 0
    %v5345 = vsub.s32 0, %v5328
    %v5346 = vsel %vm5344, %v5345, %v5328
    %v5347 = vshrl.u32 %v5346, 4
    %v5348 = vand.u32 %v5346, 15
    %v5349 = vsub.s32 0, %v5348
    %v5350 = vsel %vm5344, %v5349, %v5348
    %vm5351 = vcmp.lt.s32.totalorder %v5329, 0
    %v5352 = vsub.s32 0, %v5329
    %v5353 = vsel %vm5351, %v5352, %v5329
    %v5354 = vshrl.u32 %v5353, 4
    %v5355 = vand.u32 %v5353, 15
    %v5356 = vsub.s32 0, %v5355
    %v5357 = vsel %vm5351, %v5356, %v5355
    %vm5358 = vcmp.lt.s32.totalorder %v5330, 0
    %v5359 = vsub.s32 0, %v5330
    %v5360 = vsel %vm5358, %v5359, %v5330
    %v5361 = vshrl.u32 %v5360, 4
    %v5362 = vand.u32 %v5360, 15
    %v5363 = vsub.s32 0, %v5362
    %v5364 = vsel %vm5358, %v5363, %v5362
    %vm5365 = vcmp.lt.s32.totalorder %v5331, 0
    %v5366 = vsub.s32 0, %v5331
    %v5367 = vsel %vm5365, %v5366, %v5331
    %v5368 = vshrl.u32 %v5367, 4
    %v5369 = vand.u32 %v5367, 15
    %v5370 = vsub.s32 0, %v5369
    %v5371 = vsel %vm5365, %v5370, %v5369
    %vm5372 = vcmp.lt.s32.totalorder %v5332, 0
    %v5373 = vsub.s32 0, %v5332
    %v5374 = vsel %vm5372, %v5373, %v5332
    %v5375 = vshrl.u32 %v5374, 4
    %v5376 = vand.u32 %v5374, 15
    %v5377 = vsub.s32 0, %v5376
    %v5378 = vsel %vm5372, %v5377, %v5376
    %vm5379 = vcmp.lt.s32.totalorder %v5333, 0
    %v5380 = vsub.s32 0, %v5333
    %v5381 = vsel %vm5379, %v5380, %v5333
    %v5382 = vshrl.u32 %v5381, 4
    %v5383 = vand.u32 %v5381, 15
    %v5384 = vsub.s32 0, %v5383
    %v5385 = vsel %vm5379, %v5384, %v5383
    %vm5386 = vcmp.lt.s32.totalorder %v5334, 0
    %v5387 = vsub.s32 0, %v5334
    %v5388 = vsel %vm5386, %v5387, %v5334
    %v5389 = vshrl.u32 %v5388, 4
    %v5390 = vand.u32 %v5388, 15
    %v5391 = vsub.s32 0, %v5390
    %v5392 = vsel %vm5386, %v5391, %v5390
    %vm5393 = vcmp.lt.s32.totalorder %v5335, 0
    %v5394 = vsub.s32 0, %v5335
    %v5395 = vsel %vm5393, %v5394, %v5335
    %v5396 = vshrl.u32 %v5395, 4
    %v5397 = vand.u32 %v5395, 15
    %v5398 = vsub.s32 0, %v5397
    %v5399 = vsel %vm5393, %v5398, %v5397
    %vm5400 = vcmp.lt.s32.totalorder %v5336, 0
    %v5401 = vsub.s32 0, %v5336
    %v5402 = vsel %vm5400, %v5401, %v5336
    %v5403 = vshrl.u32 %v5402, 4
    %v5404 = vand.u32 %v5402, 15
    %v5405 = vsub.s32 0, %v5404
    %v5406 = vsel %vm5400, %v5405, %v5404
    %vm5407 = vcmp.lt.s32.totalorder %v5337, 0
    %v5408 = vsub.s32 0, %v5337
    %v5409 = vsel %vm5407, %v5408, %v5337
    %v5410 = vshrl.u32 %v5409, 4
    %v5411 = vand.u32 %v5409, 15
    %v5412 = vsub.s32 0, %v5411
    %v5413 = vsel %vm5407, %v5412, %v5411
    %vm5414 = vcmp.lt.s32.totalorder %v5338, 0
    %v5415 = vsub.s32 0, %v5338
    %v5416 = vsel %vm5414, %v5415, %v5338
    %v5417 = vshrl.u32 %v5416, 4
    %v5418 = vand.u32 %v5416, 15
    %v5419 = vsub.s32 0, %v5418
    %v5420 = vsel %vm5414, %v5419, %v5418
    %vm5421 = vcmp.lt.s32.totalorder %v5339, 0
    %v5422 = vsub.s32 0, %v5339
    %v5423 = vsel %vm5421, %v5422, %v5339
    %v5424 = vshrl.u32 %v5423, 4
    %v5425 = vand.u32 %v5423, 15
    %v5426 = vsub.s32 0, %v5425
    %v5427 = vsel %vm5421, %v5426, %v5425
    %vm5428 = vcmp.lt.s32.totalorder %v5340, 0
    %v5429 = vsub.s32 0, %v5340
    %v5430 = vsel %vm5428, %v5429, %v5340
    %v5431 = vshrl.u32 %v5430, 4
    %v5432 = vand.u32 %v5430, 15
    %v5433 = vsub.s32 0, %v5432
    %v5434 = vsel %vm5428, %v5433, %v5432
    %vm5435 = vcmp.lt.s32.totalorder %v5341, 0
    %v5436 = vsub.s32 0, %v5341
    %v5437 = vsel %vm5435, %v5436, %v5341
    %v5438 = vshrl.u32 %v5437, 4
    %v5439 = vand.u32 %v5437, 15
    %v5440 = vsub.s32 0, %v5439
    %v5441 = vsel %vm5435, %v5440, %v5439
    %vm5442 = vcmp.lt.s32.totalorder %v5342, 0
    %v5443 = vsub.s32 0, %v5342
    %v5444 = vsel %vm5442, %v5443, %v5342
    %v5445 = vshrl.u32 %v5444, 4
    %v5446 = vand.u32 %v5444, 15
    %v5447 = vsub.s32 0, %v5446
    %v5448 = vsel %vm5442, %v5447, %v5446
    %vm5449 = vcmp.lt.s32.totalorder %v5343, 0
    %v5450 = vsub.s32 0, %v5343
    %v5451 = vsel %vm5449, %v5450, %v5343
    %v5452 = vshrl.u32 %v5451, 4
    %v5453 = vand.u32 %v5451, 15
    %v5454 = vsub.s32 0, %v5453
    %v5455 = vsel %vm5449, %v5454, %v5453
    %vm5456 = vcmp.ne.s32.totalorder %v5350, 0
    %vm5457 = vcmp.ne.s32.totalorder %v5357, 0
    %vm5458 = vcmp.ne.s32.totalorder %v5364, 0
    %vm5459 = vcmp.ne.s32.totalorder %v5371, 0
    %vm5460 = vcmp.ne.s32.totalorder %v5378, 0
    %vm5461 = vcmp.ne.s32.totalorder %v5385, 0
    %vm5462 = vcmp.ne.s32.totalorder %v5392, 0
    %vm5463 = vcmp.ne.s32.totalorder %v5399, 0
    %vm5464 = vcmp.ne.s32.totalorder %v5406, 0
    %vm5465 = vcmp.ne.s32.totalorder %v5413, 0
    %vm5466 = vcmp.ne.s32.totalorder %v5420, 0
    %vm5467 = vcmp.ne.s32.totalorder %v5427, 0
    %vm5468 = vcmp.ne.s32.totalorder %v5434, 0
    %vm5469 = vcmp.ne.s32.totalorder %v5441, 0
    %vm5470 = vcmp.ne.s32.totalorder %v5448, 0
    %vm5471 = vcmp.ne.s32.totalorder %v5455, 0
    %vm5472 = vcmp.lt.s32.totalorder %v5350, 0
    %vm5473 = vcmp.lt.s32.totalorder %v5357, 0
    %vm5474 = vcmp.lt.s32.totalorder %v5364, 0
    %vm5475 = vcmp.lt.s32.totalorder %v5371, 0
    %vm5476 = vcmp.lt.s32.totalorder %v5378, 0
    %vm5477 = vcmp.lt.s32.totalorder %v5385, 0
    %vm5478 = vcmp.lt.s32.totalorder %v5392, 0
    %vm5479 = vcmp.lt.s32.totalorder %v5399, 0
    %vm5480 = vcmp.lt.s32.totalorder %v5406, 0
    %vm5481 = vcmp.lt.s32.totalorder %v5413, 0
    %vm5482 = vcmp.lt.s32.totalorder %v5420, 0
    %vm5483 = vcmp.lt.s32.totalorder %v5427, 0
    %vm5484 = vcmp.lt.s32.totalorder %v5434, 0
    %vm5485 = vcmp.lt.s32.totalorder %v5441, 0
    %vm5486 = vcmp.lt.s32.totalorder %v5448, 0
    %vm5487 = vcmp.lt.s32.totalorder %v5455, 0
    %vm5488 = vmand %vm5472, %vm5456
    %vm5489 = vmand %vm5473, %vm5457
    %vm5490 = vmand %vm5474, %vm5458
    %vm5491 = vmand %vm5475, %vm5459
    %vm5492 = vmand %vm5476, %vm5460
    %vm5493 = vmand %vm5477, %vm5461
    %vm5494 = vmand %vm5478, %vm5462
    %vm5495 = vmand %vm5479, %vm5463
    %vm5496 = vmand %vm5480, %vm5464
    %vm5497 = vmand %vm5481, %vm5465
    %vm5498 = vmand %vm5482, %vm5466
    %vm5499 = vmand %vm5483, %vm5467
    %vm5500 = vmand %vm5484, %vm5468
    %vm5501 = vmand %vm5485, %vm5469
    %vm5502 = vmand %vm5486, %vm5470
    %vm5503 = vmand %vm5487, %vm5471
    %v5504 = vadd.s32 %v5350, 16
    %v5505 = vadd.s32 %v5357, 16
    %v5506 = vadd.s32 %v5364, 16
    %v5507 = vadd.s32 %v5371, 16
    %v5508 = vadd.s32 %v5378, 16
    %v5509 = vadd.s32 %v5385, 16
    %v5510 = vadd.s32 %v5392, 16
    %v5511 = vadd.s32 %v5399, 16
    %v5512 = vadd.s32 %v5406, 16
    %v5513 = vadd.s32 %v5413, 16
    %v5514 = vadd.s32 %v5420, 16
    %v5515 = vadd.s32 %v5427, 16
    %v5516 = vadd.s32 %v5434, 16
    %v5517 = vadd.s32 %v5441, 16
    %v5518 = vadd.s32 %v5448, 16
    %v5519 = vadd.s32 %v5455, 16
    %v5520 = vsel %vm5488, %v5504, %v5350
    %v5521 = vsel %vm5489, %v5505, %v5357
    %v5522 = vsel %vm5490, %v5506, %v5364
    %v5523 = vsel %vm5491, %v5507, %v5371
    %v5524 = vsel %vm5492, %v5508, %v5378
    %v5525 = vsel %vm5493, %v5509, %v5385
    %v5526 = vsel %vm5494, %v5510, %v5392
    %v5527 = vsel %vm5495, %v5511, %v5399
    %v5528 = vsel %vm5496, %v5512, %v5406
    %v5529 = vsel %vm5497, %v5513, %v5413
    %v5530 = vsel %vm5498, %v5514, %v5420
    %v5531 = vsel %vm5499, %v5515, %v5427
    %v5532 = vsel %vm5500, %v5516, %v5434
    %v5533 = vsel %vm5501, %v5517, %v5441
    %v5534 = vsel %vm5502, %v5518, %v5448
    %v5535 = vsel %vm5503, %v5519, %v5455
    %vm5536 = vcmp.lt.s32.totalorder %v5520, 8
    %vm5537 = vcmp.lt.s32.totalorder %v5521, 8
    %vm5538 = vcmp.lt.s32.totalorder %v5522, 8
    %vm5539 = vcmp.lt.s32.totalorder %v5523, 8
    %vm5540 = vcmp.lt.s32.totalorder %v5524, 8
    %vm5541 = vcmp.lt.s32.totalorder %v5525, 8
    %vm5542 = vcmp.lt.s32.totalorder %v5526, 8
    %vm5543 = vcmp.lt.s32.totalorder %v5527, 8
    %vm5544 = vcmp.lt.s32.totalorder %v5528, 8
    %vm5545 = vcmp.lt.s32.totalorder %v5529, 8
    %vm5546 = vcmp.lt.s32.totalorder %v5530, 8
    %vm5547 = vcmp.lt.s32.totalorder %v5531, 8
    %vm5548 = vcmp.lt.s32.totalorder %v5532, 8
    %vm5549 = vcmp.lt.s32.totalorder %v5533, 8
    %vm5550 = vcmp.lt.s32.totalorder %v5534, 8
    %vm5551 = vcmp.lt.s32.totalorder %v5535, 8
    %v5552 = vsel %vm5536, 1, 0
    %v5553 = vsel %vm5537, 1, 0
    %v5554 = vsel %vm5538, 1, 0
    %v5555 = vsel %vm5539, 1, 0
    %v5556 = vsel %vm5540, 1, 0
    %v5557 = vsel %vm5541, 1, 0
    %v5558 = vsel %vm5542, 1, 0
    %v5559 = vsel %vm5543, 1, 0
    %v5560 = vsel %vm5544, 1, 0
    %v5561 = vsel %vm5545, 1, 0
    %v5562 = vsel %vm5546, 1, 0
    %v5563 = vsel %vm5547, 1, 0
    %v5564 = vsel %vm5548, 1, 0
    %v5565 = vsel %vm5549, 1, 0
    %v5566 = vsel %vm5550, 1, 0
    %v5567 = vsel %vm5551, 1, 0
    %vm5568 = vcmp.eq.s32.totalorder %v5552, 1
    %vm5569 = vcmp.eq.s32.totalorder %v5553, 1
    %vm5570 = vcmp.eq.s32.totalorder %v5554, 1
    %vm5571 = vcmp.eq.s32.totalorder %v5555, 1
    %vm5572 = vcmp.eq.s32.totalorder %v5556, 1
    %vm5573 = vcmp.eq.s32.totalorder %v5557, 1
    %vm5574 = vcmp.eq.s32.totalorder %v5558, 1
    %vm5575 = vcmp.eq.s32.totalorder %v5559, 1
    %vm5576 = vcmp.eq.s32.totalorder %v5560, 1
    %vm5577 = vcmp.eq.s32.totalorder %v5561, 1
    %vm5578 = vcmp.eq.s32.totalorder %v5562, 1
    %vm5579 = vcmp.eq.s32.totalorder %v5563, 1
    %vm5580 = vcmp.eq.s32.totalorder %v5564, 1
    %vm5581 = vcmp.eq.s32.totalorder %v5565, 1
    %vm5582 = vcmp.eq.s32.totalorder %v5566, 1
    %vm5583 = vcmp.eq.s32.totalorder %v5567, 1
    %v5584 = vsel %vm5568, %v5249, 0.0
    %v5585 = vsel %vm5569, %v5254, 0.0
    %v5586 = vsel %vm5570, %v5259, 0.0
    %v5587 = vsel %vm5571, %v5264, 0.0
    %v5588 = vsel %vm5572, %v5269, 0.0
    %v5589 = vsel %vm5573, %v5274, 0.0
    %v5590 = vsel %vm5574, %v5279, 0.0
    %v5591 = vsel %vm5575, %v5284, 0.0
    %v5592 = vsel %vm5576, %v5289, 0.0
    %v5593 = vsel %vm5577, %v5294, 0.0
    %v5594 = vsel %vm5578, %v5299, 0.0
    %v5595 = vsel %vm5579, %v5304, 0.0
    %v5596 = vsel %vm5580, %v5309, 0.0
    %v5597 = vsel %vm5581, %v5314, 0.0
    %v5598 = vsel %vm5582, %v5319, 0.0
    %v5599 = vsel %vm5583, %v5324, 0.0
    %v5600 = vadd.f32 %v5584, %v5585
    %v5601 = vadd.f32 %v5600, %v5586
    %v5602 = vadd.f32 %v5601, %v5587
    %v5603 = vadd.f32 %v5602, %v5588
    %v5604 = vadd.f32 %v5603, %v5589
    %v5605 = vadd.f32 %v5604, %v5590
    %v5606 = vadd.f32 %v5605, %v5591
    %v5607 = vadd.f32 %v5606, %v5592
    %v5608 = vadd.f32 %v5607, %v5593
    %v5609 = vadd.f32 %v5608, %v5594
    %v5610 = vadd.f32 %v5609, %v5595
    %v5611 = vadd.f32 %v5610, %v5596
    %v5612 = vadd.f32 %v5611, %v5597
    %v5613 = vadd.f32 %v5612, %v5598
    %v5614 = vadd.f32 %v5613, %v5599
    %v5615 = vrot.slane %v5614, 4
    %v5616 = vadd.f32 %v5614, %v5615
    %v5617 = vrot.slane %v5616, 2
    %v5618 = vadd.f32 %v5616, %v5617
    %v5619 = vrot.slane %v5618, 1
    %v5620 = vadd.f32 %v5618, %v5619
    %v5621 = vmul.f32 %v5584, %v5584
    %v5622 = vmul.f32 %v5585, %v5585
    %v5623 = vmul.f32 %v5586, %v5586
    %v5624 = vmul.f32 %v5587, %v5587
    %v5625 = vmul.f32 %v5588, %v5588
    %v5626 = vmul.f32 %v5589, %v5589
    %v5627 = vmul.f32 %v5590, %v5590
    %v5628 = vmul.f32 %v5591, %v5591
    %v5629 = vmul.f32 %v5592, %v5592
    %v5630 = vmul.f32 %v5593, %v5593
    %v5631 = vmul.f32 %v5594, %v5594
    %v5632 = vmul.f32 %v5595, %v5595
    %v5633 = vmul.f32 %v5596, %v5596
    %v5634 = vmul.f32 %v5597, %v5597
    %v5635 = vmul.f32 %v5598, %v5598
    %v5636 = vmul.f32 %v5599, %v5599
    %v5637 = vadd.f32 %v5621, %v5622
    %v5638 = vadd.f32 %v5637, %v5623
    %v5639 = vadd.f32 %v5638, %v5624
    %v5640 = vadd.f32 %v5639, %v5625
    %v5641 = vadd.f32 %v5640, %v5626
    %v5642 = vadd.f32 %v5641, %v5627
    %v5643 = vadd.f32 %v5642, %v5628
    %v5644 = vadd.f32 %v5643, %v5629
    %v5645 = vadd.f32 %v5644, %v5630
    %v5646 = vadd.f32 %v5645, %v5631
    %v5647 = vadd.f32 %v5646, %v5632
    %v5648 = vadd.f32 %v5647, %v5633
    %v5649 = vadd.f32 %v5648, %v5634
    %v5650 = vadd.f32 %v5649, %v5635
    %v5651 = vadd.f32 %v5650, %v5636
    %v5652 = vrot.slane %v5651, 4
    %v5653 = vadd.f32 %v5651, %v5652
    %v5654 = vrot.slane %v5653, 2
    %v5655 = vadd.f32 %v5653, %v5654
    %v5656 = vrot.slane %v5655, 1
    %v5657 = vadd.f32 %v5655, %v5656
    %v5658 = vadd.f32 %v5620, 0.0
    %v5659 = vadd.f32 %v5657, 0.0
    %s5660 = scalar_lea.vmem [#allocation3], 176
    %v5661 = vld [vmem:[%s5660] sm:$0xff]
    %v5662 = vld [vmem:[%s5660 + $0x8] sm:$0xff]
    %v5663 = vld [vmem:[%s5660 + $0x10] sm:$0xff]
    %v5664 = vld [vmem:[%s5660 + $0x18] sm:$0xff]
    %v5665 = vld [vmem:[%s5660 + $0x20] sm:$0xff]
    %v5666 = vld [vmem:[%s5660 + $0x28] sm:$0xff]
    %v5667 = vld [vmem:[%s5660 + $0x30] sm:$0xff]
    %v5668 = vld [vmem:[%s5660 + $0x38] sm:$0xff]
    %v5669 = vld [vmem:[%s5660 + $0x40] sm:$0xff]
    %v5670 = vld [vmem:[%s5660 + $0x48] sm:$0xff]
    %v5671 = vld [vmem:[%s5660 + $0x50] sm:$0xff]
    %v5672 = vld [vmem:[%s5660 + $0x58] sm:$0xff]
    %v5673 = vld [vmem:[%s5660 + $0x60] sm:$0xff]
    %v5674 = vld [vmem:[%s5660 + $0x68] sm:$0xff]
    %v5675 = vld [vmem:[%s5660 + $0x70] sm:$0xff]
    %v5676 = vld [vmem:[%s5660 + $0x78] sm:$0xff]
    %v5677 = vld [vmem:[%s5660 + $0x80] sm:$0xff]
    %v5678 = vld [vmem:[%s5660 + $0x88] sm:$0xff]
    %v5679 = vld [vmem:[%s5660 + $0x90] sm:$0xff]
    %v5680 = vld [vmem:[%s5660 + $0x98] sm:$0xff]
    %v5681 = vld [vmem:[%s5660 + $0xa0] sm:$0xff]
    %v5699 = vrot.slane %v5661, 1
    %v5700 = vrot.slane %v5662, 1
    %v5701 = vsel %vm4460, %v5699, %v5700
    %v5702 = vrot.slane %v5663, 1
    %v5703 = vsel %vm4460, %v5700, %v5702
    %v5704 = vrot.slane %v5664, 1
    %v5705 = vsel %vm4460, %v5702, %v5704
    %v5706 = vrot.slane %v5665, 1
    %v5707 = vsel %vm4460, %v5704, %v5706
    %v5708 = vrot.slane %v5666, 1
    %v5709 = vsel %vm4460, %v5706, %v5708
    %v5710 = vrot.slane %v5667, 1
    %v5711 = vsel %vm4460, %v5708, %v5710
    %v5712 = vrot.slane %v5668, 1
    %v5713 = vsel %vm4460, %v5710, %v5712
    %v5714 = vrot.slane %v5669, 1
    %v5715 = vsel %vm4460, %v5712, %v5714
    %v5716 = vrot.slane %v5670, 1
    %v5717 = vsel %vm4460, %v5714, %v5716
    %v5718 = vrot.slane %v5671, 1
    %v5719 = vsel %vm4460, %v5716, %v5718
    %v5720 = vrot.slane %v5672, 1
    %v5721 = vsel %vm4460, %v5718, %v5720
    %v5722 = vrot.slane %v5673, 1
    %v5723 = vsel %vm4460, %v5720, %v5722
    %v5724 = vrot.slane %v5674, 1
    %v5725 = vsel %vm4460, %v5722, %v5724
    %v5726 = vrot.slane %v5675, 1
    %v5727 = vsel %vm4460, %v5724, %v5726
    %v5728 = vrot.slane %v5676, 1
    %v5729 = vsel %vm4460, %v5726, %v5728
    %v5730 = vrot.slane %v5677, 1
    %v5731 = vsel %vm4460, %v5728, %v5730
    %5732 = vrot.lane.b32.xlu0 %v5701, 64
    %v5733 = vpop.permute.xlu0 %5732
    %5734 = vrot.lane.b32.xlu0 %v5703, 64
    %v5735 = vpop.permute.xlu0 %5734
    %5736 = vrot.lane.b32.xlu0 %v5705, 64
    %v5737 = vpop.permute.xlu0 %5736
    %5738 = vrot.lane.b32.xlu0 %v5707, 64
    %v5739 = vpop.permute.xlu0 %5738
    %5740 = vrot.lane.b32.xlu0 %v5709, 64
    %v5741 = vpop.permute.xlu0 %5740
    %5742 = vrot.lane.b32.xlu0 %v5711, 64
    %v5743 = vpop.permute.xlu0 %5742
    %5744 = vrot.lane.b32.xlu0 %v5713, 64
    %v5745 = vpop.permute.xlu0 %5744
    %5746 = vrot.lane.b32.xlu0 %v5715, 64
    %v5747 = vpop.permute.xlu0 %5746
    %5748 = vrot.lane.b32.xlu0 %v5717, 64
    %v5749 = vpop.permute.xlu0 %5748
    %5750 = vrot.lane.b32.xlu0 %v5719, 64
    %v5751 = vpop.permute.xlu0 %5750
    %5752 = vrot.lane.b32.xlu0 %v5721, 64
    %v5753 = vpop.permute.xlu0 %5752
    %5754 = vrot.lane.b32.xlu0 %v5723, 64
    %v5755 = vpop.permute.xlu0 %5754
    %5756 = vrot.lane.b32.xlu0 %v5725, 64
    %v5757 = vpop.permute.xlu0 %5756
    %5758 = vrot.lane.b32.xlu0 %v5727, 64
    %v5759 = vpop.permute.xlu0 %5758
    %5760 = vrot.lane.b32.xlu0 %v5729, 64
    %v5761 = vpop.permute.xlu0 %5760
    %5762 = vrot.lane.b32.xlu0 %v5731, 64
    %v5763 = vpop.permute.xlu0 %5762
    %v5780 = vrot.slane %v5661, 2
    %v5781 = vrot.slane %v5662, 2
    %v5782 = vsel %vm4542, %v5780, %v5781
    %v5783 = vrot.slane %v5663, 2
    %v5784 = vsel %vm4542, %v5781, %v5783
    %v5785 = vrot.slane %v5664, 2
    %v5786 = vsel %vm4542, %v5783, %v5785
    %v5787 = vrot.slane %v5665, 2
    %v5788 = vsel %vm4542, %v5785, %v5787
    %v5789 = vrot.slane %v5666, 2
    %v5790 = vsel %vm4542, %v5787, %v5789
    %v5791 = vrot.slane %v5667, 2
    %v5792 = vsel %vm4542, %v5789, %v5791
    %v5793 = vrot.slane %v5668, 2
    %v5794 = vsel %vm4542, %v5791, %v5793
    %v5795 = vrot.slane %v5669, 2
    %v5796 = vsel %vm4542, %v5793, %v5795
    %v5797 = vrot.slane %v5670, 2
    %v5798 = vsel %vm4542, %v5795, %v5797
    %v5799 = vrot.slane %v5671, 2
    %v5800 = vsel %vm4542, %v5797, %v5799
    %v5801 = vrot.slane %v5672, 2
    %v5802 = vsel %vm4542, %v5799, %v5801
    %v5803 = vrot.slane %v5673, 2
    %v5804 = vsel %vm4542, %v5801, %v5803
    %v5805 = vrot.slane %v5674, 2
    %v5806 = vsel %vm4542, %v5803, %v5805
    %v5807 = vrot.slane %v5675, 2
    %v5808 = vsel %vm4542, %v5805, %v5807
    %v5809 = vrot.slane %v5676, 2
    %v5810 = vsel %vm4542, %v5807, %v5809
    %v5811 = vrot.slane %v5677, 2
    %v5812 = vsel %vm4542, %v5809, %v5811
    %5830 = vrot.lane.b32.xlu0 %v5663, 64
    %v5831 = vpop.permute.xlu0 %5830
    %5832 = vrot.lane.b32.xlu0 %v5664, 64
    %v5833 = vpop.permute.xlu0 %5832
    %5834 = vrot.lane.b32.xlu0 %v5665, 64
    %v5835 = vpop.permute.xlu0 %5834
    %5836 = vrot.lane.b32.xlu0 %v5666, 64
    %v5837 = vpop.permute.xlu0 %5836
    %5838 = vrot.lane.b32.xlu0 %v5667, 64
    %v5839 = vpop.permute.xlu0 %5838
    %5840 = vrot.lane.b32.xlu0 %v5668, 64
    %v5841 = vpop.permute.xlu0 %5840
    %5842 = vrot.lane.b32.xlu0 %v5669, 64
    %v5843 = vpop.permute.xlu0 %5842
    %5844 = vrot.lane.b32.xlu0 %v5670, 64
    %v5845 = vpop.permute.xlu0 %5844
    %5846 = vrot.lane.b32.xlu0 %v5671, 64
    %v5847 = vpop.permute.xlu0 %5846
    %5848 = vrot.lane.b32.xlu0 %v5672, 64
    %v5849 = vpop.permute.xlu0 %5848
    %5850 = vrot.lane.b32.xlu0 %v5673, 64
    %v5851 = vpop.permute.xlu0 %5850
    %5852 = vrot.lane.b32.xlu0 %v5674, 64
    %v5853 = vpop.permute.xlu0 %5852
    %5854 = vrot.lane.b32.xlu0 %v5675, 64
    %v5855 = vpop.permute.xlu0 %5854
    %5856 = vrot.lane.b32.xlu0 %v5676, 64
    %v5857 = vpop.permute.xlu0 %5856
    %5858 = vrot.lane.b32.xlu0 %v5677, 64
    %v5859 = vpop.permute.xlu0 %5858
    %5860 = vrot.lane.b32.xlu0 %v5678, 64
    %v5861 = vpop.permute.xlu0 %5860
    %v5879 = vrot.slane %v5678, 1
    %v5880 = vsel %vm4460, %v5730, %v5879
    %v5881 = vrot.slane %v5679, 1
    %v5882 = vsel %vm4460, %v5879, %v5881
    %v5899 = vrot.slane %v5678, 2
    %v5900 = vsel %vm4542, %v5811, %v5899
    %v5901 = vrot.slane %v5679, 2
    %v5902 = vsel %vm4542, %v5899, %v5901
    %5903 = vrot.lane.b32.xlu0 %v5786, 64
    %v5904 = vpop.permute.xlu0 %5903
    %5905 = vrot.lane.b32.xlu0 %v5788, 64
    %v5906 = vpop.permute.xlu0 %5905
    %5907 = vrot.lane.b32.xlu0 %v5790, 64
    %v5908 = vpop.permute.xlu0 %5907
    %5909 = vrot.lane.b32.xlu0 %v5792, 64
    %v5910 = vpop.permute.xlu0 %5909
    %5911 = vrot.lane.b32.xlu0 %v5794, 64
    %v5912 = vpop.permute.xlu0 %5911
    %5913 = vrot.lane.b32.xlu0 %v5796, 64
    %v5914 = vpop.permute.xlu0 %5913
    %5915 = vrot.lane.b32.xlu0 %v5798, 64
    %v5916 = vpop.permute.xlu0 %5915
    %5917 = vrot.lane.b32.xlu0 %v5800, 64
    %v5918 = vpop.permute.xlu0 %5917
    %5919 = vrot.lane.b32.xlu0 %v5802, 64
    %v5920 = vpop.permute.xlu0 %5919
    %5921 = vrot.lane.b32.xlu0 %v5804, 64
    %v5922 = vpop.permute.xlu0 %5921
    %5923 = vrot.lane.b32.xlu0 %v5806, 64
    %v5924 = vpop.permute.xlu0 %5923
    %5925 = vrot.lane.b32.xlu0 %v5808, 64
    %v5926 = vpop.permute.xlu0 %5925
    %5927 = vrot.lane.b32.xlu0 %v5810, 64
    %v5928 = vpop.permute.xlu0 %5927
    %5929 = vrot.lane.b32.xlu0 %v5812, 64
    %v5930 = vpop.permute.xlu0 %5929
    %5931 = vrot.lane.b32.xlu0 %v5900, 64
    %v5932 = vpop.permute.xlu0 %5931
    %5933 = vrot.lane.b32.xlu0 %v5902, 64
    %v5934 = vpop.permute.xlu0 %5933
    %v5953 = vrot.slane %v5680, 1
    %v5954 = vsel %vm4460, %v5881, %v5953
    %v5955 = vrot.slane %v5681, 1
    %v5956 = vsel %vm4460, %v5953, %v5955
    %5957 = vrot.lane.b32.xlu0 %v5880, 64
    %v5958 = vpop.permute.xlu0 %5957
    %5959 = vrot.lane.b32.xlu0 %v5882, 64
    %v5960 = vpop.permute.xlu0 %5959
    %5961 = vrot.lane.b32.xlu0 %v5954, 64
    %v5962 = vpop.permute.xlu0 %5961
    %5963 = vrot.lane.b32.xlu0 %v5956, 64
    %v5964 = vpop.permute.xlu0 %5963
    %v5969 = vrot.slane %v5680, 2
    %v5970 = vsel %vm4542, %v5901, %v5969
    %v5971 = vrot.slane %v5681, 2
    %v5972 = vsel %vm4542, %v5969, %v5971
    %v5973 = vsel %vm113, %v5661, %v5733
    %v5974 = vsel %vm113, %v5662, %v5735
    %v5975 = vsel %vm113, %v5663, %v5737
    %v5976 = vsel %vm113, %v5664, %v5739
    %v5977 = vsel %vm113, %v5665, %v5741
    %v5978 = vsel %vm113, %v5666, %v5743
    %v5979 = vsel %vm113, %v5667, %v5745
    %v5980 = vsel %vm113, %v5668, %v5747
    %v5981 = vsel %vm113, %v5669, %v5749
    %v5982 = vsel %vm113, %v5670, %v5751
    %v5983 = vsel %vm113, %v5671, %v5753
    %v5984 = vsel %vm113, %v5672, %v5755
    %v5985 = vsel %vm113, %v5673, %v5757
    %v5986 = vsel %vm113, %v5674, %v5759
    %v5987 = vsel %vm113, %v5675, %v5761
    %v5988 = vsel %vm113, %v5676, %v5763
    %v5989 = vsel %vm113, %v5782, %v5831
    %v5990 = vsel %vm113, %v5784, %v5833
    %v5991 = vsel %vm113, %v5786, %v5835
    %v5992 = vsel %vm113, %v5788, %v5837
    %v5993 = vsel %vm113, %v5790, %v5839
    %v5994 = vsel %vm113, %v5792, %v5841
    %v5995 = vsel %vm113, %v5794, %v5843
    %v5996 = vsel %vm113, %v5796, %v5845
    %v5997 = vsel %vm113, %v5798, %v5847
    %v5998 = vsel %vm113, %v5800, %v5849
    %v5999 = vsel %vm113, %v5802, %v5851
    %v6000 = vsel %vm113, %v5804, %v5853
    %v6001 = vsel %vm113, %v5806, %v5855
    %v6002 = vsel %vm113, %v5808, %v5857
    %v6003 = vsel %vm113, %v5810, %v5859
    %v6004 = vsel %vm113, %v5812, %v5861
    %v6005 = vsel %vm113, %v5705, %v5904
    %v6006 = vsel %vm113, %v5707, %v5906
    %v6007 = vsel %vm113, %v5709, %v5908
    %v6008 = vsel %vm113, %v5711, %v5910
    %v6009 = vsel %vm113, %v5713, %v5912
    %v6010 = vsel %vm113, %v5715, %v5914
    %v6011 = vsel %vm113, %v5717, %v5916
    %v6012 = vsel %vm113, %v5719, %v5918
    %v6013 = vsel %vm113, %v5721, %v5920
    %v6014 = vsel %vm113, %v5723, %v5922
    %v6015 = vsel %vm113, %v5725, %v5924
    %v6016 = vsel %vm113, %v5727, %v5926
    %v6017 = vsel %vm113, %v5729, %v5928
    %v6018 = vsel %vm113, %v5731, %v5930
    %v6019 = vsel %vm113, %v5880, %v5932
    %v6020 = vsel %vm113, %v5882, %v5934
    %v6021 = vsel %vm113, %v5677, %v5958
    %v6022 = vsel %vm113, %v5678, %v5960
    %v6023 = vsel %vm113, %v5679, %v5962
    %v6024 = vsel %vm113, %v5680, %v5964
    %v6025 = vsel %vm113, %v5790, 0
    %v6027 = vsel %vm113, %v5792, 0
    %v6029 = vsel %vm113, %v5794, 0
    %v6031 = vsel %vm113, %v5796, 0
    %v6033 = vsel %vm113, %v5798, 0
    %v6035 = vsel %vm113, %v5800, 0
    %v6037 = vsel %vm113, %v5802, 0
    %v6039 = vsel %vm113, %v5804, 0
    %v6041 = vsel %vm113, %v5806, 0
    %v6043 = vsel %vm113, %v5808, 0
    %v6045 = vsel %vm113, %v5810, 0
    %v6047 = vsel %vm113, %v5812, 0
    %v6049 = vsel %vm113, %v5900, 0
    %v6051 = vsel %vm113, %v5902, 0
    %v6053 = vsel %vm113, %v5970, 0
    %v6055 = vsel %vm113, %v5972, 0
    %6057 = vmatprep.subr.mxu0 0.0
    %6058 = vmatpush1.msra.mxu0 %v4803
    %6059 = vmatprep.subr.mxu0 0.0
    %6060 = vmatpush1.msra.mxu0 %v4802
    %6061 = vmatprep.subr.mxu0 0.0
    %6062 = vmatpush1.msra.mxu0 %v4801
    %6063 = vmatprep.subr.mxu0 0.0
    %6064 = vmatpush1.msra.mxu0 %v4800
    %6065 = vmatprep.subr.mxu0 0.0
    %6066 = vmatpush1.msra.mxu0 %v4799
    %6067 = vmatprep.subr.mxu0 0.0
    %6068 = vmatpush1.msra.mxu0 %v4798
    %6069 = vmatprep.subr.mxu0 0.0
    %6070 = vmatpush1.msra.mxu0 %v4797
    %6071 = vmatprep.subr.mxu0 0.0
    %6072 = vmatpush1.msra.mxu0 %v4796
    %6073 = vmatprep.subr.mxu0 0.0
    %6074 = vmatpush1.msra.mxu0 %v4795
    %6075 = vmatprep.subr.mxu0 0.0
    %6076 = vmatpush1.msra.mxu0 %v4794
    %6077 = vmatprep.subr.mxu0 0.0
    %6078 = vmatpush1.msra.mxu0 %v4793
    %6079 = vmatprep.subr.mxu0 0.0
    %6080 = vmatpush1.msra.mxu0 %v4792
    %6081 = vmatprep.subr.mxu0 0.0
    %6082 = vmatpush1.msra.mxu0 %v4791
    %6083 = vmatprep.subr.mxu0 0.0
    %6084 = vmatpush1.msra.mxu0 %v4790
    %6085 = vmatprep.subr.mxu0 0.0
    %6086 = vmatpush1.msra.mxu0 %v4789
    %6087 = vmatprep.subr.mxu0 0.0
    %6088 = vmatpush1.msra.mxu0 %v4788
    %6089 = vmatprep.subr.mxu0 0.0
    %6090 = vmatpush2.msra.mxu0 %v4819
    %6091 = vmatprep.subr.mxu0 0.0
    %6092 = vmatpush2.msra.mxu0 %v4818
    %6093 = vmatprep.subr.mxu0 0.0
    %6094 = vmatpush2.msra.mxu0 %v4817
    %6095 = vmatprep.subr.mxu0 0.0
    %6096 = vmatpush2.msra.mxu0 %v4816
    %6097 = vmatprep.subr.mxu0 0.0
    %6098 = vmatpush2.msra.mxu0 %v4815
    %6099 = vmatprep.subr.mxu0 0.0
    %6100 = vmatpush2.msra.mxu0 %v4814
    %6101 = vmatprep.subr.mxu0 0.0
    %6102 = vmatpush2.msra.mxu0 %v4813
    %6103 = vmatprep.subr.mxu0 0.0
    %6104 = vmatpush2.msra.mxu0 %v4812
    %6105 = vmatprep.subr.mxu0 0.0
    %6106 = vmatpush2.msra.mxu0 %v4811
    %6107 = vmatprep.subr.mxu0 0.0
    %6108 = vmatpush2.msra.mxu0 %v4810
    %6109 = vmatprep.subr.mxu0 0.0
    %6110 = vmatpush2.msra.mxu0 %v4809
    %6111 = vmatprep.subr.mxu0 0.0
    %6112 = vmatpush2.msra.mxu0 %v4808
    %6113 = vmatprep.subr.mxu0 0.0
    %6114 = vmatpush2.msra.mxu0 %v4807
    %6115 = vmatprep.subr.mxu0 0.0
    %6116 = vmatpush2.msra.mxu0 %v4806
    %6117 = vmatprep.subr.mxu0 0.0
    %6118 = vmatpush2.msra.mxu0 %v4805
    %6119 = vmatprep.subr.mxu0 0.0
    %6120 = vmatpush2.msra.mxu0 %v4804
    %6121 = vmatprep.mubr.f32.mxu0 %v5989
    %6122 = vmatmul.mubr.f32.gmra.mxu0 %v5973
    %v6123 = vpop.f32.mrf.mxu0
    %v6124 = vadd.f32 0.0, %v6123
    %v6125 = vpop.f32.mrf.mxu0
    %6126 = vmatprep.mubr.f32.mxu0 %v5990
    %6127 = vmatmul.mubr.f32.gmra.mxu0 %v5974
    %v6128 = vpop.f32.mrf.mxu0
    %v6129 = vadd.f32 0.0, %v6128
    %v6130 = vpop.f32.mrf.mxu0
    %6131 = vmatprep.mubr.f32.mxu0 %v5991
    %6132 = vmatmul.mubr.f32.gmra.mxu0 %v5975
    %v6133 = vpop.f32.mrf.mxu0
    %v6134 = vadd.f32 0.0, %v6133
    %v6135 = vpop.f32.mrf.mxu0
    %6136 = vmatprep.mubr.f32.mxu0 %v5992
    %6137 = vmatmul.mubr.f32.gmra.mxu0 %v5976
    %v6138 = vpop.f32.mrf.mxu0
    %v6139 = vadd.f32 0.0, %v6138
    %v6140 = vpop.f32.mrf.mxu0
    %6141 = vmatprep.mubr.f32.mxu0 %v5993
    %6142 = vmatmul.mubr.f32.gmra.mxu0 %v5977
    %v6143 = vpop.f32.mrf.mxu0
    %v6144 = vadd.f32 0.0, %v6143
    %v6145 = vpop.f32.mrf.mxu0
    %6146 = vmatprep.mubr.f32.mxu0 %v5994
    %6147 = vmatmul.mubr.f32.gmra.mxu0 %v5978
    %v6148 = vpop.f32.mrf.mxu0
    %v6149 = vadd.f32 0.0, %v6148
    %v6150 = vpop.f32.mrf.mxu0
    %6151 = vmatprep.mubr.f32.mxu0 %v5995
    %6152 = vmatmul.mubr.f32.gmra.mxu0 %v5979
    %v6153 = vpop.f32.mrf.mxu0
    %v6154 = vadd.f32 0.0, %v6153
    %v6155 = vpop.f32.mrf.mxu0
    %6156 = vmatprep.mubr.f32.mxu0 %v5996
    %6157 = vmatmul.mubr.f32.gmra.mxu0 %v5980
    %v6158 = vpop.f32.mrf.mxu0
    %v6159 = vadd.f32 0.0, %v6158
    %v6160 = vpop.f32.mrf.mxu0
    %6161 = vmatprep.mubr.f32.mxu0 %v5997
    %6162 = vmatmul.mubr.f32.gmra.mxu0 %v5981
    %v6163 = vpop.f32.mrf.mxu0
    %v6164 = vadd.f32 0.0, %v6163
    %v6165 = vpop.f32.mrf.mxu0
    %6166 = vmatprep.mubr.f32.mxu0 %v5998
    %6167 = vmatmul.mubr.f32.gmra.mxu0 %v5982
    %v6168 = vpop.f32.mrf.mxu0
    %v6169 = vadd.f32 0.0, %v6168
    %v6170 = vpop.f32.mrf.mxu0
    %6171 = vmatprep.mubr.f32.mxu0 %v5999
    %6172 = vmatmul.mubr.f32.gmra.mxu0 %v5983
    %v6173 = vpop.f32.mrf.mxu0
    %v6174 = vadd.f32 0.0, %v6173
    %v6175 = vpop.f32.mrf.mxu0
    %6176 = vmatprep.mubr.f32.mxu0 %v6000
    %6177 = vmatmul.mubr.f32.gmra.mxu0 %v5984
    %v6178 = vpop.f32.mrf.mxu0
    %v6179 = vadd.f32 0.0, %v6178
    %v6180 = vpop.f32.mrf.mxu0
    %6181 = vmatprep.mubr.f32.mxu0 %v6001
    %6182 = vmatmul.mubr.f32.gmra.mxu0 %v5985
    %v6183 = vpop.f32.mrf.mxu0
    %v6184 = vadd.f32 0.0, %v6183
    %v6185 = vpop.f32.mrf.mxu0
    %6186 = vmatprep.mubr.f32.mxu0 %v6002
    %6187 = vmatmul.mubr.f32.gmra.mxu0 %v5986
    %v6188 = vpop.f32.mrf.mxu0
    %v6189 = vadd.f32 0.0, %v6188
    %v6190 = vpop.f32.mrf.mxu0
    %6191 = vmatprep.mubr.f32.mxu0 %v6003
    %6192 = vmatmul.mubr.f32.gmra.mxu0 %v5987
    %v6193 = vpop.f32.mrf.mxu0
    %v6194 = vadd.f32 0.0, %v6193
    %v6195 = vpop.f32.mrf.mxu0
    %6196 = vmatprep.mubr.f32.mxu0 %v6004
    %6197 = vmatmul.mubr.f32.gmra.mxu0 %v5988
    %v6198 = vpop.f32.mrf.mxu0
    %v6199 = vadd.f32 0.0, %v6198
    %v6200 = vpop.f32.mrf.mxu0
    %6201 = vdwg.mxu0
    %6202 = vmatprep.subr.mxu0 0.0
    %6203 = vmatpush1.msra.mxu0 %v4835
    %6204 = vmatprep.subr.mxu0 0.0
    %6205 = vmatpush1.msra.mxu0 %v4834
    %6206 = vmatprep.subr.mxu0 0.0
    %6207 = vmatpush1.msra.mxu0 %v4833
    %6208 = vmatprep.subr.mxu0 0.0
    %6209 = vmatpush1.msra.mxu0 %v4832
    %6210 = vmatprep.subr.mxu0 0.0
    %6211 = vmatpush1.msra.mxu0 %v4831
    %6212 = vmatprep.subr.mxu0 0.0
    %6213 = vmatpush1.msra.mxu0 %v4830
    %6214 = vmatprep.subr.mxu0 0.0
    %6215 = vmatpush1.msra.mxu0 %v4829
    %6216 = vmatprep.subr.mxu0 0.0
    %6217 = vmatpush1.msra.mxu0 %v4828
    %6218 = vmatprep.subr.mxu0 0.0
    %6219 = vmatpush1.msra.mxu0 %v4827
    %6220 = vmatprep.subr.mxu0 0.0
    %6221 = vmatpush1.msra.mxu0 %v4826
    %6222 = vmatprep.subr.mxu0 0.0
    %6223 = vmatpush1.msra.mxu0 %v4825
    %6224 = vmatprep.subr.mxu0 0.0
    %6225 = vmatpush1.msra.mxu0 %v4824
    %6226 = vmatprep.subr.mxu0 0.0
    %6227 = vmatpush1.msra.mxu0 %v4823
    %6228 = vmatprep.subr.mxu0 0.0
    %6229 = vmatpush1.msra.mxu0 %v4822
    %6230 = vmatprep.subr.mxu0 0.0
    %6231 = vmatpush1.msra.mxu0 %v4821
    %6232 = vmatprep.subr.mxu0 0.0
    %6233 = vmatpush1.msra.mxu0 %v4820
    %6234 = vmatprep.subr.mxu0 0.0
    %6235 = vmatpush2.msra.mxu0 %v4851
    %6236 = vmatprep.subr.mxu0 0.0
    %6237 = vmatpush2.msra.mxu0 %v4850
    %6238 = vmatprep.subr.mxu0 0.0
    %6239 = vmatpush2.msra.mxu0 %v4849
    %6240 = vmatprep.subr.mxu0 0.0
    %6241 = vmatpush2.msra.mxu0 %v4848
    %6242 = vmatprep.subr.mxu0 0.0
    %6243 = vmatpush2.msra.mxu0 %v4847
    %6244 = vmatprep.subr.mxu0 0.0
    %6245 = vmatpush2.msra.mxu0 %v4846
    %6246 = vmatprep.subr.mxu0 0.0
    %6247 = vmatpush2.msra.mxu0 %v4845
    %6248 = vmatprep.subr.mxu0 0.0
    %6249 = vmatpush2.msra.mxu0 %v4844
    %6250 = vmatprep.subr.mxu0 0.0
    %6251 = vmatpush2.msra.mxu0 %v4843
    %6252 = vmatprep.subr.mxu0 0.0
    %6253 = vmatpush2.msra.mxu0 %v4842
    %6254 = vmatprep.subr.mxu0 0.0
    %6255 = vmatpush2.msra.mxu0 %v4841
    %6256 = vmatprep.subr.mxu0 0.0
    %6257 = vmatpush2.msra.mxu0 %v4840
    %6258 = vmatprep.subr.mxu0 0.0
    %6259 = vmatpush2.msra.mxu0 %v4839
    %6260 = vmatprep.subr.mxu0 0.0
    %6261 = vmatpush2.msra.mxu0 %v4838
    %6262 = vmatprep.subr.mxu0 0.0
    %6263 = vmatpush2.msra.mxu0 %v4837
    %6264 = vmatprep.subr.mxu0 0.0
    %6265 = vmatpush2.msra.mxu0 %v4836
    %6266 = vmatprep.mubr.f32.mxu0 %v5977
    %6267 = vmatmul.mubr.f32.gmra.mxu0 %v6005
    %v6268 = vpop.f32.mrf.mxu0
    %v6269 = vadd.f32 %v6124, %v6268
    %v6270 = vpop.f32.mrf.mxu0
    %6271 = vmatprep.mubr.f32.mxu0 %v5978
    %6272 = vmatmul.mubr.f32.gmra.mxu0 %v6006
    %v6273 = vpop.f32.mrf.mxu0
    %v6274 = vadd.f32 %v6129, %v6273
    %v6275 = vpop.f32.mrf.mxu0
    %6276 = vmatprep.mubr.f32.mxu0 %v5979
    %6277 = vmatmul.mubr.f32.gmra.mxu0 %v6007
    %v6278 = vpop.f32.mrf.mxu0
    %v6279 = vadd.f32 %v6134, %v6278
    %v6280 = vpop.f32.mrf.mxu0
    %6281 = vmatprep.mubr.f32.mxu0 %v5980
    %6282 = vmatmul.mubr.f32.gmra.mxu0 %v6008
    %v6283 = vpop.f32.mrf.mxu0
    %v6284 = vadd.f32 %v6139, %v6283
    %v6285 = vpop.f32.mrf.mxu0
    %6286 = vmatprep.mubr.f32.mxu0 %v5981
    %6287 = vmatmul.mubr.f32.gmra.mxu0 %v6009
    %v6288 = vpop.f32.mrf.mxu0
    %v6289 = vadd.f32 %v6144, %v6288
    %v6290 = vpop.f32.mrf.mxu0
    %6291 = vmatprep.mubr.f32.mxu0 %v5982
    %6292 = vmatmul.mubr.f32.gmra.mxu0 %v6010
    %v6293 = vpop.f32.mrf.mxu0
    %v6294 = vadd.f32 %v6149, %v6293
    %v6295 = vpop.f32.mrf.mxu0
    %6296 = vmatprep.mubr.f32.mxu0 %v5983
    %6297 = vmatmul.mubr.f32.gmra.mxu0 %v6011
    %v6298 = vpop.f32.mrf.mxu0
    %v6299 = vadd.f32 %v6154, %v6298
    %v6300 = vpop.f32.mrf.mxu0
    %6301 = vmatprep.mubr.f32.mxu0 %v5984
    %6302 = vmatmul.mubr.f32.gmra.mxu0 %v6012
    %v6303 = vpop.f32.mrf.mxu0
    %v6304 = vadd.f32 %v6159, %v6303
    %v6305 = vpop.f32.mrf.mxu0
    %6306 = vmatprep.mubr.f32.mxu0 %v5985
    %6307 = vmatmul.mubr.f32.gmra.mxu0 %v6013
    %v6308 = vpop.f32.mrf.mxu0
    %v6309 = vadd.f32 %v6164, %v6308
    %v6310 = vpop.f32.mrf.mxu0
    %6311 = vmatprep.mubr.f32.mxu0 %v5986
    %6312 = vmatmul.mubr.f32.gmra.mxu0 %v6014
    %v6313 = vpop.f32.mrf.mxu0
    %v6314 = vadd.f32 %v6169, %v6313
    %v6315 = vpop.f32.mrf.mxu0
    %6316 = vmatprep.mubr.f32.mxu0 %v5987
    %6317 = vmatmul.mubr.f32.gmra.mxu0 %v6015
    %v6318 = vpop.f32.mrf.mxu0
    %v6319 = vadd.f32 %v6174, %v6318
    %v6320 = vpop.f32.mrf.mxu0
    %6321 = vmatprep.mubr.f32.mxu0 %v5988
    %6322 = vmatmul.mubr.f32.gmra.mxu0 %v6016
    %v6323 = vpop.f32.mrf.mxu0
    %v6324 = vadd.f32 %v6179, %v6323
    %v6325 = vpop.f32.mrf.mxu0
    %6326 = vmatprep.mubr.f32.mxu0 %v6021
    %6327 = vmatmul.mubr.f32.gmra.mxu0 %v6017
    %v6328 = vpop.f32.mrf.mxu0
    %v6329 = vadd.f32 %v6184, %v6328
    %v6330 = vpop.f32.mrf.mxu0
    %6331 = vmatprep.mubr.f32.mxu0 %v6022
    %6332 = vmatmul.mubr.f32.gmra.mxu0 %v6018
    %v6333 = vpop.f32.mrf.mxu0
    %v6334 = vadd.f32 %v6189, %v6333
    %v6335 = vpop.f32.mrf.mxu0
    %6336 = vmatprep.mubr.f32.mxu0 %v6023
    %6337 = vmatmul.mubr.f32.gmra.mxu0 %v6019
    %v6338 = vpop.f32.mrf.mxu0
    %v6339 = vadd.f32 %v6194, %v6338
    %v6340 = vpop.f32.mrf.mxu0
    %6341 = vmatprep.mubr.f32.mxu0 %v6024
    %6342 = vmatmul.mubr.f32.gmra.mxu0 %v6020
    %v6343 = vpop.f32.mrf.mxu0
    %v6344 = vadd.f32 %v6199, %v6343
    %v6345 = vpop.f32.mrf.mxu0
    %6346 = vdwg.mxu0
    %6347 = vmatprep.subr.mxu0 0.0
    %6348 = vmatpush1.msra.mxu0 0.0
    %6349 = vmatprep.subr.mxu0 0.0
    %6350 = vmatpush1.msra.mxu0 0.0
    %6351 = vmatprep.subr.mxu0 0.0
    %6352 = vmatpush1.msra.mxu0 0.0
    %6353 = vmatprep.subr.mxu0 0.0
    %6354 = vmatpush1.msra.mxu0 0.0
    %6355 = vmatprep.subr.mxu0 0.0
    %6356 = vmatpush1.msra.mxu0 0.0
    %6357 = vmatprep.subr.mxu0 0.0
    %6358 = vmatpush1.msra.mxu0 0.0
    %6359 = vmatprep.subr.mxu0 0.0
    %6360 = vmatpush1.msra.mxu0 0.0
    %6361 = vmatprep.subr.mxu0 0.0
    %6362 = vmatpush1.msra.mxu0 0.0
    %6363 = vmatprep.subr.mxu0 0.0
    %6364 = vmatpush1.msra.mxu0 %v4859
    %6365 = vmatprep.subr.mxu0 0.0
    %6366 = vmatpush1.msra.mxu0 %v4858
    %6367 = vmatprep.subr.mxu0 0.0
    %6368 = vmatpush1.msra.mxu0 %v4857
    %6369 = vmatprep.subr.mxu0 0.0
    %6370 = vmatpush1.msra.mxu0 %v4856
    %6371 = vmatprep.subr.mxu0 0.0
    %6372 = vmatpush1.msra.mxu0 %v4855
    %6373 = vmatprep.subr.mxu0 0.0
    %6374 = vmatpush1.msra.mxu0 %v4854
    %6375 = vmatprep.subr.mxu0 0.0
    %6376 = vmatpush1.msra.mxu0 %v4853
    %6377 = vmatprep.subr.mxu0 0.0
    %6378 = vmatpush1.msra.mxu0 %v4852
    %6379 = vmatprep.subr.mxu0 0.0
    %6380 = vmatpush2.msra.mxu0 0.0
    %6381 = vmatprep.subr.mxu0 0.0
    %6382 = vmatpush2.msra.mxu0 0.0
    %6383 = vmatprep.subr.mxu0 0.0
    %6384 = vmatpush2.msra.mxu0 0.0
    %6385 = vmatprep.subr.mxu0 0.0
    %6386 = vmatpush2.msra.mxu0 0.0
    %6387 = vmatprep.subr.mxu0 0.0
    %6388 = vmatpush2.msra.mxu0 0.0
    %6389 = vmatprep.subr.mxu0 0.0
    %6390 = vmatpush2.msra.mxu0 0.0
    %6391 = vmatprep.subr.mxu0 0.0
    %6392 = vmatpush2.msra.mxu0 0.0
    %6393 = vmatprep.subr.mxu0 0.0
    %6394 = vmatpush2.msra.mxu0 0.0
    %6395 = vmatprep.subr.mxu0 0.0
    %6396 = vmatpush2.msra.mxu0 0.0
    %6397 = vmatprep.subr.mxu0 0.0
    %6398 = vmatpush2.msra.mxu0 0.0
    %6399 = vmatprep.subr.mxu0 0.0
    %6400 = vmatpush2.msra.mxu0 0.0
    %6401 = vmatprep.subr.mxu0 0.0
    %6402 = vmatpush2.msra.mxu0 0.0
    %6403 = vmatprep.subr.mxu0 0.0
    %6404 = vmatpush2.msra.mxu0 0.0
    %6405 = vmatprep.subr.mxu0 0.0
    %6406 = vmatpush2.msra.mxu0 0.0
    %6407 = vmatprep.subr.mxu0 0.0
    %6408 = vmatpush2.msra.mxu0 0.0
    %6409 = vmatprep.subr.mxu0 0.0
    %6410 = vmatpush2.msra.mxu0 0.0
    %6411 = vmatprep.mubr.f32.mxu0 0.0
    %6412 = vmatmul.mubr.f32.gmra.mxu0 %v6025
    %v6413 = vpop.f32.mrf.mxu0
    %v6414 = vadd.f32 %v6269, %v6413
    %v6415 = vpop.f32.mrf.mxu0
    %6416 = vmatprep.mubr.f32.mxu0 0.0
    %6417 = vmatmul.mubr.f32.gmra.mxu0 %v6027
    %v6418 = vpop.f32.mrf.mxu0
    %v6419 = vadd.f32 %v6274, %v6418
    %v6420 = vpop.f32.mrf.mxu0
    %6421 = vmatprep.mubr.f32.mxu0 0.0
    %6422 = vmatmul.mubr.f32.gmra.mxu0 %v6029
    %v6423 = vpop.f32.mrf.mxu0
    %v6424 = vadd.f32 %v6279, %v6423
    %v6425 = vpop.f32.mrf.mxu0
    %6426 = vmatprep.mubr.f32.mxu0 0.0
    %6427 = vmatmul.mubr.f32.gmra.mxu0 %v6031
    %v6428 = vpop.f32.mrf.mxu0
    %v6429 = vadd.f32 %v6284, %v6428
    %v6430 = vpop.f32.mrf.mxu0
    %6431 = vmatprep.mubr.f32.mxu0 0.0
    %6432 = vmatmul.mubr.f32.gmra.mxu0 %v6033
    %v6433 = vpop.f32.mrf.mxu0
    %v6434 = vadd.f32 %v6289, %v6433
    %v6435 = vpop.f32.mrf.mxu0
    %6436 = vmatprep.mubr.f32.mxu0 0.0
    %6437 = vmatmul.mubr.f32.gmra.mxu0 %v6035
    %v6438 = vpop.f32.mrf.mxu0
    %v6439 = vadd.f32 %v6294, %v6438
    %v6440 = vpop.f32.mrf.mxu0
    %6441 = vmatprep.mubr.f32.mxu0 0.0
    %6442 = vmatmul.mubr.f32.gmra.mxu0 %v6037
    %v6443 = vpop.f32.mrf.mxu0
    %v6444 = vadd.f32 %v6299, %v6443
    %v6445 = vpop.f32.mrf.mxu0
    %6446 = vmatprep.mubr.f32.mxu0 0.0
    %6447 = vmatmul.mubr.f32.gmra.mxu0 %v6039
    %v6448 = vpop.f32.mrf.mxu0
    %v6449 = vadd.f32 %v6304, %v6448
    %v6450 = vpop.f32.mrf.mxu0
    %6451 = vmatprep.mubr.f32.mxu0 0.0
    %6452 = vmatmul.mubr.f32.gmra.mxu0 %v6041
    %v6453 = vpop.f32.mrf.mxu0
    %v6454 = vadd.f32 %v6309, %v6453
    %v6455 = vpop.f32.mrf.mxu0
    %6456 = vmatprep.mubr.f32.mxu0 0.0
    %6457 = vmatmul.mubr.f32.gmra.mxu0 %v6043
    %v6458 = vpop.f32.mrf.mxu0
    %v6459 = vadd.f32 %v6314, %v6458
    %v6460 = vpop.f32.mrf.mxu0
    %6461 = vmatprep.mubr.f32.mxu0 0.0
    %6462 = vmatmul.mubr.f32.gmra.mxu0 %v6045
    %v6463 = vpop.f32.mrf.mxu0
    %v6464 = vadd.f32 %v6319, %v6463
    %v6465 = vpop.f32.mrf.mxu0
    %6466 = vmatprep.mubr.f32.mxu0 0.0
    %6467 = vmatmul.mubr.f32.gmra.mxu0 %v6047
    %v6468 = vpop.f32.mrf.mxu0
    %v6469 = vadd.f32 %v6324, %v6468
    %v6470 = vpop.f32.mrf.mxu0
    %6471 = vmatprep.mubr.f32.mxu0 0.0
    %6472 = vmatmul.mubr.f32.gmra.mxu0 %v6049
    %v6473 = vpop.f32.mrf.mxu0
    %v6474 = vadd.f32 %v6329, %v6473
    %v6475 = vpop.f32.mrf.mxu0
    %6476 = vmatprep.mubr.f32.mxu0 0.0
    %6477 = vmatmul.mubr.f32.gmra.mxu0 %v6051
    %v6478 = vpop.f32.mrf.mxu0
    %v6479 = vadd.f32 %v6334, %v6478
    %v6480 = vpop.f32.mrf.mxu0
    %6481 = vmatprep.mubr.f32.mxu0 0.0
    %6482 = vmatmul.mubr.f32.gmra.mxu0 %v6053
    %v6483 = vpop.f32.mrf.mxu0
    %v6484 = vadd.f32 %v6339, %v6483
    %v6485 = vpop.f32.mrf.mxu0
    %6486 = vmatprep.mubr.f32.mxu0 0.0
    %6487 = vmatmul.mubr.f32.gmra.mxu0 %v6055
    %v6488 = vpop.f32.mrf.mxu0
    %v6489 = vadd.f32 %v6344, %v6488
    %v6490 = vpop.f32.mrf.mxu0
    %6491 = vdwg.mxu0
    %v6492 = vsel %vm5568, %v6414, 0.0
    %v6493 = vsel %vm5569, %v6419, 0.0
    %v6494 = vsel %vm5570, %v6424, 0.0
    %v6495 = vsel %vm5571, %v6429, 0.0
    %v6496 = vsel %vm5572, %v6434, 0.0
    %v6497 = vsel %vm5573, %v6439, 0.0
    %v6498 = vsel %vm5574, %v6444, 0.0
    %v6499 = vsel %vm5575, %v6449, 0.0
    %v6500 = vsel %vm5576, %v6454, 0.0
    %v6501 = vsel %vm5577, %v6459, 0.0
    %v6502 = vsel %vm5578, %v6464, 0.0
    %v6503 = vsel %vm5579, %v6469, 0.0
    %v6504 = vsel %vm5580, %v6474, 0.0
    %v6505 = vsel %vm5581, %v6479, 0.0
    %v6506 = vsel %vm5582, %v6484, 0.0
    %v6507 = vsel %vm5583, %v6489, 0.0
    %v6508 = vadd.f32 %v6492, %v6493
    %v6509 = vadd.f32 %v6508, %v6494
    %v6510 = vadd.f32 %v6509, %v6495
    %v6511 = vadd.f32 %v6510, %v6496
    %v6512 = vadd.f32 %v6511, %v6497
    %v6513 = vadd.f32 %v6512, %v6498
    %v6514 = vadd.f32 %v6513, %v6499
    %v6515 = vadd.f32 %v6514, %v6500
    %v6516 = vadd.f32 %v6515, %v6501
    %v6517 = vadd.f32 %v6516, %v6502
    %v6518 = vadd.f32 %v6517, %v6503
    %v6519 = vadd.f32 %v6518, %v6504
    %v6520 = vadd.f32 %v6519, %v6505
    %v6521 = vadd.f32 %v6520, %v6506
    %v6522 = vadd.f32 %v6521, %v6507
    %v6523 = vrot.slane %v6522, 4
    %v6524 = vadd.f32 %v6522, %v6523
    %v6525 = vrot.slane %v6524, 2
    %v6526 = vadd.f32 %v6524, %v6525
    %v6527 = vrot.slane %v6526, 1
    %v6528 = vadd.f32 %v6526, %v6527
    %v6529 = vmul.f32 %v6492, %v6492
    %v6530 = vmul.f32 %v6493, %v6493
    %v6531 = vmul.f32 %v6494, %v6494
    %v6532 = vmul.f32 %v6495, %v6495
    %v6533 = vmul.f32 %v6496, %v6496
    %v6534 = vmul.f32 %v6497, %v6497
    %v6535 = vmul.f32 %v6498, %v6498
    %v6536 = vmul.f32 %v6499, %v6499
    %v6537 = vmul.f32 %v6500, %v6500
    %v6538 = vmul.f32 %v6501, %v6501
    %v6539 = vmul.f32 %v6502, %v6502
    %v6540 = vmul.f32 %v6503, %v6503
    %v6541 = vmul.f32 %v6504, %v6504
    %v6542 = vmul.f32 %v6505, %v6505
    %v6543 = vmul.f32 %v6506, %v6506
    %v6544 = vmul.f32 %v6507, %v6507
    %v6545 = vadd.f32 %v6529, %v6530
    %v6546 = vadd.f32 %v6545, %v6531
    %v6547 = vadd.f32 %v6546, %v6532
    %v6548 = vadd.f32 %v6547, %v6533
    %v6549 = vadd.f32 %v6548, %v6534
    %v6550 = vadd.f32 %v6549, %v6535
    %v6551 = vadd.f32 %v6550, %v6536
    %v6552 = vadd.f32 %v6551, %v6537
    %v6553 = vadd.f32 %v6552, %v6538
    %v6554 = vadd.f32 %v6553, %v6539
    %v6555 = vadd.f32 %v6554, %v6540
    %v6556 = vadd.f32 %v6555, %v6541
    %v6557 = vadd.f32 %v6556, %v6542
    %v6558 = vadd.f32 %v6557, %v6543
    %v6559 = vadd.f32 %v6558, %v6544
    %v6560 = vrot.slane %v6559, 4
    %v6561 = vadd.f32 %v6559, %v6560
    %v6562 = vrot.slane %v6561, 2
    %v6563 = vadd.f32 %v6561, %v6562
    %v6564 = vrot.slane %v6563, 1
    %v6565 = vadd.f32 %v6563, %v6564
    %v6566 = vadd.f32 %v5658, %v6528
    %v6567 = vadd.f32 %v5659, %v6565
    %v6568 = vrcp.pop 128.0
    %v6569 = vmul.f32 %v6566, %v6568
    %v6570 = vmul.f32 %v6567, %v6568
    %v6571 = vmul.f32 %v6569, %v6569
    %v6572 = vsub.f32 %v6570, %v6571
    %v6573 = vld [vmem:[#allocation12] sm:$0x1]
    %v6574 = vadd.f32 %v6572, 1e-05
    %v6575 = vrsqrt.pop %v6574
    %v6576 = vmul.f32 %v6573, %v6575
    %v6577 = vld [vmem:[#allocation13] sm:$0x1]
    %v6578 = vmul.f32 %v6569, %v6576
    %v6579 = vsub.f32 %v6577, %v6578
    %v6581 = vlaneseq
    %v6582 = vshrl.u32 %v6581, 7
    %v6583 = vsub.s32 0, %v6582
    %v6584 = vrot.slane %v6576, %v6583
    %v6586 = vmul.f32 %v5249, %v6584
    %v6587 = vmul.f32 %v5259, %v6584
    %v6588 = vmul.f32 %v5269, %v6584
    %v6589 = vmul.f32 %v5279, %v6584
    %v6590 = vmul.f32 %v5289, %v6584
    %v6591 = vmul.f32 %v5299, %v6584
    %v6592 = vmul.f32 %v5309, %v6584
    %v6593 = vmul.f32 %v5319, %v6584
    %v6595 = vlaneseq
    %v6596 = vshrl.u32 %v6595, 7
    %v6597 = vsub.s32 0, %v6596
    %v6598 = vrot.slane %v6579, %v6597
    %v6600 = vadd.f32 %v6586, %v6598
    %v6601 = vadd.f32 %v6587, %v6598
    %v6602 = vadd.f32 %v6588, %v6598
    %v6603 = vadd.f32 %v6589, %v6598
    %v6604 = vadd.f32 %v6590, %v6598
    %v6605 = vadd.f32 %v6591, %v6598
    %v6606 = vadd.f32 %v6592, %v6598
    %v6607 = vadd.f32 %v6593, %v6598
    %v6608 = vmax.f32 %v6600, 0.0
    %v6609 = vmax.f32 %v6601, 0.0
    %v6610 = vmax.f32 %v6602, 0.0
    %v6611 = vmax.f32 %v6603, 0.0
    %v6612 = vmax.f32 %v6604, 0.0
    %v6613 = vmax.f32 %v6605, 0.0
    %v6614 = vmax.f32 %v6606, 0.0
    %v6615 = vmax.f32 %v6607, 0.0
    %v6616 = vmul.f32 %v6414, %v6584
    %v6617 = vmul.f32 %v6424, %v6584
    %v6618 = vmul.f32 %v6434, %v6584
    %v6619 = vmul.f32 %v6444, %v6584
    %v6620 = vmul.f32 %v6454, %v6584
    %v6621 = vmul.f32 %v6464, %v6584
    %v6622 = vmul.f32 %v6474, %v6584
    %v6623 = vmul.f32 %v6484, %v6584
    %v6624 = vadd.f32 %v6616, %v6598
    %v6625 = vadd.f32 %v6617, %v6598
    %v6626 = vadd.f32 %v6618, %v6598
    %v6627 = vadd.f32 %v6619, %v6598
    %v6628 = vadd.f32 %v6620, %v6598
    %v6629 = vadd.f32 %v6621, %v6598
    %v6630 = vadd.f32 %v6622, %v6598
    %v6631 = vadd.f32 %v6623, %v6598
    %v6632 = vmax.f32 %v6624, 0.0
    %v6633 = vmax.f32 %v6625, 0.0
    %v6634 = vmax.f32 %v6626, 0.0
    %v6635 = vmax.f32 %v6627, 0.0
    %v6636 = vmax.f32 %v6628, 0.0
    %v6637 = vmax.f32 %v6629, 0.0
    %v6638 = vmax.f32 %v6630, 0.0
    %v6639 = vmax.f32 %v6631, 0.0
    %6640 = vst [vmem:[#allocation4] sm:$0xff] %v6608
    %6641 = vst [vmem:[#allocation4 + $0x8] sm:$0xff] %v6609
    %6642 = vst [vmem:[#allocation4 + $0x10] sm:$0xff] %v6610
    %6643 = vst [vmem:[#allocation4 + $0x18] sm:$0xff] %v6611
    %6644 = vst [vmem:[#allocation4 + $0x20] sm:$0xff] %v6612
    %6645 = vst [vmem:[#allocation4 + $0x28] sm:$0xff] %v6613
    %6646 = vst [vmem:[#allocation4 + $0x30] sm:$0xff] %v6614
    %6647 = vst [vmem:[#allocation4 + $0x38] sm:$0xff] %v6615
    %s6648 = scalar_lea.vmem [#allocation4], 72
    %6649 = vst [vmem:[%s6648] sm:$0xff] %v6632
    %6650 = vst [vmem:[%s6648 + $0x8] sm:$0xff] %v6633
    %6651 = vst [vmem:[%s6648 + $0x10] sm:$0xff] %v6634
    %6652 = vst [vmem:[%s6648 + $0x18] sm:$0xff] %v6635
    %6653 = vst [vmem:[%s6648 + $0x20] sm:$0xff] %v6636
    %6654 = vst [vmem:[%s6648 + $0x28] sm:$0xff] %v6637
    %6655 = vst [vmem:[%s6648 + $0x30] sm:$0xff] %v6638
    %6656 = vst [vmem:[%s6648 + $0x38] sm:$0xff] %v6639
    %v6657 = vld [vmem:[#allocation4] sm:$0xff]
    %v6658 = vld [vmem:[#allocation4 + $0x8] sm:$0xff]
    %v6659 = vld [vmem:[#allocation4 + $0x10] sm:$0xff]
    %v6660 = vld [vmem:[#allocation4 + $0x18] sm:$0xff]
    %v6661 = vld [vmem:[#allocation4 + $0x20] sm:$0xff]
    %v6662 = vld [vmem:[#allocation4 + $0x28] sm:$0xff]
    %v6663 = vld [vmem:[#allocation4 + $0x30] sm:$0xff]
    %v6664 = vld [vmem:[#allocation4 + $0x38] sm:$0xff]
    %v6665 = vld [vmem:[#allocation4 + $0x40] sm:$0xff]
    %v6673 = vrot.slane %v6657, 1
    %v6674 = vrot.slane %v6658, 1
    %v6675 = vsel %vm4460, %v6673, %v6674
    %v6676 = vrot.slane %v6659, 1
    %v6677 = vsel %vm4460, %v6674, %v6676
    %v6678 = vrot.slane %v6660, 1
    %v6679 = vsel %vm4460, %v6676, %v6678
    %v6680 = vrot.slane %v6661, 1
    %v6681 = vsel %vm4460, %v6678, %v6680
    %v6682 = vrot.slane %v6662, 1
    %v6683 = vsel %vm4460, %v6680, %v6682
    %v6684 = vrot.slane %v6663, 1
    %v6685 = vsel %vm4460, %v6682, %v6684
    %v6692 = vrot.slane %v6657, 2
    %v6693 = vrot.slane %v6658, 2
    %v6694 = vsel %vm4542, %v6692, %v6693
    %v6695 = vrot.slane %v6659, 2
    %v6696 = vsel %vm4542, %v6693, %v6695
    %v6697 = vrot.slane %v6660, 2
    %v6698 = vsel %vm4542, %v6695, %v6697
    %v6699 = vrot.slane %v6661, 2
    %v6700 = vsel %vm4542, %v6697, %v6699
    %v6701 = vrot.slane %v6662, 2
    %v6702 = vsel %vm4542, %v6699, %v6701
    %v6703 = vrot.slane %v6663, 2
    %v6704 = vsel %vm4542, %v6701, %v6703
    %v6712 = vrot.slane %v6664, 1
    %v6713 = vsel %vm4460, %v6684, %v6712
    %v6715 = vrot.slane %v6664, 2
    %v6716 = vsel %vm4542, %v6703, %v6715
    %v6719 = vrot.slane %v6665, 1
    %v6720 = vsel %vm4460, %v6712, %v6719
    %v6722 = vrot.slane %v6665, 2
    %v6723 = vsel %vm4542, %v6715, %v6722
    %v6725 = vld [vmem:[%s3] sm:$0xff]
    %v6726 = vld [vmem:[%s3 + $0x8] sm:$0xff]
    %v6727 = vld [vmem:[%s3 + $0x10] sm:$0xff]
    %v6728 = vld [vmem:[%s3 + $0x18] sm:$0xff]
    %v6729 = vld [vmem:[%s3 + $0x20] sm:$0xff]
    %v6730 = vld [vmem:[%s3 + $0x28] sm:$0xff]
    %v6731 = vld [vmem:[%s3 + $0x30] sm:$0xff]
    %v6732 = vld [vmem:[%s3 + $0x38] sm:$0xff]
    %v6733 = vld [vmem:[%s3 + $0x40] sm:$0xff]
    %v6734 = vld [vmem:[%s3 + $0x48] sm:$0xff]
    %v6735 = vld [vmem:[%s3 + $0x50] sm:$0xff]
    %v6736 = vld [vmem:[%s3 + $0x58] sm:$0xff]
    %v6737 = vld [vmem:[%s3 + $0x60] sm:$0xff]
    %v6738 = vld [vmem:[%s3 + $0x68] sm:$0xff]
    %v6739 = vld [vmem:[%s3 + $0x70] sm:$0xff]
    %v6740 = vld [vmem:[%s3 + $0x78] sm:$0xff]
    %v6741 = vld [vmem:[%s3 + $0x80] sm:$0xff]
    %v6742 = vld [vmem:[%s3 + $0x88] sm:$0xff]
    %v6743 = vld [vmem:[%s3 + $0x90] sm:$0xff]
    %v6744 = vld [vmem:[%s3 + $0x98] sm:$0xff]
    %v6745 = vld [vmem:[%s3 + $0xa0] sm:$0xff]
    %v6746 = vld [vmem:[%s3 + $0xa8] sm:$0xff]
    %v6747 = vld [vmem:[%s3 + $0xb0] sm:$0xff]
    %v6748 = vld [vmem:[%s3 + $0xb8] sm:$0xff]
    %v6749 = vld [vmem:[%s3 + $0xc0] sm:$0xff]
    %v6750 = vld [vmem:[%s3 + $0xc8] sm:$0xff]
    %v6751 = vld [vmem:[%s3 + $0xd0] sm:$0xff]
    %v6752 = vld [vmem:[%s3 + $0xd8] sm:$0xff]
    %v6753 = vld [vmem:[%s3 + $0xe0] sm:$0xff]
    %v6754 = vld [vmem:[%s3 + $0xe8] sm:$0xff]
    %v6755 = vld [vmem:[%s3 + $0xf0] sm:$0xff]
    %v6756 = vld [vmem:[%s3 + $0xf8] sm:$0xff]
    %v6757 = vld [vmem:[%s3 + $0x100] sm:$0xff]
    %v6758 = vld [vmem:[%s3 + $0x108] sm:$0xff]
    %v6759 = vld [vmem:[%s3 + $0x110] sm:$0xff]
    %v6760 = vld [vmem:[%s3 + $0x118] sm:$0xff]
    %v6761 = vld [vmem:[%s3 + $0x120] sm:$0xff]
    %v6762 = vld [vmem:[%s3 + $0x128] sm:$0xff]
    %v6763 = vld [vmem:[%s3 + $0x130] sm:$0xff]
    %v6764 = vld [vmem:[%s3 + $0x138] sm:$0xff]
    %v6765 = vld [vmem:[%s3 + $0x140] sm:$0xff]
    %v6766 = vld [vmem:[%s3 + $0x148] sm:$0xff]
    %v6767 = vld [vmem:[%s3 + $0x150] sm:$0xff]
    %v6768 = vld [vmem:[%s3 + $0x158] sm:$0xff]
    %v6769 = vld [vmem:[%s3 + $0x160] sm:$0xff]
    %v6770 = vld [vmem:[%s3 + $0x168] sm:$0xff]
    %v6771 = vld [vmem:[%s3 + $0x170] sm:$0xff]
    %v6772 = vld [vmem:[%s3 + $0x178] sm:$0xff]
    %v6773 = vld [vmem:[%s3 + $0x180] sm:$0xff]
    %v6774 = vld [vmem:[%s3 + $0x188] sm:$0xff]
    %v6775 = vld [vmem:[%s3 + $0x190] sm:$0xff]
    %v6776 = vld [vmem:[%s3 + $0x198] sm:$0xff]
    %v6777 = vld [vmem:[%s3 + $0x1a0] sm:$0xff]
    %v6778 = vld [vmem:[%s3 + $0x1a8] sm:$0xff]
    %v6779 = vld [vmem:[%s3 + $0x1b0] sm:$0xff]
    %v6780 = vld [vmem:[%s3 + $0x1b8] sm:$0xff]
    %v6781 = vld [vmem:[%s3 + $0x1c0] sm:$0xff]
    %v6782 = vld [vmem:[%s3 + $0x1c8] sm:$0xff]
    %v6783 = vld [vmem:[%s3 + $0x1d0] sm:$0xff]
    %v6784 = vld [vmem:[%s3 + $0x1d8] sm:$0xff]
    %v6785 = vld [vmem:[%s3 + $0x1e0] sm:$0xff]
    %v6786 = vld [vmem:[%s3 + $0x1e8] sm:$0xff]
    %v6787 = vld [vmem:[%s3 + $0x1f0] sm:$0xff]
    %v6788 = vld [vmem:[%s3 + $0x1f8] sm:$0xff]
    %v6789 = vld [vmem:[%s3 + $0x200] sm:$0xff]
    %v6790 = vld [vmem:[%s3 + $0x208] sm:$0xff]
    %v6791 = vld [vmem:[%s3 + $0x210] sm:$0xff]
    %v6792 = vld [vmem:[%s3 + $0x218] sm:$0xff]
    %v6793 = vld [vmem:[%s3 + $0x220] sm:$0xff]
    %v6794 = vld [vmem:[%s3 + $0x228] sm:$0xff]
    %v6795 = vld [vmem:[%s3 + $0x230] sm:$0xff]
    %v6796 = vld [vmem:[%s3 + $0x238] sm:$0xff]
    %v6797 = vld [vmem:[%s3 + $0x240] sm:$0xff]
    %v6798 = vld [vmem:[%s3 + $0x248] sm:$0xff]
    %v6799 = vld [vmem:[%s3 + $0x250] sm:$0xff]
    %v6800 = vld [vmem:[%s3 + $0x258] sm:$0xff]
    %v6801 = vld [vmem:[%s3 + $0x260] sm:$0xff]
    %v6802 = vld [vmem:[%s3 + $0x268] sm:$0xff]
    %v6803 = vld [vmem:[%s3 + $0x270] sm:$0xff]
    %v6804 = vld [vmem:[%s3 + $0x278] sm:$0xff]
    %v6805 = vld [vmem:[%s3 + $0x280] sm:$0xff]
    %v6806 = vld [vmem:[%s3 + $0x288] sm:$0xff]
    %v6807 = vld [vmem:[%s3 + $0x290] sm:$0xff]
    %v6808 = vld [vmem:[%s3 + $0x298] sm:$0xff]
    %v6809 = vld [vmem:[%s3 + $0x2a0] sm:$0xff]
    %v6810 = vld [vmem:[%s3 + $0x2a8] sm:$0xff]
    %v6811 = vld [vmem:[%s3 + $0x2b0] sm:$0xff]
    %v6812 = vld [vmem:[%s3 + $0x2b8] sm:$0xff]
    %v6813 = vld [vmem:[%s3 + $0x2c0] sm:$0xff]
    %v6814 = vld [vmem:[%s3 + $0x2c8] sm:$0xff]
    %v6815 = vld [vmem:[%s3 + $0x2d0] sm:$0xff]
    %v6816 = vld [vmem:[%s3 + $0x2d8] sm:$0xff]
    %v6817 = vld [vmem:[%s3 + $0x2e0] sm:$0xff]
    %v6818 = vld [vmem:[%s3 + $0x2e8] sm:$0xff]
    %v6819 = vld [vmem:[%s3 + $0x2f0] sm:$0xff]
    %v6820 = vld [vmem:[%s3 + $0x2f8] sm:$0xff]
    %v6821 = vld [vmem:[%s3 + $0x300] sm:$0xff]
    %v6822 = vld [vmem:[%s3 + $0x308] sm:$0xff]
    %v6823 = vld [vmem:[%s3 + $0x310] sm:$0xff]
    %v6824 = vld [vmem:[%s3 + $0x318] sm:$0xff]
    %v6825 = vld [vmem:[%s3 + $0x320] sm:$0xff]
    %v6826 = vld [vmem:[%s3 + $0x328] sm:$0xff]
    %v6827 = vld [vmem:[%s3 + $0x330] sm:$0xff]
    %v6828 = vld [vmem:[%s3 + $0x338] sm:$0xff]
    %v6829 = vld [vmem:[%s3 + $0x340] sm:$0xff]
    %v6830 = vld [vmem:[%s3 + $0x348] sm:$0xff]
    %v6831 = vld [vmem:[%s3 + $0x350] sm:$0xff]
    %v6832 = vld [vmem:[%s3 + $0x358] sm:$0xff]
    %v6833 = vld [vmem:[%s3 + $0x360] sm:$0xff]
    %v6834 = vld [vmem:[%s3 + $0x368] sm:$0xff]
    %v6835 = vld [vmem:[%s3 + $0x370] sm:$0xff]
    %v6836 = vld [vmem:[%s3 + $0x378] sm:$0xff]
    %v6837 = vld [vmem:[%s3 + $0x380] sm:$0xff]
    %v6838 = vld [vmem:[%s3 + $0x388] sm:$0xff]
    %v6839 = vld [vmem:[%s3 + $0x390] sm:$0xff]
    %v6840 = vld [vmem:[%s3 + $0x398] sm:$0xff]
    %v6841 = vld [vmem:[%s3 + $0x3a0] sm:$0xff]
    %v6842 = vld [vmem:[%s3 + $0x3a8] sm:$0xff]
    %v6843 = vld [vmem:[%s3 + $0x3b0] sm:$0xff]
    %v6844 = vld [vmem:[%s3 + $0x3b8] sm:$0xff]
    %v6845 = vld [vmem:[%s3 + $0x3c0] sm:$0xff]
    %v6846 = vld [vmem:[%s3 + $0x3c8] sm:$0xff]
    %v6847 = vld [vmem:[%s3 + $0x3d0] sm:$0xff]
    %v6848 = vld [vmem:[%s3 + $0x3d8] sm:$0xff]
    %v6849 = vld [vmem:[%s3 + $0x3e0] sm:$0xff]
    %v6850 = vld [vmem:[%s3 + $0x3e8] sm:$0xff]
    %v6851 = vld [vmem:[%s3 + $0x3f0] sm:$0xff]
    %v6852 = vld [vmem:[%s3 + $0x3f8] sm:$0xff]
    %v6853 = vld [vmem:[%s3 + $0x400] sm:$0xff]
    %v6854 = vld [vmem:[%s3 + $0x408] sm:$0xff]
    %v6855 = vld [vmem:[%s3 + $0x410] sm:$0xff]
    %v6856 = vld [vmem:[%s3 + $0x418] sm:$0xff]
    %v6857 = vld [vmem:[%s3 + $0x420] sm:$0xff]
    %v6858 = vld [vmem:[%s3 + $0x428] sm:$0xff]
    %v6859 = vld [vmem:[%s3 + $0x430] sm:$0xff]
    %v6860 = vld [vmem:[%s3 + $0x438] sm:$0xff]
    %v6861 = vld [vmem:[%s3 + $0x440] sm:$0xff]
    %v6862 = vld [vmem:[%s3 + $0x448] sm:$0xff]
    %v6863 = vld [vmem:[%s3 + $0x450] sm:$0xff]
    %v6864 = vld [vmem:[%s3 + $0x458] sm:$0xff]
    %v6865 = vld [vmem:[%s3 + $0x460] sm:$0xff]
    %v6866 = vld [vmem:[%s3 + $0x468] sm:$0xff]
    %v6867 = vld [vmem:[%s3 + $0x470] sm:$0xff]
    %v6868 = vld [vmem:[%s3 + $0x478] sm:$0xff]
    %6869 = vmatprep.subr.mxu0 0.0
    %6870 = vmatpush1.msra.mxu0 %v6740
    %6871 = vmatprep.subr.mxu0 0.0
    %6872 = vmatpush1.msra.mxu0 %v6739
    %6873 = vmatprep.subr.mxu0 0.0
    %6874 = vmatpush1.msra.mxu0 %v6738
    %6875 = vmatprep.subr.mxu0 0.0
    %6876 = vmatpush1.msra.mxu0 %v6737
    %6877 = vmatprep.subr.mxu0 0.0
    %6878 = vmatpush1.msra.mxu0 %v6736
    %6879 = vmatprep.subr.mxu0 0.0
    %6880 = vmatpush1.msra.mxu0 %v6735
    %6881 = vmatprep.subr.mxu0 0.0
    %6882 = vmatpush1.msra.mxu0 %v6734
    %6883 = vmatprep.subr.mxu0 0.0
    %6884 = vmatpush1.msra.mxu0 %v6733
    %6885 = vmatprep.subr.mxu0 0.0
    %6886 = vmatpush1.msra.mxu0 %v6732
    %6887 = vmatprep.subr.mxu0 0.0
    %6888 = vmatpush1.msra.mxu0 %v6731
    %6889 = vmatprep.subr.mxu0 0.0
    %6890 = vmatpush1.msra.mxu0 %v6730
    %6891 = vmatprep.subr.mxu0 0.0
    %6892 = vmatpush1.msra.mxu0 %v6729
    %6893 = vmatprep.subr.mxu0 0.0
    %6894 = vmatpush1.msra.mxu0 %v6728
    %6895 = vmatprep.subr.mxu0 0.0
    %6896 = vmatpush1.msra.mxu0 %v6727
    %6897 = vmatprep.subr.mxu0 0.0
    %6898 = vmatpush1.msra.mxu0 %v6726
    %6899 = vmatprep.subr.mxu0 0.0
    %6900 = vmatpush1.msra.mxu0 %v6725
    %6901 = vmatprep.subr.mxu0 0.0
    %6902 = vmatpush2.msra.mxu0 %v6756
    %6903 = vmatprep.subr.mxu0 0.0
    %6904 = vmatpush2.msra.mxu0 %v6755
    %6905 = vmatprep.subr.mxu0 0.0
    %6906 = vmatpush2.msra.mxu0 %v6754
    %6907 = vmatprep.subr.mxu0 0.0
    %6908 = vmatpush2.msra.mxu0 %v6753
    %6909 = vmatprep.subr.mxu0 0.0
    %6910 = vmatpush2.msra.mxu0 %v6752
    %6911 = vmatprep.subr.mxu0 0.0
    %6912 = vmatpush2.msra.mxu0 %v6751
    %6913 = vmatprep.subr.mxu0 0.0
    %6914 = vmatpush2.msra.mxu0 %v6750
    %6915 = vmatprep.subr.mxu0 0.0
    %6916 = vmatpush2.msra.mxu0 %v6749
    %6917 = vmatprep.subr.mxu0 0.0
    %6918 = vmatpush2.msra.mxu0 %v6748
    %6919 = vmatprep.subr.mxu0 0.0
    %6920 = vmatpush2.msra.mxu0 %v6747
    %6921 = vmatprep.subr.mxu0 0.0
    %6922 = vmatpush2.msra.mxu0 %v6746
    %6923 = vmatprep.subr.mxu0 0.0
    %6924 = vmatpush2.msra.mxu0 %v6745
    %6925 = vmatprep.subr.mxu0 0.0
    %6926 = vmatpush2.msra.mxu0 %v6744
    %6927 = vmatprep.subr.mxu0 0.0
    %6928 = vmatpush2.msra.mxu0 %v6743
    %6929 = vmatprep.subr.mxu0 0.0
    %6930 = vmatpush2.msra.mxu0 %v6742
    %6931 = vmatprep.subr.mxu0 0.0
    %6932 = vmatpush2.msra.mxu0 %v6741
    %6933 = vmatprep.mubr.f32.mxu0 %v6675
    %6934 = vmatmul.mubr.f32.gmra.mxu0 %v6657
    %v6935 = vpop.f32.mrf.mxu0
    %v6936 = vadd.f32 0.0, %v6935
    %v6937 = vpop.f32.mrf.mxu0
    %6938 = vmatprep.mubr.f32.mxu0 %v6677
    %6939 = vmatmul.mubr.f32.gmra.mxu0 %v6658
    %v6940 = vpop.f32.mrf.mxu0
    %v6941 = vadd.f32 0.0, %v6940
    %v6942 = vpop.f32.mrf.mxu0
    %6943 = vmatprep.mubr.f32.mxu0 %v6679
    %6944 = vmatmul.mubr.f32.gmra.mxu0 %v6659
    %v6945 = vpop.f32.mrf.mxu0
    %v6946 = vadd.f32 0.0, %v6945
    %v6947 = vpop.f32.mrf.mxu0
    %6948 = vmatprep.mubr.f32.mxu0 %v6681
    %6949 = vmatmul.mubr.f32.gmra.mxu0 %v6660
    %v6950 = vpop.f32.mrf.mxu0
    %v6951 = vadd.f32 0.0, %v6950
    %v6952 = vpop.f32.mrf.mxu0
    %6953 = vmatprep.mubr.f32.mxu0 %v6683
    %6954 = vmatmul.mubr.f32.gmra.mxu0 %v6661
    %v6955 = vpop.f32.mrf.mxu0
    %v6956 = vadd.f32 0.0, %v6955
    %v6957 = vpop.f32.mrf.mxu0
    %6958 = vmatprep.mubr.f32.mxu0 %v6685
    %6959 = vmatmul.mubr.f32.gmra.mxu0 %v6662
    %v6960 = vpop.f32.mrf.mxu0
    %v6961 = vadd.f32 0.0, %v6960
    %v6962 = vpop.f32.mrf.mxu0
    %6963 = vdwg.mxu0
    %6964 = vmatprep.subr.mxu0 0.0
    %6965 = vmatpush1.msra.mxu0 %v6772
    %6966 = vmatprep.subr.mxu0 0.0
    %6967 = vmatpush1.msra.mxu0 %v6771
    %6968 = vmatprep.subr.mxu0 0.0
    %6969 = vmatpush1.msra.mxu0 %v6770
    %6970 = vmatprep.subr.mxu0 0.0
    %6971 = vmatpush1.msra.mxu0 %v6769
    %6972 = vmatprep.subr.mxu0 0.0
    %6973 = vmatpush1.msra.mxu0 %v6768
    %6974 = vmatprep.subr.mxu0 0.0
    %6975 = vmatpush1.msra.mxu0 %v6767
    %6976 = vmatprep.subr.mxu0 0.0
    %6977 = vmatpush1.msra.mxu0 %v6766
    %6978 = vmatprep.subr.mxu0 0.0
    %6979 = vmatpush1.msra.mxu0 %v6765
    %6980 = vmatprep.subr.mxu0 0.0
    %6981 = vmatpush1.msra.mxu0 %v6764
    %6982 = vmatprep.subr.mxu0 0.0
    %6983 = vmatpush1.msra.mxu0 %v6763
    %6984 = vmatprep.subr.mxu0 0.0
    %6985 = vmatpush1.msra.mxu0 %v6762
    %6986 = vmatprep.subr.mxu0 0.0
    %6987 = vmatpush1.msra.mxu0 %v6761
    %6988 = vmatprep.subr.mxu0 0.0
    %6989 = vmatpush1.msra.mxu0 %v6760
    %6990 = vmatprep.subr.mxu0 0.0
    %6991 = vmatpush1.msra.mxu0 %v6759
    %6992 = vmatprep.subr.mxu0 0.0
    %6993 = vmatpush1.msra.mxu0 %v6758
    %6994 = vmatprep.subr.mxu0 0.0
    %6995 = vmatpush1.msra.mxu0 %v6757
    %6996 = vmatprep.subr.mxu0 0.0
    %6997 = vmatpush2.msra.mxu0 %v6788
    %6998 = vmatprep.subr.mxu0 0.0
    %6999 = vmatpush2.msra.mxu0 %v6787
    %7000 = vmatprep.subr.mxu0 0.0
    %7001 = vmatpush2.msra.mxu0 %v6786
    %7002 = vmatprep.subr.mxu0 0.0
    %7003 = vmatpush2.msra.mxu0 %v6785
    %7004 = vmatprep.subr.mxu0 0.0
    %7005 = vmatpush2.msra.mxu0 %v6784
    %7006 = vmatprep.subr.mxu0 0.0
    %7007 = vmatpush2.msra.mxu0 %v6783
    %7008 = vmatprep.subr.mxu0 0.0
    %7009 = vmatpush2.msra.mxu0 %v6782
    %7010 = vmatprep.subr.mxu0 0.0
    %7011 = vmatpush2.msra.mxu0 %v6781
    %7012 = vmatprep.subr.mxu0 0.0
    %7013 = vmatpush2.msra.mxu0 %v6780
    %7014 = vmatprep.subr.mxu0 0.0
    %7015 = vmatpush2.msra.mxu0 %v6779
    %7016 = vmatprep.subr.mxu0 0.0
    %7017 = vmatpush2.msra.mxu0 %v6778
    %7018 = vmatprep.subr.mxu0 0.0
    %7019 = vmatpush2.msra.mxu0 %v6777
    %7020 = vmatprep.subr.mxu0 0.0
    %7021 = vmatpush2.msra.mxu0 %v6776
    %7022 = vmatprep.subr.mxu0 0.0
    %7023 = vmatpush2.msra.mxu0 %v6775
    %7024 = vmatprep.subr.mxu0 0.0
    %7025 = vmatpush2.msra.mxu0 %v6774
    %7026 = vmatprep.subr.mxu0 0.0
    %7027 = vmatpush2.msra.mxu0 %v6773
    %7028 = vmatprep.mubr.f32.mxu0 %v6658
    %7029 = vmatmul.mubr.f32.gmra.mxu0 %v6694
    %v7030 = vpop.f32.mrf.mxu0
    %v7031 = vadd.f32 %v6936, %v7030
    %v7032 = vpop.f32.mrf.mxu0
    %7033 = vmatprep.mubr.f32.mxu0 %v6659
    %7034 = vmatmul.mubr.f32.gmra.mxu0 %v6696
    %v7035 = vpop.f32.mrf.mxu0
    %v7036 = vadd.f32 %v6941, %v7035
    %v7037 = vpop.f32.mrf.mxu0
    %7038 = vmatprep.mubr.f32.mxu0 %v6660
    %7039 = vmatmul.mubr.f32.gmra.mxu0 %v6698
    %v7040 = vpop.f32.mrf.mxu0
    %v7041 = vadd.f32 %v6946, %v7040
    %v7042 = vpop.f32.mrf.mxu0
    %7043 = vmatprep.mubr.f32.mxu0 %v6661
    %7044 = vmatmul.mubr.f32.gmra.mxu0 %v6700
    %v7045 = vpop.f32.mrf.mxu0
    %v7046 = vadd.f32 %v6951, %v7045
    %v7047 = vpop.f32.mrf.mxu0
    %7048 = vmatprep.mubr.f32.mxu0 %v6662
    %7049 = vmatmul.mubr.f32.gmra.mxu0 %v6702
    %v7050 = vpop.f32.mrf.mxu0
    %v7051 = vadd.f32 %v6956, %v7050
    %v7052 = vpop.f32.mrf.mxu0
    %7053 = vmatprep.mubr.f32.mxu0 %v6663
    %7054 = vmatmul.mubr.f32.gmra.mxu0 %v6704
    %v7055 = vpop.f32.mrf.mxu0
    %v7056 = vadd.f32 %v6961, %v7055
    %v7057 = vpop.f32.mrf.mxu0
    %7058 = vdwg.mxu0
    %7059 = vmatprep.subr.mxu0 0.0
    %7060 = vmatpush1.msra.mxu0 %v6804
    %7061 = vmatprep.subr.mxu0 0.0
    %7062 = vmatpush1.msra.mxu0 %v6803
    %7063 = vmatprep.subr.mxu0 0.0
    %7064 = vmatpush1.msra.mxu0 %v6802
    %7065 = vmatprep.subr.mxu0 0.0
    %7066 = vmatpush1.msra.mxu0 %v6801
    %7067 = vmatprep.subr.mxu0 0.0
    %7068 = vmatpush1.msra.mxu0 %v6800
    %7069 = vmatprep.subr.mxu0 0.0
    %7070 = vmatpush1.msra.mxu0 %v6799
    %7071 = vmatprep.subr.mxu0 0.0
    %7072 = vmatpush1.msra.mxu0 %v6798
    %7073 = vmatprep.subr.mxu0 0.0
    %7074 = vmatpush1.msra.mxu0 %v6797
    %7075 = vmatprep.subr.mxu0 0.0
    %7076 = vmatpush1.msra.mxu0 %v6796
    %7077 = vmatprep.subr.mxu0 0.0
    %7078 = vmatpush1.msra.mxu0 %v6795
    %7079 = vmatprep.subr.mxu0 0.0
    %7080 = vmatpush1.msra.mxu0 %v6794
    %7081 = vmatprep.subr.mxu0 0.0
    %7082 = vmatpush1.msra.mxu0 %v6793
    %7083 = vmatprep.subr.mxu0 0.0
    %7084 = vmatpush1.msra.mxu0 %v6792
    %7085 = vmatprep.subr.mxu0 0.0
    %7086 = vmatpush1.msra.mxu0 %v6791
    %7087 = vmatprep.subr.mxu0 0.0
    %7088 = vmatpush1.msra.mxu0 %v6790
    %7089 = vmatprep.subr.mxu0 0.0
    %7090 = vmatpush1.msra.mxu0 %v6789
    %7091 = vmatprep.subr.mxu0 0.0
    %7092 = vmatpush2.msra.mxu0 %v6820
    %7093 = vmatprep.subr.mxu0 0.0
    %7094 = vmatpush2.msra.mxu0 %v6819
    %7095 = vmatprep.subr.mxu0 0.0
    %7096 = vmatpush2.msra.mxu0 %v6818
    %7097 = vmatprep.subr.mxu0 0.0
    %7098 = vmatpush2.msra.mxu0 %v6817
    %7099 = vmatprep.subr.mxu0 0.0
    %7100 = vmatpush2.msra.mxu0 %v6816
    %7101 = vmatprep.subr.mxu0 0.0
    %7102 = vmatpush2.msra.mxu0 %v6815
    %7103 = vmatprep.subr.mxu0 0.0
    %7104 = vmatpush2.msra.mxu0 %v6814
    %7105 = vmatprep.subr.mxu0 0.0
    %7106 = vmatpush2.msra.mxu0 %v6813
    %7107 = vmatprep.subr.mxu0 0.0
    %7108 = vmatpush2.msra.mxu0 %v6812
    %7109 = vmatprep.subr.mxu0 0.0
    %7110 = vmatpush2.msra.mxu0 %v6811
    %7111 = vmatprep.subr.mxu0 0.0
    %7112 = vmatpush2.msra.mxu0 %v6810
    %7113 = vmatprep.subr.mxu0 0.0
    %7114 = vmatpush2.msra.mxu0 %v6809
    %7115 = vmatprep.subr.mxu0 0.0
    %7116 = vmatpush2.msra.mxu0 %v6808
    %7117 = vmatprep.subr.mxu0 0.0
    %7118 = vmatpush2.msra.mxu0 %v6807
    %7119 = vmatprep.subr.mxu0 0.0
    %7120 = vmatpush2.msra.mxu0 %v6806
    %7121 = vmatprep.subr.mxu0 0.0
    %7122 = vmatpush2.msra.mxu0 %v6805
    %7123 = vmatprep.mubr.f32.mxu0 %v6696
    %7124 = vmatmul.mubr.f32.gmra.mxu0 %v6677
    %v7125 = vpop.f32.mrf.mxu0
    %v7126 = vadd.f32 %v7031, %v7125
    %v7127 = vpop.f32.mrf.mxu0
    %7128 = vmatprep.mubr.f32.mxu0 %v6698
    %7129 = vmatmul.mubr.f32.gmra.mxu0 %v6679
    %v7130 = vpop.f32.mrf.mxu0
    %v7131 = vadd.f32 %v7036, %v7130
    %v7132 = vpop.f32.mrf.mxu0
    %7133 = vmatprep.mubr.f32.mxu0 %v6700
    %7134 = vmatmul.mubr.f32.gmra.mxu0 %v6681
    %v7135 = vpop.f32.mrf.mxu0
    %v7136 = vadd.f32 %v7041, %v7135
    %v7137 = vpop.f32.mrf.mxu0
    %7138 = vmatprep.mubr.f32.mxu0 %v6702
    %7139 = vmatmul.mubr.f32.gmra.mxu0 %v6683
    %v7140 = vpop.f32.mrf.mxu0
    %v7141 = vadd.f32 %v7046, %v7140
    %v7142 = vpop.f32.mrf.mxu0
    %7143 = vmatprep.mubr.f32.mxu0 %v6704
    %7144 = vmatmul.mubr.f32.gmra.mxu0 %v6685
    %v7145 = vpop.f32.mrf.mxu0
    %v7146 = vadd.f32 %v7051, %v7145
    %v7147 = vpop.f32.mrf.mxu0
    %7148 = vmatprep.mubr.f32.mxu0 %v6716
    %7149 = vmatmul.mubr.f32.gmra.mxu0 %v6713
    %v7150 = vpop.f32.mrf.mxu0
    %v7151 = vadd.f32 %v7056, %v7150
    %v7152 = vpop.f32.mrf.mxu0
    %7153 = vdwg.mxu0
    %7154 = vmatprep.subr.mxu0 0.0
    %7155 = vmatpush1.msra.mxu0 %v6836
    %7156 = vmatprep.subr.mxu0 0.0
    %7157 = vmatpush1.msra.mxu0 %v6835
    %7158 = vmatprep.subr.mxu0 0.0
    %7159 = vmatpush1.msra.mxu0 %v6834
    %7160 = vmatprep.subr.mxu0 0.0
    %7161 = vmatpush1.msra.mxu0 %v6833
    %7162 = vmatprep.subr.mxu0 0.0
    %7163 = vmatpush1.msra.mxu0 %v6832
    %7164 = vmatprep.subr.mxu0 0.0
    %7165 = vmatpush1.msra.mxu0 %v6831
    %7166 = vmatprep.subr.mxu0 0.0
    %7167 = vmatpush1.msra.mxu0 %v6830
    %7168 = vmatprep.subr.mxu0 0.0
    %7169 = vmatpush1.msra.mxu0 %v6829
    %7170 = vmatprep.subr.mxu0 0.0
    %7171 = vmatpush1.msra.mxu0 %v6828
    %7172 = vmatprep.subr.mxu0 0.0
    %7173 = vmatpush1.msra.mxu0 %v6827
    %7174 = vmatprep.subr.mxu0 0.0
    %7175 = vmatpush1.msra.mxu0 %v6826
    %7176 = vmatprep.subr.mxu0 0.0
    %7177 = vmatpush1.msra.mxu0 %v6825
    %7178 = vmatprep.subr.mxu0 0.0
    %7179 = vmatpush1.msra.mxu0 %v6824
    %7180 = vmatprep.subr.mxu0 0.0
    %7181 = vmatpush1.msra.mxu0 %v6823
    %7182 = vmatprep.subr.mxu0 0.0
    %7183 = vmatpush1.msra.mxu0 %v6822
    %7184 = vmatprep.subr.mxu0 0.0
    %7185 = vmatpush1.msra.mxu0 %v6821
    %7186 = vmatprep.subr.mxu0 0.0
    %7187 = vmatpush2.msra.mxu0 %v6852
    %7188 = vmatprep.subr.mxu0 0.0
    %7189 = vmatpush2.msra.mxu0 %v6851
    %7190 = vmatprep.subr.mxu0 0.0
    %7191 = vmatpush2.msra.mxu0 %v6850
    %7192 = vmatprep.subr.mxu0 0.0
    %7193 = vmatpush2.msra.mxu0 %v6849
    %7194 = vmatprep.subr.mxu0 0.0
    %7195 = vmatpush2.msra.mxu0 %v6848
    %7196 = vmatprep.subr.mxu0 0.0
    %7197 = vmatpush2.msra.mxu0 %v6847
    %7198 = vmatprep.subr.mxu0 0.0
    %7199 = vmatpush2.msra.mxu0 %v6846
    %7200 = vmatprep.subr.mxu0 0.0
    %7201 = vmatpush2.msra.mxu0 %v6845
    %7202 = vmatprep.subr.mxu0 0.0
    %7203 = vmatpush2.msra.mxu0 %v6844
    %7204 = vmatprep.subr.mxu0 0.0
    %7205 = vmatpush2.msra.mxu0 %v6843
    %7206 = vmatprep.subr.mxu0 0.0
    %7207 = vmatpush2.msra.mxu0 %v6842
    %7208 = vmatprep.subr.mxu0 0.0
    %7209 = vmatpush2.msra.mxu0 %v6841
    %7210 = vmatprep.subr.mxu0 0.0
    %7211 = vmatpush2.msra.mxu0 %v6840
    %7212 = vmatprep.subr.mxu0 0.0
    %7213 = vmatpush2.msra.mxu0 %v6839
    %7214 = vmatprep.subr.mxu0 0.0
    %7215 = vmatpush2.msra.mxu0 %v6838
    %7216 = vmatprep.subr.mxu0 0.0
    %7217 = vmatpush2.msra.mxu0 %v6837
    %7218 = vmatprep.mubr.f32.mxu0 %v6679
    %7219 = vmatmul.mubr.f32.gmra.mxu0 %v6659
    %v7220 = vpop.f32.mrf.mxu0
    %v7221 = vadd.f32 %v7126, %v7220
    %v7222 = vpop.f32.mrf.mxu0
    %7223 = vmatprep.mubr.f32.mxu0 %v6681
    %7224 = vmatmul.mubr.f32.gmra.mxu0 %v6660
    %v7225 = vpop.f32.mrf.mxu0
    %v7226 = vadd.f32 %v7131, %v7225
    %v7227 = vpop.f32.mrf.mxu0
    %7228 = vmatprep.mubr.f32.mxu0 %v6683
    %7229 = vmatmul.mubr.f32.gmra.mxu0 %v6661
    %v7230 = vpop.f32.mrf.mxu0
    %v7231 = vadd.f32 %v7136, %v7230
    %v7232 = vpop.f32.mrf.mxu0
    %7233 = vmatprep.mubr.f32.mxu0 %v6685
    %7234 = vmatmul.mubr.f32.gmra.mxu0 %v6662
    %v7235 = vpop.f32.mrf.mxu0
    %v7236 = vadd.f32 %v7141, %v7235
    %v7237 = vpop.f32.mrf.mxu0
    %7238 = vmatprep.mubr.f32.mxu0 %v6713
    %7239 = vmatmul.mubr.f32.gmra.mxu0 %v6663
    %v7240 = vpop.f32.mrf.mxu0
    %v7241 = vadd.f32 %v7146, %v7240
    %v7242 = vpop.f32.mrf.mxu0
    %7243 = vmatprep.mubr.f32.mxu0 %v6720
    %7244 = vmatmul.mubr.f32.gmra.mxu0 %v6664
    %v7245 = vpop.f32.mrf.mxu0
    %v7246 = vadd.f32 %v7151, %v7245
    %v7247 = vpop.f32.mrf.mxu0
    %7248 = vdwg.mxu0
    %7249 = vmatprep.subr.mxu0 0.0
    %7250 = vmatpush1.msra.mxu0 %v6868
    %7251 = vmatprep.subr.mxu0 0.0
    %7252 = vmatpush1.msra.mxu0 %v6867
    %7253 = vmatprep.subr.mxu0 0.0
    %7254 = vmatpush1.msra.mxu0 %v6866
    %7255 = vmatprep.subr.mxu0 0.0
    %7256 = vmatpush1.msra.mxu0 %v6865
    %7257 = vmatprep.subr.mxu0 0.0
    %7258 = vmatpush1.msra.mxu0 %v6864
    %7259 = vmatprep.subr.mxu0 0.0
    %7260 = vmatpush1.msra.mxu0 %v6863
    %7261 = vmatprep.subr.mxu0 0.0
    %7262 = vmatpush1.msra.mxu0 %v6862
    %7263 = vmatprep.subr.mxu0 0.0
    %7264 = vmatpush1.msra.mxu0 %v6861
    %7265 = vmatprep.subr.mxu0 0.0
    %7266 = vmatpush1.msra.mxu0 %v6860
    %7267 = vmatprep.subr.mxu0 0.0
    %7268 = vmatpush1.msra.mxu0 %v6859
    %7269 = vmatprep.subr.mxu0 0.0
    %7270 = vmatpush1.msra.mxu0 %v6858
    %7271 = vmatprep.subr.mxu0 0.0
    %7272 = vmatpush1.msra.mxu0 %v6857
    %7273 = vmatprep.subr.mxu0 0.0
    %7274 = vmatpush1.msra.mxu0 %v6856
    %7275 = vmatprep.subr.mxu0 0.0
    %7276 = vmatpush1.msra.mxu0 %v6855
    %7277 = vmatprep.subr.mxu0 0.0
    %7278 = vmatpush1.msra.mxu0 %v6854
    %7279 = vmatprep.subr.mxu0 0.0
    %7280 = vmatpush1.msra.mxu0 %v6853
    %7281 = vmatprep.subr.mxu0 0.0
    %7282 = vmatpush2.msra.mxu0 0.0
    %7283 = vmatprep.subr.mxu0 0.0
    %7284 = vmatpush2.msra.mxu0 0.0
    %7285 = vmatprep.subr.mxu0 0.0
    %7286 = vmatpush2.msra.mxu0 0.0
    %7287 = vmatprep.subr.mxu0 0.0
    %7288 = vmatpush2.msra.mxu0 0.0
    %7289 = vmatprep.subr.mxu0 0.0
    %7290 = vmatpush2.msra.mxu0 0.0
    %7291 = vmatprep.subr.mxu0 0.0
    %7292 = vmatpush2.msra.mxu0 0.0
    %7293 = vmatprep.subr.mxu0 0.0
    %7294 = vmatpush2.msra.mxu0 0.0
    %7295 = vmatprep.subr.mxu0 0.0
    %7296 = vmatpush2.msra.mxu0 0.0
    %7297 = vmatprep.subr.mxu0 0.0
    %7298 = vmatpush2.msra.mxu0 0.0
    %7299 = vmatprep.subr.mxu0 0.0
    %7300 = vmatpush2.msra.mxu0 0.0
    %7301 = vmatprep.subr.mxu0 0.0
    %7302 = vmatpush2.msra.mxu0 0.0
    %7303 = vmatprep.subr.mxu0 0.0
    %7304 = vmatpush2.msra.mxu0 0.0
    %7305 = vmatprep.subr.mxu0 0.0
    %7306 = vmatpush2.msra.mxu0 0.0
    %7307 = vmatprep.subr.mxu0 0.0
    %7308 = vmatpush2.msra.mxu0 0.0
    %7309 = vmatprep.subr.mxu0 0.0
    %7310 = vmatpush2.msra.mxu0 0.0
    %7311 = vmatprep.subr.mxu0 0.0
    %7312 = vmatpush2.msra.mxu0 0.0
    %7313 = vmatprep.mubr.f32.mxu0 0.0
    %7314 = vmatmul.mubr.f32.gmra.mxu0 %v6698
    %v7315 = vpop.f32.mrf.mxu0
    %v7316 = vadd.f32 %v7221, %v7315
    %v7317 = vpop.f32.mrf.mxu0
    %7318 = vmatprep.mubr.f32.mxu0 0.0
    %7319 = vmatmul.mubr.f32.gmra.mxu0 %v6700
    %v7320 = vpop.f32.mrf.mxu0
    %v7321 = vadd.f32 %v7226, %v7320
    %v7322 = vpop.f32.mrf.mxu0
    %7323 = vmatprep.mubr.f32.mxu0 0.0
    %7324 = vmatmul.mubr.f32.gmra.mxu0 %v6702
    %v7325 = vpop.f32.mrf.mxu0
    %v7326 = vadd.f32 %v7231, %v7325
    %v7327 = vpop.f32.mrf.mxu0
    %7328 = vmatprep.mubr.f32.mxu0 0.0
    %7329 = vmatmul.mubr.f32.gmra.mxu0 %v6704
    %v7330 = vpop.f32.mrf.mxu0
    %v7331 = vadd.f32 %v7236, %v7330
    %v7332 = vpop.f32.mrf.mxu0
    %7333 = vmatprep.mubr.f32.mxu0 0.0
    %7334 = vmatmul.mubr.f32.gmra.mxu0 %v6716
    %v7335 = vpop.f32.mrf.mxu0
    %v7336 = vadd.f32 %v7241, %v7335
    %v7337 = vpop.f32.mrf.mxu0
    %7338 = vmatprep.mubr.f32.mxu0 0.0
    %7339 = vmatmul.mubr.f32.gmra.mxu0 %v6723
    %v7340 = vpop.f32.mrf.mxu0
    %v7341 = vadd.f32 %v7246, %v7340
    %v7342 = vpop.f32.mrf.mxu0
    %7343 = vdwg.mxu0
    %vm7344 = vcmp.lt.s32.totalorder %v5328, 0
    %v7345 = vsub.s32 0, %v5328
    %v7346 = vsel %vm7344, %v7345, %v5328
    %v7347 = vshrl.u32 %v7346, 3
    %v7348 = vand.u32 %v7346, 7
    %v7349 = vsub.s32 0, %v7348
    %v7350 = vsel %vm7344, %v7349, %v7348
    %vm7351 = vcmp.lt.s32.totalorder %v5329, 0
    %v7352 = vsub.s32 0, %v5329
    %v7353 = vsel %vm7351, %v7352, %v5329
    %v7354 = vshrl.u32 %v7353, 3
    %v7355 = vand.u32 %v7353, 7
    %v7356 = vsub.s32 0, %v7355
    %v7357 = vsel %vm7351, %v7356, %v7355
    %vm7358 = vcmp.lt.s32.totalorder %v5330, 0
    %v7359 = vsub.s32 0, %v5330
    %v7360 = vsel %vm7358, %v7359, %v5330
    %v7361 = vshrl.u32 %v7360, 3
    %v7362 = vand.u32 %v7360, 7
    %v7363 = vsub.s32 0, %v7362
    %v7364 = vsel %vm7358, %v7363, %v7362
    %vm7365 = vcmp.lt.s32.totalorder %v5331, 0
    %v7366 = vsub.s32 0, %v5331
    %v7367 = vsel %vm7365, %v7366, %v5331
    %v7368 = vshrl.u32 %v7367, 3
    %v7369 = vand.u32 %v7367, 7
    %v7370 = vsub.s32 0, %v7369
    %v7371 = vsel %vm7365, %v7370, %v7369
    %vm7372 = vcmp.lt.s32.totalorder %v5332, 0
    %v7373 = vsub.s32 0, %v5332
    %v7374 = vsel %vm7372, %v7373, %v5332
    %v7375 = vshrl.u32 %v7374, 3
    %v7376 = vand.u32 %v7374, 7
    %v7377 = vsub.s32 0, %v7376
    %v7378 = vsel %vm7372, %v7377, %v7376
    %vm7379 = vcmp.lt.s32.totalorder %v5333, 0
    %v7380 = vsub.s32 0, %v5333
    %v7381 = vsel %vm7379, %v7380, %v5333
    %v7382 = vshrl.u32 %v7381, 3
    %v7383 = vand.u32 %v7381, 7
    %v7384 = vsub.s32 0, %v7383
    %v7385 = vsel %vm7379, %v7384, %v7383
    %vm7386 = vcmp.ne.s32.totalorder %v7350, 0
    %vm7387 = vcmp.ne.s32.totalorder %v7357, 0
    %vm7388 = vcmp.ne.s32.totalorder %v7364, 0
    %vm7389 = vcmp.ne.s32.totalorder %v7371, 0
    %vm7390 = vcmp.ne.s32.totalorder %v7378, 0
    %vm7391 = vcmp.ne.s32.totalorder %v7385, 0
    %vm7392 = vcmp.lt.s32.totalorder %v7350, 0
    %vm7393 = vcmp.lt.s32.totalorder %v7357, 0
    %vm7394 = vcmp.lt.s32.totalorder %v7364, 0
    %vm7395 = vcmp.lt.s32.totalorder %v7371, 0
    %vm7396 = vcmp.lt.s32.totalorder %v7378, 0
    %vm7397 = vcmp.lt.s32.totalorder %v7385, 0
    %vm7398 = vmand %vm7392, %vm7386
    %vm7399 = vmand %vm7393, %vm7387
    %vm7400 = vmand %vm7394, %vm7388
    %vm7401 = vmand %vm7395, %vm7389
    %vm7402 = vmand %vm7396, %vm7390
    %vm7403 = vmand %vm7397, %vm7391
    %v7404 = vadd.s32 %v7350, 8
    %v7405 = vadd.s32 %v7357, 8
    %v7406 = vadd.s32 %v7364, 8
    %v7407 = vadd.s32 %v7371, 8
    %v7408 = vadd.s32 %v7378, 8
    %v7409 = vadd.s32 %v7385, 8
    %v7410 = vsel %vm7398, %v7404, %v7350
    %v7411 = vsel %vm7399, %v7405, %v7357
    %v7412 = vsel %vm7400, %v7406, %v7364
    %v7413 = vsel %vm7401, %v7407, %v7371
    %v7414 = vsel %vm7402, %v7408, %v7378
    %v7415 = vsel %vm7403, %v7409, %v7385
    %vm7416 = vcmp.lt.s32.totalorder %v7410, 6
    %vm7417 = vcmp.lt.s32.totalorder %v7411, 6
    %vm7418 = vcmp.lt.s32.totalorder %v7412, 6
    %vm7419 = vcmp.lt.s32.totalorder %v7413, 6
    %vm7420 = vcmp.lt.s32.totalorder %v7414, 6
    %vm7421 = vcmp.lt.s32.totalorder %v7415, 6
    %v7422 = vsel %vm7416, 1, 0
    %v7423 = vsel %vm7417, 1, 0
    %v7424 = vsel %vm7418, 1, 0
    %v7425 = vsel %vm7419, 1, 0
    %v7426 = vsel %vm7420, 1, 0
    %v7427 = vsel %vm7421, 1, 0
    %vm7428 = vcmp.eq.s32.totalorder %v7422, 1
    %vm7429 = vcmp.eq.s32.totalorder %v7423, 1
    %vm7430 = vcmp.eq.s32.totalorder %v7424, 1
    %vm7431 = vcmp.eq.s32.totalorder %v7425, 1
    %vm7432 = vcmp.eq.s32.totalorder %v7426, 1
    %vm7433 = vcmp.eq.s32.totalorder %v7427, 1
    %v7434 = vsel %vm7428, %v7316, 0.0
    %v7435 = vsel %vm7429, %v7321, 0.0
    %v7436 = vsel %vm7430, %v7326, 0.0
    %v7437 = vsel %vm7431, %v7331, 0.0
    %v7438 = vsel %vm7432, %v7336, 0.0
    %v7439 = vsel %vm7433, %v7341, 0.0
    %v7440 = vadd.f32 %v7434, %v7435
    %v7441 = vadd.f32 %v7440, %v7436
    %v7442 = vadd.f32 %v7441, %v7437
    %v7443 = vadd.f32 %v7442, %v7438
    %v7444 = vadd.f32 %v7443, %v7439
    %v7445 = vrot.slane %v7444, 4
    %v7446 = vadd.f32 %v7444, %v7445
    %v7447 = vrot.slane %v7446, 2
    %v7448 = vadd.f32 %v7446, %v7447
    %v7449 = vrot.slane %v7448, 1
    %v7450 = vadd.f32 %v7448, %v7449
    %v7451 = vmul.f32 %v7434, %v7434
    %v7452 = vmul.f32 %v7435, %v7435
    %v7453 = vmul.f32 %v7436, %v7436
    %v7454 = vmul.f32 %v7437, %v7437
    %v7455 = vmul.f32 %v7438, %v7438
    %v7456 = vmul.f32 %v7439, %v7439
    %v7457 = vadd.f32 %v7451, %v7452
    %v7458 = vadd.f32 %v7457, %v7453
    %v7459 = vadd.f32 %v7458, %v7454
    %v7460 = vadd.f32 %v7459, %v7455
    %v7461 = vadd.f32 %v7460, %v7456
    %v7462 = vrot.slane %v7461, 4
    %v7463 = vadd.f32 %v7461, %v7462
    %v7464 = vrot.slane %v7463, 2
    %v7465 = vadd.f32 %v7463, %v7464
    %v7466 = vrot.slane %v7465, 1
    %v7467 = vadd.f32 %v7465, %v7466
    %v7468 = vadd.f32 %v7450, 0.0
    %v7469 = vadd.f32 %v7467, 0.0
    %v7470 = vld [vmem:[%s6648] sm:$0xff]
    %v7471 = vld [vmem:[%s6648 + $0x8] sm:$0xff]
    %v7472 = vld [vmem:[%s6648 + $0x10] sm:$0xff]
    %v7473 = vld [vmem:[%s6648 + $0x18] sm:$0xff]
    %v7474 = vld [vmem:[%s6648 + $0x20] sm:$0xff]
    %v7475 = vld [vmem:[%s6648 + $0x28] sm:$0xff]
    %v7476 = vld [vmem:[%s6648 + $0x30] sm:$0xff]
    %v7477 = vld [vmem:[%s6648 + $0x38] sm:$0xff]
    %v7478 = vld [vmem:[%s6648 + $0x40] sm:$0xff]
    %v7486 = vrot.slane %v7470, 1
    %v7487 = vrot.slane %v7471, 1
    %v7488 = vsel %vm4460, %v7486, %v7487
    %v7489 = vrot.slane %v7472, 1
    %v7490 = vsel %vm4460, %v7487, %v7489
    %v7491 = vrot.slane %v7473, 1
    %v7492 = vsel %vm4460, %v7489, %v7491
    %v7493 = vrot.slane %v7474, 1
    %v7494 = vsel %vm4460, %v7491, %v7493
    %v7495 = vrot.slane %v7475, 1
    %v7496 = vsel %vm4460, %v7493, %v7495
    %v7497 = vrot.slane %v7476, 1
    %v7498 = vsel %vm4460, %v7495, %v7497
    %v7505 = vrot.slane %v7470, 2
    %v7506 = vrot.slane %v7471, 2
    %v7507 = vsel %vm4542, %v7505, %v7506
    %v7508 = vrot.slane %v7472, 2
    %v7509 = vsel %vm4542, %v7506, %v7508
    %v7510 = vrot.slane %v7473, 2
    %v7511 = vsel %vm4542, %v7508, %v7510
    %v7512 = vrot.slane %v7474, 2
    %v7513 = vsel %vm4542, %v7510, %v7512
    %v7514 = vrot.slane %v7475, 2
    %v7515 = vsel %vm4542, %v7512, %v7514
    %v7516 = vrot.slane %v7476, 2
    %v7517 = vsel %vm4542, %v7514, %v7516
    %v7525 = vrot.slane %v7477, 1
    %v7526 = vsel %vm4460, %v7497, %v7525
    %v7528 = vrot.slane %v7477, 2
    %v7529 = vsel %vm4542, %v7516, %v7528
    %v7532 = vrot.slane %v7478, 1
    %v7533 = vsel %vm4460, %v7525, %v7532
    %v7535 = vrot.slane %v7478, 2
    %v7536 = vsel %vm4542, %v7528, %v7535
    %7538 = vmatprep.subr.mxu0 0.0
    %7539 = vmatpush1.msra.mxu0 %v6740
    %7540 = vmatprep.subr.mxu0 0.0
    %7541 = vmatpush1.msra.mxu0 %v6739
    %7542 = vmatprep.subr.mxu0 0.0
    %7543 = vmatpush1.msra.mxu0 %v6738
    %7544 = vmatprep.subr.mxu0 0.0
    %7545 = vmatpush1.msra.mxu0 %v6737
    %7546 = vmatprep.subr.mxu0 0.0
    %7547 = vmatpush1.msra.mxu0 %v6736
    %7548 = vmatprep.subr.mxu0 0.0
    %7549 = vmatpush1.msra.mxu0 %v6735
    %7550 = vmatprep.subr.mxu0 0.0
    %7551 = vmatpush1.msra.mxu0 %v6734
    %7552 = vmatprep.subr.mxu0 0.0
    %7553 = vmatpush1.msra.mxu0 %v6733
    %7554 = vmatprep.subr.mxu0 0.0
    %7555 = vmatpush1.msra.mxu0 %v6732
    %7556 = vmatprep.subr.mxu0 0.0
    %7557 = vmatpush1.msra.mxu0 %v6731
    %7558 = vmatprep.subr.mxu0 0.0
    %7559 = vmatpush1.msra.mxu0 %v6730
    %7560 = vmatprep.subr.mxu0 0.0
    %7561 = vmatpush1.msra.mxu0 %v6729
    %7562 = vmatprep.subr.mxu0 0.0
    %7563 = vmatpush1.msra.mxu0 %v6728
    %7564 = vmatprep.subr.mxu0 0.0
    %7565 = vmatpush1.msra.mxu0 %v6727
    %7566 = vmatprep.subr.mxu0 0.0
    %7567 = vmatpush1.msra.mxu0 %v6726
    %7568 = vmatprep.subr.mxu0 0.0
    %7569 = vmatpush1.msra.mxu0 %v6725
    %7570 = vmatprep.subr.mxu0 0.0
    %7571 = vmatpush2.msra.mxu0 %v6756
    %7572 = vmatprep.subr.mxu0 0.0
    %7573 = vmatpush2.msra.mxu0 %v6755
    %7574 = vmatprep.subr.mxu0 0.0
    %7575 = vmatpush2.msra.mxu0 %v6754
    %7576 = vmatprep.subr.mxu0 0.0
    %7577 = vmatpush2.msra.mxu0 %v6753
    %7578 = vmatprep.subr.mxu0 0.0
    %7579 = vmatpush2.msra.mxu0 %v6752
    %7580 = vmatprep.subr.mxu0 0.0
    %7581 = vmatpush2.msra.mxu0 %v6751
    %7582 = vmatprep.subr.mxu0 0.0
    %7583 = vmatpush2.msra.mxu0 %v6750
    %7584 = vmatprep.subr.mxu0 0.0
    %7585 = vmatpush2.msra.mxu0 %v6749
    %7586 = vmatprep.subr.mxu0 0.0
    %7587 = vmatpush2.msra.mxu0 %v6748
    %7588 = vmatprep.subr.mxu0 0.0
    %7589 = vmatpush2.msra.mxu0 %v6747
    %7590 = vmatprep.subr.mxu0 0.0
    %7591 = vmatpush2.msra.mxu0 %v6746
    %7592 = vmatprep.subr.mxu0 0.0
    %7593 = vmatpush2.msra.mxu0 %v6745
    %7594 = vmatprep.subr.mxu0 0.0
    %7595 = vmatpush2.msra.mxu0 %v6744
    %7596 = vmatprep.subr.mxu0 0.0
    %7597 = vmatpush2.msra.mxu0 %v6743
    %7598 = vmatprep.subr.mxu0 0.0
    %7599 = vmatpush2.msra.mxu0 %v6742
    %7600 = vmatprep.subr.mxu0 0.0
    %7601 = vmatpush2.msra.mxu0 %v6741
    %7602 = vmatprep.mubr.f32.mxu0 %v7488
    %7603 = vmatmul.mubr.f32.gmra.mxu0 %v7470
    %v7604 = vpop.f32.mrf.mxu0
    %v7605 = vadd.f32 0.0, %v7604
    %v7606 = vpop.f32.mrf.mxu0
    %7607 = vmatprep.mubr.f32.mxu0 %v7490
    %7608 = vmatmul.mubr.f32.gmra.mxu0 %v7471
    %v7609 = vpop.f32.mrf.mxu0
    %v7610 = vadd.f32 0.0, %v7609
    %v7611 = vpop.f32.mrf.mxu0
    %7612 = vmatprep.mubr.f32.mxu0 %v7492
    %7613 = vmatmul.mubr.f32.gmra.mxu0 %v7472
    %v7614 = vpop.f32.mrf.mxu0
    %v7615 = vadd.f32 0.0, %v7614
    %v7616 = vpop.f32.mrf.mxu0
    %7617 = vmatprep.mubr.f32.mxu0 %v7494
    %7618 = vmatmul.mubr.f32.gmra.mxu0 %v7473
    %v7619 = vpop.f32.mrf.mxu0
    %v7620 = vadd.f32 0.0, %v7619
    %v7621 = vpop.f32.mrf.mxu0
    %7622 = vmatprep.mubr.f32.mxu0 %v7496
    %7623 = vmatmul.mubr.f32.gmra.mxu0 %v7474
    %v7624 = vpop.f32.mrf.mxu0
    %v7625 = vadd.f32 0.0, %v7624
    %v7626 = vpop.f32.mrf.mxu0
    %7627 = vmatprep.mubr.f32.mxu0 %v7498
    %7628 = vmatmul.mubr.f32.gmra.mxu0 %v7475
    %v7629 = vpop.f32.mrf.mxu0
    %v7630 = vadd.f32 0.0, %v7629
    %v7631 = vpop.f32.mrf.mxu0
    %7632 = vdwg.mxu0
    %7633 = vmatprep.subr.mxu0 0.0
    %7634 = vmatpush1.msra.mxu0 %v6772
    %7635 = vmatprep.subr.mxu0 0.0
    %7636 = vmatpush1.msra.mxu0 %v6771
    %7637 = vmatprep.subr.mxu0 0.0
    %7638 = vmatpush1.msra.mxu0 %v6770
    %7639 = vmatprep.subr.mxu0 0.0
    %7640 = vmatpush1.msra.mxu0 %v6769
    %7641 = vmatprep.subr.mxu0 0.0
    %7642 = vmatpush1.msra.mxu0 %v6768
    %7643 = vmatprep.subr.mxu0 0.0
    %7644 = vmatpush1.msra.mxu0 %v6767
    %7645 = vmatprep.subr.mxu0 0.0
    %7646 = vmatpush1.msra.mxu0 %v6766
    %7647 = vmatprep.subr.mxu0 0.0
    %7648 = vmatpush1.msra.mxu0 %v6765
    %7649 = vmatprep.subr.mxu0 0.0
    %7650 = vmatpush1.msra.mxu0 %v6764
    %7651 = vmatprep.subr.mxu0 0.0
    %7652 = vmatpush1.msra.mxu0 %v6763
    %7653 = vmatprep.subr.mxu0 0.0
    %7654 = vmatpush1.msra.mxu0 %v6762
    %7655 = vmatprep.subr.mxu0 0.0
    %7656 = vmatpush1.msra.mxu0 %v6761
    %7657 = vmatprep.subr.mxu0 0.0
    %7658 = vmatpush1.msra.mxu0 %v6760
    %7659 = vmatprep.subr.mxu0 0.0
    %7660 = vmatpush1.msra.mxu0 %v6759
    %7661 = vmatprep.subr.mxu0 0.0
    %7662 = vmatpush1.msra.mxu0 %v6758
    %7663 = vmatprep.subr.mxu0 0.0
    %7664 = vmatpush1.msra.mxu0 %v6757
    %7665 = vmatprep.subr.mxu0 0.0
    %7666 = vmatpush2.msra.mxu0 %v6788
    %7667 = vmatprep.subr.mxu0 0.0
    %7668 = vmatpush2.msra.mxu0 %v6787
    %7669 = vmatprep.subr.mxu0 0.0
    %7670 = vmatpush2.msra.mxu0 %v6786
    %7671 = vmatprep.subr.mxu0 0.0
    %7672 = vmatpush2.msra.mxu0 %v6785
    %7673 = vmatprep.subr.mxu0 0.0
    %7674 = vmatpush2.msra.mxu0 %v6784
    %7675 = vmatprep.subr.mxu0 0.0
    %7676 = vmatpush2.msra.mxu0 %v6783
    %7677 = vmatprep.subr.mxu0 0.0
    %7678 = vmatpush2.msra.mxu0 %v6782
    %7679 = vmatprep.subr.mxu0 0.0
    %7680 = vmatpush2.msra.mxu0 %v6781
    %7681 = vmatprep.subr.mxu0 0.0
    %7682 = vmatpush2.msra.mxu0 %v6780
    %7683 = vmatprep.subr.mxu0 0.0
    %7684 = vmatpush2.msra.mxu0 %v6779
    %7685 = vmatprep.subr.mxu0 0.0
    %7686 = vmatpush2.msra.mxu0 %v6778
    %7687 = vmatprep.subr.mxu0 0.0
    %7688 = vmatpush2.msra.mxu0 %v6777
    %7689 = vmatprep.subr.mxu0 0.0
    %7690 = vmatpush2.msra.mxu0 %v6776
    %7691 = vmatprep.subr.mxu0 0.0
    %7692 = vmatpush2.msra.mxu0 %v6775
    %7693 = vmatprep.subr.mxu0 0.0
    %7694 = vmatpush2.msra.mxu0 %v6774
    %7695 = vmatprep.subr.mxu0 0.0
    %7696 = vmatpush2.msra.mxu0 %v6773
    %7697 = vmatprep.mubr.f32.mxu0 %v7471
    %7698 = vmatmul.mubr.f32.gmra.mxu0 %v7507
    %v7699 = vpop.f32.mrf.mxu0
    %v7700 = vadd.f32 %v7605, %v7699
    %v7701 = vpop.f32.mrf.mxu0
    %7702 = vmatprep.mubr.f32.mxu0 %v7472
    %7703 = vmatmul.mubr.f32.gmra.mxu0 %v7509
    %v7704 = vpop.f32.mrf.mxu0
    %v7705 = vadd.f32 %v7610, %v7704
    %v7706 = vpop.f32.mrf.mxu0
    %7707 = vmatprep.mubr.f32.mxu0 %v7473
    %7708 = vmatmul.mubr.f32.gmra.mxu0 %v7511
    %v7709 = vpop.f32.mrf.mxu0
    %v7710 = vadd.f32 %v7615, %v7709
    %v7711 = vpop.f32.mrf.mxu0
    %7712 = vmatprep.mubr.f32.mxu0 %v7474
    %7713 = vmatmul.mubr.f32.gmra.mxu0 %v7513
    %v7714 = vpop.f32.mrf.mxu0
    %v7715 = vadd.f32 %v7620, %v7714
    %v7716 = vpop.f32.mrf.mxu0
    %7717 = vmatprep.mubr.f32.mxu0 %v7475
    %7718 = vmatmul.mubr.f32.gmra.mxu0 %v7515
    %v7719 = vpop.f32.mrf.mxu0
    %v7720 = vadd.f32 %v7625, %v7719
    %v7721 = vpop.f32.mrf.mxu0
    %7722 = vmatprep.mubr.f32.mxu0 %v7476
    %7723 = vmatmul.mubr.f32.gmra.mxu0 %v7517
    %v7724 = vpop.f32.mrf.mxu0
    %v7725 = vadd.f32 %v7630, %v7724
    %v7726 = vpop.f32.mrf.mxu0
    %7727 = vdwg.mxu0
    %7728 = vmatprep.subr.mxu0 0.0
    %7729 = vmatpush1.msra.mxu0 %v6804
    %7730 = vmatprep.subr.mxu0 0.0
    %7731 = vmatpush1.msra.mxu0 %v6803
    %7732 = vmatprep.subr.mxu0 0.0
    %7733 = vmatpush1.msra.mxu0 %v6802
    %7734 = vmatprep.subr.mxu0 0.0
    %7735 = vmatpush1.msra.mxu0 %v6801
    %7736 = vmatprep.subr.mxu0 0.0
    %7737 = vmatpush1.msra.mxu0 %v6800
    %7738 = vmatprep.subr.mxu0 0.0
    %7739 = vmatpush1.msra.mxu0 %v6799
    %7740 = vmatprep.subr.mxu0 0.0
    %7741 = vmatpush1.msra.mxu0 %v6798
    %7742 = vmatprep.subr.mxu0 0.0
    %7743 = vmatpush1.msra.mxu0 %v6797
    %7744 = vmatprep.subr.mxu0 0.0
    %7745 = vmatpush1.msra.mxu0 %v6796
    %7746 = vmatprep.subr.mxu0 0.0
    %7747 = vmatpush1.msra.mxu0 %v6795
    %7748 = vmatprep.subr.mxu0 0.0
    %7749 = vmatpush1.msra.mxu0 %v6794
    %7750 = vmatprep.subr.mxu0 0.0
    %7751 = vmatpush1.msra.mxu0 %v6793
    %7752 = vmatprep.subr.mxu0 0.0
    %7753 = vmatpush1.msra.mxu0 %v6792
    %7754 = vmatprep.subr.mxu0 0.0
    %7755 = vmatpush1.msra.mxu0 %v6791
    %7756 = vmatprep.subr.mxu0 0.0
    %7757 = vmatpush1.msra.mxu0 %v6790
    %7758 = vmatprep.subr.mxu0 0.0
    %7759 = vmatpush1.msra.mxu0 %v6789
    %7760 = vmatprep.subr.mxu0 0.0
    %7761 = vmatpush2.msra.mxu0 %v6820
    %7762 = vmatprep.subr.mxu0 0.0
    %7763 = vmatpush2.msra.mxu0 %v6819
    %7764 = vmatprep.subr.mxu0 0.0
    %7765 = vmatpush2.msra.mxu0 %v6818
    %7766 = vmatprep.subr.mxu0 0.0
    %7767 = vmatpush2.msra.mxu0 %v6817
    %7768 = vmatprep.subr.mxu0 0.0
    %7769 = vmatpush2.msra.mxu0 %v6816
    %7770 = vmatprep.subr.mxu0 0.0
    %7771 = vmatpush2.msra.mxu0 %v6815
    %7772 = vmatprep.subr.mxu0 0.0
    %7773 = vmatpush2.msra.mxu0 %v6814
    %7774 = vmatprep.subr.mxu0 0.0
    %7775 = vmatpush2.msra.mxu0 %v6813
    %7776 = vmatprep.subr.mxu0 0.0
    %7777 = vmatpush2.msra.mxu0 %v6812
    %7778 = vmatprep.subr.mxu0 0.0
    %7779 = vmatpush2.msra.mxu0 %v6811
    %7780 = vmatprep.subr.mxu0 0.0
    %7781 = vmatpush2.msra.mxu0 %v6810
    %7782 = vmatprep.subr.mxu0 0.0
    %7783 = vmatpush2.msra.mxu0 %v6809
    %7784 = vmatprep.subr.mxu0 0.0
    %7785 = vmatpush2.msra.mxu0 %v6808
    %7786 = vmatprep.subr.mxu0 0.0
    %7787 = vmatpush2.msra.mxu0 %v6807
    %7788 = vmatprep.subr.mxu0 0.0
    %7789 = vmatpush2.msra.mxu0 %v6806
    %7790 = vmatprep.subr.mxu0 0.0
    %7791 = vmatpush2.msra.mxu0 %v6805
    %7792 = vmatprep.mubr.f32.mxu0 %v7509
    %7793 = vmatmul.mubr.f32.gmra.mxu0 %v7490
    %v7794 = vpop.f32.mrf.mxu0
    %v7795 = vadd.f32 %v7700, %v7794
    %v7796 = vpop.f32.mrf.mxu0
    %7797 = vmatprep.mubr.f32.mxu0 %v7511
    %7798 = vmatmul.mubr.f32.gmra.mxu0 %v7492
    %v7799 = vpop.f32.mrf.mxu0
    %v7800 = vadd.f32 %v7705, %v7799
    %v7801 = vpop.f32.mrf.mxu0
    %7802 = vmatprep.mubr.f32.mxu0 %v7513
    %7803 = vmatmul.mubr.f32.gmra.mxu0 %v7494
    %v7804 = vpop.f32.mrf.mxu0
    %v7805 = vadd.f32 %v7710, %v7804
    %v7806 = vpop.f32.mrf.mxu0
    %7807 = vmatprep.mubr.f32.mxu0 %v7515
    %7808 = vmatmul.mubr.f32.gmra.mxu0 %v7496
    %v7809 = vpop.f32.mrf.mxu0
    %v7810 = vadd.f32 %v7715, %v7809
    %v7811 = vpop.f32.mrf.mxu0
    %7812 = vmatprep.mubr.f32.mxu0 %v7517
    %7813 = vmatmul.mubr.f32.gmra.mxu0 %v7498
    %v7814 = vpop.f32.mrf.mxu0
    %v7815 = vadd.f32 %v7720, %v7814
    %v7816 = vpop.f32.mrf.mxu0
    %7817 = vmatprep.mubr.f32.mxu0 %v7529
    %7818 = vmatmul.mubr.f32.gmra.mxu0 %v7526
    %v7819 = vpop.f32.mrf.mxu0
    %v7820 = vadd.f32 %v7725, %v7819
    %v7821 = vpop.f32.mrf.mxu0
    %7822 = vdwg.mxu0
    %7823 = vmatprep.subr.mxu0 0.0
    %7824 = vmatpush1.msra.mxu0 %v6836
    %7825 = vmatprep.subr.mxu0 0.0
    %7826 = vmatpush1.msra.mxu0 %v6835
    %7827 = vmatprep.subr.mxu0 0.0
    %7828 = vmatpush1.msra.mxu0 %v6834
    %7829 = vmatprep.subr.mxu0 0.0
    %7830 = vmatpush1.msra.mxu0 %v6833
    %7831 = vmatprep.subr.mxu0 0.0
    %7832 = vmatpush1.msra.mxu0 %v6832
    %7833 = vmatprep.subr.mxu0 0.0
    %7834 = vmatpush1.msra.mxu0 %v6831
    %7835 = vmatprep.subr.mxu0 0.0
    %7836 = vmatpush1.msra.mxu0 %v6830
    %7837 = vmatprep.subr.mxu0 0.0
    %7838 = vmatpush1.msra.mxu0 %v6829
    %7839 = vmatprep.subr.mxu0 0.0
    %7840 = vmatpush1.msra.mxu0 %v6828
    %7841 = vmatprep.subr.mxu0 0.0
    %7842 = vmatpush1.msra.mxu0 %v6827
    %7843 = vmatprep.subr.mxu0 0.0
    %7844 = vmatpush1.msra.mxu0 %v6826
    %7845 = vmatprep.subr.mxu0 0.0
    %7846 = vmatpush1.msra.mxu0 %v6825
    %7847 = vmatprep.subr.mxu0 0.0
    %7848 = vmatpush1.msra.mxu0 %v6824
    %7849 = vmatprep.subr.mxu0 0.0
    %7850 = vmatpush1.msra.mxu0 %v6823
    %7851 = vmatprep.subr.mxu0 0.0
    %7852 = vmatpush1.msra.mxu0 %v6822
    %7853 = vmatprep.subr.mxu0 0.0
    %7854 = vmatpush1.msra.mxu0 %v6821
    %7855 = vmatprep.subr.mxu0 0.0
    %7856 = vmatpush2.msra.mxu0 %v6852
    %7857 = vmatprep.subr.mxu0 0.0
    %7858 = vmatpush2.msra.mxu0 %v6851
    %7859 = vmatprep.subr.mxu0 0.0
    %7860 = vmatpush2.msra.mxu0 %v6850
    %7861 = vmatprep.subr.mxu0 0.0
    %7862 = vmatpush2.msra.mxu0 %v6849
    %7863 = vmatprep.subr.mxu0 0.0
    %7864 = vmatpush2.msra.mxu0 %v6848
    %7865 = vmatprep.subr.mxu0 0.0
    %7866 = vmatpush2.msra.mxu0 %v6847
    %7867 = vmatprep.subr.mxu0 0.0
    %7868 = vmatpush2.msra.mxu0 %v6846
    %7869 = vmatprep.subr.mxu0 0.0
    %7870 = vmatpush2.msra.mxu0 %v6845
    %7871 = vmatprep.subr.mxu0 0.0
    %7872 = vmatpush2.msra.mxu0 %v6844
    %7873 = vmatprep.subr.mxu0 0.0
    %7874 = vmatpush2.msra.mxu0 %v6843
    %7875 = vmatprep.subr.mxu0 0.0
    %7876 = vmatpush2.msra.mxu0 %v6842
    %7877 = vmatprep.subr.mxu0 0.0
    %7878 = vmatpush2.msra.mxu0 %v6841
    %7879 = vmatprep.subr.mxu0 0.0
    %7880 = vmatpush2.msra.mxu0 %v6840
    %7881 = vmatprep.subr.mxu0 0.0
    %7882 = vmatpush2.msra.mxu0 %v6839
    %7883 = vmatprep.subr.mxu0 0.0
    %7884 = vmatpush2.msra.mxu0 %v6838
    %7885 = vmatprep.subr.mxu0 0.0
    %7886 = vmatpush2.msra.mxu0 %v6837
    %7887 = vmatprep.mubr.f32.mxu0 %v7492
    %7888 = vmatmul.mubr.f32.gmra.mxu0 %v7472
    %v7889 = vpop.f32.mrf.mxu0
    %v7890 = vadd.f32 %v7795, %v7889
    %v7891 = vpop.f32.mrf.mxu0
    %7892 = vmatprep.mubr.f32.mxu0 %v7494
    %7893 = vmatmul.mubr.f32.gmra.mxu0 %v7473
    %v7894 = vpop.f32.mrf.mxu0
    %v7895 = vadd.f32 %v7800, %v7894
    %v7896 = vpop.f32.mrf.mxu0
    %7897 = vmatprep.mubr.f32.mxu0 %v7496
    %7898 = vmatmul.mubr.f32.gmra.mxu0 %v7474
    %v7899 = vpop.f32.mrf.mxu0
    %v7900 = vadd.f32 %v7805, %v7899
    %v7901 = vpop.f32.mrf.mxu0
    %7902 = vmatprep.mubr.f32.mxu0 %v7498
    %7903 = vmatmul.mubr.f32.gmra.mxu0 %v7475
    %v7904 = vpop.f32.mrf.mxu0
    %v7905 = vadd.f32 %v7810, %v7904
    %v7906 = vpop.f32.mrf.mxu0
    %7907 = vmatprep.mubr.f32.mxu0 %v7526
    %7908 = vmatmul.mubr.f32.gmra.mxu0 %v7476
    %v7909 = vpop.f32.mrf.mxu0
    %v7910 = vadd.f32 %v7815, %v7909
    %v7911 = vpop.f32.mrf.mxu0
    %7912 = vmatprep.mubr.f32.mxu0 %v7533
    %7913 = vmatmul.mubr.f32.gmra.mxu0 %v7477
    %v7914 = vpop.f32.mrf.mxu0
    %v7915 = vadd.f32 %v7820, %v7914
    %v7916 = vpop.f32.mrf.mxu0
    %7917 = vdwg.mxu0
    %7918 = vmatprep.subr.mxu0 0.0
    %7919 = vmatpush1.msra.mxu0 %v6868
    %7920 = vmatprep.subr.mxu0 0.0
    %7921 = vmatpush1.msra.mxu0 %v6867
    %7922 = vmatprep.subr.mxu0 0.0
    %7923 = vmatpush1.msra.mxu0 %v6866
    %7924 = vmatprep.subr.mxu0 0.0
    %7925 = vmatpush1.msra.mxu0 %v6865
    %7926 = vmatprep.subr.mxu0 0.0
    %7927 = vmatpush1.msra.mxu0 %v6864
    %7928 = vmatprep.subr.mxu0 0.0
    %7929 = vmatpush1.msra.mxu0 %v6863
    %7930 = vmatprep.subr.mxu0 0.0
    %7931 = vmatpush1.msra.mxu0 %v6862
    %7932 = vmatprep.subr.mxu0 0.0
    %7933 = vmatpush1.msra.mxu0 %v6861
    %7934 = vmatprep.subr.mxu0 0.0
    %7935 = vmatpush1.msra.mxu0 %v6860
    %7936 = vmatprep.subr.mxu0 0.0
    %7937 = vmatpush1.msra.mxu0 %v6859
    %7938 = vmatprep.subr.mxu0 0.0
    %7939 = vmatpush1.msra.mxu0 %v6858
    %7940 = vmatprep.subr.mxu0 0.0
    %7941 = vmatpush1.msra.mxu0 %v6857
    %7942 = vmatprep.subr.mxu0 0.0
    %7943 = vmatpush1.msra.mxu0 %v6856
    %7944 = vmatprep.subr.mxu0 0.0
    %7945 = vmatpush1.msra.mxu0 %v6855
    %7946 = vmatprep.subr.mxu0 0.0
    %7947 = vmatpush1.msra.mxu0 %v6854
    %7948 = vmatprep.subr.mxu0 0.0
    %7949 = vmatpush1.msra.mxu0 %v6853
    %7950 = vmatprep.subr.mxu0 0.0
    %7951 = vmatpush2.msra.mxu0 0.0
    %7952 = vmatprep.subr.mxu0 0.0
    %7953 = vmatpush2.msra.mxu0 0.0
    %7954 = vmatprep.subr.mxu0 0.0
    %7955 = vmatpush2.msra.mxu0 0.0
    %7956 = vmatprep.subr.mxu0 0.0
    %7957 = vmatpush2.msra.mxu0 0.0
    %7958 = vmatprep.subr.mxu0 0.0
    %7959 = vmatpush2.msra.mxu0 0.0
    %7960 = vmatprep.subr.mxu0 0.0
    %7961 = vmatpush2.msra.mxu0 0.0
    %7962 = vmatprep.subr.mxu0 0.0
    %7963 = vmatpush2.msra.mxu0 0.0
    %7964 = vmatprep.subr.mxu0 0.0
    %7965 = vmatpush2.msra.mxu0 0.0
    %7966 = vmatprep.subr.mxu0 0.0
    %7967 = vmatpush2.msra.mxu0 0.0
    %7968 = vmatprep.subr.mxu0 0.0
    %7969 = vmatpush2.msra.mxu0 0.0
    %7970 = vmatprep.subr.mxu0 0.0
    %7971 = vmatpush2.msra.mxu0 0.0
    %7972 = vmatprep.subr.mxu0 0.0
    %7973 = vmatpush2.msra.mxu0 0.0
    %7974 = vmatprep.subr.mxu0 0.0
    %7975 = vmatpush2.msra.mxu0 0.0
    %7976 = vmatprep.subr.mxu0 0.0
    %7977 = vmatpush2.msra.mxu0 0.0
    %7978 = vmatprep.subr.mxu0 0.0
    %7979 = vmatpush2.msra.mxu0 0.0
    %7980 = vmatprep.subr.mxu0 0.0
    %7981 = vmatpush2.msra.mxu0 0.0
    %7982 = vmatprep.mubr.f32.mxu0 0.0
    %7983 = vmatmul.mubr.f32.gmra.mxu0 %v7511
    %v7984 = vpop.f32.mrf.mxu0
    %v7985 = vadd.f32 %v7890, %v7984
    %v7986 = vpop.f32.mrf.mxu0
    %7987 = vmatprep.mubr.f32.mxu0 0.0
    %7988 = vmatmul.mubr.f32.gmra.mxu0 %v7513
    %v7989 = vpop.f32.mrf.mxu0
    %v7990 = vadd.f32 %v7895, %v7989
    %v7991 = vpop.f32.mrf.mxu0
    %7992 = vmatprep.mubr.f32.mxu0 0.0
    %7993 = vmatmul.mubr.f32.gmra.mxu0 %v7515
    %v7994 = vpop.f32.mrf.mxu0
    %v7995 = vadd.f32 %v7900, %v7994
    %v7996 = vpop.f32.mrf.mxu0
    %7997 = vmatprep.mubr.f32.mxu0 0.0
    %7998 = vmatmul.mubr.f32.gmra.mxu0 %v7517
    %v7999 = vpop.f32.mrf.mxu0
    %v8000 = vadd.f32 %v7905, %v7999
    %v8001 = vpop.f32.mrf.mxu0
    %8002 = vmatprep.mubr.f32.mxu0 0.0
    %8003 = vmatmul.mubr.f32.gmra.mxu0 %v7529
    %v8004 = vpop.f32.mrf.mxu0
    %v8005 = vadd.f32 %v7910, %v8004
    %v8006 = vpop.f32.mrf.mxu0
    %8007 = vmatprep.mubr.f32.mxu0 0.0
    %8008 = vmatmul.mubr.f32.gmra.mxu0 %v7536
    %v8009 = vpop.f32.mrf.mxu0
    %v8010 = vadd.f32 %v7915, %v8009
    %v8011 = vpop.f32.mrf.mxu0
    %8012 = vdwg.mxu0
    %v8013 = vsel %vm7428, %v7985, 0.0
    %v8014 = vsel %vm7429, %v7990, 0.0
    %v8015 = vsel %vm7430, %v7995, 0.0
    %v8016 = vsel %vm7431, %v8000, 0.0
    %v8017 = vsel %vm7432, %v8005, 0.0
    %v8018 = vsel %vm7433, %v8010, 0.0
    %v8019 = vadd.f32 %v8013, %v8014
    %v8020 = vadd.f32 %v8019, %v8015
    %v8021 = vadd.f32 %v8020, %v8016
    %v8022 = vadd.f32 %v8021, %v8017
    %v8023 = vadd.f32 %v8022, %v8018
    %v8024 = vrot.slane %v8023, 4
    %v8025 = vadd.f32 %v8023, %v8024
    %v8026 = vrot.slane %v8025, 2
    %v8027 = vadd.f32 %v8025, %v8026
    %v8028 = vrot.slane %v8027, 1
    %v8029 = vadd.f32 %v8027, %v8028
    %v8030 = vmul.f32 %v8013, %v8013
    %v8031 = vmul.f32 %v8014, %v8014
    %v8032 = vmul.f32 %v8015, %v8015
    %v8033 = vmul.f32 %v8016, %v8016
    %v8034 = vmul.f32 %v8017, %v8017
    %v8035 = vmul.f32 %v8018, %v8018
    %v8036 = vadd.f32 %v8030, %v8031
    %v8037 = vadd.f32 %v8036, %v8032
    %v8038 = vadd.f32 %v8037, %v8033
    %v8039 = vadd.f32 %v8038, %v8034
    %v8040 = vadd.f32 %v8039, %v8035
    %v8041 = vrot.slane %v8040, 4
    %v8042 = vadd.f32 %v8040, %v8041
    %v8043 = vrot.slane %v8042, 2
    %v8044 = vadd.f32 %v8042, %v8043
    %v8045 = vrot.slane %v8044, 1
    %v8046 = vadd.f32 %v8044, %v8045
    %v8047 = vadd.f32 %v7468, %v8029
    %v8048 = vadd.f32 %v7469, %v8046
    %v8049 = vrcp.pop 72.0
    %v8050 = vmul.f32 %v8047, %v8049
    %v8051 = vmul.f32 %v8048, %v8049
    %v8052 = vmul.f32 %v8050, %v8050
    %v8053 = vsub.f32 %v8051, %v8052
    %v8054 = vld [vmem:[#allocation12] sm:$0x1]
    %v8055 = vadd.f32 %v8053, 1e-05
    %v8056 = vrsqrt.pop %v8055
    %v8057 = vmul.f32 %v8054, %v8056
    %v8058 = vld [vmem:[#allocation13] sm:$0x1]
    %v8059 = vmul.f32 %v8050, %v8057
    %v8060 = vsub.f32 %v8058, %v8059
    %v8062 = vlaneseq
    %v8063 = vshrl.u32 %v8062, 7
    %v8064 = vsub.s32 0, %v8063
    %v8065 = vrot.slane %v8057, %v8064
    %v8067 = vmul.f32 %v7316, %v8065
    %v8068 = vmul.f32 %v7321, %v8065
    %v8069 = vmul.f32 %v7326, %v8065
    %v8070 = vmul.f32 %v7331, %v8065
    %v8071 = vmul.f32 %v7336, %v8065
    %v8072 = vmul.f32 %v7341, %v8065
    %v8074 = vlaneseq
    %v8075 = vshrl.u32 %v8074, 7
    %v8076 = vsub.s32 0, %v8075
    %v8077 = vrot.slane %v8060, %v8076
    %v8079 = vadd.f32 %v8067, %v8077
    %v8080 = vadd.f32 %v8068, %v8077
    %v8081 = vadd.f32 %v8069, %v8077
    %v8082 = vadd.f32 %v8070, %v8077
    %v8083 = vadd.f32 %v8071, %v8077
    %v8084 = vadd.f32 %v8072, %v8077
    %v8085 = vmax.f32 %v8079, 0.0
    %v8086 = vmax.f32 %v8080, 0.0
    %v8087 = vmax.f32 %v8081, 0.0
    %v8088 = vmax.f32 %v8082, 0.0
    %v8089 = vmax.f32 %v8083, 0.0
    %v8090 = vmax.f32 %v8084, 0.0
    %v8091 = vmul.f32 %v7985, %v8065
    %v8092 = vmul.f32 %v7990, %v8065
    %v8093 = vmul.f32 %v7995, %v8065
    %v8094 = vmul.f32 %v8000, %v8065
    %v8095 = vmul.f32 %v8005, %v8065
    %v8096 = vmul.f32 %v8010, %v8065
    %v8097 = vadd.f32 %v8091, %v8077
    %v8098 = vadd.f32 %v8092, %v8077
    %v8099 = vadd.f32 %v8093, %v8077
    %v8100 = vadd.f32 %v8094, %v8077
    %v8101 = vadd.f32 %v8095, %v8077
    %v8102 = vadd.f32 %v8096, %v8077
    %v8103 = vmax.f32 %v8097, 0.0
    %v8104 = vmax.f32 %v8098, 0.0
    %v8105 = vmax.f32 %v8099, 0.0
    %v8106 = vmax.f32 %v8100, 0.0
    %v8107 = vmax.f32 %v8101, 0.0
    %v8108 = vmax.f32 %v8102, 0.0
    %s8109 = scalar_lea.vmem [#allocation5], 8
    %8110 = vst [vmem:[%s8109 + $0x1] sm:$0x3f] %v8085
    %8111 = vst [vmem:[%s8109 + $0x9] sm:$0x3f] %v8086
    %8112 = vst [vmem:[%s8109 + $0x11] sm:$0x3f] %v8087
    %8113 = vst [vmem:[%s8109 + $0x19] sm:$0x3f] %v8088
    %8114 = vst [vmem:[%s8109 + $0x21] sm:$0x3f] %v8089
    %8115 = vst [vmem:[%s8109 + $0x29] sm:$0x3f] %v8090
    %s8116 = scalar_lea.vmem [#allocation5], 80
    %8117 = vst [vmem:[%s8116 + $0x1] sm:$0x3f] %v8103
    %8118 = vst [vmem:[%s8116 + $0x9] sm:$0x3f] %v8104
    %8119 = vst [vmem:[%s8116 + $0x11] sm:$0x3f] %v8105
    %8120 = vst [vmem:[%s8116 + $0x19] sm:$0x3f] %v8106
    %8121 = vst [vmem:[%s8116 + $0x21] sm:$0x3f] %v8107
    %8122 = vst [vmem:[%s8116 + $0x29] sm:$0x3f] %v8108
    %v8123 = vld [vmem:[#allocation5] sm:$0xff]
    %v8124 = vld [vmem:[#allocation5 + $0x8] sm:$0xff]
    %v8125 = vld [vmem:[#allocation5 + $0x10] sm:$0xff]
    %v8126 = vld [vmem:[#allocation5 + $0x18] sm:$0xff]
    %v8127 = vld [vmem:[#allocation5 + $0x20] sm:$0xff]
    %v8128 = vld [vmem:[#allocation5 + $0x28] sm:$0xff]
    %v8129 = vld [vmem:[#allocation5 + $0x30] sm:$0xff]
    %v8130 = vld [vmem:[#allocation5 + $0x38] sm:$0xff]
    %v8131 = vld [vmem:[#allocation5 + $0x40] sm:$0xff]
    %v8139 = vrot.slane %v8123, 1
    %v8140 = vrot.slane %v8124, 1
    %v8141 = vsel %vm4460, %v8139, %v8140
    %v8142 = vrot.slane %v8125, 1
    %v8143 = vsel %vm4460, %v8140, %v8142
    %v8144 = vrot.slane %v8126, 1
    %v8145 = vsel %vm4460, %v8142, %v8144
    %v8146 = vrot.slane %v8127, 1
    %v8147 = vsel %vm4460, %v8144, %v8146
    %v8148 = vrot.slane %v8128, 1
    %v8149 = vsel %vm4460, %v8146, %v8148
    %v8150 = vrot.slane %v8129, 1
    %v8151 = vsel %vm4460, %v8148, %v8150
    %v8158 = vrot.slane %v8123, 2
    %v8159 = vrot.slane %v8124, 2
    %v8160 = vsel %vm4542, %v8158, %v8159
    %v8161 = vrot.slane %v8125, 2
    %v8162 = vsel %vm4542, %v8159, %v8161
    %v8163 = vrot.slane %v8126, 2
    %v8164 = vsel %vm4542, %v8161, %v8163
    %v8165 = vrot.slane %v8127, 2
    %v8166 = vsel %vm4542, %v8163, %v8165
    %v8167 = vrot.slane %v8128, 2
    %v8168 = vsel %vm4542, %v8165, %v8167
    %v8169 = vrot.slane %v8129, 2
    %v8170 = vsel %vm4542, %v8167, %v8169
    %v8178 = vrot.slane %v8130, 1
    %v8179 = vsel %vm4460, %v8150, %v8178
    %v8181 = vrot.slane %v8130, 2
    %v8182 = vsel %vm4542, %v8169, %v8181
    %v8185 = vrot.slane %v8131, 1
    %v8186 = vsel %vm4460, %v8178, %v8185
    %v8188 = vrot.slane %v8131, 2
    %v8189 = vsel %vm4542, %v8181, %v8188
    %v8191 = vld [vmem:[%s4] sm:$0xff]
    %v8192 = vld [vmem:[%s4 + $0x8] sm:$0xff]
    %v8193 = vld [vmem:[%s4 + $0x10] sm:$0xff]
    %v8194 = vld [vmem:[%s4 + $0x18] sm:$0xff]
    %v8195 = vld [vmem:[%s4 + $0x20] sm:$0xff]
    %v8196 = vld [vmem:[%s4 + $0x28] sm:$0xff]
    %v8197 = vld [vmem:[%s4 + $0x30] sm:$0xff]
    %v8198 = vld [vmem:[%s4 + $0x38] sm:$0xff]
    %v8199 = vld [vmem:[%s4 + $0x40] sm:$0xff]
    %v8200 = vld [vmem:[%s4 + $0x48] sm:$0xff]
    %v8201 = vld [vmem:[%s4 + $0x50] sm:$0xff]
    %v8202 = vld [vmem:[%s4 + $0x58] sm:$0xff]
    %v8203 = vld [vmem:[%s4 + $0x60] sm:$0xff]
    %v8204 = vld [vmem:[%s4 + $0x68] sm:$0xff]
    %v8205 = vld [vmem:[%s4 + $0x70] sm:$0xff]
    %v8206 = vld [vmem:[%s4 + $0x78] sm:$0xff]
    %v8207 = vld [vmem:[%s4 + $0x80] sm:$0xff]
    %v8208 = vld [vmem:[%s4 + $0x88] sm:$0xff]
    %v8209 = vld [vmem:[%s4 + $0x90] sm:$0xff]
    %v8210 = vld [vmem:[%s4 + $0x98] sm:$0xff]
    %v8211 = vld [vmem:[%s4 + $0xa0] sm:$0xff]
    %v8212 = vld [vmem:[%s4 + $0xa8] sm:$0xff]
    %v8213 = vld [vmem:[%s4 + $0xb0] sm:$0xff]
    %v8214 = vld [vmem:[%s4 + $0xb8] sm:$0xff]
    %v8215 = vld [vmem:[%s4 + $0xc0] sm:$0xff]
    %v8216 = vld [vmem:[%s4 + $0xc8] sm:$0xff]
    %v8217 = vld [vmem:[%s4 + $0xd0] sm:$0xff]
    %v8218 = vld [vmem:[%s4 + $0xd8] sm:$0xff]
    %v8219 = vld [vmem:[%s4 + $0xe0] sm:$0xff]
    %v8220 = vld [vmem:[%s4 + $0xe8] sm:$0xff]
    %v8221 = vld [vmem:[%s4 + $0xf0] sm:$0xff]
    %v8222 = vld [vmem:[%s4 + $0xf8] sm:$0xff]
    %v8223 = vld [vmem:[%s4 + $0x100] sm:$0xff]
    %v8224 = vld [vmem:[%s4 + $0x108] sm:$0xff]
    %v8225 = vld [vmem:[%s4 + $0x110] sm:$0xff]
    %v8226 = vld [vmem:[%s4 + $0x118] sm:$0xff]
    %v8227 = vld [vmem:[%s4 + $0x120] sm:$0xff]
    %v8228 = vld [vmem:[%s4 + $0x128] sm:$0xff]
    %v8229 = vld [vmem:[%s4 + $0x130] sm:$0xff]
    %v8230 = vld [vmem:[%s4 + $0x138] sm:$0xff]
    %v8231 = vld [vmem:[%s4 + $0x140] sm:$0xff]
    %v8232 = vld [vmem:[%s4 + $0x148] sm:$0xff]
    %v8233 = vld [vmem:[%s4 + $0x150] sm:$0xff]
    %v8234 = vld [vmem:[%s4 + $0x158] sm:$0xff]
    %v8235 = vld [vmem:[%s4 + $0x160] sm:$0xff]
    %v8236 = vld [vmem:[%s4 + $0x168] sm:$0xff]
    %v8237 = vld [vmem:[%s4 + $0x170] sm:$0xff]
    %v8238 = vld [vmem:[%s4 + $0x178] sm:$0xff]
    %v8239 = vld [vmem:[%s4 + $0x180] sm:$0xff]
    %v8240 = vld [vmem:[%s4 + $0x188] sm:$0xff]
    %v8241 = vld [vmem:[%s4 + $0x190] sm:$0xff]
    %v8242 = vld [vmem:[%s4 + $0x198] sm:$0xff]
    %v8243 = vld [vmem:[%s4 + $0x1a0] sm:$0xff]
    %v8244 = vld [vmem:[%s4 + $0x1a8] sm:$0xff]
    %v8245 = vld [vmem:[%s4 + $0x1b0] sm:$0xff]
    %v8246 = vld [vmem:[%s4 + $0x1b8] sm:$0xff]
    %v8247 = vld [vmem:[%s4 + $0x1c0] sm:$0xff]
    %v8248 = vld [vmem:[%s4 + $0x1c8] sm:$0xff]
    %v8249 = vld [vmem:[%s4 + $0x1d0] sm:$0xff]
    %v8250 = vld [vmem:[%s4 + $0x1d8] sm:$0xff]
    %v8251 = vld [vmem:[%s4 + $0x1e0] sm:$0xff]
    %v8252 = vld [vmem:[%s4 + $0x1e8] sm:$0xff]
    %v8253 = vld [vmem:[%s4 + $0x1f0] sm:$0xff]
    %v8254 = vld [vmem:[%s4 + $0x1f8] sm:$0xff]
    %v8255 = vld [vmem:[%s4 + $0x200] sm:$0xff]
    %v8256 = vld [vmem:[%s4 + $0x208] sm:$0xff]
    %v8257 = vld [vmem:[%s4 + $0x210] sm:$0xff]
    %v8258 = vld [vmem:[%s4 + $0x218] sm:$0xff]
    %v8259 = vld [vmem:[%s4 + $0x220] sm:$0xff]
    %v8260 = vld [vmem:[%s4 + $0x228] sm:$0xff]
    %v8261 = vld [vmem:[%s4 + $0x230] sm:$0xff]
    %v8262 = vld [vmem:[%s4 + $0x238] sm:$0xff]
    %v8263 = vld [vmem:[%s4 + $0x240] sm:$0xff]
    %v8264 = vld [vmem:[%s4 + $0x248] sm:$0xff]
    %v8265 = vld [vmem:[%s4 + $0x250] sm:$0xff]
    %v8266 = vld [vmem:[%s4 + $0x258] sm:$0xff]
    %v8267 = vld [vmem:[%s4 + $0x260] sm:$0xff]
    %v8268 = vld [vmem:[%s4 + $0x268] sm:$0xff]
    %v8269 = vld [vmem:[%s4 + $0x270] sm:$0xff]
    %v8270 = vld [vmem:[%s4 + $0x278] sm:$0xff]
    %v8271 = vld [vmem:[%s4 + $0x280] sm:$0xff]
    %v8272 = vld [vmem:[%s4 + $0x288] sm:$0xff]
    %v8273 = vld [vmem:[%s4 + $0x290] sm:$0xff]
    %v8274 = vld [vmem:[%s4 + $0x298] sm:$0xff]
    %v8275 = vld [vmem:[%s4 + $0x2a0] sm:$0xff]
    %v8276 = vld [vmem:[%s4 + $0x2a8] sm:$0xff]
    %v8277 = vld [vmem:[%s4 + $0x2b0] sm:$0xff]
    %v8278 = vld [vmem:[%s4 + $0x2b8] sm:$0xff]
    %v8279 = vld [vmem:[%s4 + $0x2c0] sm:$0xff]
    %v8280 = vld [vmem:[%s4 + $0x2c8] sm:$0xff]
    %v8281 = vld [vmem:[%s4 + $0x2d0] sm:$0xff]
    %v8282 = vld [vmem:[%s4 + $0x2d8] sm:$0xff]
    %v8283 = vld [vmem:[%s4 + $0x2e0] sm:$0xff]
    %v8284 = vld [vmem:[%s4 + $0x2e8] sm:$0xff]
    %v8285 = vld [vmem:[%s4 + $0x2f0] sm:$0xff]
    %v8286 = vld [vmem:[%s4 + $0x2f8] sm:$0xff]
    %v8287 = vld [vmem:[%s4 + $0x300] sm:$0xff]
    %v8288 = vld [vmem:[%s4 + $0x308] sm:$0xff]
    %v8289 = vld [vmem:[%s4 + $0x310] sm:$0xff]
    %v8290 = vld [vmem:[%s4 + $0x318] sm:$0xff]
    %v8291 = vld [vmem:[%s4 + $0x320] sm:$0xff]
    %v8292 = vld [vmem:[%s4 + $0x328] sm:$0xff]
    %v8293 = vld [vmem:[%s4 + $0x330] sm:$0xff]
    %v8294 = vld [vmem:[%s4 + $0x338] sm:$0xff]
    %v8295 = vld [vmem:[%s4 + $0x340] sm:$0xff]
    %v8296 = vld [vmem:[%s4 + $0x348] sm:$0xff]
    %v8297 = vld [vmem:[%s4 + $0x350] sm:$0xff]
    %v8298 = vld [vmem:[%s4 + $0x358] sm:$0xff]
    %v8299 = vld [vmem:[%s4 + $0x360] sm:$0xff]
    %v8300 = vld [vmem:[%s4 + $0x368] sm:$0xff]
    %v8301 = vld [vmem:[%s4 + $0x370] sm:$0xff]
    %v8302 = vld [vmem:[%s4 + $0x378] sm:$0xff]
    %v8303 = vld [vmem:[%s4 + $0x380] sm:$0xff]
    %v8304 = vld [vmem:[%s4 + $0x388] sm:$0xff]
    %v8305 = vld [vmem:[%s4 + $0x390] sm:$0xff]
    %v8306 = vld [vmem:[%s4 + $0x398] sm:$0xff]
    %v8307 = vld [vmem:[%s4 + $0x3a0] sm:$0xff]
    %v8308 = vld [vmem:[%s4 + $0x3a8] sm:$0xff]
    %v8309 = vld [vmem:[%s4 + $0x3b0] sm:$0xff]
    %v8310 = vld [vmem:[%s4 + $0x3b8] sm:$0xff]
    %v8311 = vld [vmem:[%s4 + $0x3c0] sm:$0xff]
    %v8312 = vld [vmem:[%s4 + $0x3c8] sm:$0xff]
    %v8313 = vld [vmem:[%s4 + $0x3d0] sm:$0xff]
    %v8314 = vld [vmem:[%s4 + $0x3d8] sm:$0xff]
    %v8315 = vld [vmem:[%s4 + $0x3e0] sm:$0xff]
    %v8316 = vld [vmem:[%s4 + $0x3e8] sm:$0xff]
    %v8317 = vld [vmem:[%s4 + $0x3f0] sm:$0xff]
    %v8318 = vld [vmem:[%s4 + $0x3f8] sm:$0xff]
    %v8319 = vld [vmem:[%s4 + $0x400] sm:$0xff]
    %v8320 = vld [vmem:[%s4 + $0x408] sm:$0xff]
    %v8321 = vld [vmem:[%s4 + $0x410] sm:$0xff]
    %v8322 = vld [vmem:[%s4 + $0x418] sm:$0xff]
    %v8323 = vld [vmem:[%s4 + $0x420] sm:$0xff]
    %v8324 = vld [vmem:[%s4 + $0x428] sm:$0xff]
    %v8325 = vld [vmem:[%s4 + $0x430] sm:$0xff]
    %v8326 = vld [vmem:[%s4 + $0x438] sm:$0xff]
    %v8327 = vld [vmem:[%s4 + $0x440] sm:$0xff]
    %v8328 = vld [vmem:[%s4 + $0x448] sm:$0xff]
    %v8329 = vld [vmem:[%s4 + $0x450] sm:$0xff]
    %v8330 = vld [vmem:[%s4 + $0x458] sm:$0xff]
    %v8331 = vld [vmem:[%s4 + $0x460] sm:$0xff]
    %v8332 = vld [vmem:[%s4 + $0x468] sm:$0xff]
    %v8333 = vld [vmem:[%s4 + $0x470] sm:$0xff]
    %v8334 = vld [vmem:[%s4 + $0x478] sm:$0xff]
    %8335 = vmatprep.subr.mxu0 0.0
    %8336 = vmatpush1.msra.mxu0 %v8206
    %8337 = vmatprep.subr.mxu0 0.0
    %8338 = vmatpush1.msra.mxu0 %v8205
    %8339 = vmatprep.subr.mxu0 0.0
    %8340 = vmatpush1.msra.mxu0 %v8204
    %8341 = vmatprep.subr.mxu0 0.0
    %8342 = vmatpush1.msra.mxu0 %v8203
    %8343 = vmatprep.subr.mxu0 0.0
    %8344 = vmatpush1.msra.mxu0 %v8202
    %8345 = vmatprep.subr.mxu0 0.0
    %8346 = vmatpush1.msra.mxu0 %v8201
    %8347 = vmatprep.subr.mxu0 0.0
    %8348 = vmatpush1.msra.mxu0 %v8200
    %8349 = vmatprep.subr.mxu0 0.0
    %8350 = vmatpush1.msra.mxu0 %v8199
    %8351 = vmatprep.subr.mxu0 0.0
    %8352 = vmatpush1.msra.mxu0 %v8198
    %8353 = vmatprep.subr.mxu0 0.0
    %8354 = vmatpush1.msra.mxu0 %v8197
    %8355 = vmatprep.subr.mxu0 0.0
    %8356 = vmatpush1.msra.mxu0 %v8196
    %8357 = vmatprep.subr.mxu0 0.0
    %8358 = vmatpush1.msra.mxu0 %v8195
    %8359 = vmatprep.subr.mxu0 0.0
    %8360 = vmatpush1.msra.mxu0 %v8194
    %8361 = vmatprep.subr.mxu0 0.0
    %8362 = vmatpush1.msra.mxu0 %v8193
    %8363 = vmatprep.subr.mxu0 0.0
    %8364 = vmatpush1.msra.mxu0 %v8192
    %8365 = vmatprep.subr.mxu0 0.0
    %8366 = vmatpush1.msra.mxu0 %v8191
    %8367 = vmatprep.subr.mxu0 0.0
    %8368 = vmatpush2.msra.mxu0 %v8222
    %8369 = vmatprep.subr.mxu0 0.0
    %8370 = vmatpush2.msra.mxu0 %v8221
    %8371 = vmatprep.subr.mxu0 0.0
    %8372 = vmatpush2.msra.mxu0 %v8220
    %8373 = vmatprep.subr.mxu0 0.0
    %8374 = vmatpush2.msra.mxu0 %v8219
    %8375 = vmatprep.subr.mxu0 0.0
    %8376 = vmatpush2.msra.mxu0 %v8218
    %8377 = vmatprep.subr.mxu0 0.0
    %8378 = vmatpush2.msra.mxu0 %v8217
    %8379 = vmatprep.subr.mxu0 0.0
    %8380 = vmatpush2.msra.mxu0 %v8216
    %8381 = vmatprep.subr.mxu0 0.0
    %8382 = vmatpush2.msra.mxu0 %v8215
    %8383 = vmatprep.subr.mxu0 0.0
    %8384 = vmatpush2.msra.mxu0 %v8214
    %8385 = vmatprep.subr.mxu0 0.0
    %8386 = vmatpush2.msra.mxu0 %v8213
    %8387 = vmatprep.subr.mxu0 0.0
    %8388 = vmatpush2.msra.mxu0 %v8212
    %8389 = vmatprep.subr.mxu0 0.0
    %8390 = vmatpush2.msra.mxu0 %v8211
    %8391 = vmatprep.subr.mxu0 0.0
    %8392 = vmatpush2.msra.mxu0 %v8210
    %8393 = vmatprep.subr.mxu0 0.0
    %8394 = vmatpush2.msra.mxu0 %v8209
    %8395 = vmatprep.subr.mxu0 0.0
    %8396 = vmatpush2.msra.mxu0 %v8208
    %8397 = vmatprep.subr.mxu0 0.0
    %8398 = vmatpush2.msra.mxu0 %v8207
    %8399 = vmatprep.mubr.f32.mxu0 %v8141
    %8400 = vmatmul.mubr.f32.gmra.mxu0 %v8123
    %v8401 = vpop.f32.mrf.mxu0
    %v8402 = vadd.f32 0.0, %v8401
    %v8403 = vpop.f32.mrf.mxu0
    %8404 = vmatprep.mubr.f32.mxu0 %v8143
    %8405 = vmatmul.mubr.f32.gmra.mxu0 %v8124
    %v8406 = vpop.f32.mrf.mxu0
    %v8407 = vadd.f32 0.0, %v8406
    %v8408 = vpop.f32.mrf.mxu0
    %8409 = vmatprep.mubr.f32.mxu0 %v8145
    %8410 = vmatmul.mubr.f32.gmra.mxu0 %v8125
    %v8411 = vpop.f32.mrf.mxu0
    %v8412 = vadd.f32 0.0, %v8411
    %v8413 = vpop.f32.mrf.mxu0
    %8414 = vmatprep.mubr.f32.mxu0 %v8147
    %8415 = vmatmul.mubr.f32.gmra.mxu0 %v8126
    %v8416 = vpop.f32.mrf.mxu0
    %v8417 = vadd.f32 0.0, %v8416
    %v8418 = vpop.f32.mrf.mxu0
    %8419 = vmatprep.mubr.f32.mxu0 %v8149
    %8420 = vmatmul.mubr.f32.gmra.mxu0 %v8127
    %v8421 = vpop.f32.mrf.mxu0
    %v8422 = vadd.f32 0.0, %v8421
    %v8423 = vpop.f32.mrf.mxu0
    %8424 = vmatprep.mubr.f32.mxu0 %v8151
    %8425 = vmatmul.mubr.f32.gmra.mxu0 %v8128
    %v8426 = vpop.f32.mrf.mxu0
    %v8427 = vadd.f32 0.0, %v8426
    %v8428 = vpop.f32.mrf.mxu0
    %8429 = vdwg.mxu0
    %8430 = vmatprep.subr.mxu0 0.0
    %8431 = vmatpush1.msra.mxu0 %v8238
    %8432 = vmatprep.subr.mxu0 0.0
    %8433 = vmatpush1.msra.mxu0 %v8237
    %8434 = vmatprep.subr.mxu0 0.0
    %8435 = vmatpush1.msra.mxu0 %v8236
    %8436 = vmatprep.subr.mxu0 0.0
    %8437 = vmatpush1.msra.mxu0 %v8235
    %8438 = vmatprep.subr.mxu0 0.0
    %8439 = vmatpush1.msra.mxu0 %v8234
    %8440 = vmatprep.subr.mxu0 0.0
    %8441 = vmatpush1.msra.mxu0 %v8233
    %8442 = vmatprep.subr.mxu0 0.0
    %8443 = vmatpush1.msra.mxu0 %v8232
    %8444 = vmatprep.subr.mxu0 0.0
    %8445 = vmatpush1.msra.mxu0 %v8231
    %8446 = vmatprep.subr.mxu0 0.0
    %8447 = vmatpush1.msra.mxu0 %v8230
    %8448 = vmatprep.subr.mxu0 0.0
    %8449 = vmatpush1.msra.mxu0 %v8229
    %8450 = vmatprep.subr.mxu0 0.0
    %8451 = vmatpush1.msra.mxu0 %v8228
    %8452 = vmatprep.subr.mxu0 0.0
    %8453 = vmatpush1.msra.mxu0 %v8227
    %8454 = vmatprep.subr.mxu0 0.0
    %8455 = vmatpush1.msra.mxu0 %v8226
    %8456 = vmatprep.subr.mxu0 0.0
    %8457 = vmatpush1.msra.mxu0 %v8225
    %8458 = vmatprep.subr.mxu0 0.0
    %8459 = vmatpush1.msra.mxu0 %v8224
    %8460 = vmatprep.subr.mxu0 0.0
    %8461 = vmatpush1.msra.mxu0 %v8223
    %8462 = vmatprep.subr.mxu0 0.0
    %8463 = vmatpush2.msra.mxu0 %v8254
    %8464 = vmatprep.subr.mxu0 0.0
    %8465 = vmatpush2.msra.mxu0 %v8253
    %8466 = vmatprep.subr.mxu0 0.0
    %8467 = vmatpush2.msra.mxu0 %v8252
    %8468 = vmatprep.subr.mxu0 0.0
    %8469 = vmatpush2.msra.mxu0 %v8251
    %8470 = vmatprep.subr.mxu0 0.0
    %8471 = vmatpush2.msra.mxu0 %v8250
    %8472 = vmatprep.subr.mxu0 0.0
    %8473 = vmatpush2.msra.mxu0 %v8249
    %8474 = vmatprep.subr.mxu0 0.0
    %8475 = vmatpush2.msra.mxu0 %v8248
    %8476 = vmatprep.subr.mxu0 0.0
    %8477 = vmatpush2.msra.mxu0 %v8247
    %8478 = vmatprep.subr.mxu0 0.0
    %8479 = vmatpush2.msra.mxu0 %v8246
    %8480 = vmatprep.subr.mxu0 0.0
    %8481 = vmatpush2.msra.mxu0 %v8245
    %8482 = vmatprep.subr.mxu0 0.0
    %8483 = vmatpush2.msra.mxu0 %v8244
    %8484 = vmatprep.subr.mxu0 0.0
    %8485 = vmatpush2.msra.mxu0 %v8243
    %8486 = vmatprep.subr.mxu0 0.0
    %8487 = vmatpush2.msra.mxu0 %v8242
    %8488 = vmatprep.subr.mxu0 0.0
    %8489 = vmatpush2.msra.mxu0 %v8241
    %8490 = vmatprep.subr.mxu0 0.0
    %8491 = vmatpush2.msra.mxu0 %v8240
    %8492 = vmatprep.subr.mxu0 0.0
    %8493 = vmatpush2.msra.mxu0 %v8239
    %8494 = vmatprep.mubr.f32.mxu0 %v8124
    %8495 = vmatmul.mubr.f32.gmra.mxu0 %v8160
    %v8496 = vpop.f32.mrf.mxu0
    %v8497 = vadd.f32 %v8402, %v8496
    %v8498 = vpop.f32.mrf.mxu0
    %8499 = vmatprep.mubr.f32.mxu0 %v8125
    %8500 = vmatmul.mubr.f32.gmra.mxu0 %v8162
    %v8501 = vpop.f32.mrf.mxu0
    %v8502 = vadd.f32 %v8407, %v8501
    %v8503 = vpop.f32.mrf.mxu0
    %8504 = vmatprep.mubr.f32.mxu0 %v8126
    %8505 = vmatmul.mubr.f32.gmra.mxu0 %v8164
    %v8506 = vpop.f32.mrf.mxu0
    %v8507 = vadd.f32 %v8412, %v8506
    %v8508 = vpop.f32.mrf.mxu0
    %8509 = vmatprep.mubr.f32.mxu0 %v8127
    %8510 = vmatmul.mubr.f32.gmra.mxu0 %v8166
    %v8511 = vpop.f32.mrf.mxu0
    %v8512 = vadd.f32 %v8417, %v8511
    %v8513 = vpop.f32.mrf.mxu0
    %8514 = vmatprep.mubr.f32.mxu0 %v8128
    %8515 = vmatmul.mubr.f32.gmra.mxu0 %v8168
    %v8516 = vpop.f32.mrf.mxu0
    %v8517 = vadd.f32 %v8422, %v8516
    %v8518 = vpop.f32.mrf.mxu0
    %8519 = vmatprep.mubr.f32.mxu0 %v8129
    %8520 = vmatmul.mubr.f32.gmra.mxu0 %v8170
    %v8521 = vpop.f32.mrf.mxu0
    %v8522 = vadd.f32 %v8427, %v8521
    %v8523 = vpop.f32.mrf.mxu0
    %8524 = vdwg.mxu0
    %8525 = vmatprep.subr.mxu0 0.0
    %8526 = vmatpush1.msra.mxu0 %v8270
    %8527 = vmatprep.subr.mxu0 0.0
    %8528 = vmatpush1.msra.mxu0 %v8269
    %8529 = vmatprep.subr.mxu0 0.0
    %8530 = vmatpush1.msra.mxu0 %v8268
    %8531 = vmatprep.subr.mxu0 0.0
    %8532 = vmatpush1.msra.mxu0 %v8267
    %8533 = vmatprep.subr.mxu0 0.0
    %8534 = vmatpush1.msra.mxu0 %v8266
    %8535 = vmatprep.subr.mxu0 0.0
    %8536 = vmatpush1.msra.mxu0 %v8265
    %8537 = vmatprep.subr.mxu0 0.0
    %8538 = vmatpush1.msra.mxu0 %v8264
    %8539 = vmatprep.subr.mxu0 0.0
    %8540 = vmatpush1.msra.mxu0 %v8263
    %8541 = vmatprep.subr.mxu0 0.0
    %8542 = vmatpush1.msra.mxu0 %v8262
    %8543 = vmatprep.subr.mxu0 0.0
    %8544 = vmatpush1.msra.mxu0 %v8261
    %8545 = vmatprep.subr.mxu0 0.0
    %8546 = vmatpush1.msra.mxu0 %v8260
    %8547 = vmatprep.subr.mxu0 0.0
    %8548 = vmatpush1.msra.mxu0 %v8259
    %8549 = vmatprep.subr.mxu0 0.0
    %8550 = vmatpush1.msra.mxu0 %v8258
    %8551 = vmatprep.subr.mxu0 0.0
    %8552 = vmatpush1.msra.mxu0 %v8257
    %8553 = vmatprep.subr.mxu0 0.0
    %8554 = vmatpush1.msra.mxu0 %v8256
    %8555 = vmatprep.subr.mxu0 0.0
    %8556 = vmatpush1.msra.mxu0 %v8255
    %8557 = vmatprep.subr.mxu0 0.0
    %8558 = vmatpush2.msra.mxu0 %v8286
    %8559 = vmatprep.subr.mxu0 0.0
    %8560 = vmatpush2.msra.mxu0 %v8285
    %8561 = vmatprep.subr.mxu0 0.0
    %8562 = vmatpush2.msra.mxu0 %v8284
    %8563 = vmatprep.subr.mxu0 0.0
    %8564 = vmatpush2.msra.mxu0 %v8283
    %8565 = vmatprep.subr.mxu0 0.0
    %8566 = vmatpush2.msra.mxu0 %v8282
    %8567 = vmatprep.subr.mxu0 0.0
    %8568 = vmatpush2.msra.mxu0 %v8281
    %8569 = vmatprep.subr.mxu0 0.0
    %8570 = vmatpush2.msra.mxu0 %v8280
    %8571 = vmatprep.subr.mxu0 0.0
    %8572 = vmatpush2.msra.mxu0 %v8279
    %8573 = vmatprep.subr.mxu0 0.0
    %8574 = vmatpush2.msra.mxu0 %v8278
    %8575 = vmatprep.subr.mxu0 0.0
    %8576 = vmatpush2.msra.mxu0 %v8277
    %8577 = vmatprep.subr.mxu0 0.0
    %8578 = vmatpush2.msra.mxu0 %v8276
    %8579 = vmatprep.subr.mxu0 0.0
    %8580 = vmatpush2.msra.mxu0 %v8275
    %8581 = vmatprep.subr.mxu0 0.0
    %8582 = vmatpush2.msra.mxu0 %v8274
    %8583 = vmatprep.subr.mxu0 0.0
    %8584 = vmatpush2.msra.mxu0 %v8273
    %8585 = vmatprep.subr.mxu0 0.0
    %8586 = vmatpush2.msra.mxu0 %v8272
    %8587 = vmatprep.subr.mxu0 0.0
    %8588 = vmatpush2.msra.mxu0 %v8271
    %8589 = vmatprep.mubr.f32.mxu0 %v8162
    %8590 = vmatmul.mubr.f32.gmra.mxu0 %v8143
    %v8591 = vpop.f32.mrf.mxu0
    %v8592 = vadd.f32 %v8497, %v8591
    %v8593 = vpop.f32.mrf.mxu0
    %8594 = vmatprep.mubr.f32.mxu0 %v8164
    %8595 = vmatmul.mubr.f32.gmra.mxu0 %v8145
    %v8596 = vpop.f32.mrf.mxu0
    %v8597 = vadd.f32 %v8502, %v8596
    %v8598 = vpop.f32.mrf.mxu0
    %8599 = vmatprep.mubr.f32.mxu0 %v8166
    %8600 = vmatmul.mubr.f32.gmra.mxu0 %v8147
    %v8601 = vpop.f32.mrf.mxu0
    %v8602 = vadd.f32 %v8507, %v8601
    %v8603 = vpop.f32.mrf.mxu0
    %8604 = vmatprep.mubr.f32.mxu0 %v8168
    %8605 = vmatmul.mubr.f32.gmra.mxu0 %v8149
    %v8606 = vpop.f32.mrf.mxu0
    %v8607 = vadd.f32 %v8512, %v8606
    %v8608 = vpop.f32.mrf.mxu0
    %8609 = vmatprep.mubr.f32.mxu0 %v8170
    %8610 = vmatmul.mubr.f32.gmra.mxu0 %v8151
    %v8611 = vpop.f32.mrf.mxu0
    %v8612 = vadd.f32 %v8517, %v8611
    %v8613 = vpop.f32.mrf.mxu0
    %8614 = vmatprep.mubr.f32.mxu0 %v8182
    %8615 = vmatmul.mubr.f32.gmra.mxu0 %v8179
    %v8616 = vpop.f32.mrf.mxu0
    %v8617 = vadd.f32 %v8522, %v8616
    %v8618 = vpop.f32.mrf.mxu0
    %8619 = vdwg.mxu0
    %8620 = vmatprep.subr.mxu0 0.0
    %8621 = vmatpush1.msra.mxu0 %v8302
    %8622 = vmatprep.subr.mxu0 0.0
    %8623 = vmatpush1.msra.mxu0 %v8301
    %8624 = vmatprep.subr.mxu0 0.0
    %8625 = vmatpush1.msra.mxu0 %v8300
    %8626 = vmatprep.subr.mxu0 0.0
    %8627 = vmatpush1.msra.mxu0 %v8299
    %8628 = vmatprep.subr.mxu0 0.0
    %8629 = vmatpush1.msra.mxu0 %v8298
    %8630 = vmatprep.subr.mxu0 0.0
    %8631 = vmatpush1.msra.mxu0 %v8297
    %8632 = vmatprep.subr.mxu0 0.0
    %8633 = vmatpush1.msra.mxu0 %v8296
    %8634 = vmatprep.subr.mxu0 0.0
    %8635 = vmatpush1.msra.mxu0 %v8295
    %8636 = vmatprep.subr.mxu0 0.0
    %8637 = vmatpush1.msra.mxu0 %v8294
    %8638 = vmatprep.subr.mxu0 0.0
    %8639 = vmatpush1.msra.mxu0 %v8293
    %8640 = vmatprep.subr.mxu0 0.0
    %8641 = vmatpush1.msra.mxu0 %v8292
    %8642 = vmatprep.subr.mxu0 0.0
    %8643 = vmatpush1.msra.mxu0 %v8291
    %8644 = vmatprep.subr.mxu0 0.0
    %8645 = vmatpush1.msra.mxu0 %v8290
    %8646 = vmatprep.subr.mxu0 0.0
    %8647 = vmatpush1.msra.mxu0 %v8289
    %8648 = vmatprep.subr.mxu0 0.0
    %8649 = vmatpush1.msra.mxu0 %v8288
    %8650 = vmatprep.subr.mxu0 0.0
    %8651 = vmatpush1.msra.mxu0 %v8287
    %8652 = vmatprep.subr.mxu0 0.0
    %8653 = vmatpush2.msra.mxu0 %v8318
    %8654 = vmatprep.subr.mxu0 0.0
    %8655 = vmatpush2.msra.mxu0 %v8317
    %8656 = vmatprep.subr.mxu0 0.0
    %8657 = vmatpush2.msra.mxu0 %v8316
    %8658 = vmatprep.subr.mxu0 0.0
    %8659 = vmatpush2.msra.mxu0 %v8315
    %8660 = vmatprep.subr.mxu0 0.0
    %8661 = vmatpush2.msra.mxu0 %v8314
    %8662 = vmatprep.subr.mxu0 0.0
    %8663 = vmatpush2.msra.mxu0 %v8313
    %8664 = vmatprep.subr.mxu0 0.0
    %8665 = vmatpush2.msra.mxu0 %v8312
    %8666 = vmatprep.subr.mxu0 0.0
    %8667 = vmatpush2.msra.mxu0 %v8311
    %8668 = vmatprep.subr.mxu0 0.0
    %8669 = vmatpush2.msra.mxu0 %v8310
    %8670 = vmatprep.subr.mxu0 0.0
    %8671 = vmatpush2.msra.mxu0 %v8309
    %8672 = vmatprep.subr.mxu0 0.0
    %8673 = vmatpush2.msra.mxu0 %v8308
    %8674 = vmatprep.subr.mxu0 0.0
    %8675 = vmatpush2.msra.mxu0 %v8307
    %8676 = vmatprep.subr.mxu0 0.0
    %8677 = vmatpush2.msra.mxu0 %v8306
    %8678 = vmatprep.subr.mxu0 0.0
    %8679 = vmatpush2.msra.mxu0 %v8305
    %8680 = vmatprep.subr.mxu0 0.0
    %8681 = vmatpush2.msra.mxu0 %v8304
    %8682 = vmatprep.subr.mxu0 0.0
    %8683 = vmatpush2.msra.mxu0 %v8303
    %8684 = vmatprep.mubr.f32.mxu0 %v8145
    %8685 = vmatmul.mubr.f32.gmra.mxu0 %v8125
    %v8686 = vpop.f32.mrf.mxu0
    %v8687 = vadd.f32 %v8592, %v8686
    %v8688 = vpop.f32.mrf.mxu0
    %8689 = vmatprep.mubr.f32.mxu0 %v8147
    %8690 = vmatmul.mubr.f32.gmra.mxu0 %v8126
    %v8691 = vpop.f32.mrf.mxu0
    %v8692 = vadd.f32 %v8597, %v8691
    %v8693 = vpop.f32.mrf.mxu0
    %8694 = vmatprep.mubr.f32.mxu0 %v8149
    %8695 = vmatmul.mubr.f32.gmra.mxu0 %v8127
    %v8696 = vpop.f32.mrf.mxu0
    %v8697 = vadd.f32 %v8602, %v8696
    %v8698 = vpop.f32.mrf.mxu0
    %8699 = vmatprep.mubr.f32.mxu0 %v8151
    %8700 = vmatmul.mubr.f32.gmra.mxu0 %v8128
    %v8701 = vpop.f32.mrf.mxu0
    %v8702 = vadd.f32 %v8607, %v8701
    %v8703 = vpop.f32.mrf.mxu0
    %8704 = vmatprep.mubr.f32.mxu0 %v8179
    %8705 = vmatmul.mubr.f32.gmra.mxu0 %v8129
    %v8706 = vpop.f32.mrf.mxu0
    %v8707 = vadd.f32 %v8612, %v8706
    %v8708 = vpop.f32.mrf.mxu0
    %8709 = vmatprep.mubr.f32.mxu0 %v8186
    %8710 = vmatmul.mubr.f32.gmra.mxu0 %v8130
    %v8711 = vpop.f32.mrf.mxu0
    %v8712 = vadd.f32 %v8617, %v8711
    %v8713 = vpop.f32.mrf.mxu0
    %8714 = vdwg.mxu0
    %8715 = vmatprep.subr.mxu0 0.0
    %8716 = vmatpush1.msra.mxu0 %v8334
    %8717 = vmatprep.subr.mxu0 0.0
    %8718 = vmatpush1.msra.mxu0 %v8333
    %8719 = vmatprep.subr.mxu0 0.0
    %8720 = vmatpush1.msra.mxu0 %v8332
    %8721 = vmatprep.subr.mxu0 0.0
    %8722 = vmatpush1.msra.mxu0 %v8331
    %8723 = vmatprep.subr.mxu0 0.0
    %8724 = vmatpush1.msra.mxu0 %v8330
    %8725 = vmatprep.subr.mxu0 0.0
    %8726 = vmatpush1.msra.mxu0 %v8329
    %8727 = vmatprep.subr.mxu0 0.0
    %8728 = vmatpush1.msra.mxu0 %v8328
    %8729 = vmatprep.subr.mxu0 0.0
    %8730 = vmatpush1.msra.mxu0 %v8327
    %8731 = vmatprep.subr.mxu0 0.0
    %8732 = vmatpush1.msra.mxu0 %v8326
    %8733 = vmatprep.subr.mxu0 0.0
    %8734 = vmatpush1.msra.mxu0 %v8325
    %8735 = vmatprep.subr.mxu0 0.0
    %8736 = vmatpush1.msra.mxu0 %v8324
    %8737 = vmatprep.subr.mxu0 0.0
    %8738 = vmatpush1.msra.mxu0 %v8323
    %8739 = vmatprep.subr.mxu0 0.0
    %8740 = vmatpush1.msra.mxu0 %v8322
    %8741 = vmatprep.subr.mxu0 0.0
    %8742 = vmatpush1.msra.mxu0 %v8321
    %8743 = vmatprep.subr.mxu0 0.0
    %8744 = vmatpush1.msra.mxu0 %v8320
    %8745 = vmatprep.subr.mxu0 0.0
    %8746 = vmatpush1.msra.mxu0 %v8319
    %8747 = vmatprep.subr.mxu0 0.0
    %8748 = vmatpush2.msra.mxu0 0.0
    %8749 = vmatprep.subr.mxu0 0.0
    %8750 = vmatpush2.msra.mxu0 0.0
    %8751 = vmatprep.subr.mxu0 0.0
    %8752 = vmatpush2.msra.mxu0 0.0
    %8753 = vmatprep.subr.mxu0 0.0
    %8754 = vmatpush2.msra.mxu0 0.0
    %8755 = vmatprep.subr.mxu0 0.0
    %8756 = vmatpush2.msra.mxu0 0.0
    %8757 = vmatprep.subr.mxu0 0.0
    %8758 = vmatpush2.msra.mxu0 0.0
    %8759 = vmatprep.subr.mxu0 0.0
    %8760 = vmatpush2.msra.mxu0 0.0
    %8761 = vmatprep.subr.mxu0 0.0
    %8762 = vmatpush2.msra.mxu0 0.0
    %8763 = vmatprep.subr.mxu0 0.0
    %8764 = vmatpush2.msra.mxu0 0.0
    %8765 = vmatprep.subr.mxu0 0.0
    %8766 = vmatpush2.msra.mxu0 0.0
    %8767 = vmatprep.subr.mxu0 0.0
    %8768 = vmatpush2.msra.mxu0 0.0
    %8769 = vmatprep.subr.mxu0 0.0
    %8770 = vmatpush2.msra.mxu0 0.0
    %8771 = vmatprep.subr.mxu0 0.0
    %8772 = vmatpush2.msra.mxu0 0.0
    %8773 = vmatprep.subr.mxu0 0.0
    %8774 = vmatpush2.msra.mxu0 0.0
    %8775 = vmatprep.subr.mxu0 0.0
    %8776 = vmatpush2.msra.mxu0 0.0
    %8777 = vmatprep.subr.mxu0 0.0
    %8778 = vmatpush2.msra.mxu0 0.0
    %8779 = vmatprep.mubr.f32.mxu0 0.0
    %8780 = vmatmul.mubr.f32.gmra.mxu0 %v8164
    %v8781 = vpop.f32.mrf.mxu0
    %v8782 = vadd.f32 %v8687, %v8781
    %v8783 = vpop.f32.mrf.mxu0
    %8784 = vmatprep.mubr.f32.mxu0 0.0
    %8785 = vmatmul.mubr.f32.gmra.mxu0 %v8166
    %v8786 = vpop.f32.mrf.mxu0
    %v8787 = vadd.f32 %v8692, %v8786
    %v8788 = vpop.f32.mrf.mxu0
    %8789 = vmatprep.mubr.f32.mxu0 0.0
    %8790 = vmatmul.mubr.f32.gmra.mxu0 %v8168
    %v8791 = vpop.f32.mrf.mxu0
    %v8792 = vadd.f32 %v8697, %v8791
    %v8793 = vpop.f32.mrf.mxu0
    %8794 = vmatprep.mubr.f32.mxu0 0.0
    %8795 = vmatmul.mubr.f32.gmra.mxu0 %v8170
    %v8796 = vpop.f32.mrf.mxu0
    %v8797 = vadd.f32 %v8702, %v8796
    %v8798 = vpop.f32.mrf.mxu0
    %8799 = vmatprep.mubr.f32.mxu0 0.0
    %8800 = vmatmul.mubr.f32.gmra.mxu0 %v8182
    %v8801 = vpop.f32.mrf.mxu0
    %v8802 = vadd.f32 %v8707, %v8801
    %v8803 = vpop.f32.mrf.mxu0
    %8804 = vmatprep.mubr.f32.mxu0 0.0
    %8805 = vmatmul.mubr.f32.gmra.mxu0 %v8189
    %v8806 = vpop.f32.mrf.mxu0
    %v8807 = vadd.f32 %v8712, %v8806
    %v8808 = vpop.f32.mrf.mxu0
    %8809 = vdwg.mxu0
    %v8810 = vsel %vm7428, %v8782, 0.0
    %v8811 = vsel %vm7429, %v8787, 0.0
    %v8812 = vsel %vm7430, %v8792, 0.0
    %v8813 = vsel %vm7431, %v8797, 0.0
    %v8814 = vsel %vm7432, %v8802, 0.0
    %v8815 = vsel %vm7433, %v8807, 0.0
    %v8816 = vadd.f32 %v8810, %v8811
    %v8817 = vadd.f32 %v8816, %v8812
    %v8818 = vadd.f32 %v8817, %v8813
    %v8819 = vadd.f32 %v8818, %v8814
    %v8820 = vadd.f32 %v8819, %v8815
    %v8821 = vrot.slane %v8820, 4
    %v8822 = vadd.f32 %v8820, %v8821
    %v8823 = vrot.slane %v8822, 2
    %v8824 = vadd.f32 %v8822, %v8823
    %v8825 = vrot.slane %v8824, 1
    %v8826 = vadd.f32 %v8824, %v8825
    %v8827 = vmul.f32 %v8810, %v8810
    %v8828 = vmul.f32 %v8811, %v8811
    %v8829 = vmul.f32 %v8812, %v8812
    %v8830 = vmul.f32 %v8813, %v8813
    %v8831 = vmul.f32 %v8814, %v8814
    %v8832 = vmul.f32 %v8815, %v8815
    %v8833 = vadd.f32 %v8827, %v8828
    %v8834 = vadd.f32 %v8833, %v8829
    %v8835 = vadd.f32 %v8834, %v8830
    %v8836 = vadd.f32 %v8835, %v8831
    %v8837 = vadd.f32 %v8836, %v8832
    %v8838 = vrot.slane %v8837, 4
    %v8839 = vadd.f32 %v8837, %v8838
    %v8840 = vrot.slane %v8839, 2
    %v8841 = vadd.f32 %v8839, %v8840
    %v8842 = vrot.slane %v8841, 1
    %v8843 = vadd.f32 %v8841, %v8842
    %v8844 = vadd.f32 %v8826, 0.0
    %v8845 = vadd.f32 %v8843, 0.0
    %s8846 = scalar_lea.vmem [#allocation5], 72
    %v8847 = vld [vmem:[%s8846] sm:$0xff]
    %v8848 = vld [vmem:[%s8846 + $0x8] sm:$0xff]
    %v8849 = vld [vmem:[%s8846 + $0x10] sm:$0xff]
    %v8850 = vld [vmem:[%s8846 + $0x18] sm:$0xff]
    %v8851 = vld [vmem:[%s8846 + $0x20] sm:$0xff]
    %v8852 = vld [vmem:[%s8846 + $0x28] sm:$0xff]
    %v8853 = vld [vmem:[%s8846 + $0x30] sm:$0xff]
    %v8854 = vld [vmem:[%s8846 + $0x38] sm:$0xff]
    %v8855 = vld [vmem:[%s8846 + $0x40] sm:$0xff]
    %v8863 = vrot.slane %v8847, 1
    %v8864 = vrot.slane %v8848, 1
    %v8865 = vsel %vm4460, %v8863, %v8864
    %v8866 = vrot.slane %v8849, 1
    %v8867 = vsel %vm4460, %v8864, %v8866
    %v8868 = vrot.slane %v8850, 1
    %v8869 = vsel %vm4460, %v8866, %v8868
    %v8870 = vrot.slane %v8851, 1
    %v8871 = vsel %vm4460, %v8868, %v8870
    %v8872 = vrot.slane %v8852, 1
    %v8873 = vsel %vm4460, %v8870, %v8872
    %v8874 = vrot.slane %v8853, 1
    %v8875 = vsel %vm4460, %v8872, %v8874
    %v8882 = vrot.slane %v8847, 2
    %v8883 = vrot.slane %v8848, 2
    %v8884 = vsel %vm4542, %v8882, %v8883
    %v8885 = vrot.slane %v8849, 2
    %v8886 = vsel %vm4542, %v8883, %v8885
    %v8887 = vrot.slane %v8850, 2
    %v8888 = vsel %vm4542, %v8885, %v8887
    %v8889 = vrot.slane %v8851, 2
    %v8890 = vsel %vm4542, %v8887, %v8889
    %v8891 = vrot.slane %v8852, 2
    %v8892 = vsel %vm4542, %v8889, %v8891
    %v8893 = vrot.slane %v8853, 2
    %v8894 = vsel %vm4542, %v8891, %v8893
    %v8902 = vrot.slane %v8854, 1
    %v8903 = vsel %vm4460, %v8874, %v8902
    %v8905 = vrot.slane %v8854, 2
    %v8906 = vsel %vm4542, %v8893, %v8905
    %v8909 = vrot.slane %v8855, 1
    %v8910 = vsel %vm4460, %v8902, %v8909
    %v8912 = vrot.slane %v8855, 2
    %v8913 = vsel %vm4542, %v8905, %v8912
    %8915 = vmatprep.subr.mxu0 0.0
    %8916 = vmatpush1.msra.mxu0 %v8206
    %8917 = vmatprep.subr.mxu0 0.0
    %8918 = vmatpush1.msra.mxu0 %v8205
    %8919 = vmatprep.subr.mxu0 0.0
    %8920 = vmatpush1.msra.mxu0 %v8204
    %8921 = vmatprep.subr.mxu0 0.0
    %8922 = vmatpush1.msra.mxu0 %v8203
    %8923 = vmatprep.subr.mxu0 0.0
    %8924 = vmatpush1.msra.mxu0 %v8202
    %8925 = vmatprep.subr.mxu0 0.0
    %8926 = vmatpush1.msra.mxu0 %v8201
    %8927 = vmatprep.subr.mxu0 0.0
    %8928 = vmatpush1.msra.mxu0 %v8200
    %8929 = vmatprep.subr.mxu0 0.0
    %8930 = vmatpush1.msra.mxu0 %v8199
    %8931 = vmatprep.subr.mxu0 0.0
    %8932 = vmatpush1.msra.mxu0 %v8198
    %8933 = vmatprep.subr.mxu0 0.0
    %8934 = vmatpush1.msra.mxu0 %v8197
    %8935 = vmatprep.subr.mxu0 0.0
    %8936 = vmatpush1.msra.mxu0 %v8196
    %8937 = vmatprep.subr.mxu0 0.0
    %8938 = vmatpush1.msra.mxu0 %v8195
    %8939 = vmatprep.subr.mxu0 0.0
    %8940 = vmatpush1.msra.mxu0 %v8194
    %8941 = vmatprep.subr.mxu0 0.0
    %8942 = vmatpush1.msra.mxu0 %v8193
    %8943 = vmatprep.subr.mxu0 0.0
    %8944 = vmatpush1.msra.mxu0 %v8192
    %8945 = vmatprep.subr.mxu0 0.0
    %8946 = vmatpush1.msra.mxu0 %v8191
    %8947 = vmatprep.subr.mxu0 0.0
    %8948 = vmatpush2.msra.mxu0 %v8222
    %8949 = vmatprep.subr.mxu0 0.0
    %8950 = vmatpush2.msra.mxu0 %v8221
    %8951 = vmatprep.subr.mxu0 0.0
    %8952 = vmatpush2.msra.mxu0 %v8220
    %8953 = vmatprep.subr.mxu0 0.0
    %8954 = vmatpush2.msra.mxu0 %v8219
    %8955 = vmatprep.subr.mxu0 0.0
    %8956 = vmatpush2.msra.mxu0 %v8218
    %8957 = vmatprep.subr.mxu0 0.0
    %8958 = vmatpush2.msra.mxu0 %v8217
    %8959 = vmatprep.subr.mxu0 0.0
    %8960 = vmatpush2.msra.mxu0 %v8216
    %8961 = vmatprep.subr.mxu0 0.0
    %8962 = vmatpush2.msra.mxu0 %v8215
    %8963 = vmatprep.subr.mxu0 0.0
    %8964 = vmatpush2.msra.mxu0 %v8214
    %8965 = vmatprep.subr.mxu0 0.0
    %8966 = vmatpush2.msra.mxu0 %v8213
    %8967 = vmatprep.subr.mxu0 0.0
    %8968 = vmatpush2.msra.mxu0 %v8212
    %8969 = vmatprep.subr.mxu0 0.0
    %8970 = vmatpush2.msra.mxu0 %v8211
    %8971 = vmatprep.subr.mxu0 0.0
    %8972 = vmatpush2.msra.mxu0 %v8210
    %8973 = vmatprep.subr.mxu0 0.0
    %8974 = vmatpush2.msra.mxu0 %v8209
    %8975 = vmatprep.subr.mxu0 0.0
    %8976 = vmatpush2.msra.mxu0 %v8208
    %8977 = vmatprep.subr.mxu0 0.0
    %8978 = vmatpush2.msra.mxu0 %v8207
    %8979 = vmatprep.mubr.f32.mxu0 %v8865
    %8980 = vmatmul.mubr.f32.gmra.mxu0 %v8847
    %v8981 = vpop.f32.mrf.mxu0
    %v8982 = vadd.f32 0.0, %v8981
    %v8983 = vpop.f32.mrf.mxu0
    %8984 = vmatprep.mubr.f32.mxu0 %v8867
    %8985 = vmatmul.mubr.f32.gmra.mxu0 %v8848
    %v8986 = vpop.f32.mrf.mxu0
    %v8987 = vadd.f32 0.0, %v8986
    %v8988 = vpop.f32.mrf.mxu0
    %8989 = vmatprep.mubr.f32.mxu0 %v8869
    %8990 = vmatmul.mubr.f32.gmra.mxu0 %v8849
    %v8991 = vpop.f32.mrf.mxu0
    %v8992 = vadd.f32 0.0, %v8991
    %v8993 = vpop.f32.mrf.mxu0
    %8994 = vmatprep.mubr.f32.mxu0 %v8871
    %8995 = vmatmul.mubr.f32.gmra.mxu0 %v8850
    %v8996 = vpop.f32.mrf.mxu0
    %v8997 = vadd.f32 0.0, %v8996
    %v8998 = vpop.f32.mrf.mxu0
    %8999 = vmatprep.mubr.f32.mxu0 %v8873
    %9000 = vmatmul.mubr.f32.gmra.mxu0 %v8851
    %v9001 = vpop.f32.mrf.mxu0
    %v9002 = vadd.f32 0.0, %v9001
    %v9003 = vpop.f32.mrf.mxu0
    %9004 = vmatprep.mubr.f32.mxu0 %v8875
    %9005 = vmatmul.mubr.f32.gmra.mxu0 %v8852
    %v9006 = vpop.f32.mrf.mxu0
    %v9007 = vadd.f32 0.0, %v9006
    %v9008 = vpop.f32.mrf.mxu0
    %9009 = vdwg.mxu0
    %9010 = vmatprep.subr.mxu0 0.0
    %9011 = vmatpush1.msra.mxu0 %v8238
    %9012 = vmatprep.subr.mxu0 0.0
    %9013 = vmatpush1.msra.mxu0 %v8237
    %9014 = vmatprep.subr.mxu0 0.0
    %9015 = vmatpush1.msra.mxu0 %v8236
    %9016 = vmatprep.subr.mxu0 0.0
    %9017 = vmatpush1.msra.mxu0 %v8235
    %9018 = vmatprep.subr.mxu0 0.0
    %9019 = vmatpush1.msra.mxu0 %v8234
    %9020 = vmatprep.subr.mxu0 0.0
    %9021 = vmatpush1.msra.mxu0 %v8233
    %9022 = vmatprep.subr.mxu0 0.0
    %9023 = vmatpush1.msra.mxu0 %v8232
    %9024 = vmatprep.subr.mxu0 0.0
    %9025 = vmatpush1.msra.mxu0 %v8231
    %9026 = vmatprep.subr.mxu0 0.0
    %9027 = vmatpush1.msra.mxu0 %v8230
    %9028 = vmatprep.subr.mxu0 0.0
    %9029 = vmatpush1.msra.mxu0 %v8229
    %9030 = vmatprep.subr.mxu0 0.0
    %9031 = vmatpush1.msra.mxu0 %v8228
    %9032 = vmatprep.subr.mxu0 0.0
    %9033 = vmatpush1.msra.mxu0 %v8227
    %9034 = vmatprep.subr.mxu0 0.0
    %9035 = vmatpush1.msra.mxu0 %v8226
    %9036 = vmatprep.subr.mxu0 0.0
    %9037 = vmatpush1.msra.mxu0 %v8225
    %9038 = vmatprep.subr.mxu0 0.0
    %9039 = vmatpush1.msra.mxu0 %v8224
    %9040 = vmatprep.subr.mxu0 0.0
    %9041 = vmatpush1.msra.mxu0 %v8223
    %9042 = vmatprep.subr.mxu0 0.0
    %9043 = vmatpush2.msra.mxu0 %v8254
    %9044 = vmatprep.subr.mxu0 0.0
    %9045 = vmatpush2.msra.mxu0 %v8253
    %9046 = vmatprep.subr.mxu0 0.0
    %9047 = vmatpush2.msra.mxu0 %v8252
    %9048 = vmatprep.subr.mxu0 0.0
    %9049 = vmatpush2.msra.mxu0 %v8251
    %9050 = vmatprep.subr.mxu0 0.0
    %9051 = vmatpush2.msra.mxu0 %v8250
    %9052 = vmatprep.subr.mxu0 0.0
    %9053 = vmatpush2.msra.mxu0 %v8249
    %9054 = vmatprep.subr.mxu0 0.0
    %9055 = vmatpush2.msra.mxu0 %v8248
    %9056 = vmatprep.subr.mxu0 0.0
    %9057 = vmatpush2.msra.mxu0 %v8247
    %9058 = vmatprep.subr.mxu0 0.0
    %9059 = vmatpush2.msra.mxu0 %v8246
    %9060 = vmatprep.subr.mxu0 0.0
    %9061 = vmatpush2.msra.mxu0 %v8245
    %9062 = vmatprep.subr.mxu0 0.0
    %9063 = vmatpush2.msra.mxu0 %v8244
    %9064 = vmatprep.subr.mxu0 0.0
    %9065 = vmatpush2.msra.mxu0 %v8243
    %9066 = vmatprep.subr.mxu0 0.0
    %9067 = vmatpush2.msra.mxu0 %v8242
    %9068 = vmatprep.subr.mxu0 0.0
    %9069 = vmatpush2.msra.mxu0 %v8241
    %9070 = vmatprep.subr.mxu0 0.0
    %9071 = vmatpush2.msra.mxu0 %v8240
    %9072 = vmatprep.subr.mxu0 0.0
    %9073 = vmatpush2.msra.mxu0 %v8239
    %9074 = vmatprep.mubr.f32.mxu0 %v8848
    %9075 = vmatmul.mubr.f32.gmra.mxu0 %v8884
    %v9076 = vpop.f32.mrf.mxu0
    %v9077 = vadd.f32 %v8982, %v9076
    %v9078 = vpop.f32.mrf.mxu0
    %9079 = vmatprep.mubr.f32.mxu0 %v8849
    %9080 = vmatmul.mubr.f32.gmra.mxu0 %v8886
    %v9081 = vpop.f32.mrf.mxu0
    %v9082 = vadd.f32 %v8987, %v9081
    %v9083 = vpop.f32.mrf.mxu0
    %9084 = vmatprep.mubr.f32.mxu0 %v8850
    %9085 = vmatmul.mubr.f32.gmra.mxu0 %v8888
    %v9086 = vpop.f32.mrf.mxu0
    %v9087 = vadd.f32 %v8992, %v9086
    %v9088 = vpop.f32.mrf.mxu0
    %9089 = vmatprep.mubr.f32.mxu0 %v8851
    %9090 = vmatmul.mubr.f32.gmra.mxu0 %v8890
    %v9091 = vpop.f32.mrf.mxu0
    %v9092 = vadd.f32 %v8997, %v9091
    %v9093 = vpop.f32.mrf.mxu0
    %9094 = vmatprep.mubr.f32.mxu0 %v8852
    %9095 = vmatmul.mubr.f32.gmra.mxu0 %v8892
    %v9096 = vpop.f32.mrf.mxu0
    %v9097 = vadd.f32 %v9002, %v9096
    %v9098 = vpop.f32.mrf.mxu0
    %9099 = vmatprep.mubr.f32.mxu0 %v8853
    %9100 = vmatmul.mubr.f32.gmra.mxu0 %v8894
    %v9101 = vpop.f32.mrf.mxu0
    %v9102 = vadd.f32 %v9007, %v9101
    %v9103 = vpop.f32.mrf.mxu0
    %9104 = vdwg.mxu0
    %9105 = vmatprep.subr.mxu0 0.0
    %9106 = vmatpush1.msra.mxu0 %v8270
    %9107 = vmatprep.subr.mxu0 0.0
    %9108 = vmatpush1.msra.mxu0 %v8269
    %9109 = vmatprep.subr.mxu0 0.0
    %9110 = vmatpush1.msra.mxu0 %v8268
    %9111 = vmatprep.subr.mxu0 0.0
    %9112 = vmatpush1.msra.mxu0 %v8267
    %9113 = vmatprep.subr.mxu0 0.0
    %9114 = vmatpush1.msra.mxu0 %v8266
    %9115 = vmatprep.subr.mxu0 0.0
    %9116 = vmatpush1.msra.mxu0 %v8265
    %9117 = vmatprep.subr.mxu0 0.0
    %9118 = vmatpush1.msra.mxu0 %v8264
    %9119 = vmatprep.subr.mxu0 0.0
    %9120 = vmatpush1.msra.mxu0 %v8263
    %9121 = vmatprep.subr.mxu0 0.0
    %9122 = vmatpush1.msra.mxu0 %v8262
    %9123 = vmatprep.subr.mxu0 0.0
    %9124 = vmatpush1.msra.mxu0 %v8261
    %9125 = vmatprep.subr.mxu0 0.0
    %9126 = vmatpush1.msra.mxu0 %v8260
    %9127 = vmatprep.subr.mxu0 0.0
    %9128 = vmatpush1.msra.mxu0 %v8259
    %9129 = vmatprep.subr.mxu0 0.0
    %9130 = vmatpush1.msra.mxu0 %v8258
    %9131 = vmatprep.subr.mxu0 0.0
    %9132 = vmatpush1.msra.mxu0 %v8257
    %9133 = vmatprep.subr.mxu0 0.0
    %9134 = vmatpush1.msra.mxu0 %v8256
    %9135 = vmatprep.subr.mxu0 0.0
    %9136 = vmatpush1.msra.mxu0 %v8255
    %9137 = vmatprep.subr.mxu0 0.0
    %9138 = vmatpush2.msra.mxu0 %v8286
    %9139 = vmatprep.subr.mxu0 0.0
    %9140 = vmatpush2.msra.mxu0 %v8285
    %9141 = vmatprep.subr.mxu0 0.0
    %9142 = vmatpush2.msra.mxu0 %v8284
    %9143 = vmatprep.subr.mxu0 0.0
    %9144 = vmatpush2.msra.mxu0 %v8283
    %9145 = vmatprep.subr.mxu0 0.0
    %9146 = vmatpush2.msra.mxu0 %v8282
    %9147 = vmatprep.subr.mxu0 0.0
    %9148 = vmatpush2.msra.mxu0 %v8281
    %9149 = vmatprep.subr.mxu0 0.0
    %9150 = vmatpush2.msra.mxu0 %v8280
    %9151 = vmatprep.subr.mxu0 0.0
    %9152 = vmatpush2.msra.mxu0 %v8279
    %9153 = vmatprep.subr.mxu0 0.0
    %9154 = vmatpush2.msra.mxu0 %v8278
    %9155 = vmatprep.subr.mxu0 0.0
    %9156 = vmatpush2.msra.mxu0 %v8277
    %9157 = vmatprep.subr.mxu0 0.0
    %9158 = vmatpush2.msra.mxu0 %v8276
    %9159 = vmatprep.subr.mxu0 0.0
    %9160 = vmatpush2.msra.mxu0 %v8275
    %9161 = vmatprep.subr.mxu0 0.0
    %9162 = vmatpush2.msra.mxu0 %v8274
    %9163 = vmatprep.subr.mxu0 0.0
    %9164 = vmatpush2.msra.mxu0 %v8273
    %9165 = vmatprep.subr.mxu0 0.0
    %9166 = vmatpush2.msra.mxu0 %v8272
    %9167 = vmatprep.subr.mxu0 0.0
    %9168 = vmatpush2.msra.mxu0 %v8271
    %9169 = vmatprep.mubr.f32.mxu0 %v8886
    %9170 = vmatmul.mubr.f32.gmra.mxu0 %v8867
    %v9171 = vpop.f32.mrf.mxu0
    %v9172 = vadd.f32 %v9077, %v9171
    %v9173 = vpop.f32.mrf.mxu0
    %9174 = vmatprep.mubr.f32.mxu0 %v8888
    %9175 = vmatmul.mubr.f32.gmra.mxu0 %v8869
    %v9176 = vpop.f32.mrf.mxu0
    %v9177 = vadd.f32 %v9082, %v9176
    %v9178 = vpop.f32.mrf.mxu0
    %9179 = vmatprep.mubr.f32.mxu0 %v8890
    %9180 = vmatmul.mubr.f32.gmra.mxu0 %v8871
    %v9181 = vpop.f32.mrf.mxu0
    %v9182 = vadd.f32 %v9087, %v9181
    %v9183 = vpop.f32.mrf.mxu0
    %9184 = vmatprep.mubr.f32.mxu0 %v8892
    %9185 = vmatmul.mubr.f32.gmra.mxu0 %v8873
    %v9186 = vpop.f32.mrf.mxu0
    %v9187 = vadd.f32 %v9092, %v9186
    %v9188 = vpop.f32.mrf.mxu0
    %9189 = vmatprep.mubr.f32.mxu0 %v8894
    %9190 = vmatmul.mubr.f32.gmra.mxu0 %v8875
    %v9191 = vpop.f32.mrf.mxu0
    %v9192 = vadd.f32 %v9097, %v9191
    %v9193 = vpop.f32.mrf.mxu0
    %9194 = vmatprep.mubr.f32.mxu0 %v8906
    %9195 = vmatmul.mubr.f32.gmra.mxu0 %v8903
    %v9196 = vpop.f32.mrf.mxu0
    %v9197 = vadd.f32 %v9102, %v9196
    %v9198 = vpop.f32.mrf.mxu0
    %9199 = vdwg.mxu0
    %9200 = vmatprep.subr.mxu0 0.0
    %9201 = vmatpush1.msra.mxu0 %v8302
    %9202 = vmatprep.subr.mxu0 0.0
    %9203 = vmatpush1.msra.mxu0 %v8301
    %9204 = vmatprep.subr.mxu0 0.0
    %9205 = vmatpush1.msra.mxu0 %v8300
    %9206 = vmatprep.subr.mxu0 0.0
    %9207 = vmatpush1.msra.mxu0 %v8299
    %9208 = vmatprep.subr.mxu0 0.0
    %9209 = vmatpush1.msra.mxu0 %v8298
    %9210 = vmatprep.subr.mxu0 0.0
    %9211 = vmatpush1.msra.mxu0 %v8297
    %9212 = vmatprep.subr.mxu0 0.0
    %9213 = vmatpush1.msra.mxu0 %v8296
    %9214 = vmatprep.subr.mxu0 0.0
    %9215 = vmatpush1.msra.mxu0 %v8295
    %9216 = vmatprep.subr.mxu0 0.0
    %9217 = vmatpush1.msra.mxu0 %v8294
    %9218 = vmatprep.subr.mxu0 0.0
    %9219 = vmatpush1.msra.mxu0 %v8293
    %9220 = vmatprep.subr.mxu0 0.0
    %9221 = vmatpush1.msra.mxu0 %v8292
    %9222 = vmatprep.subr.mxu0 0.0
    %9223 = vmatpush1.msra.mxu0 %v8291
    %9224 = vmatprep.subr.mxu0 0.0
    %9225 = vmatpush1.msra.mxu0 %v8290
    %9226 = vmatprep.subr.mxu0 0.0
    %9227 = vmatpush1.msra.mxu0 %v8289
    %9228 = vmatprep.subr.mxu0 0.0
    %9229 = vmatpush1.msra.mxu0 %v8288
    %9230 = vmatprep.subr.mxu0 0.0
    %9231 = vmatpush1.msra.mxu0 %v8287
    %9232 = vmatprep.subr.mxu0 0.0
    %9233 = vmatpush2.msra.mxu0 %v8318
    %9234 = vmatprep.subr.mxu0 0.0
    %9235 = vmatpush2.msra.mxu0 %v8317
    %9236 = vmatprep.subr.mxu0 0.0
    %9237 = vmatpush2.msra.mxu0 %v8316
    %9238 = vmatprep.subr.mxu0 0.0
    %9239 = vmatpush2.msra.mxu0 %v8315
    %9240 = vmatprep.subr.mxu0 0.0
    %9241 = vmatpush2.msra.mxu0 %v8314
    %9242 = vmatprep.subr.mxu0 0.0
    %9243 = vmatpush2.msra.mxu0 %v8313
    %9244 = vmatprep.subr.mxu0 0.0
    %9245 = vmatpush2.msra.mxu0 %v8312
    %9246 = vmatprep.subr.mxu0 0.0
    %9247 = vmatpush2.msra.mxu0 %v8311
    %9248 = vmatprep.subr.mxu0 0.0
    %9249 = vmatpush2.msra.mxu0 %v8310
    %9250 = vmatprep.subr.mxu0 0.0
    %9251 = vmatpush2.msra.mxu0 %v8309
    %9252 = vmatprep.subr.mxu0 0.0
    %9253 = vmatpush2.msra.mxu0 %v8308
    %9254 = vmatprep.subr.mxu0 0.0
    %9255 = vmatpush2.msra.mxu0 %v8307
    %9256 = vmatprep.subr.mxu0 0.0
    %9257 = vmatpush2.msra.mxu0 %v8306
    %9258 = vmatprep.subr.mxu0 0.0
    %9259 = vmatpush2.msra.mxu0 %v8305
    %9260 = vmatprep.subr.mxu0 0.0
    %9261 = vmatpush2.msra.mxu0 %v8304
    %9262 = vmatprep.subr.mxu0 0.0
    %9263 = vmatpush2.msra.mxu0 %v8303
    %9264 = vmatprep.mubr.f32.mxu0 %v8869
    %9265 = vmatmul.mubr.f32.gmra.mxu0 %v8849
    %v9266 = vpop.f32.mrf.mxu0
    %v9267 = vadd.f32 %v9172, %v9266
    %v9268 = vpop.f32.mrf.mxu0
    %9269 = vmatprep.mubr.f32.mxu0 %v8871
    %9270 = vmatmul.mubr.f32.gmra.mxu0 %v8850
    %v9271 = vpop.f32.mrf.mxu0
    %v9272 = vadd.f32 %v9177, %v9271
    %v9273 = vpop.f32.mrf.mxu0
    %9274 = vmatprep.mubr.f32.mxu0 %v8873
    %9275 = vmatmul.mubr.f32.gmra.mxu0 %v8851
    %v9276 = vpop.f32.mrf.mxu0
    %v9277 = vadd.f32 %v9182, %v9276
    %v9278 = vpop.f32.mrf.mxu0
    %9279 = vmatprep.mubr.f32.mxu0 %v8875
    %9280 = vmatmul.mubr.f32.gmra.mxu0 %v8852
    %v9281 = vpop.f32.mrf.mxu0
    %v9282 = vadd.f32 %v9187, %v9281
    %v9283 = vpop.f32.mrf.mxu0
    %9284 = vmatprep.mubr.f32.mxu0 %v8903
    %9285 = vmatmul.mubr.f32.gmra.mxu0 %v8853
    %v9286 = vpop.f32.mrf.mxu0
    %v9287 = vadd.f32 %v9192, %v9286
    %v9288 = vpop.f32.mrf.mxu0
    %9289 = vmatprep.mubr.f32.mxu0 %v8910
    %9290 = vmatmul.mubr.f32.gmra.mxu0 %v8854
    %v9291 = vpop.f32.mrf.mxu0
    %v9292 = vadd.f32 %v9197, %v9291
    %v9293 = vpop.f32.mrf.mxu0
    %9294 = vdwg.mxu0
    %9295 = vmatprep.subr.mxu0 0.0
    %9296 = vmatpush1.msra.mxu0 %v8334
    %9297 = vmatprep.subr.mxu0 0.0
    %9298 = vmatpush1.msra.mxu0 %v8333
    %9299 = vmatprep.subr.mxu0 0.0
    %9300 = vmatpush1.msra.mxu0 %v8332
    %9301 = vmatprep.subr.mxu0 0.0
    %9302 = vmatpush1.msra.mxu0 %v8331
    %9303 = vmatprep.subr.mxu0 0.0
    %9304 = vmatpush1.msra.mxu0 %v8330
    %9305 = vmatprep.subr.mxu0 0.0
    %9306 = vmatpush1.msra.mxu0 %v8329
    %9307 = vmatprep.subr.mxu0 0.0
    %9308 = vmatpush1.msra.mxu0 %v8328
    %9309 = vmatprep.subr.mxu0 0.0
    %9310 = vmatpush1.msra.mxu0 %v8327
    %9311 = vmatprep.subr.mxu0 0.0
    %9312 = vmatpush1.msra.mxu0 %v8326
    %9313 = vmatprep.subr.mxu0 0.0
    %9314 = vmatpush1.msra.mxu0 %v8325
    %9315 = vmatprep.subr.mxu0 0.0
    %9316 = vmatpush1.msra.mxu0 %v8324
    %9317 = vmatprep.subr.mxu0 0.0
    %9318 = vmatpush1.msra.mxu0 %v8323
    %9319 = vmatprep.subr.mxu0 0.0
    %9320 = vmatpush1.msra.mxu0 %v8322
    %9321 = vmatprep.subr.mxu0 0.0
    %9322 = vmatpush1.msra.mxu0 %v8321
    %9323 = vmatprep.subr.mxu0 0.0
    %9324 = vmatpush1.msra.mxu0 %v8320
    %9325 = vmatprep.subr.mxu0 0.0
    %9326 = vmatpush1.msra.mxu0 %v8319
    %9327 = vmatprep.subr.mxu0 0.0
    %9328 = vmatpush2.msra.mxu0 0.0
    %9329 = vmatprep.subr.mxu0 0.0
    %9330 = vmatpush2.msra.mxu0 0.0
    %9331 = vmatprep.subr.mxu0 0.0
    %9332 = vmatpush2.msra.mxu0 0.0
    %9333 = vmatprep.subr.mxu0 0.0
    %9334 = vmatpush2.msra.mxu0 0.0
    %9335 = vmatprep.subr.mxu0 0.0
    %9336 = vmatpush2.msra.mxu0 0.0
    %9337 = vmatprep.subr.mxu0 0.0
    %9338 = vmatpush2.msra.mxu0 0.0
    %9339 = vmatprep.subr.mxu0 0.0
    %9340 = vmatpush2.msra.mxu0 0.0
    %9341 = vmatprep.subr.mxu0 0.0
    %9342 = vmatpush2.msra.mxu0 0.0
    %9343 = vmatprep.subr.mxu0 0.0
    %9344 = vmatpush2.msra.mxu0 0.0
    %9345 = vmatprep.subr.mxu0 0.0
    %9346 = vmatpush2.msra.mxu0 0.0
    %9347 = vmatprep.subr.mxu0 0.0
    %9348 = vmatpush2.msra.mxu0 0.0
    %9349 = vmatprep.subr.mxu0 0.0
    %9350 = vmatpush2.msra.mxu0 0.0
    %9351 = vmatprep.subr.mxu0 0.0
    %9352 = vmatpush2.msra.mxu0 0.0
    %9353 = vmatprep.subr.mxu0 0.0
    %9354 = vmatpush2.msra.mxu0 0.0
    %9355 = vmatprep.subr.mxu0 0.0
    %9356 = vmatpush2.msra.mxu0 0.0
    %9357 = vmatprep.subr.mxu0 0.0
    %9358 = vmatpush2.msra.mxu0 0.0
    %9359 = vmatprep.mubr.f32.mxu0 0.0
    %9360 = vmatmul.mubr.f32.gmra.mxu0 %v8888
    %v9361 = vpop.f32.mrf.mxu0
    %v9362 = vadd.f32 %v9267, %v9361
    %v9363 = vpop.f32.mrf.mxu0
    %9364 = vmatprep.mubr.f32.mxu0 0.0
    %9365 = vmatmul.mubr.f32.gmra.mxu0 %v8890
    %v9366 = vpop.f32.mrf.mxu0
    %v9367 = vadd.f32 %v9272, %v9366
    %v9368 = vpop.f32.mrf.mxu0
    %9369 = vmatprep.mubr.f32.mxu0 0.0
    %9370 = vmatmul.mubr.f32.gmra.mxu0 %v8892
    %v9371 = vpop.f32.mrf.mxu0
    %v9372 = vadd.f32 %v9277, %v9371
    %v9373 = vpop.f32.mrf.mxu0
    %9374 = vmatprep.mubr.f32.mxu0 0.0
    %9375 = vmatmul.mubr.f32.gmra.mxu0 %v8894
    %v9376 = vpop.f32.mrf.mxu0
    %v9377 = vadd.f32 %v9282, %v9376
    %v9378 = vpop.f32.mrf.mxu0
    %9379 = vmatprep.mubr.f32.mxu0 0.0
    %9380 = vmatmul.mubr.f32.gmra.mxu0 %v8906
    %v9381 = vpop.f32.mrf.mxu0
    %v9382 = vadd.f32 %v9287, %v9381
    %v9383 = vpop.f32.mrf.mxu0
    %9384 = vmatprep.mubr.f32.mxu0 0.0
    %9385 = vmatmul.mubr.f32.gmra.mxu0 %v8913
    %v9386 = vpop.f32.mrf.mxu0
    %v9387 = vadd.f32 %v9292, %v9386
    %v9388 = vpop.f32.mrf.mxu0
    %9389 = vdwg.mxu0
    %v9390 = vsel %vm7428, %v9362, 0.0
    %v9391 = vsel %vm7429, %v9367, 0.0
    %v9392 = vsel %vm7430, %v9372, 0.0
    %v9393 = vsel %vm7431, %v9377, 0.0
    %v9394 = vsel %vm7432, %v9382, 0.0
    %v9395 = vsel %vm7433, %v9387, 0.0
    %v9396 = vadd.f32 %v9390, %v9391
    %v9397 = vadd.f32 %v9396, %v9392
    %v9398 = vadd.f32 %v9397, %v9393
    %v9399 = vadd.f32 %v9398, %v9394
    %v9400 = vadd.f32 %v9399, %v9395
    %v9401 = vrot.slane %v9400, 4
    %v9402 = vadd.f32 %v9400, %v9401
    %v9403 = vrot.slane %v9402, 2
    %v9404 = vadd.f32 %v9402, %v9403
    %v9405 = vrot.slane %v9404, 1
    %v9406 = vadd.f32 %v9404, %v9405
    %v9407 = vmul.f32 %v9390, %v9390
    %v9408 = vmul.f32 %v9391, %v9391
    %v9409 = vmul.f32 %v9392, %v9392
    %v9410 = vmul.f32 %v9393, %v9393
    %v9411 = vmul.f32 %v9394, %v9394
    %v9412 = vmul.f32 %v9395, %v9395
    %v9413 = vadd.f32 %v9407, %v9408
    %v9414 = vadd.f32 %v9413, %v9409
    %v9415 = vadd.f32 %v9414, %v9410
    %v9416 = vadd.f32 %v9415, %v9411
    %v9417 = vadd.f32 %v9416, %v9412
    %v9418 = vrot.slane %v9417, 4
    %v9419 = vadd.f32 %v9417, %v9418
    %v9420 = vrot.slane %v9419, 2
    %v9421 = vadd.f32 %v9419, %v9420
    %v9422 = vrot.slane %v9421, 1
    %v9423 = vadd.f32 %v9421, %v9422
    %v9424 = vadd.f32 %v8844, %v9406
    %v9425 = vadd.f32 %v8845, %v9423
    %v9426 = vmul.f32 %v9424, %v8049
    %v9427 = vmul.f32 %v9425, %v8049
    %v9428 = vmul.f32 %v9426, %v9426
    %v9429 = vsub.f32 %v9427, %v9428
    %v9430 = vld [vmem:[#allocation12] sm:$0x1]
    %v9431 = vadd.f32 %v9429, 1e-05
    %v9432 = vrsqrt.pop %v9431
    %v9433 = vmul.f32 %v9430, %v9432
    %v9434 = vld [vmem:[#allocation13] sm:$0x1]
    %v9435 = vmul.f32 %v9426, %v9433
    %v9436 = vsub.f32 %v9434, %v9435
    %v9438 = vlaneseq
    %v9439 = vshrl.u32 %v9438, 7
    %v9440 = vsub.s32 0, %v9439
    %v9441 = vrot.slane %v9433, %v9440
    %v9443 = vmul.f32 %v8782, %v9441
    %v9444 = vmul.f32 %v8787, %v9441
    %v9445 = vmul.f32 %v8792, %v9441
    %v9446 = vmul.f32 %v8797, %v9441
    %v9447 = vmul.f32 %v8802, %v9441
    %v9448 = vmul.f32 %v8807, %v9441
    %v9450 = vlaneseq
    %v9451 = vshrl.u32 %v9450, 7
    %v9452 = vsub.s32 0, %v9451
    %v9453 = vrot.slane %v9436, %v9452
    %v9455 = vadd.f32 %v9443, %v9453
    %v9456 = vadd.f32 %v9444, %v9453
    %v9457 = vadd.f32 %v9445, %v9453
    %v9458 = vadd.f32 %v9446, %v9453
    %v9459 = vadd.f32 %v9447, %v9453
    %v9460 = vadd.f32 %v9448, %v9453
    %v9461 = vmax.f32 %v9455, 0.0
    %v9462 = vmax.f32 %v9456, 0.0
    %v9463 = vmax.f32 %v9457, 0.0
    %v9464 = vmax.f32 %v9458, 0.0
    %v9465 = vmax.f32 %v9459, 0.0
    %v9466 = vmax.f32 %v9460, 0.0
    %v9467 = vmul.f32 %v9362, %v9441
    %v9468 = vmul.f32 %v9367, %v9441
    %v9469 = vmul.f32 %v9372, %v9441
    %v9470 = vmul.f32 %v9377, %v9441
    %v9471 = vmul.f32 %v9382, %v9441
    %v9472 = vmul.f32 %v9387, %v9441
    %v9473 = vadd.f32 %v9467, %v9453
    %v9474 = vadd.f32 %v9468, %v9453
    %v9475 = vadd.f32 %v9469, %v9453
    %v9476 = vadd.f32 %v9470, %v9453
    %v9477 = vadd.f32 %v9471, %v9453
    %v9478 = vadd.f32 %v9472, %v9453
    %v9479 = vmax.f32 %v9473, 0.0
    %v9480 = vmax.f32 %v9474, 0.0
    %v9481 = vmax.f32 %v9475, 0.0
    %v9482 = vmax.f32 %v9476, 0.0
    %v9483 = vmax.f32 %v9477, 0.0
    %v9484 = vmax.f32 %v9478, 0.0
    %v9485 = vmax.f32 %v9461, %v9462
    %v9486 = vmax.f32 %v9485, %v9463
    %v9487 = vmax.f32 %v9486, %v9464
    %v9488 = vmax.f32 %v9487, %v9465
    %v9489 = vmax.f32 %v9488, %v9466
    %9490 = vst [vmem:[#allocation7] sm:$0xff] %v9489
    %v9491 = vld [vmem:[#allocation7] ss:$2 sm:$0x7]
    %s9492 = scalar_lea.vmem [#allocation7], 1
    %v9493 = vld [vmem:[%s9492] ss:$2 sm:$0x7]
    %v9494 = vmax.f32 %v9491, %v9493
    %s9495 = scalar_lea.vmem [#allocation6], 8
    %9496 = vst [vmem:[%s9495 + $0x1] sm:$0x7] %v9494
    %v9497 = vmax.f32 %v9479, %v9480
    %v9498 = vmax.f32 %v9497, %v9481
    %v9499 = vmax.f32 %v9498, %v9482
    %v9500 = vmax.f32 %v9499, %v9483
    %v9501 = vmax.f32 %v9500, %v9484
    %9502 = vst [vmem:[#allocation7] sm:$0xff] %v9501
    %v9503 = vld [vmem:[#allocation7] ss:$2 sm:$0x7]
    %v9504 = vld [vmem:[%s9492] ss:$2 sm:$0x7]
    %v9505 = vmax.f32 %v9503, %v9504
    %s9506 = scalar_lea.vmem [#allocation6], 40
    %9507 = vst [vmem:[%s9506 + $0x1] sm:$0x7] %v9505
    %v9508 = vld [vmem:[#allocation6] sm:$0xff]
    %v9509 = vld [vmem:[#allocation6 + $0x8] sm:$0xff]
    %v9510 = vld [vmem:[#allocation6 + $0x10] sm:$0xff]
    %v9511 = vld [vmem:[#allocation6 + $0x18] sm:$0xff]
    %v9514 = vrot.slane %v9508, 1
    %v9515 = vrot.slane %v9509, 1
    %v9516 = vsel %vm4460, %v9514, %v9515
    %v9518 = vrot.slane %v9508, 2
    %v9519 = vrot.slane %v9509, 2
    %v9520 = vsel %vm4542, %v9518, %v9519
    %v9523 = vrot.slane %v9510, 1
    %v9524 = vsel %vm4460, %v9515, %v9523
    %v9526 = vrot.slane %v9510, 2
    %v9527 = vsel %vm4542, %v9519, %v9526
    %v9530 = vrot.slane %v9511, 1
    %v9531 = vsel %vm4460, %v9523, %v9530
    %v9533 = vrot.slane %v9511, 2
    %v9534 = vsel %vm4542, %v9526, %v9533
    %v9536 = vld [vmem:[%s5] sm:$0xff]
    %v9537 = vld [vmem:[%s5 + $0x8] sm:$0xff]
    %v9538 = vld [vmem:[%s5 + $0x10] sm:$0xff]
    %v9539 = vld [vmem:[%s5 + $0x18] sm:$0xff]
    %v9540 = vld [vmem:[%s5 + $0x20] sm:$0xff]
    %v9541 = vld [vmem:[%s5 + $0x28] sm:$0xff]
    %v9542 = vld [vmem:[%s5 + $0x30] sm:$0xff]
    %v9543 = vld [vmem:[%s5 + $0x38] sm:$0xff]
    %v9544 = vld [vmem:[%s5 + $0x40] sm:$0xff]
    %v9545 = vld [vmem:[%s5 + $0x48] sm:$0xff]
    %v9546 = vld [vmem:[%s5 + $0x50] sm:$0xff]
    %v9547 = vld [vmem:[%s5 + $0x58] sm:$0xff]
    %v9548 = vld [vmem:[%s5 + $0x60] sm:$0xff]
    %v9549 = vld [vmem:[%s5 + $0x68] sm:$0xff]
    %v9550 = vld [vmem:[%s5 + $0x70] sm:$0xff]
    %v9551 = vld [vmem:[%s5 + $0x78] sm:$0xff]
    %v9552 = vld [vmem:[%s5 + $0x80] sm:$0xff]
    %v9553 = vld [vmem:[%s5 + $0x88] sm:$0xff]
    %v9554 = vld [vmem:[%s5 + $0x90] sm:$0xff]
    %v9555 = vld [vmem:[%s5 + $0x98] sm:$0xff]
    %v9556 = vld [vmem:[%s5 + $0xa0] sm:$0xff]
    %v9557 = vld [vmem:[%s5 + $0xa8] sm:$0xff]
    %v9558 = vld [vmem:[%s5 + $0xb0] sm:$0xff]
    %v9559 = vld [vmem:[%s5 + $0xb8] sm:$0xff]
    %v9560 = vld [vmem:[%s5 + $0xc0] sm:$0xff]
    %v9561 = vld [vmem:[%s5 + $0xc8] sm:$0xff]
    %v9562 = vld [vmem:[%s5 + $0xd0] sm:$0xff]
    %v9563 = vld [vmem:[%s5 + $0xd8] sm:$0xff]
    %v9564 = vld [vmem:[%s5 + $0xe0] sm:$0xff]
    %v9565 = vld [vmem:[%s5 + $0xe8] sm:$0xff]
    %v9566 = vld [vmem:[%s5 + $0xf0] sm:$0xff]
    %v9567 = vld [vmem:[%s5 + $0xf8] sm:$0xff]
    %v9568 = vld [vmem:[%s5 + $0x100] sm:$0xff]
    %v9569 = vld [vmem:[%s5 + $0x108] sm:$0xff]
    %v9570 = vld [vmem:[%s5 + $0x110] sm:$0xff]
    %v9571 = vld [vmem:[%s5 + $0x118] sm:$0xff]
    %v9572 = vld [vmem:[%s5 + $0x120] sm:$0xff]
    %v9573 = vld [vmem:[%s5 + $0x128] sm:$0xff]
    %v9574 = vld [vmem:[%s5 + $0x130] sm:$0xff]
    %v9575 = vld [vmem:[%s5 + $0x138] sm:$0xff]
    %v9576 = vld [vmem:[%s5 + $0x140] sm:$0xff]
    %v9577 = vld [vmem:[%s5 + $0x148] sm:$0xff]
    %v9578 = vld [vmem:[%s5 + $0x150] sm:$0xff]
    %v9579 = vld [vmem:[%s5 + $0x158] sm:$0xff]
    %v9580 = vld [vmem:[%s5 + $0x160] sm:$0xff]
    %v9581 = vld [vmem:[%s5 + $0x168] sm:$0xff]
    %v9582 = vld [vmem:[%s5 + $0x170] sm:$0xff]
    %v9583 = vld [vmem:[%s5 + $0x178] sm:$0xff]
    %v9584 = vld [vmem:[%s5 + $0x180] sm:$0xff]
    %v9585 = vld [vmem:[%s5 + $0x188] sm:$0xff]
    %v9586 = vld [vmem:[%s5 + $0x190] sm:$0xff]
    %v9587 = vld [vmem:[%s5 + $0x198] sm:$0xff]
    %v9588 = vld [vmem:[%s5 + $0x1a0] sm:$0xff]
    %v9589 = vld [vmem:[%s5 + $0x1a8] sm:$0xff]
    %v9590 = vld [vmem:[%s5 + $0x1b0] sm:$0xff]
    %v9591 = vld [vmem:[%s5 + $0x1b8] sm:$0xff]
    %v9592 = vld [vmem:[%s5 + $0x1c0] sm:$0xff]
    %v9593 = vld [vmem:[%s5 + $0x1c8] sm:$0xff]
    %v9594 = vld [vmem:[%s5 + $0x1d0] sm:$0xff]
    %v9595 = vld [vmem:[%s5 + $0x1d8] sm:$0xff]
    %v9596 = vld [vmem:[%s5 + $0x1e0] sm:$0xff]
    %v9597 = vld [vmem:[%s5 + $0x1e8] sm:$0xff]
    %v9598 = vld [vmem:[%s5 + $0x1f0] sm:$0xff]
    %v9599 = vld [vmem:[%s5 + $0x1f8] sm:$0xff]
    %v9600 = vld [vmem:[%s5 + $0x200] sm:$0xff]
    %v9601 = vld [vmem:[%s5 + $0x208] sm:$0xff]
    %v9602 = vld [vmem:[%s5 + $0x210] sm:$0xff]
    %v9603 = vld [vmem:[%s5 + $0x218] sm:$0xff]
    %v9604 = vld [vmem:[%s5 + $0x220] sm:$0xff]
    %v9605 = vld [vmem:[%s5 + $0x228] sm:$0xff]
    %v9606 = vld [vmem:[%s5 + $0x230] sm:$0xff]
    %v9607 = vld [vmem:[%s5 + $0x238] sm:$0xff]
    %v9608 = vld [vmem:[%s5 + $0x240] sm:$0xff]
    %v9609 = vld [vmem:[%s5 + $0x248] sm:$0xff]
    %v9610 = vld [vmem:[%s5 + $0x250] sm:$0xff]
    %v9611 = vld [vmem:[%s5 + $0x258] sm:$0xff]
    %v9612 = vld [vmem:[%s5 + $0x260] sm:$0xff]
    %v9613 = vld [vmem:[%s5 + $0x268] sm:$0xff]
    %v9614 = vld [vmem:[%s5 + $0x270] sm:$0xff]
    %v9615 = vld [vmem:[%s5 + $0x278] sm:$0xff]
    %v9616 = vld [vmem:[%s5 + $0x280] sm:$0xff]
    %v9617 = vld [vmem:[%s5 + $0x288] sm:$0xff]
    %v9618 = vld [vmem:[%s5 + $0x290] sm:$0xff]
    %v9619 = vld [vmem:[%s5 + $0x298] sm:$0xff]
    %v9620 = vld [vmem:[%s5 + $0x2a0] sm:$0xff]
    %v9621 = vld [vmem:[%s5 + $0x2a8] sm:$0xff]
    %v9622 = vld [vmem:[%s5 + $0x2b0] sm:$0xff]
    %v9623 = vld [vmem:[%s5 + $0x2b8] sm:$0xff]
    %v9624 = vld [vmem:[%s5 + $0x2c0] sm:$0xff]
    %v9625 = vld [vmem:[%s5 + $0x2c8] sm:$0xff]
    %v9626 = vld [vmem:[%s5 + $0x2d0] sm:$0xff]
    %v9627 = vld [vmem:[%s5 + $0x2d8] sm:$0xff]
    %v9628 = vld [vmem:[%s5 + $0x2e0] sm:$0xff]
    %v9629 = vld [vmem:[%s5 + $0x2e8] sm:$0xff]
    %v9630 = vld [vmem:[%s5 + $0x2f0] sm:$0xff]
    %v9631 = vld [vmem:[%s5 + $0x2f8] sm:$0xff]
    %v9632 = vld [vmem:[%s5 + $0x300] sm:$0xff]
    %v9633 = vld [vmem:[%s5 + $0x308] sm:$0xff]
    %v9634 = vld [vmem:[%s5 + $0x310] sm:$0xff]
    %v9635 = vld [vmem:[%s5 + $0x318] sm:$0xff]
    %v9636 = vld [vmem:[%s5 + $0x320] sm:$0xff]
    %v9637 = vld [vmem:[%s5 + $0x328] sm:$0xff]
    %v9638 = vld [vmem:[%s5 + $0x330] sm:$0xff]
    %v9639 = vld [vmem:[%s5 + $0x338] sm:$0xff]
    %v9640 = vld [vmem:[%s5 + $0x340] sm:$0xff]
    %v9641 = vld [vmem:[%s5 + $0x348] sm:$0xff]
    %v9642 = vld [vmem:[%s5 + $0x350] sm:$0xff]
    %v9643 = vld [vmem:[%s5 + $0x358] sm:$0xff]
    %v9644 = vld [vmem:[%s5 + $0x360] sm:$0xff]
    %v9645 = vld [vmem:[%s5 + $0x368] sm:$0xff]
    %v9646 = vld [vmem:[%s5 + $0x370] sm:$0xff]
    %v9647 = vld [vmem:[%s5 + $0x378] sm:$0xff]
    %v9648 = vld [vmem:[%s5 + $0x380] sm:$0xff]
    %v9649 = vld [vmem:[%s5 + $0x388] sm:$0xff]
    %v9650 = vld [vmem:[%s5 + $0x390] sm:$0xff]
    %v9651 = vld [vmem:[%s5 + $0x398] sm:$0xff]
    %v9652 = vld [vmem:[%s5 + $0x3a0] sm:$0xff]
    %v9653 = vld [vmem:[%s5 + $0x3a8] sm:$0xff]
    %v9654 = vld [vmem:[%s5 + $0x3b0] sm:$0xff]
    %v9655 = vld [vmem:[%s5 + $0x3b8] sm:$0xff]
    %v9656 = vld [vmem:[%s5 + $0x3c0] sm:$0xff]
    %v9657 = vld [vmem:[%s5 + $0x3c8] sm:$0xff]
    %v9658 = vld [vmem:[%s5 + $0x3d0] sm:$0xff]
    %v9659 = vld [vmem:[%s5 + $0x3d8] sm:$0xff]
    %v9660 = vld [vmem:[%s5 + $0x3e0] sm:$0xff]
    %v9661 = vld [vmem:[%s5 + $0x3e8] sm:$0xff]
    %v9662 = vld [vmem:[%s5 + $0x3f0] sm:$0xff]
    %v9663 = vld [vmem:[%s5 + $0x3f8] sm:$0xff]
    %v9664 = vld [vmem:[%s5 + $0x400] sm:$0xff]
    %v9665 = vld [vmem:[%s5 + $0x408] sm:$0xff]
    %v9666 = vld [vmem:[%s5 + $0x410] sm:$0xff]
    %v9667 = vld [vmem:[%s5 + $0x418] sm:$0xff]
    %v9668 = vld [vmem:[%s5 + $0x420] sm:$0xff]
    %v9669 = vld [vmem:[%s5 + $0x428] sm:$0xff]
    %v9670 = vld [vmem:[%s5 + $0x430] sm:$0xff]
    %v9671 = vld [vmem:[%s5 + $0x438] sm:$0xff]
    %v9672 = vld [vmem:[%s5 + $0x440] sm:$0xff]
    %v9673 = vld [vmem:[%s5 + $0x448] sm:$0xff]
    %v9674 = vld [vmem:[%s5 + $0x450] sm:$0xff]
    %v9675 = vld [vmem:[%s5 + $0x458] sm:$0xff]
    %v9676 = vld [vmem:[%s5 + $0x460] sm:$0xff]
    %v9677 = vld [vmem:[%s5 + $0x468] sm:$0xff]
    %v9678 = vld [vmem:[%s5 + $0x470] sm:$0xff]
    %v9679 = vld [vmem:[%s5 + $0x478] sm:$0xff]
    %9680 = vmatprep.subr.mxu0 0.0
    %9681 = vmatpush1.msra.mxu0 %v9551
    %9682 = vmatprep.subr.mxu0 0.0
    %9683 = vmatpush1.msra.mxu0 %v9550
    %9684 = vmatprep.subr.mxu0 0.0
    %9685 = vmatpush1.msra.mxu0 %v9549
    %9686 = vmatprep.subr.mxu0 0.0
    %9687 = vmatpush1.msra.mxu0 %v9548
    %9688 = vmatprep.subr.mxu0 0.0
    %9689 = vmatpush1.msra.mxu0 %v9547
    %9690 = vmatprep.subr.mxu0 0.0
    %9691 = vmatpush1.msra.mxu0 %v9546
    %9692 = vmatprep.subr.mxu0 0.0
    %9693 = vmatpush1.msra.mxu0 %v9545
    %9694 = vmatprep.subr.mxu0 0.0
    %9695 = vmatpush1.msra.mxu0 %v9544
    %9696 = vmatprep.subr.mxu0 0.0
    %9697 = vmatpush1.msra.mxu0 %v9543
    %9698 = vmatprep.subr.mxu0 0.0
    %9699 = vmatpush1.msra.mxu0 %v9542
    %9700 = vmatprep.subr.mxu0 0.0
    %9701 = vmatpush1.msra.mxu0 %v9541
    %9702 = vmatprep.subr.mxu0 0.0
    %9703 = vmatpush1.msra.mxu0 %v9540
    %9704 = vmatprep.subr.mxu0 0.0
    %9705 = vmatpush1.msra.mxu0 %v9539
    %9706 = vmatprep.subr.mxu0 0.0
    %9707 = vmatpush1.msra.mxu0 %v9538
    %9708 = vmatprep.subr.mxu0 0.0
    %9709 = vmatpush1.msra.mxu0 %v9537
    %9710 = vmatprep.subr.mxu0 0.0
    %9711 = vmatpush1.msra.mxu0 %v9536
    %9712 = vmatprep.subr.mxu0 0.0
    %9713 = vmatpush2.msra.mxu0 %v9567
    %9714 = vmatprep.subr.mxu0 0.0
    %9715 = vmatpush2.msra.mxu0 %v9566
    %9716 = vmatprep.subr.mxu0 0.0
    %9717 = vmatpush2.msra.mxu0 %v9565
    %9718 = vmatprep.subr.mxu0 0.0
    %9719 = vmatpush2.msra.mxu0 %v9564
    %9720 = vmatprep.subr.mxu0 0.0
    %9721 = vmatpush2.msra.mxu0 %v9563
    %9722 = vmatprep.subr.mxu0 0.0
    %9723 = vmatpush2.msra.mxu0 %v9562
    %9724 = vmatprep.subr.mxu0 0.0
    %9725 = vmatpush2.msra.mxu0 %v9561
    %9726 = vmatprep.subr.mxu0 0.0
    %9727 = vmatpush2.msra.mxu0 %v9560
    %9728 = vmatprep.subr.mxu0 0.0
    %9729 = vmatpush2.msra.mxu0 %v9559
    %9730 = vmatprep.subr.mxu0 0.0
    %9731 = vmatpush2.msra.mxu0 %v9558
    %9732 = vmatprep.subr.mxu0 0.0
    %9733 = vmatpush2.msra.mxu0 %v9557
    %9734 = vmatprep.subr.mxu0 0.0
    %9735 = vmatpush2.msra.mxu0 %v9556
    %9736 = vmatprep.subr.mxu0 0.0
    %9737 = vmatpush2.msra.mxu0 %v9555
    %9738 = vmatprep.subr.mxu0 0.0
    %9739 = vmatpush2.msra.mxu0 %v9554
    %9740 = vmatprep.subr.mxu0 0.0
    %9741 = vmatpush2.msra.mxu0 %v9553
    %9742 = vmatprep.subr.mxu0 0.0
    %9743 = vmatpush2.msra.mxu0 %v9552
    %9744 = vmatprep.mubr.f32.mxu0 %v9516
    %9745 = vmatmul.mubr.f32.gmra.mxu0 %v9508
    %v9746 = vpop.f32.mrf.mxu0
    %v9747 = vadd.f32 0.0, %v9746
    %v9748 = vpop.f32.mrf.mxu0
    %9749 = vdwg.mxu0
    %9750 = vmatprep.subr.mxu0 0.0
    %9751 = vmatpush1.msra.mxu0 %v9583
    %9752 = vmatprep.subr.mxu0 0.0
    %9753 = vmatpush1.msra.mxu0 %v9582
    %9754 = vmatprep.subr.mxu0 0.0
    %9755 = vmatpush1.msra.mxu0 %v9581
    %9756 = vmatprep.subr.mxu0 0.0
    %9757 = vmatpush1.msra.mxu0 %v9580
    %9758 = vmatprep.subr.mxu0 0.0
    %9759 = vmatpush1.msra.mxu0 %v9579
    %9760 = vmatprep.subr.mxu0 0.0
    %9761 = vmatpush1.msra.mxu0 %v9578
    %9762 = vmatprep.subr.mxu0 0.0
    %9763 = vmatpush1.msra.mxu0 %v9577
    %9764 = vmatprep.subr.mxu0 0.0
    %9765 = vmatpush1.msra.mxu0 %v9576
    %9766 = vmatprep.subr.mxu0 0.0
    %9767 = vmatpush1.msra.mxu0 %v9575
    %9768 = vmatprep.subr.mxu0 0.0
    %9769 = vmatpush1.msra.mxu0 %v9574
    %9770 = vmatprep.subr.mxu0 0.0
    %9771 = vmatpush1.msra.mxu0 %v9573
    %9772 = vmatprep.subr.mxu0 0.0
    %9773 = vmatpush1.msra.mxu0 %v9572
    %9774 = vmatprep.subr.mxu0 0.0
    %9775 = vmatpush1.msra.mxu0 %v9571
    %9776 = vmatprep.subr.mxu0 0.0
    %9777 = vmatpush1.msra.mxu0 %v9570
    %9778 = vmatprep.subr.mxu0 0.0
    %9779 = vmatpush1.msra.mxu0 %v9569
    %9780 = vmatprep.subr.mxu0 0.0
    %9781 = vmatpush1.msra.mxu0 %v9568
    %9782 = vmatprep.subr.mxu0 0.0
    %9783 = vmatpush2.msra.mxu0 %v9599
    %9784 = vmatprep.subr.mxu0 0.0
    %9785 = vmatpush2.msra.mxu0 %v9598
    %9786 = vmatprep.subr.mxu0 0.0
    %9787 = vmatpush2.msra.mxu0 %v9597
    %9788 = vmatprep.subr.mxu0 0.0
    %9789 = vmatpush2.msra.mxu0 %v9596
    %9790 = vmatprep.subr.mxu0 0.0
    %9791 = vmatpush2.msra.mxu0 %v9595
    %9792 = vmatprep.subr.mxu0 0.0
    %9793 = vmatpush2.msra.mxu0 %v9594
    %9794 = vmatprep.subr.mxu0 0.0
    %9795 = vmatpush2.msra.mxu0 %v9593
    %9796 = vmatprep.subr.mxu0 0.0
    %9797 = vmatpush2.msra.mxu0 %v9592
    %9798 = vmatprep.subr.mxu0 0.0
    %9799 = vmatpush2.msra.mxu0 %v9591
    %9800 = vmatprep.subr.mxu0 0.0
    %9801 = vmatpush2.msra.mxu0 %v9590
    %9802 = vmatprep.subr.mxu0 0.0
    %9803 = vmatpush2.msra.mxu0 %v9589
    %9804 = vmatprep.subr.mxu0 0.0
    %9805 = vmatpush2.msra.mxu0 %v9588
    %9806 = vmatprep.subr.mxu0 0.0
    %9807 = vmatpush2.msra.mxu0 %v9587
    %9808 = vmatprep.subr.mxu0 0.0
    %9809 = vmatpush2.msra.mxu0 %v9586
    %9810 = vmatprep.subr.mxu0 0.0
    %9811 = vmatpush2.msra.mxu0 %v9585
    %9812 = vmatprep.subr.mxu0 0.0
    %9813 = vmatpush2.msra.mxu0 %v9584
    %9814 = vmatprep.mubr.f32.mxu0 %v9509
    %9815 = vmatmul.mubr.f32.gmra.mxu0 %v9520
    %v9816 = vpop.f32.mrf.mxu0
    %v9817 = vadd.f32 %v9747, %v9816
    %v9818 = vpop.f32.mrf.mxu0
    %9819 = vdwg.mxu0
    %9820 = vmatprep.subr.mxu0 0.0
    %9821 = vmatpush1.msra.mxu0 %v9615
    %9822 = vmatprep.subr.mxu0 0.0
    %9823 = vmatpush1.msra.mxu0 %v9614
    %9824 = vmatprep.subr.mxu0 0.0
    %9825 = vmatpush1.msra.mxu0 %v9613
    %9826 = vmatprep.subr.mxu0 0.0
    %9827 = vmatpush1.msra.mxu0 %v9612
    %9828 = vmatprep.subr.mxu0 0.0
    %9829 = vmatpush1.msra.mxu0 %v9611
    %9830 = vmatprep.subr.mxu0 0.0
    %9831 = vmatpush1.msra.mxu0 %v9610
    %9832 = vmatprep.subr.mxu0 0.0
    %9833 = vmatpush1.msra.mxu0 %v9609
    %9834 = vmatprep.subr.mxu0 0.0
    %9835 = vmatpush1.msra.mxu0 %v9608
    %9836 = vmatprep.subr.mxu0 0.0
    %9837 = vmatpush1.msra.mxu0 %v9607
    %9838 = vmatprep.subr.mxu0 0.0
    %9839 = vmatpush1.msra.mxu0 %v9606
    %9840 = vmatprep.subr.mxu0 0.0
    %9841 = vmatpush1.msra.mxu0 %v9605
    %9842 = vmatprep.subr.mxu0 0.0
    %9843 = vmatpush1.msra.mxu0 %v9604
    %9844 = vmatprep.subr.mxu0 0.0
    %9845 = vmatpush1.msra.mxu0 %v9603
    %9846 = vmatprep.subr.mxu0 0.0
    %9847 = vmatpush1.msra.mxu0 %v9602
    %9848 = vmatprep.subr.mxu0 0.0
    %9849 = vmatpush1.msra.mxu0 %v9601
    %9850 = vmatprep.subr.mxu0 0.0
    %9851 = vmatpush1.msra.mxu0 %v9600
    %9852 = vmatprep.subr.mxu0 0.0
    %9853 = vmatpush2.msra.mxu0 %v9631
    %9854 = vmatprep.subr.mxu0 0.0
    %9855 = vmatpush2.msra.mxu0 %v9630
    %9856 = vmatprep.subr.mxu0 0.0
    %9857 = vmatpush2.msra.mxu0 %v9629
    %9858 = vmatprep.subr.mxu0 0.0
    %9859 = vmatpush2.msra.mxu0 %v9628
    %9860 = vmatprep.subr.mxu0 0.0
    %9861 = vmatpush2.msra.mxu0 %v9627
    %9862 = vmatprep.subr.mxu0 0.0
    %9863 = vmatpush2.msra.mxu0 %v9626
    %9864 = vmatprep.subr.mxu0 0.0
    %9865 = vmatpush2.msra.mxu0 %v9625
    %9866 = vmatprep.subr.mxu0 0.0
    %9867 = vmatpush2.msra.mxu0 %v9624
    %9868 = vmatprep.subr.mxu0 0.0
    %9869 = vmatpush2.msra.mxu0 %v9623
    %9870 = vmatprep.subr.mxu0 0.0
    %9871 = vmatpush2.msra.mxu0 %v9622
    %9872 = vmatprep.subr.mxu0 0.0
    %9873 = vmatpush2.msra.mxu0 %v9621
    %9874 = vmatprep.subr.mxu0 0.0
    %9875 = vmatpush2.msra.mxu0 %v9620
    %9876 = vmatprep.subr.mxu0 0.0
    %9877 = vmatpush2.msra.mxu0 %v9619
    %9878 = vmatprep.subr.mxu0 0.0
    %9879 = vmatpush2.msra.mxu0 %v9618
    %9880 = vmatprep.subr.mxu0 0.0
    %9881 = vmatpush2.msra.mxu0 %v9617
    %9882 = vmatprep.subr.mxu0 0.0
    %9883 = vmatpush2.msra.mxu0 %v9616
    %9884 = vmatprep.mubr.f32.mxu0 %v9527
    %9885 = vmatmul.mubr.f32.gmra.mxu0 %v9524
    %v9886 = vpop.f32.mrf.mxu0
    %v9887 = vadd.f32 %v9817, %v9886
    %v9888 = vpop.f32.mrf.mxu0
    %9889 = vdwg.mxu0
    %9890 = vmatprep.subr.mxu0 0.0
    %9891 = vmatpush1.msra.mxu0 %v9647
    %9892 = vmatprep.subr.mxu0 0.0
    %9893 = vmatpush1.msra.mxu0 %v9646
    %9894 = vmatprep.subr.mxu0 0.0
    %9895 = vmatpush1.msra.mxu0 %v9645
    %9896 = vmatprep.subr.mxu0 0.0
    %9897 = vmatpush1.msra.mxu0 %v9644
    %9898 = vmatprep.subr.mxu0 0.0
    %9899 = vmatpush1.msra.mxu0 %v9643
    %9900 = vmatprep.subr.mxu0 0.0
    %9901 = vmatpush1.msra.mxu0 %v9642
    %9902 = vmatprep.subr.mxu0 0.0
    %9903 = vmatpush1.msra.mxu0 %v9641
    %9904 = vmatprep.subr.mxu0 0.0
    %9905 = vmatpush1.msra.mxu0 %v9640
    %9906 = vmatprep.subr.mxu0 0.0
    %9907 = vmatpush1.msra.mxu0 %v9639
    %9908 = vmatprep.subr.mxu0 0.0
    %9909 = vmatpush1.msra.mxu0 %v9638
    %9910 = vmatprep.subr.mxu0 0.0
    %9911 = vmatpush1.msra.mxu0 %v9637
    %9912 = vmatprep.subr.mxu0 0.0
    %9913 = vmatpush1.msra.mxu0 %v9636
    %9914 = vmatprep.subr.mxu0 0.0
    %9915 = vmatpush1.msra.mxu0 %v9635
    %9916 = vmatprep.subr.mxu0 0.0
    %9917 = vmatpush1.msra.mxu0 %v9634
    %9918 = vmatprep.subr.mxu0 0.0
    %9919 = vmatpush1.msra.mxu0 %v9633
    %9920 = vmatprep.subr.mxu0 0.0
    %9921 = vmatpush1.msra.mxu0 %v9632
    %9922 = vmatprep.subr.mxu0 0.0
    %9923 = vmatpush2.msra.mxu0 %v9663
    %9924 = vmatprep.subr.mxu0 0.0
    %9925 = vmatpush2.msra.mxu0 %v9662
    %9926 = vmatprep.subr.mxu0 0.0
    %9927 = vmatpush2.msra.mxu0 %v9661
    %9928 = vmatprep.subr.mxu0 0.0
    %9929 = vmatpush2.msra.mxu0 %v9660
    %9930 = vmatprep.subr.mxu0 0.0
    %9931 = vmatpush2.msra.mxu0 %v9659
    %9932 = vmatprep.subr.mxu0 0.0
    %9933 = vmatpush2.msra.mxu0 %v9658
    %9934 = vmatprep.subr.mxu0 0.0
    %9935 = vmatpush2.msra.mxu0 %v9657
    %9936 = vmatprep.subr.mxu0 0.0
    %9937 = vmatpush2.msra.mxu0 %v9656
    %9938 = vmatprep.subr.mxu0 0.0
    %9939 = vmatpush2.msra.mxu0 %v9655
    %9940 = vmatprep.subr.mxu0 0.0
    %9941 = vmatpush2.msra.mxu0 %v9654
    %9942 = vmatprep.subr.mxu0 0.0
    %9943 = vmatpush2.msra.mxu0 %v9653
    %9944 = vmatprep.subr.mxu0 0.0
    %9945 = vmatpush2.msra.mxu0 %v9652
    %9946 = vmatprep.subr.mxu0 0.0
    %9947 = vmatpush2.msra.mxu0 %v9651
    %9948 = vmatprep.subr.mxu0 0.0
    %9949 = vmatpush2.msra.mxu0 %v9650
    %9950 = vmatprep.subr.mxu0 0.0
    %9951 = vmatpush2.msra.mxu0 %v9649
    %9952 = vmatprep.subr.mxu0 0.0
    %9953 = vmatpush2.msra.mxu0 %v9648
    %9954 = vmatprep.mubr.f32.mxu0 %v9531
    %9955 = vmatmul.mubr.f32.gmra.mxu0 %v9510
    %v9956 = vpop.f32.mrf.mxu0
    %v9957 = vadd.f32 %v9887, %v9956
    %v9958 = vpop.f32.mrf.mxu0
    %9959 = vdwg.mxu0
    %9960 = vmatprep.subr.mxu0 0.0
    %9961 = vmatpush1.msra.mxu0 %v9679
    %9962 = vmatprep.subr.mxu0 0.0
    %9963 = vmatpush1.msra.mxu0 %v9678
    %9964 = vmatprep.subr.mxu0 0.0
    %9965 = vmatpush1.msra.mxu0 %v9677
    %9966 = vmatprep.subr.mxu0 0.0
    %9967 = vmatpush1.msra.mxu0 %v9676
    %9968 = vmatprep.subr.mxu0 0.0
    %9969 = vmatpush1.msra.mxu0 %v9675
    %9970 = vmatprep.subr.mxu0 0.0
    %9971 = vmatpush1.msra.mxu0 %v9674
    %9972 = vmatprep.subr.mxu0 0.0
    %9973 = vmatpush1.msra.mxu0 %v9673
    %9974 = vmatprep.subr.mxu0 0.0
    %9975 = vmatpush1.msra.mxu0 %v9672
    %9976 = vmatprep.subr.mxu0 0.0
    %9977 = vmatpush1.msra.mxu0 %v9671
    %9978 = vmatprep.subr.mxu0 0.0
    %9979 = vmatpush1.msra.mxu0 %v9670
    %9980 = vmatprep.subr.mxu0 0.0
    %9981 = vmatpush1.msra.mxu0 %v9669
    %9982 = vmatprep.subr.mxu0 0.0
    %9983 = vmatpush1.msra.mxu0 %v9668
    %9984 = vmatprep.subr.mxu0 0.0
    %9985 = vmatpush1.msra.mxu0 %v9667
    %9986 = vmatprep.subr.mxu0 0.0
    %9987 = vmatpush1.msra.mxu0 %v9666
    %9988 = vmatprep.subr.mxu0 0.0
    %9989 = vmatpush1.msra.mxu0 %v9665
    %9990 = vmatprep.subr.mxu0 0.0
    %9991 = vmatpush1.msra.mxu0 %v9664
    %9992 = vmatprep.subr.mxu0 0.0
    %9993 = vmatpush2.msra.mxu0 0.0
    %9994 = vmatprep.subr.mxu0 0.0
    %9995 = vmatpush2.msra.mxu0 0.0
    %9996 = vmatprep.subr.mxu0 0.0
    %9997 = vmatpush2.msra.mxu0 0.0
    %9998 = vmatprep.subr.mxu0 0.0
    %9999 = vmatpush2.msra.mxu0 0.0
    %10000 = vmatprep.subr.mxu0 0.0
    %10001 = vmatpush2.msra.mxu0 0.0
    %10002 = vmatprep.subr.mxu0 0.0
    %10003 = vmatpush2.msra.mxu0 0.0
    %10004 = vmatprep.subr.mxu0 0.0
    %10005 = vmatpush2.msra.mxu0 0.0
    %10006 = vmatprep.subr.mxu0 0.0
    %10007 = vmatpush2.msra.mxu0 0.0
    %10008 = vmatprep.subr.mxu0 0.0
    %10009 = vmatpush2.msra.mxu0 0.0
    %10010 = vmatprep.subr.mxu0 0.0
    %10011 = vmatpush2.msra.mxu0 0.0
    %10012 = vmatprep.subr.mxu0 0.0
    %10013 = vmatpush2.msra.mxu0 0.0
    %10014 = vmatprep.subr.mxu0 0.0
    %10015 = vmatpush2.msra.mxu0 0.0
    %10016 = vmatprep.subr.mxu0 0.0
    %10017 = vmatpush2.msra.mxu0 0.0
    %10018 = vmatprep.subr.mxu0 0.0
    %10019 = vmatpush2.msra.mxu0 0.0
    %10020 = vmatprep.subr.mxu0 0.0
    %10021 = vmatpush2.msra.mxu0 0.0
    %10022 = vmatprep.subr.mxu0 0.0
    %10023 = vmatpush2.msra.mxu0 0.0
    %10024 = vmatprep.mubr.f32.mxu0 0.0
    %10025 = vmatmul.mubr.f32.gmra.mxu0 %v9534
    %v10026 = vpop.f32.mrf.mxu0
    %v10027 = vadd.f32 %v9957, %v10026
    %v10028 = vpop.f32.mrf.mxu0
    %10029 = vdwg.mxu0
    %vm10030 = vcmp.lt.s32.totalorder %v7410, 3
    %v10031 = vsel %vm10030, 1, 0
    %vm10032 = vcmp.eq.s32.totalorder %v10031, 1
    %v10033 = vsel %vm10032, %v10027, 0.0
    %v10034 = vrot.slane %v10033, 4
    %v10035 = vadd.f32 %v10033, %v10034
    %v10036 = vrot.slane %v10035, 2
    %v10037 = vadd.f32 %v10035, %v10036
    %v10038 = vrot.slane %v10037, 1
    %v10039 = vadd.f32 %v10037, %v10038
    %v10040 = vmul.f32 %v10033, %v10033
    %v10041 = vrot.slane %v10040, 4
    %v10042 = vadd.f32 %v10040, %v10041
    %v10043 = vrot.slane %v10042, 2
    %v10044 = vadd.f32 %v10042, %v10043
    %v10045 = vrot.slane %v10044, 1
    %v10046 = vadd.f32 %v10044, %v10045
    %v10047 = vadd.f32 %v10039, 0.0
    %v10048 = vadd.f32 %v10046, 0.0
    %s10049 = scalar_lea.vmem [#allocation6], 32
    %v10050 = vld [vmem:[%s10049] sm:$0xff]
    %v10051 = vld [vmem:[%s10049 + $0x8] sm:$0xff]
    %v10052 = vld [vmem:[%s10049 + $0x10] sm:$0xff]
    %v10053 = vld [vmem:[%s10049 + $0x18] sm:$0xff]
    %v10056 = vrot.slane %v10050, 1
    %v10057 = vrot.slane %v10051, 1
    %v10058 = vsel %vm4460, %v10056, %v10057
    %v10060 = vrot.slane %v10050, 2
    %v10061 = vrot.slane %v10051, 2
    %v10062 = vsel %vm4542, %v10060, %v10061
    %v10065 = vrot.slane %v10052, 1
    %v10066 = vsel %vm4460, %v10057, %v10065
    %v10068 = vrot.slane %v10052, 2
    %v10069 = vsel %vm4542, %v10061, %v10068
    %v10072 = vrot.slane %v10053, 1
    %v10073 = vsel %vm4460, %v10065, %v10072
    %v10075 = vrot.slane %v10053, 2
    %v10076 = vsel %vm4542, %v10068, %v10075
    %10078 = vmatprep.subr.mxu0 0.0
    %10079 = vmatpush1.msra.mxu0 %v9551
    %10080 = vmatprep.subr.mxu0 0.0
    %10081 = vmatpush1.msra.mxu0 %v9550
    %10082 = vmatprep.subr.mxu0 0.0
    %10083 = vmatpush1.msra.mxu0 %v9549
    %10084 = vmatprep.subr.mxu0 0.0
    %10085 = vmatpush1.msra.mxu0 %v9548
    %10086 = vmatprep.subr.mxu0 0.0
    %10087 = vmatpush1.msra.mxu0 %v9547
    %10088 = vmatprep.subr.mxu0 0.0
    %10089 = vmatpush1.msra.mxu0 %v9546
    %10090 = vmatprep.subr.mxu0 0.0
    %10091 = vmatpush1.msra.mxu0 %v9545
    %10092 = vmatprep.subr.mxu0 0.0
    %10093 = vmatpush1.msra.mxu0 %v9544
    %10094 = vmatprep.subr.mxu0 0.0
    %10095 = vmatpush1.msra.mxu0 %v9543
    %10096 = vmatprep.subr.mxu0 0.0
    %10097 = vmatpush1.msra.mxu0 %v9542
    %10098 = vmatprep.subr.mxu0 0.0
    %10099 = vmatpush1.msra.mxu0 %v9541
    %10100 = vmatprep.subr.mxu0 0.0
    %10101 = vmatpush1.msra.mxu0 %v9540
    %10102 = vmatprep.subr.mxu0 0.0
    %10103 = vmatpush1.msra.mxu0 %v9539
    %10104 = vmatprep.subr.mxu0 0.0
    %10105 = vmatpush1.msra.mxu0 %v9538
    %10106 = vmatprep.subr.mxu0 0.0
    %10107 = vmatpush1.msra.mxu0 %v9537
    %10108 = vmatprep.subr.mxu0 0.0
    %10109 = vmatpush1.msra.mxu0 %v9536
    %10110 = vmatprep.subr.mxu0 0.0
    %10111 = vmatpush2.msra.mxu0 %v9567
    %10112 = vmatprep.subr.mxu0 0.0
    %10113 = vmatpush2.msra.mxu0 %v9566
    %10114 = vmatprep.subr.mxu0 0.0
    %10115 = vmatpush2.msra.mxu0 %v9565
    %10116 = vmatprep.subr.mxu0 0.0
    %10117 = vmatpush2.msra.mxu0 %v9564
    %10118 = vmatprep.subr.mxu0 0.0
    %10119 = vmatpush2.msra.mxu0 %v9563
    %10120 = vmatprep.subr.mxu0 0.0
    %10121 = vmatpush2.msra.mxu0 %v9562
    %10122 = vmatprep.subr.mxu0 0.0
    %10123 = vmatpush2.msra.mxu0 %v9561
    %10124 = vmatprep.subr.mxu0 0.0
    %10125 = vmatpush2.msra.mxu0 %v9560
    %10126 = vmatprep.subr.mxu0 0.0
    %10127 = vmatpush2.msra.mxu0 %v9559
    %10128 = vmatprep.subr.mxu0 0.0
    %10129 = vmatpush2.msra.mxu0 %v9558
    %10130 = vmatprep.subr.mxu0 0.0
    %10131 = vmatpush2.msra.mxu0 %v9557
    %10132 = vmatprep.subr.mxu0 0.0
    %10133 = vmatpush2.msra.mxu0 %v9556
    %10134 = vmatprep.subr.mxu0 0.0
    %10135 = vmatpush2.msra.mxu0 %v9555
    %10136 = vmatprep.subr.mxu0 0.0
    %10137 = vmatpush2.msra.mxu0 %v9554
    %10138 = vmatprep.subr.mxu0 0.0
    %10139 = vmatpush2.msra.mxu0 %v9553
    %10140 = vmatprep.subr.mxu0 0.0
    %10141 = vmatpush2.msra.mxu0 %v9552
    %10142 = vmatprep.mubr.f32.mxu0 %v10058
    %10143 = vmatmul.mubr.f32.gmra.mxu0 %v10050
    %v10144 = vpop.f32.mrf.mxu0
    %v10145 = vadd.f32 0.0, %v10144
    %v10146 = vpop.f32.mrf.mxu0
    %10147 = vdwg.mxu0
    %10148 = vmatprep.subr.mxu0 0.0
    %10149 = vmatpush1.msra.mxu0 %v9583
    %10150 = vmatprep.subr.mxu0 0.0
    %10151 = vmatpush1.msra.mxu0 %v9582
    %10152 = vmatprep.subr.mxu0 0.0
    %10153 = vmatpush1.msra.mxu0 %v9581
    %10154 = vmatprep.subr.mxu0 0.0
    %10155 = vmatpush1.msra.mxu0 %v9580
    %10156 = vmatprep.subr.mxu0 0.0
    %10157 = vmatpush1.msra.mxu0 %v9579
    %10158 = vmatprep.subr.mxu0 0.0
    %10159 = vmatpush1.msra.mxu0 %v9578
    %10160 = vmatprep.subr.mxu0 0.0
    %10161 = vmatpush1.msra.mxu0 %v9577
    %10162 = vmatprep.subr.mxu0 0.0
    %10163 = vmatpush1.msra.mxu0 %v9576
    %10164 = vmatprep.subr.mxu0 0.0
    %10165 = vmatpush1.msra.mxu0 %v9575
    %10166 = vmatprep.subr.mxu0 0.0
    %10167 = vmatpush1.msra.mxu0 %v9574
    %10168 = vmatprep.subr.mxu0 0.0
    %10169 = vmatpush1.msra.mxu0 %v9573
    %10170 = vmatprep.subr.mxu0 0.0
    %10171 = vmatpush1.msra.mxu0 %v9572
    %10172 = vmatprep.subr.mxu0 0.0
    %10173 = vmatpush1.msra.mxu0 %v9571
    %10174 = vmatprep.subr.mxu0 0.0
    %10175 = vmatpush1.msra.mxu0 %v9570
    %10176 = vmatprep.subr.mxu0 0.0
    %10177 = vmatpush1.msra.mxu0 %v9569
    %10178 = vmatprep.subr.mxu0 0.0
    %10179 = vmatpush1.msra.mxu0 %v9568
    %10180 = vmatprep.subr.mxu0 0.0
    %10181 = vmatpush2.msra.mxu0 %v9599
    %10182 = vmatprep.subr.mxu0 0.0
    %10183 = vmatpush2.msra.mxu0 %v9598
    %10184 = vmatprep.subr.mxu0 0.0
    %10185 = vmatpush2.msra.mxu0 %v9597
    %10186 = vmatprep.subr.mxu0 0.0
    %10187 = vmatpush2.msra.mxu0 %v9596
    %10188 = vmatprep.subr.mxu0 0.0
    %10189 = vmatpush2.msra.mxu0 %v9595
    %10190 = vmatprep.subr.mxu0 0.0
    %10191 = vmatpush2.msra.mxu0 %v9594
    %10192 = vmatprep.subr.mxu0 0.0
    %10193 = vmatpush2.msra.mxu0 %v9593
    %10194 = vmatprep.subr.mxu0 0.0
    %10195 = vmatpush2.msra.mxu0 %v9592
    %10196 = vmatprep.subr.mxu0 0.0
    %10197 = vmatpush2.msra.mxu0 %v9591
    %10198 = vmatprep.subr.mxu0 0.0
    %10199 = vmatpush2.msra.mxu0 %v9590
    %10200 = vmatprep.subr.mxu0 0.0
    %10201 = vmatpush2.msra.mxu0 %v9589
    %10202 = vmatprep.subr.mxu0 0.0
    %10203 = vmatpush2.msra.mxu0 %v9588
    %10204 = vmatprep.subr.mxu0 0.0
    %10205 = vmatpush2.msra.mxu0 %v9587
    %10206 = vmatprep.subr.mxu0 0.0
    %10207 = vmatpush2.msra.mxu0 %v9586
    %10208 = vmatprep.subr.mxu0 0.0
    %10209 = vmatpush2.msra.mxu0 %v9585
    %10210 = vmatprep.subr.mxu0 0.0
    %10211 = vmatpush2.msra.mxu0 %v9584
    %10212 = vmatprep.mubr.f32.mxu0 %v10051
    %10213 = vmatmul.mubr.f32.gmra.mxu0 %v10062
    %v10214 = vpop.f32.mrf.mxu0
    %v10215 = vadd.f32 %v10145, %v10214
    %v10216 = vpop.f32.mrf.mxu0
    %10217 = vdwg.mxu0
    %10218 = vmatprep.subr.mxu0 0.0
    %10219 = vmatpush1.msra.mxu0 %v9615
    %10220 = vmatprep.subr.mxu0 0.0
    %10221 = vmatpush1.msra.mxu0 %v9614
    %10222 = vmatprep.subr.mxu0 0.0
    %10223 = vmatpush1.msra.mxu0 %v9613
    %10224 = vmatprep.subr.mxu0 0.0
    %10225 = vmatpush1.msra.mxu0 %v9612
    %10226 = vmatprep.subr.mxu0 0.0
    %10227 = vmatpush1.msra.mxu0 %v9611
    %10228 = vmatprep.subr.mxu0 0.0
    %10229 = vmatpush1.msra.mxu0 %v9610
    %10230 = vmatprep.subr.mxu0 0.0
    %10231 = vmatpush1.msra.mxu0 %v9609
    %10232 = vmatprep.subr.mxu0 0.0
    %10233 = vmatpush1.msra.mxu0 %v9608
    %10234 = vmatprep.subr.mxu0 0.0
    %10235 = vmatpush1.msra.mxu0 %v9607
    %10236 = vmatprep.subr.mxu0 0.0
    %10237 = vmatpush1.msra.mxu0 %v9606
    %10238 = vmatprep.subr.mxu0 0.0
    %10239 = vmatpush1.msra.mxu0 %v9605
    %10240 = vmatprep.subr.mxu0 0.0
    %10241 = vmatpush1.msra.mxu0 %v9604
    %10242 = vmatprep.subr.mxu0 0.0
    %10243 = vmatpush1.msra.mxu0 %v9603
    %10244 = vmatprep.subr.mxu0 0.0
    %10245 = vmatpush1.msra.mxu0 %v9602
    %10246 = vmatprep.subr.mxu0 0.0
    %10247 = vmatpush1.msra.mxu0 %v9601
    %10248 = vmatprep.subr.mxu0 0.0
    %10249 = vmatpush1.msra.mxu0 %v9600
    %10250 = vmatprep.subr.mxu0 0.0
    %10251 = vmatpush2.msra.mxu0 %v9631
    %10252 = vmatprep.subr.mxu0 0.0
    %10253 = vmatpush2.msra.mxu0 %v9630
    %10254 = vmatprep.subr.mxu0 0.0
    %10255 = vmatpush2.msra.mxu0 %v9629
    %10256 = vmatprep.subr.mxu0 0.0
    %10257 = vmatpush2.msra.mxu0 %v9628
    %10258 = vmatprep.subr.mxu0 0.0
    %10259 = vmatpush2.msra.mxu0 %v9627
    %10260 = vmatprep.subr.mxu0 0.0
    %10261 = vmatpush2.msra.mxu0 %v9626
    %10262 = vmatprep.subr.mxu0 0.0
    %10263 = vmatpush2.msra.mxu0 %v9625
    %10264 = vmatprep.subr.mxu0 0.0
    %10265 = vmatpush2.msra.mxu0 %v9624
    %10266 = vmatprep.subr.mxu0 0.0
    %10267 = vmatpush2.msra.mxu0 %v9623
    %10268 = vmatprep.subr.mxu0 0.0
    %10269 = vmatpush2.msra.mxu0 %v9622
    %10270 = vmatprep.subr.mxu0 0.0
    %10271 = vmatpush2.msra.mxu0 %v9621
    %10272 = vmatprep.subr.mxu0 0.0
    %10273 = vmatpush2.msra.mxu0 %v9620
    %10274 = vmatprep.subr.mxu0 0.0
    %10275 = vmatpush2.msra.mxu0 %v9619
    %10276 = vmatprep.subr.mxu0 0.0
    %10277 = vmatpush2.msra.mxu0 %v9618
    %10278 = vmatprep.subr.mxu0 0.0
    %10279 = vmatpush2.msra.mxu0 %v9617
    %10280 = vmatprep.subr.mxu0 0.0
    %10281 = vmatpush2.msra.mxu0 %v9616
    %10282 = vmatprep.mubr.f32.mxu0 %v10069
    %10283 = vmatmul.mubr.f32.gmra.mxu0 %v10066
    %v10284 = vpop.f32.mrf.mxu0
    %v10285 = vadd.f32 %v10215, %v10284
    %v10286 = vpop.f32.mrf.mxu0
    %10287 = vdwg.mxu0
    %10288 = vmatprep.subr.mxu0 0.0
    %10289 = vmatpush1.msra.mxu0 %v9647
    %10290 = vmatprep.subr.mxu0 0.0
    %10291 = vmatpush1.msra.mxu0 %v9646
    %10292 = vmatprep.subr.mxu0 0.0
    %10293 = vmatpush1.msra.mxu0 %v9645
    %10294 = vmatprep.subr.mxu0 0.0
    %10295 = vmatpush1.msra.mxu0 %v9644
    %10296 = vmatprep.subr.mxu0 0.0
    %10297 = vmatpush1.msra.mxu0 %v9643
    %10298 = vmatprep.subr.mxu0 0.0
    %10299 = vmatpush1.msra.mxu0 %v9642
    %10300 = vmatprep.subr.mxu0 0.0
    %10301 = vmatpush1.msra.mxu0 %v9641
    %10302 = vmatprep.subr.mxu0 0.0
    %10303 = vmatpush1.msra.mxu0 %v9640
    %10304 = vmatprep.subr.mxu0 0.0
    %10305 = vmatpush1.msra.mxu0 %v9639
    %10306 = vmatprep.subr.mxu0 0.0
    %10307 = vmatpush1.msra.mxu0 %v9638
    %10308 = vmatprep.subr.mxu0 0.0
    %10309 = vmatpush1.msra.mxu0 %v9637
    %10310 = vmatprep.subr.mxu0 0.0
    %10311 = vmatpush1.msra.mxu0 %v9636
    %10312 = vmatprep.subr.mxu0 0.0
    %10313 = vmatpush1.msra.mxu0 %v9635
    %10314 = vmatprep.subr.mxu0 0.0
    %10315 = vmatpush1.msra.mxu0 %v9634
    %10316 = vmatprep.subr.mxu0 0.0
    %10317 = vmatpush1.msra.mxu0 %v9633
    %10318 = vmatprep.subr.mxu0 0.0
    %10319 = vmatpush1.msra.mxu0 %v9632
    %10320 = vmatprep.subr.mxu0 0.0
    %10321 = vmatpush2.msra.mxu0 %v9663
    %10322 = vmatprep.subr.mxu0 0.0
    %10323 = vmatpush2.msra.mxu0 %v9662
    %10324 = vmatprep.subr.mxu0 0.0
    %10325 = vmatpush2.msra.mxu0 %v9661
    %10326 = vmatprep.subr.mxu0 0.0
    %10327 = vmatpush2.msra.mxu0 %v9660
    %10328 = vmatprep.subr.mxu0 0.0
    %10329 = vmatpush2.msra.mxu0 %v9659
    %10330 = vmatprep.subr.mxu0 0.0
    %10331 = vmatpush2.msra.mxu0 %v9658
    %10332 = vmatprep.subr.mxu0 0.0
    %10333 = vmatpush2.msra.mxu0 %v9657
    %10334 = vmatprep.subr.mxu0 0.0
    %10335 = vmatpush2.msra.mxu0 %v9656
    %10336 = vmatprep.subr.mxu0 0.0
    %10337 = vmatpush2.msra.mxu0 %v9655
    %10338 = vmatprep.subr.mxu0 0.0
    %10339 = vmatpush2.msra.mxu0 %v9654
    %10340 = vmatprep.subr.mxu0 0.0
    %10341 = vmatpush2.msra.mxu0 %v9653
    %10342 = vmatprep.subr.mxu0 0.0
    %10343 = vmatpush2.msra.mxu0 %v9652
    %10344 = vmatprep.subr.mxu0 0.0
    %10345 = vmatpush2.msra.mxu0 %v9651
    %10346 = vmatprep.subr.mxu0 0.0
    %10347 = vmatpush2.msra.mxu0 %v9650
    %10348 = vmatprep.subr.mxu0 0.0
    %10349 = vmatpush2.msra.mxu0 %v9649
    %10350 = vmatprep.subr.mxu0 0.0
    %10351 = vmatpush2.msra.mxu0 %v9648
    %10352 = vmatprep.mubr.f32.mxu0 %v10073
    %10353 = vmatmul.mubr.f32.gmra.mxu0 %v10052
    %v10354 = vpop.f32.mrf.mxu0
    %v10355 = vadd.f32 %v10285, %v10354
    %v10356 = vpop.f32.mrf.mxu0
    %10357 = vdwg.mxu0
    %10358 = vmatprep.subr.mxu0 0.0
    %10359 = vmatpush1.msra.mxu0 %v9679
    %10360 = vmatprep.subr.mxu0 0.0
    %10361 = vmatpush1.msra.mxu0 %v9678
    %10362 = vmatprep.subr.mxu0 0.0
    %10363 = vmatpush1.msra.mxu0 %v9677
    %10364 = vmatprep.subr.mxu0 0.0
    %10365 = vmatpush1.msra.mxu0 %v9676
    %10366 = vmatprep.subr.mxu0 0.0
    %10367 = vmatpush1.msra.mxu0 %v9675
    %10368 = vmatprep.subr.mxu0 0.0
    %10369 = vmatpush1.msra.mxu0 %v9674
    %10370 = vmatprep.subr.mxu0 0.0
    %10371 = vmatpush1.msra.mxu0 %v9673
    %10372 = vmatprep.subr.mxu0 0.0
    %10373 = vmatpush1.msra.mxu0 %v9672
    %10374 = vmatprep.subr.mxu0 0.0
    %10375 = vmatpush1.msra.mxu0 %v9671
    %10376 = vmatprep.subr.mxu0 0.0
    %10377 = vmatpush1.msra.mxu0 %v9670
    %10378 = vmatprep.subr.mxu0 0.0
    %10379 = vmatpush1.msra.mxu0 %v9669
    %10380 = vmatprep.subr.mxu0 0.0
    %10381 = vmatpush1.msra.mxu0 %v9668
    %10382 = vmatprep.subr.mxu0 0.0
    %10383 = vmatpush1.msra.mxu0 %v9667
    %10384 = vmatprep.subr.mxu0 0.0
    %10385 = vmatpush1.msra.mxu0 %v9666
    %10386 = vmatprep.subr.mxu0 0.0
    %10387 = vmatpush1.msra.mxu0 %v9665
    %10388 = vmatprep.subr.mxu0 0.0
    %10389 = vmatpush1.msra.mxu0 %v9664
    %10390 = vmatprep.subr.mxu0 0.0
    %10391 = vmatpush2.msra.mxu0 0.0
    %10392 = vmatprep.subr.mxu0 0.0
    %10393 = vmatpush2.msra.mxu0 0.0
    %10394 = vmatprep.subr.mxu0 0.0
    %10395 = vmatpush2.msra.mxu0 0.0
    %10396 = vmatprep.subr.mxu0 0.0
    %10397 = vmatpush2.msra.mxu0 0.0
    %10398 = vmatprep.subr.mxu0 0.0
    %10399 = vmatpush2.msra.mxu0 0.0
    %10400 = vmatprep.subr.mxu0 0.0
    %10401 = vmatpush2.msra.mxu0 0.0
    %10402 = vmatprep.subr.mxu0 0.0
    %10403 = vmatpush2.msra.mxu0 0.0
    %10404 = vmatprep.subr.mxu0 0.0
    %10405 = vmatpush2.msra.mxu0 0.0
    %10406 = vmatprep.subr.mxu0 0.0
    %10407 = vmatpush2.msra.mxu0 0.0
    %10408 = vmatprep.subr.mxu0 0.0
    %10409 = vmatpush2.msra.mxu0 0.0
    %10410 = vmatprep.subr.mxu0 0.0
    %10411 = vmatpush2.msra.mxu0 0.0
    %10412 = vmatprep.subr.mxu0 0.0
    %10413 = vmatpush2.msra.mxu0 0.0
    %10414 = vmatprep.subr.mxu0 0.0
    %10415 = vmatpush2.msra.mxu0 0.0
    %10416 = vmatprep.subr.mxu0 0.0
    %10417 = vmatpush2.msra.mxu0 0.0
    %10418 = vmatprep.subr.mxu0 0.0
    %10419 = vmatpush2.msra.mxu0 0.0
    %10420 = vmatprep.subr.mxu0 0.0
    %10421 = vmatpush2.msra.mxu0 0.0
    %10422 = vmatprep.mubr.f32.mxu0 0.0
    %10423 = vmatmul.mubr.f32.gmra.mxu0 %v10076
    %v10424 = vpop.f32.mrf.mxu0
    %v10425 = vadd.f32 %v10355, %v10424
    %v10426 = vpop.f32.mrf.mxu0
    %10427 = vdwg.mxu0
    %v10428 = vsel %vm10032, %v10425, 0.0
    %v10429 = vrot.slane %v10428, 4
    %v10430 = vadd.f32 %v10428, %v10429
    %v10431 = vrot.slane %v10430, 2
    %v10432 = vadd.f32 %v10430, %v10431
    %v10433 = vrot.slane %v10432, 1
    %v10434 = vadd.f32 %v10432, %v10433
    %v10435 = vmul.f32 %v10428, %v10428
    %v10436 = vrot.slane %v10435, 4
    %v10437 = vadd.f32 %v10435, %v10436
    %v10438 = vrot.slane %v10437, 2
    %v10439 = vadd.f32 %v10437, %v10438
    %v10440 = vrot.slane %v10439, 1
    %v10441 = vadd.f32 %v10439, %v10440
    %v10442 = vadd.f32 %v10047, %v10434
    %v10443 = vadd.f32 %v10048, %v10441
    %v10444 = vrcp.pop 6.0
    %v10445 = vmul.f32 %v10442, %v10444
    %v10446 = vmul.f32 %v10443, %v10444
    %v10447 = vmul.f32 %v10445, %v10445
    %v10448 = vsub.f32 %v10446, %v10447
    %v10449 = vld [vmem:[#allocation15] sm:$0x1]
    %v10450 = vadd.f32 %v10448, 1e-05
    %v10451 = vrsqrt.pop %v10450
    %v10452 = vmul.f32 %v10449, %v10451
    %v10453 = vld [vmem:[#allocation16] sm:$0x1]
    %v10454 = vmul.f32 %v10445, %v10452
    %v10455 = vsub.f32 %v10453, %v10454
    %v10457 = vlaneseq
    %v10458 = vshrl.u32 %v10457, 7
    %v10459 = vsub.s32 0, %v10458
    %v10460 = vrot.slane %v10452, %v10459
    %v10462 = vmul.f32 %v10027, %v10460
    %v10464 = vlaneseq
    %v10465 = vshrl.u32 %v10464, 7
    %v10466 = vsub.s32 0, %v10465
    %v10467 = vrot.slane %v10455, %v10466
    %v10469 = vadd.f32 %v10462, %v10467
    %v10470 = vmax.f32 %v10469, 0.0
    %v10471 = vmul.f32 %v10425, %v10460
    %v10472 = vadd.f32 %v10471, %v10467
    %v10473 = vmax.f32 %v10472, 0.0
    %10474 = vst [vmem:[%s12] sm:$0x7] %v10470
    %s10475 = scalar_lea.vmem %s12, 4
    %10476 = vst [vmem:[%s10475] sm:$0x7] %v10473
    // Predicated region
    $region74: #{cnn_forward.1} parent=1 // pred_check
      _
    $region75: #{cnn_forward.1} parent=1 // pred_check_branch
      %10478 = sbr.rel (0) target = $region77
    $region76: #{cnn_forward.1} parent=1 // pred_region
      _
    $region77: #{cnn_forward.1} parent=1 // pred_fallthru
      _
    // Predicated region
    $region78: #{cnn_forward.1} parent=1 // pred_check
      _
    $region79: #{cnn_forward.1} parent=1 // pred_check_branch
      %10480 = sbr.rel (0) target = $region81
    $region80: #{cnn_forward.1} parent=1 // pred_region
      _
    $region81: #{cnn_forward.1} parent=1 // pred_fallthru
      _
    %10481 = vsyncpa [#allocation9], 1
    %10482 = vsyncpa [#allocation11], 1
    %10483 = vsyncpa [#allocation14], 1
    %10484 = vsyncpa [#allocation17], 1

</llo_original>
